<compile_context>
chip_gen: v5e
topology: v5e:2x2
jax: 0.10.0
libtpu: 0.0.40
codegen_flags: <defaults>
</compile_context>

<pallas_src>
import jax
import jax.numpy as jnp
from jax.experimental import pallas as pl
from jax.experimental.pallas import tpu as pltpu


def _round_up(x, m):
    return (x + m - 1) // m * m


# ---------------------------------------------------------------------------
# Pallas kernel: fused chain   h <- relu(h @ W_l + b_l)   (BN folded into W,b)
# ---------------------------------------------------------------------------
def _make_chain_kernel(num_layers):
    def kernel(*refs):
        a_ref = refs[0]
        w_refs = refs[1:1 + num_layers]
        b_refs = refs[1 + num_layers:1 + 2 * num_layers]
        o_ref = refs[1 + 2 * num_layers]

        h = a_ref[...]                                   # bf16 (tm, Kp)
        for l in range(num_layers):                      # unrolled at trace time
            acc = jnp.dot(h, w_refs[l][...],
                          preferred_element_type=jnp.float32)   # MXU, f32 acc
            # VPU epilogue: fused bias (f32) + ReLU, back to bf16 for next MXU pass.
            h = jnp.maximum(acc + b_refs[l][...], 0.0).astype(jnp.bfloat16)
        o_ref[...] = h
    return kernel


def _pick_m_tiling(M):
    """Return (tm, Mp): <=2 grid steps; 2 balanced steps when M is large enough
    so the 'parallel' axis can shard across v7x's 2 TensorCores."""
    if M < 32:
        tm = _round_up(M, 8)          # single step, block == full (padded) array
        return tm, tm
    tm = _round_up(-(-M // 2), 16)    # ceil(M/2), rounded to bf16 sublane pack
    return tm, 2 * tm


def conv_chain(a, ws, bs):
    """out = relu(...relu(relu(a@W0 + b0)@W1 + b1)...).

    a : (M, K) bf16 im2col patches of the group's first (spatial) conv.
    ws[l] : (Kp_l, Np_l) bf16, BN scale folded in, padded to 128 multiples.
    bs[l] : (1, Np_l) f32 fused bias (conv bias + BN shift), zero in padding.
    Returns (Mp, Np_last) bf16 (padded rows/cols are zero / discarded later).
    """
    M, K = a.shape
    Kp = ws[0].shape[0]
    assert Kp >= K
    tm, Mp = _pick_m_tiling(M)
    if (Mp, Kp) != (M, K):
        a = jnp.pad(a, ((0, Mp - M), (0, Kp - K)))

    L = len(ws)
    Np_last = ws[-1].shape[1]

    in_specs = [pl.BlockSpec((tm, Kp), lambda i: (i, 0))]
    # Constant block index => weights/biases DMA'd once, resident across steps.
    in_specs += [pl.BlockSpec(w.shape, lambda i: (0, 0)) for w in ws]
    in_specs += [pl.BlockSpec(b.shape, lambda i: (0, 0)) for b in bs]

    return pl.pallas_call(
        _make_chain_kernel(L),
        out_shape=jax.ShapeDtypeStruct((Mp, Np_last), jnp.bfloat16),
        grid_spec=pltpu.PrefetchScalarGridSpec(
            num_scalar_prefetch=0,
            grid=(Mp // tm,),
            in_specs=in_specs,
            out_specs=pl.BlockSpec((tm, Np_last), lambda i: (i, 0)),
        ),
        compiler_params=pltpu.CompilerParams(
            dimension_semantics=("parallel",)),
    )(a, *ws, *bs)


# ---------------------------------------------------------------------------
# JAX glue: im2col, pooling, network definition
# ---------------------------------------------------------------------------
def im2col(x, k, stride, pad):
    """x: NHWC -> (N*Ho*Wo, k*k*C) patches (K ordered as kh, kw, C)."""
    x = jnp.pad(x, ((0, 0), (pad, pad), (pad, pad), (0, 0)))
    N, H, W, C = x.shape
    Ho = (H - k) // stride + 1
    Wo = (W - k) // stride + 1
    cols = []
    for i in range(k):
        for j in range(k):
            cols.append(x[:, i:i + stride * Ho:stride, j:j + stride * Wo:stride, :])
    patches = jnp.concatenate(cols, axis=-1)            # (N, Ho, Wo, k*k*C)
    return patches.reshape(N * Ho * Wo, k * k * C), (N, Ho, Wo)


def maxpool_3x3(x):
    # MaxPool2d(3, 3): kernel == stride, padding 0, floor mode.
    N, H, W, C = x.shape
    Ho, Wo = (H - 3) // 3 + 1, (W - 3) // 3 + 1
    x = x[:, :Ho * 3, :Wo * 3, :].reshape(N, Ho, 3, Wo, 3, C)
    return x.max(axis=(2, 4))


def avgpool_2x2(x):
    N, H, W, C = x.shape
    Ho, Wo = H // 2, W // 2
    x = x[:, :Ho * 2, :Wo * 2, :].astype(jnp.float32)
    return x.reshape(N, Ho, 2, Wo, 2, C).mean(axis=(2, 4))


# (Cin, Cout, kernel, stride, pad) for every conv in nn.Sequential order.
CONV_CFG = [
    (3, 192, 5, 1, 1),
    (192, 160, 1, 1, 0),
    (160, 96, 1, 1, 0),
    (96, 192, 5, 1, 1),
    (192, 192, 1, 1, 0),
    (192, 192, 1, 1, 0),
    (192, 192, 3, 1, 1),
    (192, 192, 1, 1, 0),
    (192, 192, 1, 1, 0),
    (192, 10, 1, 1, 0),
]
# Each group = one fused Pallas kernel (spatial conv + trailing 1x1 chain),
# followed by the pooling op that sits after it in the nn.Sequential.
GROUPS = [
    ((0, 1, 2), "max"),       # + Dropout (identity in eval)
    ((3, 4, 5), "max"),       # + Dropout (identity in eval)
    ((6, 7, 8, 9), "avg"),    # + Softmax afterwards
]


def init_params(key):
    params = []
    for (cin, cout, k, _s, _p) in CONV_CFG:
        key, k1, k2, k3, k4, k5, k6 = jax.random.split(key, 7)
        fan_in = cin * k * k
        params.append(dict(
            w=jax.random.normal(k1, (k, k, cin, cout), jnp.float32)
              / jnp.sqrt(jnp.float32(fan_in)),
            conv_b=0.01 * jax.random.normal(k2, (cout,), jnp.float32),
            gamma=1.0 + 0.1 * jax.random.normal(k3, (cout,), jnp.float32),
            beta=0.1 * jax.random.normal(k4, (cout,), jnp.float32),
            mean=0.1 * jax.random.normal(k5, (cout,), jnp.float32),
            var=1.0 + 0.1 * jax.random.uniform(k6, (cout,), jnp.float32),
        ))
    return params


def prepare_params(params):
    """One-time prep: fold eval-mode BN into weights/bias, pad to 128-multiples,
    cast weights to bf16.  Runs once; the jitted forward only consumes these."""
    eps = 1e-5
    prepped = []
    for (cin, cout, k, _s, _p), p in zip(CONV_CFG, params):
        scale = p["gamma"] / jnp.sqrt(p["var"] + eps)                # (cout,)
        bias = p["beta"] + (p["conv_b"] - p["mean"]) * scale         # (cout,)
        w2 = p["w"].reshape(k * k * cin, cout) * scale[None, :]      # fold BN
        K, N = w2.shape
        Kp, Np = _round_up(K, 128), _round_up(N, 128)
        w_p = jnp.pad(w2, ((0, Kp - K), (0, Np - N))).astype(jnp.bfloat16)
        b_p = jnp.pad(bias[None, :], ((0, 0), (0, Np - N))).astype(jnp.float32)
        prepped.append(dict(w=w_p, b=b_p))
    return prepped


def nin_forward(x_nchw, prepped):
    x = jnp.transpose(x_nchw, (0, 2, 3, 1)).astype(jnp.bfloat16)     # NCHW->NHWC
    for layer_ids, pool in GROUPS:
        _cin, _cout, k, s, p = CONV_CFG[layer_ids[0]]
        a, (N, Ho, Wo) = im2col(x, k, s, p)
        ws = [prepped[l]["w"] for l in layer_ids]
        bs = [prepped[l]["b"] for l in layer_ids]
        out = conv_chain(a, ws, bs)                                  # (Mp, Np) bf16
        cout_last = CONV_CFG[layer_ids[-1]][1]
        x = out[:N * Ho * Wo, :cout_last].reshape(N, Ho, Wo, cout_last)
        if pool == "max":
            x = maxpool_3x3(x)
            # Dropout(p=0.5) is identity in inference mode.
        else:
            x = avgpool_2x2(x)
    x = jax.nn.softmax(x.astype(jnp.float32), axis=-1)   # Softmax over channels
    return x.reshape(x.shape[0], -1)                     # x.view(x.size(0), -1)


if __name__ == "__main__":
    key = jax.random.PRNGKey(0)
    key, pkey, xkey = jax.random.split(key, 3)
    params = init_params(pkey)
    prepped = prepare_params(params)
    # CIFAR-like input implied by the architecture: (N=2, C=3, H=32, W=32)
    x = jax.random.normal(xkey, (2, 3, 32, 32), jnp.float32)

    fwd = jax.jit(nin_forward)
    out = jax.block_until_ready(fwd(x, prepped))

    assert out.shape == (2, 10), out.shape
    assert bool(jnp.all(jnp.isfinite(out)))
    # Softmax rows sum to 1
    assert bool(jnp.allclose(out.sum(axis=-1), 1.0, atol=1e-5))
    print("KERNEL_OK")
</pallas_src>

<mosaic_0001>
module attributes {stable_mosaic.version = 11 : i64} {
  func.func @kernel(%arg0: i32, %arg1: memref<912x128xbf16, #tpu.memory_space<vmem>>, %arg2: memref<128x256xbf16, #tpu.memory_space<vmem>>, %arg3: memref<256x256xbf16, #tpu.memory_space<vmem>>, %arg4: memref<256x128xbf16, #tpu.memory_space<vmem>>, %arg5: memref<1x256xf32, #tpu.memory_space<vmem>>, %arg6: memref<1x256xf32, #tpu.memory_space<vmem>>, %arg7: memref<1x128xf32, #tpu.memory_space<vmem>>, %arg8: memref<912x128xbf16, #tpu.memory_space<vmem>>) attributes {dimension_semantics = [#tpu.dimension_semantics<parallel>], iteration_bounds = array<i64: 2>, scalar_prefetch = 0 : i64, scratch_operands = 0 : i64, tpu.core_type = #tpu.core_type<tc>, window_params = [{transform_indices = @transform_0, window_bounds = array<i64: 912, 128>}, {pipeline_mode = #tpu.pipeline_mode<synchronous>, transform_indices = @transform_1, window_bounds = array<i64: 128, 256>}, {pipeline_mode = #tpu.pipeline_mode<synchronous>, transform_indices = @transform_2, window_bounds = array<i64: 256, 256>}, {pipeline_mode = #tpu.pipeline_mode<synchronous>, transform_indices = @transform_3, window_bounds = array<i64: 256, 128>}, {pipeline_mode = #tpu.pipeline_mode<synchronous>, transform_indices = @transform_4, window_bounds = array<i64: 1, 256>}, {pipeline_mode = #tpu.pipeline_mode<synchronous>, transform_indices = @transform_5, window_bounds = array<i64: 1, 256>}, {pipeline_mode = #tpu.pipeline_mode<synchronous>, transform_indices = @transform_6, window_bounds = array<i64: 1, 128>}, {transform_indices = @transform_7, window_bounds = array<i64: 912, 128>}]} {
    %c0 = arith.constant 0 : index
    %c0_0 = arith.constant 0 : index
    %0 = vector.load %arg1[%c0, %c0_0] : memref<912x128xbf16, #tpu.memory_space<vmem>>, vector<912x128xbf16>
    %c0_1 = arith.constant 0 : index
    %c0_2 = arith.constant 0 : index
    %1 = vector.load %arg2[%c0_1, %c0_2] : memref<128x256xbf16, #tpu.memory_space<vmem>>, vector<128x256xbf16>
    %cst = arith.constant dense<0.000000e+00> : vector<912x256xf32>
    %2 = tpu.matmul %0, %1, %cst {dimension_numbers = #tpu.dot_dimension_numbers<[1], [0], [0], [1], [0, 0, 1, 1], [], []>} : vector<912x128xbf16>, vector<128x256xbf16>, vector<912x256xf32> -> vector<912x256xf32>
    %c0_3 = arith.constant 0 : index
    %c0_4 = arith.constant 0 : index
    %3 = vector.load %arg5[%c0_3, %c0_4] : memref<1x256xf32, #tpu.memory_space<vmem>>, vector<1x256xf32>
    %4 = vector.broadcast %3 : vector<1x256xf32> to vector<912x256xf32>
    %5 = arith.addf %2, %4 : vector<912x256xf32>
    %cst_5 = arith.constant 0.000000e+00 : f32
    %6 = vector.broadcast %cst_5 : f32 to vector<912x256xf32>
    %7 = arith.maximumf %5, %6 : vector<912x256xf32>
    %8 = arith.truncf %7 : vector<912x256xf32> to vector<912x256xbf16>
    %c0_6 = arith.constant 0 : index
    %c0_7 = arith.constant 0 : index
    %9 = vector.load %arg3[%c0_6, %c0_7] : memref<256x256xbf16, #tpu.memory_space<vmem>>, vector<256x256xbf16>
    %cst_8 = arith.constant dense<0.000000e+00> : vector<912x256xf32>
    %10 = tpu.matmul %8, %9, %cst_8 {dimension_numbers = #tpu.dot_dimension_numbers<[1], [0], [0], [1], [0, 0, 1, 1], [], []>} : vector<912x256xbf16>, vector<256x256xbf16>, vector<912x256xf32> -> vector<912x256xf32>
    %c0_9 = arith.constant 0 : index
    %c0_10 = arith.constant 0 : index
    %11 = vector.load %arg6[%c0_9, %c0_10] : memref<1x256xf32, #tpu.memory_space<vmem>>, vector<1x256xf32>
    %12 = vector.broadcast %11 : vector<1x256xf32> to vector<912x256xf32>
    %13 = arith.addf %10, %12 : vector<912x256xf32>
    %cst_11 = arith.constant 0.000000e+00 : f32
    %14 = vector.broadcast %cst_11 : f32 to vector<912x256xf32>
    %15 = arith.maximumf %13, %14 : vector<912x256xf32>
    %16 = arith.truncf %15 : vector<912x256xf32> to vector<912x256xbf16>
    %c0_12 = arith.constant 0 : index
    %c0_13 = arith.constant 0 : index
    %17 = vector.load %arg4[%c0_12, %c0_13] : memref<256x128xbf16, #tpu.memory_space<vmem>>, vector<256x128xbf16>
    %cst_14 = arith.constant dense<0.000000e+00> : vector<912x128xf32>
    %18 = tpu.matmul %16, %17, %cst_14 {dimension_numbers = #tpu.dot_dimension_numbers<[1], [0], [0], [1], [0, 0, 1, 1], [], []>} : vector<912x256xbf16>, vector<256x128xbf16>, vector<912x128xf32> -> vector<912x128xf32>
    %c0_15 = arith.constant 0 : index
    %c0_16 = arith.constant 0 : index
    %19 = vector.load %arg7[%c0_15, %c0_16] : memref<1x128xf32, #tpu.memory_space<vmem>>, vector<1x128xf32>
    %20 = vector.broadcast %19 : vector<1x128xf32> to vector<912x128xf32>
    %21 = arith.addf %18, %20 : vector<912x128xf32>
    %cst_17 = arith.constant 0.000000e+00 : f32
    %22 = vector.broadcast %cst_17 : f32 to vector<912x128xf32>
    %23 = arith.maximumf %21, %22 : vector<912x128xf32>
    %24 = arith.truncf %23 : vector<912x128xf32> to vector<912x128xbf16>
    %c0_18 = arith.constant 0 : index
    %c0_19 = arith.constant 0 : index
    %25 = vector.load %arg8[%c0_18, %c0_19] : memref<912x128xbf16, #tpu.memory_space<vmem>>, vector<912x128xbf16>
    tpu.vector_store %arg8[%c0_18, %c0_19], %24 {strides = array<i32>} : memref<912x128xbf16, #tpu.memory_space<vmem>>, vector<912x128xbf16>,
    return
  }
  func.func @transform_0(%arg0: i32) -> (i32, i32) {
    %c0_i32 = arith.constant 0 : i32
    %c0_i32_0 = arith.constant 0 : i32
    return %arg0, %c0_i32 : i32, i32
  }
  func.func @transform_1(%arg0: i32) -> (i32, i32) {
    %c0_i32 = arith.constant 0 : i32
    %c0_i32_0 = arith.constant 0 : i32
    %c0_i32_1 = arith.constant 0 : i32
    return %c0_i32, %c0_i32_0 : i32, i32
  }
  func.func @transform_2(%arg0: i32) -> (i32, i32) {
    %c0_i32 = arith.constant 0 : i32
    %c0_i32_0 = arith.constant 0 : i32
    %c0_i32_1 = arith.constant 0 : i32
    return %c0_i32, %c0_i32_0 : i32, i32
  }
  func.func @transform_3(%arg0: i32) -> (i32, i32) {
    %c0_i32 = arith.constant 0 : i32
    %c0_i32_0 = arith.constant 0 : i32
    %c0_i32_1 = arith.constant 0 : i32
    return %c0_i32, %c0_i32_0 : i32, i32
  }
  func.func @transform_4(%arg0: i32) -> (i32, i32) {
    %c0_i32 = arith.constant 0 : i32
    %c0_i32_0 = arith.constant 0 : i32
    %c0_i32_1 = arith.constant 0 : i32
    return %c0_i32, %c0_i32_0 : i32, i32
  }
  func.func @transform_5(%arg0: i32) -> (i32, i32) {
    %c0_i32 = arith.constant 0 : i32
    %c0_i32_0 = arith.constant 0 : i32
    %c0_i32_1 = arith.constant 0 : i32
    return %c0_i32, %c0_i32_0 : i32, i32
  }
  func.func @transform_6(%arg0: i32) -> (i32, i32) {
    %c0_i32 = arith.constant 0 : i32
    %c0_i32_0 = arith.constant 0 : i32
    %c0_i32_1 = arith.constant 0 : i32
    return %c0_i32, %c0_i32_0 : i32, i32
  }
  func.func @transform_7(%arg0: i32) -> (i32, i32) {
    %c0_i32 = arith.constant 0 : i32
    %c0_i32_0 = arith.constant 0 : i32
    return %arg0, %c0_i32 : i32, i32
  }
}

module attributes {stable_mosaic.version = 11 : i64} {
  func.func @kernel(%arg0: i32, %arg1: memref<64x2432xbf16, #tpu.memory_space<vmem>>, %arg2: memref<2432x256xbf16, #tpu.memory_space<vmem>>, %arg3: memref<256x256xbf16, #tpu.memory_space<vmem>>, %arg4: memref<256x256xbf16, #tpu.memory_space<vmem>>, %arg5: memref<1x256xf32, #tpu.memory_space<vmem>>, %arg6: memref<1x256xf32, #tpu.memory_space<vmem>>, %arg7: memref<1x256xf32, #tpu.memory_space<vmem>>, %arg8: memref<64x256xbf16, #tpu.memory_space<vmem>>) attributes {dimension_semantics = [#tpu.dimension_semantics<parallel>], iteration_bounds = array<i64: 2>, scalar_prefetch = 0 : i64, scratch_operands = 0 : i64, tpu.core_type = #tpu.core_type<tc>, window_params = [{transform_indices = @transform_0, window_bounds = array<i64: 64, 2432>}, {pipeline_mode = #tpu.pipeline_mode<synchronous>, transform_indices = @transform_1, window_bounds = array<i64: 2432, 256>}, {pipeline_mode = #tpu.pipeline_mode<synchronous>, transform_indices = @transform_2, window_bounds = array<i64: 256, 256>}, {pipeline_mode = #tpu.pipeline_mode<synchronous>, transform_indices = @transform_3, window_bounds = array<i64: 256, 256>}, {pipeline_mode = #tpu.pipeline_mode<synchronous>, transform_indices = @transform_4, window_bounds = array<i64: 1, 256>}, {pipeline_mode = #tpu.pipeline_mode<synchronous>, transform_indices = @transform_5, window_bounds = array<i64: 1, 256>}, {pipeline_mode = #tpu.pipeline_mode<synchronous>, transform_indices = @transform_6, window_bounds = array<i64: 1, 256>}, {transform_indices = @transform_7, window_bounds = array<i64: 64, 256>}]} {
    %c0 = arith.constant 0 : index
    %c0_0 = arith.constant 0 : index
    %0 = vector.load %arg1[%c0, %c0_0] : memref<64x2432xbf16, #tpu.memory_space<vmem>>, vector<64x2432xbf16>
    %c0_1 = arith.constant 0 : index
    %c0_2 = arith.constant 0 : index
    %1 = vector.load %arg2[%c0_1, %c0_2] : memref<2432x256xbf16, #tpu.memory_space<vmem>>, vector<2432x256xbf16>
    %cst = arith.constant dense<0.000000e+00> : vector<64x256xf32>
    %2 = tpu.matmul %0, %1, %cst {dimension_numbers = #tpu.dot_dimension_numbers<[1], [0], [0], [1], [0, 0, 1, 1], [], []>} : vector<64x2432xbf16>, vector<2432x256xbf16>, vector<64x256xf32> -> vector<64x256xf32>
    %c0_3 = arith.constant 0 : index
    %c0_4 = arith.constant 0 : index
    %3 = vector.load %arg5[%c0_3, %c0_4] : memref<1x256xf32, #tpu.memory_space<vmem>>, vector<1x256xf32>
    %4 = vector.broadcast %3 : vector<1x256xf32> to vector<64x256xf32>
    %5 = arith.addf %2, %4 : vector<64x256xf32>
    %cst_5 = arith.constant 0.000000e+00 : f32
    %6 = vector.broadcast %cst_5 : f32 to vector<64x256xf32>
    %7 = arith.maximumf %5, %6 : vector<64x256xf32>
    %8 = arith.truncf %7 : vector<64x256xf32> to vector<64x256xbf16>
    %c0_6 = arith.constant 0 : index
    %c0_7 = arith.constant 0 : index
    %9 = vector.load %arg3[%c0_6, %c0_7] : memref<256x256xbf16, #tpu.memory_space<vmem>>, vector<256x256xbf16>
    %cst_8 = arith.constant dense<0.000000e+00> : vector<64x256xf32>
    %10 = tpu.matmul %8, %9, %cst_8 {dimension_numbers = #tpu.dot_dimension_numbers<[1], [0], [0], [1], [0, 0, 1, 1], [], []>} : vector<64x256xbf16>, vector<256x256xbf16>, vector<64x256xf32> -> vector<64x256xf32>
    %c0_9 = arith.constant 0 : index
    %c0_10 = arith.constant 0 : index
    %11 = vector.load %arg6[%c0_9, %c0_10] : memref<1x256xf32, #tpu.memory_space<vmem>>, vector<1x256xf32>
    %12 = vector.broadcast %11 : vector<1x256xf32> to vector<64x256xf32>
    %13 = arith.addf %10, %12 : vector<64x256xf32>
    %cst_11 = arith.constant 0.000000e+00 : f32
    %14 = vector.broadcast %cst_11 : f32 to vector<64x256xf32>
    %15 = arith.maximumf %13, %14 : vector<64x256xf32>
    %16 = arith.truncf %15 : vector<64x256xf32> to vector<64x256xbf16>
    %c0_12 = arith.constant 0 : index
    %c0_13 = arith.constant 0 : index
    %17 = vector.load %arg4[%c0_12, %c0_13] : memref<256x256xbf16, #tpu.memory_space<vmem>>, vector<256x256xbf16>
    %cst_14 = arith.constant dense<0.000000e+00> : vector<64x256xf32>
    %18 = tpu.matmul %16, %17, %cst_14 {dimension_numbers = #tpu.dot_dimension_numbers<[1], [0], [0], [1], [0, 0, 1, 1], [], []>} : vector<64x256xbf16>, vector<256x256xbf16>, vector<64x256xf32> -> vector<64x256xf32>
    %c0_15 = arith.constant 0 : index
    %c0_16 = arith.constant 0 : index
    %19 = vector.load %arg7[%c0_15, %c0_16] : memref<1x256xf32, #tpu.memory_space<vmem>>, vector<1x256xf32>
    %20 = vector.broadcast %19 : vector<1x256xf32> to vector<64x256xf32>
    %21 = arith.addf %18, %20 : vector<64x256xf32>
    %cst_17 = arith.constant 0.000000e+00 : f32
    %22 = vector.broadcast %cst_17 : f32 to vector<64x256xf32>
    %23 = arith.maximumf %21, %22 : vector<64x256xf32>
    %24 = arith.truncf %23 : vector<64x256xf32> to vector<64x256xbf16>
    %c0_18 = arith.constant 0 : index
    %c0_19 = arith.constant 0 : index
    %25 = vector.load %arg8[%c0_18, %c0_19] : memref<64x256xbf16, #tpu.memory_space<vmem>>, vector<64x256xbf16>
    tpu.vector_store %arg8[%c0_18, %c0_19], %24 {strides = array<i32>} : memref<64x256xbf16, #tpu.memory_space<vmem>>, vector<64x256xbf16>,
    return
  }
  func.func @transform_0(%arg0: i32) -> (i32, i32) {
    %c0_i32 = arith.constant 0 : i32
    %c0_i32_0 = arith.constant 0 : i32
    return %arg0, %c0_i32 : i32, i32
  }
  func.func @transform_1(%arg0: i32) -> (i32, i32) {
    %c0_i32 = arith.constant 0 : i32
    %c0_i32_0 = arith.constant 0 : i32
    %c0_i32_1 = arith.constant 0 : i32
    return %c0_i32, %c0_i32_0 : i32, i32
  }
  func.func @transform_2(%arg0: i32) -> (i32, i32) {
    %c0_i32 = arith.constant 0 : i32
    %c0_i32_0 = arith.constant 0 : i32
    %c0_i32_1 = arith.constant 0 : i32
    return %c0_i32, %c0_i32_0 : i32, i32
  }
  func.func @transform_3(%arg0: i32) -> (i32, i32) {
    %c0_i32 = arith.constant 0 : i32
    %c0_i32_0 = arith.constant 0 : i32
    %c0_i32_1 = arith.constant 0 : i32
    return %c0_i32, %c0_i32_0 : i32, i32
  }
  func.func @transform_4(%arg0: i32) -> (i32, i32) {
    %c0_i32 = arith.constant 0 : i32
    %c0_i32_0 = arith.constant 0 : i32
    %c0_i32_1 = arith.constant 0 : i32
    return %c0_i32, %c0_i32_0 : i32, i32
  }
  func.func @transform_5(%arg0: i32) -> (i32, i32) {
    %c0_i32 = arith.constant 0 : i32
    %c0_i32_0 = arith.constant 0 : i32
    %c0_i32_1 = arith.constant 0 : i32
    return %c0_i32, %c0_i32_0 : i32, i32
  }
  func.func @transform_6(%arg0: i32) -> (i32, i32) {
    %c0_i32 = arith.constant 0 : i32
    %c0_i32_0 = arith.constant 0 : i32
    %c0_i32_1 = arith.constant 0 : i32
    return %c0_i32, %c0_i32_0 : i32, i32
  }
  func.func @transform_7(%arg0: i32) -> (i32, i32) {
    %c0_i32 = arith.constant 0 : i32
    %c0_i32_0 = arith.constant 0 : i32
    return %arg0, %c0_i32 : i32, i32
  }
}

module attributes {stable_mosaic.version = 11 : i64} {
  func.func @kernel(%arg0: i32, %arg1: memref<8x1792xbf16, #tpu.memory_space<vmem>>, %arg2: memref<1792x256xbf16, #tpu.memory_space<vmem>>, %arg3: memref<256x256xbf16, #tpu.memory_space<vmem>>, %arg4: memref<256x256xbf16, #tpu.memory_space<vmem>>, %arg5: memref<256x128xbf16, #tpu.memory_space<vmem>>, %arg6: memref<1x256xf32, #tpu.memory_space<vmem>>, %arg7: memref<1x256xf32, #tpu.memory_space<vmem>>, %arg8: memref<1x256xf32, #tpu.memory_space<vmem>>, %arg9: memref<1x128xf32, #tpu.memory_space<vmem>>, %arg10: memref<8x128xbf16, #tpu.memory_space<vmem>>) attributes {dimension_semantics = [#tpu.dimension_semantics<parallel>], iteration_bounds = array<i64: 1>, scalar_prefetch = 0 : i64, scratch_operands = 0 : i64, tpu.core_type = #tpu.core_type<tc>, window_params = [{transform_indices = @transform_0, window_bounds = array<i64: 8, 1792>}, {pipeline_mode = #tpu.pipeline_mode<synchronous>, transform_indices = @transform_1, window_bounds = array<i64: 1792, 256>}, {pipeline_mode = #tpu.pipeline_mode<synchronous>, transform_indices = @transform_2, window_bounds = array<i64: 256, 256>}, {pipeline_mode = #tpu.pipeline_mode<synchronous>, transform_indices = @transform_3, window_bounds = array<i64: 256, 256>}, {pipeline_mode = #tpu.pipeline_mode<synchronous>, transform_indices = @transform_4, window_bounds = array<i64: 256, 128>}, {pipeline_mode = #tpu.pipeline_mode<synchronous>, transform_indices = @transform_5, window_bounds = array<i64: 1, 256>}, {pipeline_mode = #tpu.pipeline_mode<synchronous>, transform_indices = @transform_6, window_bounds = array<i64: 1, 256>}, {pipeline_mode = #tpu.pipeline_mode<synchronous>, transform_indices = @transform_7, window_bounds = array<i64: 1, 256>}, {pipeline_mode = #tpu.pipeline_mode<synchronous>, transform_indices = @transform_8, window_bounds = array<i64: 1, 128>}, {transform_indices = @transform_9, window_bounds = array<i64: 8, 128>}]} {
    %c0 = arith.constant 0 : index
    %c0_0 = arith.constant 0 : index
    %0 = vector.load %arg1[%c0, %c0_0] : memref<8x1792xbf16, #tpu.memory_space<vmem>>, vector<8x1792xbf16>
    %c0_1 = arith.constant 0 : index
    %c0_2 = arith.constant 0 : index
    %1 = vector.load %arg2[%c0_1, %c0_2] : memref<1792x256xbf16, #tpu.memory_space<vmem>>, vector<1792x256xbf16>
    %cst = arith.constant dense<0.000000e+00> : vector<8x256xf32>
    %2 = tpu.matmul %0, %1, %cst {dimension_numbers = #tpu.dot_dimension_numbers<[1], [0], [0], [1], [0, 0, 1, 1], [], []>} : vector<8x1792xbf16>, vector<1792x256xbf16>, vector<8x256xf32> -> vector<8x256xf32>
    %c0_3 = arith.constant 0 : index
    %c0_4 = arith.constant 0 : index
    %3 = vector.load %arg6[%c0_3, %c0_4] : memref<1x256xf32, #tpu.memory_space<vmem>>, vector<1x256xf32>
    %4 = vector.broadcast %3 : vector<1x256xf32> to vector<8x256xf32>
    %5 = arith.addf %2, %4 : vector<8x256xf32>
    %cst_5 = arith.constant 0.000000e+00 : f32
    %6 = vector.broadcast %cst_5 : f32 to vector<8x256xf32>
    %7 = arith.maximumf %5, %6 : vector<8x256xf32>
    %8 = arith.truncf %7 : vector<8x256xf32> to vector<8x256xbf16>
    %c0_6 = arith.constant 0 : index
    %c0_7 = arith.constant 0 : index
    %9 = vector.load %arg3[%c0_6, %c0_7] : memref<256x256xbf16, #tpu.memory_space<vmem>>, vector<256x256xbf16>
    %cst_8 = arith.constant dense<0.000000e+00> : vector<8x256xf32>
    %10 = tpu.matmul %8, %9, %cst_8 {dimension_numbers = #tpu.dot_dimension_numbers<[1], [0], [0], [1], [0, 0, 1, 1], [], []>} : vector<8x256xbf16>, vector<256x256xbf16>, vector<8x256xf32> -> vector<8x256xf32>
    %c0_9 = arith.constant 0 : index
    %c0_10 = arith.constant 0 : index
    %11 = vector.load %arg7[%c0_9, %c0_10] : memref<1x256xf32, #tpu.memory_space<vmem>>, vector<1x256xf32>
    %12 = vector.broadcast %11 : vector<1x256xf32> to vector<8x256xf32>
    %13 = arith.addf %10, %12 : vector<8x256xf32>
    %cst_11 = arith.constant 0.000000e+00 : f32
    %14 = vector.broadcast %cst_11 : f32 to vector<8x256xf32>
    %15 = arith.maximumf %13, %14 : vector<8x256xf32>
    %16 = arith.truncf %15 : vector<8x256xf32> to vector<8x256xbf16>
    %c0_12 = arith.constant 0 : index
    %c0_13 = arith.constant 0 : index
    %17 = vector.load %arg4[%c0_12, %c0_13] : memref<256x256xbf16, #tpu.memory_space<vmem>>, vector<256x256xbf16>
    %cst_14 = arith.constant dense<0.000000e+00> : vector<8x256xf32>
    %18 = tpu.matmul %16, %17, %cst_14 {dimension_numbers = #tpu.dot_dimension_numbers<[1], [0], [0], [1], [0, 0, 1, 1], [], []>} : vector<8x256xbf16>, vector<256x256xbf16>, vector<8x256xf32> -> vector<8x256xf32>
    %c0_15 = arith.constant 0 : index
    %c0_16 = arith.constant 0 : index
    %19 = vector.load %arg8[%c0_15, %c0_16] : memref<1x256xf32, #tpu.memory_space<vmem>>, vector<1x256xf32>
    %20 = vector.broadcast %19 : vector<1x256xf32> to vector<8x256xf32>
    %21 = arith.addf %18, %20 : vector<8x256xf32>
    %cst_17 = arith.constant 0.000000e+00 : f32
    %22 = vector.broadcast %cst_17 : f32 to vector<8x256xf32>
    %23 = arith.maximumf %21, %22 : vector<8x256xf32>
    %24 = arith.truncf %23 : vector<8x256xf32> to vector<8x256xbf16>
    %c0_18 = arith.constant 0 : index
    %c0_19 = arith.constant 0 : index
    %25 = vector.load %arg5[%c0_18, %c0_19] : memref<256x128xbf16, #tpu.memory_space<vmem>>, vector<256x128xbf16>
    %cst_20 = arith.constant dense<0.000000e+00> : vector<8x128xf32>
    %26 = tpu.matmul %24, %25, %cst_20 {dimension_numbers = #tpu.dot_dimension_numbers<[1], [0], [0], [1], [0, 0, 1, 1], [], []>} : vector<8x256xbf16>, vector<256x128xbf16>, vector<8x128xf32> -> vector<8x128xf32>
    %c0_21 = arith.constant 0 : index
    %c0_22 = arith.constant 0 : index
    %27 = vector.load %arg9[%c0_21, %c0_22] : memref<1x128xf32, #tpu.memory_space<vmem>>, vector<1x128xf32>
    %28 = vector.broadcast %27 : vector<1x128xf32> to vector<8x128xf32>
    %29 = arith.addf %26, %28 : vector<8x128xf32>
    %cst_23 = arith.constant 0.000000e+00 : f32
    %30 = vector.broadcast %cst_23 : f32 to vector<8x128xf32>
    %31 = arith.maximumf %29, %30 : vector<8x128xf32>
    %32 = arith.truncf %31 : vector<8x128xf32> to vector<8x128xbf16>
    %c0_24 = arith.constant 0 : index
    %c0_25 = arith.constant 0 : index
    %33 = vector.load %arg10[%c0_24, %c0_25] : memref<8x128xbf16, #tpu.memory_space<vmem>>, vector<8x128xbf16>
    tpu.vector_store %arg10[%c0_24, %c0_25], %32 {strides = array<i32>} : memref<8x128xbf16, #tpu.memory_space<vmem>>, vector<8x128xbf16>,
    return
  }
  func.func @transform_0(%arg0: i32) -> (i32, i32) {
    %c0_i32 = arith.constant 0 : i32
    %c0_i32_0 = arith.constant 0 : i32
    return %arg0, %c0_i32 : i32, i32
  }
  func.func @transform_1(%arg0: i32) -> (i32, i32) {
    %c0_i32 = arith.constant 0 : i32
    %c0_i32_0 = arith.constant 0 : i32
    %c0_i32_1 = arith.constant 0 : i32
    return %c0_i32, %c0_i32_0 : i32, i32
  }
  func.func @transform_2(%arg0: i32) -> (i32, i32) {
    %c0_i32 = arith.constant 0 : i32
    %c0_i32_0 = arith.constant 0 : i32
    %c0_i32_1 = arith.constant 0 : i32
    return %c0_i32, %c0_i32_0 : i32, i32
  }
  func.func @transform_3(%arg0: i32) -> (i32, i32) {
    %c0_i32 = arith.constant 0 : i32
    %c0_i32_0 = arith.constant 0 : i32
    %c0_i32_1 = arith.constant 0 : i32
    return %c0_i32, %c0_i32_0 : i32, i32
  }
  func.func @transform_4(%arg0: i32) -> (i32, i32) {
    %c0_i32 = arith.constant 0 : i32
    %c0_i32_0 = arith.constant 0 : i32
    %c0_i32_1 = arith.constant 0 : i32
    return %c0_i32, %c0_i32_0 : i32, i32
  }
  func.func @transform_5(%arg0: i32) -> (i32, i32) {
    %c0_i32 = arith.constant 0 : i32
    %c0_i32_0 = arith.constant 0 : i32
    %c0_i32_1 = arith.constant 0 : i32
    return %c0_i32, %c0_i32_0 : i32, i32
  }
  func.func @transform_6(%arg0: i32) -> (i32, i32) {
    %c0_i32 = arith.constant 0 : i32
    %c0_i32_0 = arith.constant 0 : i32
    %c0_i32_1 = arith.constant 0 : i32
    return %c0_i32, %c0_i32_0 : i32, i32
  }
  func.func @transform_7(%arg0: i32) -> (i32, i32) {
    %c0_i32 = arith.constant 0 : i32
    %c0_i32_0 = arith.constant 0 : i32
    %c0_i32_1 = arith.constant 0 : i32
    return %c0_i32, %c0_i32_0 : i32, i32
  }
  func.func @transform_8(%arg0: i32) -> (i32, i32) {
    %c0_i32 = arith.constant 0 : i32
    %c0_i32_0 = arith.constant 0 : i32
    %c0_i32_1 = arith.constant 0 : i32
    return %c0_i32, %c0_i32_0 : i32, i32
  }
  func.func @transform_9(%arg0: i32) -> (i32, i32) {
    %c0_i32 = arith.constant 0 : i32
    %c0_i32_0 = arith.constant 0 : i32
    return %arg0, %c0_i32 : i32, i32
  }
}

</mosaic_0001>

<llo_original>
// kernel: nin_forward.3
$region0: #{nin_forward.3}
  #allocation0 [shape = 'u32[]', space=smem, size = 0x4, offset = 0x4, fixed_abs, tag = 'smem constant byte address 0x4 - core index']
  #allocation1 [shape = 'u32[72,128]{1,0:T(1,128)}', space=vmem, size = 0x9000, scoped, tag = 'internal scratch']
  %s0 = inlined_call_operand.vmem [shape: bf16[1824,128], index: 0, kind: input, shape index: {}]
  %s1 = inlined_call_operand.vmem [shape: bf16[128,256], index: 1, kind: input, shape index: {}]
  %s2 = inlined_call_operand.vmem [shape: bf16[256,256], index: 2, kind: input, shape index: {}]
  %s3 = inlined_call_operand.vmem [shape: bf16[256,128], index: 3, kind: input, shape index: {}]
  %s4 = inlined_call_operand.vmem [shape: f32[1,256], index: 4, kind: input, shape index: {}]
  %s5 = inlined_call_operand.vmem [shape: f32[1,256], index: 5, kind: input, shape index: {}]
  %s6 = inlined_call_operand.vmem [shape: f32[1,128], index: 6, kind: input, shape index: {}]
  %s7 = inlined_call_operand.vmem [shape: bf16[1824,128], index: 7, kind: output, shape index: {}]
  %s8 = sld [smem:[#allocation0]]
  $region61: #{nin_forward.3} parent=0
    _
  %s10 = ssub.s32 1, %s8
  %s11 = scalar_select 0, %s10, %s8
  loop: start=0, step=1, limit=4
  $region2: #{nin_forward.3} parent=0 // loop_pre_header
    _
  $region3: #{nin_forward.3} parent=0 // loop_header
    %s13 = sphi 0, %s17
    %p14 = scmp.ge.s32.totalorder %s13, 4
    %s23 = sphi 0, %s25
    %s26 = sphi 0, %s23
    %s27 = sphi 0, %s26
    %s43 = sphi 0, %s27
    %s47 = sphi 0, %s47
    %s49 = sphi 0, %s47
    %s50 = sphi 0, %s49
    %s64 = sphi 0, %s50
    %s68 = sphi 0, %s68
    %s70 = sphi 0, %s68
    %s71 = sphi 0, %s70
    %s85 = sphi 0, %s71
    %s89 = sphi 0, %s89
    %s91 = sphi 0, %s89
    %s92 = sphi 0, %s91
    %s106 = sphi 0, %s92
    %s110 = sphi 0, %s110
    %s112 = sphi 0, %s110
    %s113 = sphi 0, %s112
    %s127 = sphi 0, %s113
    %s131 = sphi 0, %s131
    %s133 = sphi 0, %s131
    %s134 = sphi 0, %s133
    %s148 = sphi 0, %s134
    %s152 = sphi 0, %s152
    %s154 = sphi 0, %s152
    %s155 = sphi 0, %s154
    %s169 = sphi 0, %s155
    %s175 = sphi 0, %s177
    %s178 = sphi 0, %s175
    %s179 = sphi 0, %s178
    %s195 = sphi 0, %s179
  $region4: #{nin_forward.3} parent=0 // loop_header_branch
    %16 = sbr.rel (%p14) target = $region8
  $region5: #{nin_forward.3} parent=0 // loop_body
    %s18 = ssub.s32 %s13, 1
    %s19 = ssub.s32 %s13, 2
    %s20 = sadd.s32 %s13, 1
    %s21 = ssub.s32 %s13, %s20
    %p22 = scmp.eq.s32.totalorder %s21, 0
    %s24 = sadd.s32 %s23, 1
    %s25 = scalar_select %p22, %s23, %s24
    %p28 = pneg %p22
    %p29 = scmp.eq.s32.totalorder %s13, 1
    %p30 = por %p28, %p29
    %p31 = scmp.ne.s32.totalorder %s23, %s26
    %p32 = scmp.eq.s32.totalorder %s13, 0
    %p33 = por %p31, %p32
    %p34 = scmp.ne.s32.totalorder %s23, %s26
    %p35 = scmp.eq.s32.totalorder %s18, 1
    %p36 = por %p34, %p35
    %p37 = scmp.ne.s32.totalorder %s26, %s27
    %p38 = scmp.eq.s32.totalorder %s18, 0
    %p39 = por %p37, %p38
    %p40 = scmp.ne.s32.totalorder %s26, %s27
    %p41 = scmp.eq.s32.totalorder %s19, 1
    %p42 = por %p40, %p41
    %p44 = scmp.ne.s32.totalorder %s27, %s43
    %p45 = scmp.eq.s32.totalorder %s19, 0
    %p46 = por %p44, %p45
    %s48 = sadd.s32 %s47, 1
    %p51 = scmp.eq.s32.totalorder %s13, 1
    %p52 = scmp.ne.s32.totalorder %s47, %s49
    %p53 = scmp.eq.s32.totalorder %s13, 0
    %p54 = por %p52, %p53
    %p55 = scmp.ne.s32.totalorder %s47, %s49
    %p56 = scmp.eq.s32.totalorder %s18, 1
    %p57 = por %p55, %p56
    %p58 = scmp.ne.s32.totalorder %s49, %s50
    %p59 = scmp.eq.s32.totalorder %s18, 0
    %p60 = por %p58, %p59
    %p61 = scmp.ne.s32.totalorder %s49, %s50
    %p62 = scmp.eq.s32.totalorder %s19, 1
    %p63 = por %p61, %p62
    %p65 = scmp.ne.s32.totalorder %s50, %s64
    %p66 = scmp.eq.s32.totalorder %s19, 0
    %p67 = por %p65, %p66
    %s69 = sadd.s32 %s68, 1
    %p72 = scmp.eq.s32.totalorder %s13, 1
    %p73 = scmp.ne.s32.totalorder %s68, %s70
    %p74 = scmp.eq.s32.totalorder %s13, 0
    %p75 = por %p73, %p74
    %p76 = scmp.ne.s32.totalorder %s68, %s70
    %p77 = scmp.eq.s32.totalorder %s18, 1
    %p78 = por %p76, %p77
    %p79 = scmp.ne.s32.totalorder %s70, %s71
    %p80 = scmp.eq.s32.totalorder %s18, 0
    %p81 = por %p79, %p80
    %p82 = scmp.ne.s32.totalorder %s70, %s71
    %p83 = scmp.eq.s32.totalorder %s19, 1
    %p84 = por %p82, %p83
    %p86 = scmp.ne.s32.totalorder %s71, %s85
    %p87 = scmp.eq.s32.totalorder %s19, 0
    %p88 = por %p86, %p87
    %s90 = sadd.s32 %s89, 1
    %p93 = scmp.eq.s32.totalorder %s13, 1
    %p94 = scmp.ne.s32.totalorder %s89, %s91
    %p95 = scmp.eq.s32.totalorder %s13, 0
    %p96 = por %p94, %p95
    %p97 = scmp.ne.s32.totalorder %s89, %s91
    %p98 = scmp.eq.s32.totalorder %s18, 1
    %p99 = por %p97, %p98
    %p100 = scmp.ne.s32.totalorder %s91, %s92
    %p101 = scmp.eq.s32.totalorder %s18, 0
    %p102 = por %p100, %p101
    %p103 = scmp.ne.s32.totalorder %s91, %s92
    %p104 = scmp.eq.s32.totalorder %s19, 1
    %p105 = por %p103, %p104
    %p107 = scmp.ne.s32.totalorder %s92, %s106
    %p108 = scmp.eq.s32.totalorder %s19, 0
    %p109 = por %p107, %p108
    %s111 = sadd.s32 %s110, 1
    %p114 = scmp.eq.s32.totalorder %s13, 1
    %p115 = scmp.ne.s32.totalorder %s110, %s112
    %p116 = scmp.eq.s32.totalorder %s13, 0
    %p117 = por %p115, %p116
    %p118 = scmp.ne.s32.totalorder %s110, %s112
    %p119 = scmp.eq.s32.totalorder %s18, 1
    %p120 = por %p118, %p119
    %p121 = scmp.ne.s32.totalorder %s112, %s113
    %p122 = scmp.eq.s32.totalorder %s18, 0
    %p123 = por %p121, %p122
    %p124 = scmp.ne.s32.totalorder %s112, %s113
    %p125 = scmp.eq.s32.totalorder %s19, 1
    %p126 = por %p124, %p125
    %p128 = scmp.ne.s32.totalorder %s113, %s127
    %p129 = scmp.eq.s32.totalorder %s19, 0
    %p130 = por %p128, %p129
    %s132 = sadd.s32 %s131, 1
    %p135 = scmp.eq.s32.totalorder %s13, 1
    %p136 = scmp.ne.s32.totalorder %s131, %s133
    %p137 = scmp.eq.s32.totalorder %s13, 0
    %p138 = por %p136, %p137
    %p139 = scmp.ne.s32.totalorder %s131, %s133
    %p140 = scmp.eq.s32.totalorder %s18, 1
    %p141 = por %p139, %p140
    %p142 = scmp.ne.s32.totalorder %s133, %s134
    %p143 = scmp.eq.s32.totalorder %s18, 0
    %p144 = por %p142, %p143
    %p145 = scmp.ne.s32.totalorder %s133, %s134
    %p146 = scmp.eq.s32.totalorder %s19, 1
    %p147 = por %p145, %p146
    %p149 = scmp.ne.s32.totalorder %s134, %s148
    %p150 = scmp.eq.s32.totalorder %s19, 0
    %p151 = por %p149, %p150
    %s153 = sadd.s32 %s152, 1
    %p156 = scmp.eq.s32.totalorder %s13, 1
    %p157 = scmp.ne.s32.totalorder %s152, %s154
    %p158 = scmp.eq.s32.totalorder %s13, 0
    %p159 = por %p157, %p158
    %p160 = scmp.ne.s32.totalorder %s152, %s154
    %p161 = scmp.eq.s32.totalorder %s18, 1
    %p162 = por %p160, %p161
    %p163 = scmp.ne.s32.totalorder %s154, %s155
    %p164 = scmp.eq.s32.totalorder %s18, 0
    %p165 = por %p163, %p164
    %p166 = scmp.ne.s32.totalorder %s154, %s155
    %p167 = scmp.eq.s32.totalorder %s19, 1
    %p168 = por %p166, %p167
    %p170 = scmp.ne.s32.totalorder %s155, %s169
    %p171 = scmp.eq.s32.totalorder %s19, 0
    %p172 = por %p170, %p171
    %s173 = ssub.s32 %s13, %s20
    %p174 = scmp.eq.s32.totalorder %s173, 0
    %s176 = sadd.s32 %s175, 1
    %s177 = scalar_select %p174, %s175, %s176
    %p180 = pneg %p174
    %p181 = scmp.eq.s32.totalorder %s13, 1
    %p182 = por %p180, %p181
    %p183 = scmp.ne.s32.totalorder %s175, %s178
    %p184 = scmp.eq.s32.totalorder %s13, 0
    %p185 = por %p183, %p184
    %p186 = scmp.ne.s32.totalorder %s175, %s178
    %p187 = scmp.eq.s32.totalorder %s18, 1
    %p188 = por %p186, %p187
    %p189 = scmp.ne.s32.totalorder %s178, %s179
    %p190 = scmp.eq.s32.totalorder %s18, 0
    %p191 = por %p189, %p190
    %p192 = scmp.ne.s32.totalorder %s178, %s179
    %p193 = scmp.eq.s32.totalorder %s19, 1
    %p194 = por %p192, %p193
    %p196 = scmp.ne.s32.totalorder %s179, %s195
    %p197 = scmp.eq.s32.totalorder %s19, 0
    %p198 = por %p196, %p197
    %p199 = scmp.le.s32.totalorder 1, %s13
    %p200 = scmp.lt.s32.totalorder %s13, 3
    %p201 = pnand %p199, %p200
    %p202 = pneg %p201
    // Predicated region
    $region9: #{nin_forward.3} parent=5 // pred_check
      _
    $region10: #{nin_forward.3} parent=5 // pred_check_branch
      %204 = sbr.rel (%p201) target = $region12
    $region11: #{nin_forward.3} parent=5 // pred_region
      %s205 = ssub.s32 %s13, 1
      // Predicated region
      $region13: #{nin_forward.3} parent=11 // pred_check
        %p206 = pneg %p60
      $region14: #{nin_forward.3} parent=11 // pred_check_branch
        %208 = sbr.rel (%p206) target = $region16
      $region15: #{nin_forward.3} parent=11 // pred_region
        _
      $region16: #{nin_forward.3} parent=11 // pred_fallthru
        _
      // Predicated region
      $region17: #{nin_forward.3} parent=11 // pred_check
        %p209 = pneg %p81
      $region18: #{nin_forward.3} parent=11 // pred_check_branch
        %211 = sbr.rel (%p209) target = $region20
      $region19: #{nin_forward.3} parent=11 // pred_region
        _
      $region20: #{nin_forward.3} parent=11 // pred_fallthru
        _
      // Predicated region
      $region21: #{nin_forward.3} parent=11 // pred_check
        %p212 = pneg %p102
      $region22: #{nin_forward.3} parent=11 // pred_check_branch
        %214 = sbr.rel (%p212) target = $region24
      $region23: #{nin_forward.3} parent=11 // pred_region
        _
      $region24: #{nin_forward.3} parent=11 // pred_fallthru
        _
      // Predicated region
      $region25: #{nin_forward.3} parent=11 // pred_check
        %p215 = pneg %p123
      $region26: #{nin_forward.3} parent=11 // pred_check_branch
        %217 = sbr.rel (%p215) target = $region28
      $region27: #{nin_forward.3} parent=11 // pred_region
        _
      $region28: #{nin_forward.3} parent=11 // pred_fallthru
        _
      // Predicated region
      $region29: #{nin_forward.3} parent=11 // pred_check
        %p218 = pneg %p144
      $region30: #{nin_forward.3} parent=11 // pred_check_branch
        %220 = sbr.rel (%p218) target = $region32
      $region31: #{nin_forward.3} parent=11 // pred_region
        _
      $region32: #{nin_forward.3} parent=11 // pred_fallthru
        _
      // Predicated region
      $region33: #{nin_forward.3} parent=11 // pred_check
        %p221 = pneg %p165
      $region34: #{nin_forward.3} parent=11 // pred_check_branch
        %223 = sbr.rel (%p221) target = $region36
      $region35: #{nin_forward.3} parent=11 // pred_region
        _
      $region36: #{nin_forward.3} parent=11 // pred_fallthru
        _
    $region12: #{nin_forward.3} parent=5 // pred_fallthru
      _
    %p224 = scmp.lt.s32.totalorder %s13, 2
    // Predicated region
    $region37: #{nin_forward.3} parent=5 // pred_check
      %p225 = pneg %p224
    $region38: #{nin_forward.3} parent=5 // pred_check_branch
      %227 = sbr.rel (%p225) target = $region40
    $region39: #{nin_forward.3} parent=5 // pred_region
      // Predicated region
      $region41: #{nin_forward.3} parent=39 // pred_check
        %p228 = pneg %p33
      $region42: #{nin_forward.3} parent=39 // pred_check_branch
        %230 = sbr.rel (%p228) target = $region44
      $region43: #{nin_forward.3} parent=39 // pred_region
        %s231 = smul.u32 114, %s13
        %p232 = scmp.lt.s32.totalorder %s231, 227
        %s233 = scalar_select %p232, %s231, 227
        %s234 = smul.addr %s233, 4
        %s235 = scalar_lea.vmem %s0, %s234
        %s236 = smul.u32 114, %s13
      $region44: #{nin_forward.3} parent=39 // pred_fallthru
        _
    $region40: #{nin_forward.3} parent=5 // pred_fallthru
      _
    %p237 = scmp.le.s32.totalorder 1, %s13
    %p238 = scmp.lt.s32.totalorder %s13, 3
    %p239 = pnand %p237, %p238
    %p240 = pneg %p239
    // Predicated region
    $region45: #{nin_forward.3} parent=5 // pred_check
      _
    $region46: #{nin_forward.3} parent=5 // pred_check_branch
      %242 = sbr.rel (%p239) target = $region48
    $region47: #{nin_forward.3} parent=5 // pred_region
      %s243 = ssub.s32 %s13, 1
      %s244 = smul.u32 114, %s18
      %p245 = scmp.lt.s32.totalorder %s244, 227
      %s246 = scalar_select %p245, %s244, 227
      %s247 = smul.addr %s246, 4
      %s248 = scalar_lea.vmem %s0, %s247
      %p249 = pneg %p39
      %p250 = pneg %p36
      %p251 = pneg %p60
      %p252 = pneg %p57
      %p253 = pneg %p81
      %p254 = pneg %p78
      %p255 = pneg %p102
      %p256 = pneg %p99
      %p257 = pneg %p123
      %p258 = pneg %p120
      %p259 = pneg %p144
      %p260 = pneg %p141
      %p261 = pneg %p165
      %p262 = pneg %p162
      %p263 = pneg %p191
      %p264 = pneg %p188
      %s265 = smul.u32 114, %s18
      %p266 = scmp.lt.s32.totalorder %s265, 227
      %s267 = scalar_select %p266, %s265, 227
      %s268 = smul.addr %s267, 4
      %s269 = scalar_lea.vmem %s7, %s268
      %s270 = smul.u32 114, %s18
      %p271 = scmp.lt.s32.totalorder %s270, 227
      %s272 = scalar_select %p271, %s270, 227
      %s273 = smul.addr %s272, 4
      %s274 = scalar_lea.vmem %s0, %s273
      %s275 = smul.u32 114, %s18
      %s276 = smul.u32 114, %s18
      %p277 = scmp.lt.s32.totalorder %s276, 227
      %s278 = scalar_select %p277, %s276, 227
      %s279 = smul.addr %s278, 4
      %s280 = scalar_lea.vmem %s7, %s279
      %s281 = smul.u32 114, %s18
      %v282 = vld [vmem:[%s274] sm:$0xf]
      %v283 = vld [vmem:[%s274 + $0x4] sm:$0xf]
      %v284 = vld [vmem:[%s274 + $0x8] sm:$0xf]
      %v285 = vld [vmem:[%s274 + $0xc] sm:$0xf]
      %v286 = vld [vmem:[%s274 + $0x10] sm:$0xf]
      %v287 = vld [vmem:[%s274 + $0x14] sm:$0xf]
      %v288 = vld [vmem:[%s274 + $0x18] sm:$0xf]
      %v289 = vld [vmem:[%s274 + $0x1c] sm:$0xf]
      %v290 = vld [vmem:[%s274 + $0x20] sm:$0xf]
      %v291 = vld [vmem:[%s274 + $0x24] sm:$0xf]
      %v292 = vld [vmem:[%s274 + $0x28] sm:$0xf]
      %v293 = vld [vmem:[%s274 + $0x2c] sm:$0xf]
      %v294 = vld [vmem:[%s274 + $0x30] sm:$0xf]
      %v295 = vld [vmem:[%s274 + $0x34] sm:$0xf]
      %v296 = vld [vmem:[%s274 + $0x38] sm:$0xf]
      %v297 = vld [vmem:[%s274 + $0x3c] sm:$0xf]
      %v298 = vld [vmem:[%s274 + $0x40] sm:$0xf]
      %v299 = vld [vmem:[%s274 + $0x44] sm:$0xf]
      %v300 = vld [vmem:[%s274 + $0x48] sm:$0xf]
      %v301 = vld [vmem:[%s274 + $0x4c] sm:$0xf]
      %v302 = vld [vmem:[%s274 + $0x50] sm:$0xf]
      %v303 = vld [vmem:[%s274 + $0x54] sm:$0xf]
      %v304 = vld [vmem:[%s274 + $0x58] sm:$0xf]
      %v305 = vld [vmem:[%s274 + $0x5c] sm:$0xf]
      %v306 = vld [vmem:[%s274 + $0x60] sm:$0xf]
      %v307 = vld [vmem:[%s274 + $0x64] sm:$0xf]
      %v308 = vld [vmem:[%s274 + $0x68] sm:$0xf]
      %v309 = vld [vmem:[%s274 + $0x6c] sm:$0xf]
      %v310 = vld [vmem:[%s274 + $0x70] sm:$0xf]
      %v311 = vld [vmem:[%s274 + $0x74] sm:$0xf]
      %v312 = vld [vmem:[%s274 + $0x78] sm:$0xf]
      %v313 = vld [vmem:[%s274 + $0x7c] sm:$0xf]
      %v314 = vld [vmem:[%s274 + $0x80] sm:$0xf]
      %v315 = vld [vmem:[%s274 + $0x84] sm:$0xf]
      %v316 = vld [vmem:[%s274 + $0x88] sm:$0xf]
      %v317 = vld [vmem:[%s274 + $0x8c] sm:$0xf]
      %v318 = vld [vmem:[%s274 + $0x90] sm:$0xf]
      %v319 = vld [vmem:[%s274 + $0x94] sm:$0xf]
      %v320 = vld [vmem:[%s274 + $0x98] sm:$0xf]
      %v321 = vld [vmem:[%s274 + $0x9c] sm:$0xf]
      %v322 = vld [vmem:[%s274 + $0xa0] sm:$0xf]
      %v323 = vld [vmem:[%s274 + $0xa4] sm:$0xf]
      %v324 = vld [vmem:[%s274 + $0xa8] sm:$0xf]
      %v325 = vld [vmem:[%s274 + $0xac] sm:$0xf]
      %v326 = vld [vmem:[%s274 + $0xb0] sm:$0xf]
      %v327 = vld [vmem:[%s274 + $0xb4] sm:$0xf]
      %v328 = vld [vmem:[%s274 + $0xb8] sm:$0xf]
      %v329 = vld [vmem:[%s274 + $0xbc] sm:$0xf]
      %v330 = vld [vmem:[%s274 + $0xc0] sm:$0xf]
      %v331 = vld [vmem:[%s274 + $0xc4] sm:$0xf]
      %v332 = vld [vmem:[%s274 + $0xc8] sm:$0xf]
      %v333 = vld [vmem:[%s274 + $0xcc] sm:$0xf]
      %v334 = vld [vmem:[%s274 + $0xd0] sm:$0xf]
      %v335 = vld [vmem:[%s274 + $0xd4] sm:$0xf]
      %v336 = vld [vmem:[%s274 + $0xd8] sm:$0xf]
      %v337 = vld [vmem:[%s274 + $0xdc] sm:$0xf]
      %v338 = vld [vmem:[%s274 + $0xe0] sm:$0xf]
      %v339 = vld [vmem:[%s274 + $0xe4] sm:$0xf]
      %v340 = vld [vmem:[%s274 + $0xe8] sm:$0xf]
      %v341 = vld [vmem:[%s274 + $0xec] sm:$0xf]
      %v342 = vld [vmem:[%s274 + $0xf0] sm:$0xf]
      %v343 = vld [vmem:[%s274 + $0xf4] sm:$0xf]
      %v344 = vld [vmem:[%s274 + $0xf8] sm:$0xf]
      %v345 = vld [vmem:[%s274 + $0xfc] sm:$0xf]
      %v346 = vld [vmem:[%s274 + $0x100] sm:$0xf]
      %v347 = vld [vmem:[%s274 + $0x104] sm:$0xf]
      %v348 = vld [vmem:[%s274 + $0x108] sm:$0xf]
      %v349 = vld [vmem:[%s274 + $0x10c] sm:$0xf]
      %v350 = vld [vmem:[%s274 + $0x110] sm:$0xf]
      %v351 = vld [vmem:[%s274 + $0x114] sm:$0xf]
      %v352 = vld [vmem:[%s274 + $0x118] sm:$0xf]
      %v353 = vld [vmem:[%s274 + $0x11c] sm:$0xf]
      %v354 = vld [vmem:[%s274 + $0x120] sm:$0xf]
      %v355 = vld [vmem:[%s274 + $0x124] sm:$0xf]
      %v356 = vld [vmem:[%s274 + $0x128] sm:$0xf]
      %v357 = vld [vmem:[%s274 + $0x12c] sm:$0xf]
      %v358 = vld [vmem:[%s274 + $0x130] sm:$0xf]
      %v359 = vld [vmem:[%s274 + $0x134] sm:$0xf]
      %v360 = vld [vmem:[%s274 + $0x138] sm:$0xf]
      %v361 = vld [vmem:[%s274 + $0x13c] sm:$0xf]
      %v362 = vld [vmem:[%s274 + $0x140] sm:$0xf]
      %v363 = vld [vmem:[%s274 + $0x144] sm:$0xf]
      %v364 = vld [vmem:[%s274 + $0x148] sm:$0xf]
      %v365 = vld [vmem:[%s274 + $0x14c] sm:$0xf]
      %v366 = vld [vmem:[%s274 + $0x150] sm:$0xf]
      %v367 = vld [vmem:[%s274 + $0x154] sm:$0xf]
      %v368 = vld [vmem:[%s274 + $0x158] sm:$0xf]
      %v369 = vld [vmem:[%s274 + $0x15c] sm:$0xf]
      %v370 = vld [vmem:[%s274 + $0x160] sm:$0xf]
      %v371 = vld [vmem:[%s274 + $0x164] sm:$0xf]
      %v372 = vld [vmem:[%s274 + $0x168] sm:$0xf]
      %v373 = vld [vmem:[%s274 + $0x16c] sm:$0xf]
      %v374 = vld [vmem:[%s274 + $0x170] sm:$0xf]
      %v375 = vld [vmem:[%s274 + $0x174] sm:$0xf]
      %v376 = vld [vmem:[%s274 + $0x178] sm:$0xf]
      %v377 = vld [vmem:[%s274 + $0x17c] sm:$0xf]
      %v378 = vld [vmem:[%s274 + $0x180] sm:$0xf]
      %v379 = vld [vmem:[%s274 + $0x184] sm:$0xf]
      %v380 = vld [vmem:[%s274 + $0x188] sm:$0xf]
      %v381 = vld [vmem:[%s274 + $0x18c] sm:$0xf]
      %v382 = vld [vmem:[%s274 + $0x190] sm:$0xf]
      %v383 = vld [vmem:[%s274 + $0x194] sm:$0xf]
      %v384 = vld [vmem:[%s274 + $0x198] sm:$0xf]
      %v385 = vld [vmem:[%s274 + $0x19c] sm:$0xf]
      %v386 = vld [vmem:[%s274 + $0x1a0] sm:$0xf]
      %v387 = vld [vmem:[%s274 + $0x1a4] sm:$0xf]
      %v388 = vld [vmem:[%s274 + $0x1a8] sm:$0xf]
      %v389 = vld [vmem:[%s274 + $0x1ac] sm:$0xf]
      %v390 = vld [vmem:[%s274 + $0x1b0] sm:$0xf]
      %v391 = vld [vmem:[%s274 + $0x1b4] sm:$0xf]
      %v392 = vld [vmem:[%s274 + $0x1b8] sm:$0xf]
      %v393 = vld [vmem:[%s274 + $0x1bc] sm:$0xf]
      %v394 = vld [vmem:[%s274 + $0x1c0] sm:$0xf]
      %v395 = vld [vmem:[%s274 + $0x1c4] sm:$0xf]
      %v396 = vld [vmem:[%s1] sm:$0xff]
      %v397 = vld [vmem:[%s1 + $0x8] sm:$0xff]
      %v398 = vld [vmem:[%s1 + $0x10] sm:$0xff]
      %v399 = vld [vmem:[%s1 + $0x18] sm:$0xff]
      %v400 = vld [vmem:[%s1 + $0x20] sm:$0xff]
      %v401 = vld [vmem:[%s1 + $0x28] sm:$0xff]
      %v402 = vld [vmem:[%s1 + $0x30] sm:$0xff]
      %v403 = vld [vmem:[%s1 + $0x38] sm:$0xff]
      %v404 = vld [vmem:[%s1 + $0x40] sm:$0xff]
      %v405 = vld [vmem:[%s1 + $0x48] sm:$0xff]
      %v406 = vld [vmem:[%s1 + $0x50] sm:$0xff]
      %v407 = vld [vmem:[%s1 + $0x58] sm:$0xff]
      %v408 = vld [vmem:[%s1 + $0x60] sm:$0xff]
      %v409 = vld [vmem:[%s1 + $0x68] sm:$0xff]
      %v410 = vld [vmem:[%s1 + $0x70] sm:$0xff]
      %v411 = vld [vmem:[%s1 + $0x78] sm:$0xff]
      %v412 = vld [vmem:[%s4] sm:$0x3]
      %v414 = vperm.slane %v412, 0
      %v415 = vperm.slane %v412, 1
      %v532 = vunpack.c.l.b16 %v282
      %v533 = vunpack.c.l.b16 %v283
      %v534 = vunpack.c.l.b16 %v284
      %v535 = vunpack.c.l.b16 %v285
      %v536 = vunpack.c.l.b16 %v286
      %v537 = vunpack.c.l.b16 %v287
      %v538 = vunpack.c.l.b16 %v288
      %v539 = vunpack.c.l.b16 %v289
      %v540 = vunpack.c.l.b16 %v290
      %v541 = vunpack.c.l.b16 %v291
      %v542 = vunpack.c.l.b16 %v292
      %v543 = vunpack.c.l.b16 %v293
      %v544 = vunpack.c.l.b16 %v294
      %v545 = vunpack.c.l.b16 %v295
      %v546 = vunpack.c.l.b16 %v296
      %v547 = vunpack.c.l.b16 %v297
      %v548 = vunpack.c.l.b16 %v298
      %v549 = vunpack.c.l.b16 %v299
      %v550 = vunpack.c.l.b16 %v300
      %v551 = vunpack.c.l.b16 %v301
      %v552 = vunpack.c.l.b16 %v302
      %v553 = vunpack.c.l.b16 %v303
      %v554 = vunpack.c.l.b16 %v304
      %v555 = vunpack.c.l.b16 %v305
      %v556 = vunpack.c.l.b16 %v306
      %v557 = vunpack.c.l.b16 %v307
      %v558 = vunpack.c.l.b16 %v308
      %v559 = vunpack.c.l.b16 %v309
      %v560 = vunpack.c.l.b16 %v310
      %v561 = vunpack.c.l.b16 %v311
      %v562 = vunpack.c.l.b16 %v312
      %v563 = vunpack.c.l.b16 %v313
      %v564 = vunpack.c.l.b16 %v314
      %v565 = vunpack.c.l.b16 %v315
      %v566 = vunpack.c.l.b16 %v316
      %v567 = vunpack.c.l.b16 %v317
      %v568 = vunpack.c.l.b16 %v318
      %v569 = vunpack.c.l.b16 %v319
      %v570 = vunpack.c.l.b16 %v320
      %v571 = vunpack.c.l.b16 %v321
      %v572 = vunpack.c.l.b16 %v322
      %v573 = vunpack.c.l.b16 %v323
      %v574 = vunpack.c.l.b16 %v324
      %v575 = vunpack.c.l.b16 %v325
      %v576 = vunpack.c.l.b16 %v326
      %v577 = vunpack.c.l.b16 %v327
      %v578 = vunpack.c.l.b16 %v328
      %v579 = vunpack.c.l.b16 %v329
      %v580 = vunpack.c.l.b16 %v330
      %v581 = vunpack.c.l.b16 %v331
      %v582 = vunpack.c.l.b16 %v332
      %v583 = vunpack.c.l.b16 %v333
      %v584 = vunpack.c.l.b16 %v334
      %v585 = vunpack.c.l.b16 %v335
      %v586 = vunpack.c.l.b16 %v336
      %v587 = vunpack.c.l.b16 %v337
      %v588 = vunpack.c.l.b16 %v338
      %v589 = vunpack.c.l.b16 %v339
      %v590 = vunpack.c.l.b16 %v340
      %v591 = vunpack.c.l.b16 %v341
      %v592 = vunpack.c.l.b16 %v342
      %v593 = vunpack.c.l.b16 %v343
      %v594 = vunpack.c.l.b16 %v344
      %v595 = vunpack.c.l.b16 %v345
      %v596 = vunpack.c.l.b16 %v346
      %v597 = vunpack.c.l.b16 %v347
      %v598 = vunpack.c.l.b16 %v348
      %v599 = vunpack.c.l.b16 %v349
      %v600 = vunpack.c.l.b16 %v350
      %v601 = vunpack.c.l.b16 %v351
      %v602 = vunpack.c.l.b16 %v352
      %v603 = vunpack.c.l.b16 %v353
      %v604 = vunpack.c.l.b16 %v354
      %v605 = vunpack.c.l.b16 %v355
      %v606 = vunpack.c.l.b16 %v356
      %v607 = vunpack.c.l.b16 %v357
      %v608 = vunpack.c.l.b16 %v358
      %v609 = vunpack.c.l.b16 %v359
      %v610 = vunpack.c.l.b16 %v360
      %v611 = vunpack.c.l.b16 %v361
      %v612 = vunpack.c.l.b16 %v362
      %v613 = vunpack.c.l.b16 %v363
      %v614 = vunpack.c.l.b16 %v364
      %v615 = vunpack.c.l.b16 %v365
      %v616 = vunpack.c.l.b16 %v366
      %v617 = vunpack.c.l.b16 %v367
      %v618 = vunpack.c.l.b16 %v368
      %v619 = vunpack.c.l.b16 %v369
      %v620 = vunpack.c.l.b16 %v370
      %v621 = vunpack.c.l.b16 %v371
      %v622 = vunpack.c.l.b16 %v372
      %v623 = vunpack.c.l.b16 %v373
      %v624 = vunpack.c.l.b16 %v374
      %v625 = vunpack.c.l.b16 %v375
      %v626 = vunpack.c.l.b16 %v376
      %v627 = vunpack.c.l.b16 %v377
      %v628 = vunpack.c.l.b16 %v378
      %v629 = vunpack.c.l.b16 %v379
      %v630 = vunpack.c.l.b16 %v380
      %v631 = vunpack.c.l.b16 %v381
      %v632 = vunpack.c.l.b16 %v382
      %v633 = vunpack.c.l.b16 %v383
      %v634 = vunpack.c.l.b16 %v384
      %v635 = vunpack.c.l.b16 %v385
      %v636 = vunpack.c.l.b16 %v386
      %v637 = vunpack.c.l.b16 %v387
      %v638 = vunpack.c.l.b16 %v388
      %v639 = vunpack.c.l.b16 %v389
      %v640 = vunpack.c.l.b16 %v390
      %v641 = vunpack.c.l.b16 %v391
      %v642 = vunpack.c.l.b16 %v392
      %v643 = vunpack.c.l.b16 %v393
      %v644 = vunpack.c.l.b16 %v394
      %v645 = vunpack.c.l.b16 %v395
      %v646 = vpack.c.b16 %v533, %v532
      %v647 = vpack.c.b16 %v535, %v534
      %v648 = vpack.c.b16 %v537, %v536
      %v649 = vpack.c.b16 %v539, %v538
      %v650 = vpack.c.b16 %v541, %v540
      %v651 = vpack.c.b16 %v543, %v542
      %v652 = vpack.c.b16 %v545, %v544
      %v653 = vpack.c.b16 %v547, %v546
      %v654 = vpack.c.b16 %v549, %v548
      %v655 = vpack.c.b16 %v551, %v550
      %v656 = vpack.c.b16 %v553, %v552
      %v657 = vpack.c.b16 %v555, %v554
      %v658 = vpack.c.b16 %v557, %v556
      %v659 = vpack.c.b16 %v559, %v558
      %v660 = vpack.c.b16 %v561, %v560
      %v661 = vpack.c.b16 %v563, %v562
      %v662 = vpack.c.b16 %v565, %v564
      %v663 = vpack.c.b16 %v567, %v566
      %v664 = vpack.c.b16 %v569, %v568
      %v665 = vpack.c.b16 %v571, %v570
      %v666 = vpack.c.b16 %v573, %v572
      %v667 = vpack.c.b16 %v575, %v574
      %v668 = vpack.c.b16 %v577, %v576
      %v669 = vpack.c.b16 %v579, %v578
      %v670 = vpack.c.b16 %v581, %v580
      %v671 = vpack.c.b16 %v583, %v582
      %v672 = vpack.c.b16 %v585, %v584
      %v673 = vpack.c.b16 %v587, %v586
      %v674 = vpack.c.b16 %v589, %v588
      %v675 = vpack.c.b16 %v591, %v590
      %v676 = vpack.c.b16 %v593, %v592
      %v677 = vpack.c.b16 %v595, %v594
      %v678 = vpack.c.b16 %v597, %v596
      %v679 = vpack.c.b16 %v599, %v598
      %v680 = vpack.c.b16 %v601, %v600
      %v681 = vpack.c.b16 %v603, %v602
      %v682 = vpack.c.b16 %v605, %v604
      %v683 = vpack.c.b16 %v607, %v606
      %v684 = vpack.c.b16 %v609, %v608
      %v685 = vpack.c.b16 %v611, %v610
      %v686 = vpack.c.b16 %v613, %v612
      %v687 = vpack.c.b16 %v615, %v614
      %v688 = vpack.c.b16 %v617, %v616
      %v689 = vpack.c.b16 %v619, %v618
      %v690 = vpack.c.b16 %v621, %v620
      %v691 = vpack.c.b16 %v623, %v622
      %v692 = vpack.c.b16 %v625, %v624
      %v693 = vpack.c.b16 %v627, %v626
      %v694 = vpack.c.b16 %v629, %v628
      %v695 = vpack.c.b16 %v631, %v630
      %v696 = vpack.c.b16 %v633, %v632
      %v697 = vpack.c.b16 %v635, %v634
      %v698 = vpack.c.b16 %v637, %v636
      %v699 = vpack.c.b16 %v639, %v638
      %v700 = vpack.c.b16 %v641, %v640
      %v701 = vpack.c.b16 %v643, %v642
      %v702 = vpack.c.b16 %v645, %v644
      %v776 = vunpack.c.l.b16 %v396
      %v777 = vunpack.c.h.b16 %v396
      %v778 = vunpack.c.l.b16 %v397
      %v779 = vunpack.c.h.b16 %v397
      %v780 = vunpack.c.l.b16 %v398
      %v781 = vunpack.c.h.b16 %v398
      %v782 = vunpack.c.l.b16 %v399
      %v783 = vunpack.c.h.b16 %v399
      %v784 = vunpack.c.l.b16 %v400
      %v785 = vunpack.c.h.b16 %v400
      %v786 = vunpack.c.l.b16 %v401
      %v787 = vunpack.c.h.b16 %v401
      %v788 = vunpack.c.l.b16 %v402
      %v789 = vunpack.c.h.b16 %v402
      %v790 = vunpack.c.l.b16 %v403
      %v791 = vunpack.c.h.b16 %v403
      %v792 = vunpack.c.l.b16 %v404
      %v793 = vunpack.c.h.b16 %v404
      %v794 = vunpack.c.l.b16 %v405
      %v795 = vunpack.c.h.b16 %v405
      %v796 = vunpack.c.l.b16 %v406
      %v797 = vunpack.c.h.b16 %v406
      %v798 = vunpack.c.l.b16 %v407
      %v799 = vunpack.c.h.b16 %v407
      %v800 = vunpack.c.l.b16 %v408
      %v801 = vunpack.c.h.b16 %v408
      %v802 = vunpack.c.l.b16 %v409
      %v803 = vunpack.c.h.b16 %v409
      %v804 = vunpack.c.l.b16 %v410
      %v805 = vunpack.c.h.b16 %v410
      %v806 = vunpack.c.l.b16 %v411
      %v807 = vunpack.c.h.b16 %v411
      %v808 = vpack.c.b16 %v778, %v776
      %v809 = vpack.c.b16 %v779, %v777
      %v810 = vpack.c.b16 %v782, %v780
      %v811 = vpack.c.b16 %v783, %v781
      %v812 = vpack.c.b16 %v786, %v784
      %v813 = vpack.c.b16 %v787, %v785
      %v814 = vpack.c.b16 %v790, %v788
      %v815 = vpack.c.b16 %v791, %v789
      %v816 = vpack.c.b16 %v794, %v792
      %v817 = vpack.c.b16 %v795, %v793
      %v818 = vpack.c.b16 %v798, %v796
      %v819 = vpack.c.b16 %v799, %v797
      %v820 = vpack.c.b16 %v802, %v800
      %v821 = vpack.c.b16 %v803, %v801
      %v822 = vpack.c.b16 %v806, %v804
      %v823 = vpack.c.b16 %v807, %v805
      %840 = vmatpush.bf16.msra.mxu0 %v822
      %841 = vmatpush.bf16.msra.mxu0 %v820
      %842 = vmatpush.bf16.msra.mxu0 %v818
      %843 = vmatpush.bf16.msra.mxu0 %v816
      %844 = vmatpush.bf16.msra.mxu0 %v814
      %845 = vmatpush.bf16.msra.mxu0 %v812
      %846 = vmatpush.bf16.msra.mxu0 %v810
      %847 = vmatpush.bf16.msra.mxu0 %v808
      %848 = vmatmul.bf16.gmra.mxu0 %v646
      %v849 = vpop.f32.mrf.mxu0
      %v850 = vadd.f32 %v414, %v849
      %v851 = vpop.f32.mrf.mxu0
      %v852 = vadd.f32 %v414, %v851
      %853 = vmatmul.bf16.gmra.mxu0 %v647
      %v854 = vpop.f32.mrf.mxu0
      %v855 = vadd.f32 %v414, %v854
      %v856 = vpop.f32.mrf.mxu0
      %v857 = vadd.f32 %v414, %v856
      %858 = vmatmul.bf16.gmra.mxu0 %v648
      %v859 = vpop.f32.mrf.mxu0
      %v860 = vadd.f32 %v414, %v859
      %v861 = vpop.f32.mrf.mxu0
      %v862 = vadd.f32 %v414, %v861
      %863 = vmatmul.bf16.gmra.mxu0 %v649
      %v864 = vpop.f32.mrf.mxu0
      %v865 = vadd.f32 %v414, %v864
      %v866 = vpop.f32.mrf.mxu0
      %v867 = vadd.f32 %v414, %v866
      %868 = vmatmul.bf16.gmra.mxu0 %v650
      %v869 = vpop.f32.mrf.mxu0
      %v870 = vadd.f32 %v414, %v869
      %v871 = vpop.f32.mrf.mxu0
      %v872 = vadd.f32 %v414, %v871
      %873 = vmatmul.bf16.gmra.mxu0 %v651
      %v874 = vpop.f32.mrf.mxu0
      %v875 = vadd.f32 %v414, %v874
      %v876 = vpop.f32.mrf.mxu0
      %v877 = vadd.f32 %v414, %v876
      %878 = vmatmul.bf16.gmra.mxu0 %v652
      %v879 = vpop.f32.mrf.mxu0
      %v880 = vadd.f32 %v414, %v879
      %v881 = vpop.f32.mrf.mxu0
      %v882 = vadd.f32 %v414, %v881
      %883 = vmatmul.bf16.gmra.mxu0 %v653
      %v884 = vpop.f32.mrf.mxu0
      %v885 = vadd.f32 %v414, %v884
      %v886 = vpop.f32.mrf.mxu0
      %v887 = vadd.f32 %v414, %v886
      %888 = vmatmul.bf16.gmra.mxu0 %v654
      %v889 = vpop.f32.mrf.mxu0
      %v890 = vadd.f32 %v414, %v889
      %v891 = vpop.f32.mrf.mxu0
      %v892 = vadd.f32 %v414, %v891
      %893 = vmatmul.bf16.gmra.mxu0 %v655
      %v894 = vpop.f32.mrf.mxu0
      %v895 = vadd.f32 %v414, %v894
      %v896 = vpop.f32.mrf.mxu0
      %v897 = vadd.f32 %v414, %v896
      %898 = vmatmul.bf16.gmra.mxu0 %v656
      %v899 = vpop.f32.mrf.mxu0
      %v900 = vadd.f32 %v414, %v899
      %v901 = vpop.f32.mrf.mxu0
      %v902 = vadd.f32 %v414, %v901
      %903 = vmatmul.bf16.gmra.mxu0 %v657
      %v904 = vpop.f32.mrf.mxu0
      %v905 = vadd.f32 %v414, %v904
      %v906 = vpop.f32.mrf.mxu0
      %v907 = vadd.f32 %v414, %v906
      %908 = vmatmul.bf16.gmra.mxu0 %v658
      %v909 = vpop.f32.mrf.mxu0
      %v910 = vadd.f32 %v414, %v909
      %v911 = vpop.f32.mrf.mxu0
      %v912 = vadd.f32 %v414, %v911
      %913 = vmatmul.bf16.gmra.mxu0 %v659
      %v914 = vpop.f32.mrf.mxu0
      %v915 = vadd.f32 %v414, %v914
      %v916 = vpop.f32.mrf.mxu0
      %v917 = vadd.f32 %v414, %v916
      %918 = vmatmul.bf16.gmra.mxu0 %v660
      %v919 = vpop.f32.mrf.mxu0
      %v920 = vadd.f32 %v414, %v919
      %v921 = vpop.f32.mrf.mxu0
      %v922 = vadd.f32 %v414, %v921
      %923 = vmatmul.bf16.gmra.mxu0 %v661
      %v924 = vpop.f32.mrf.mxu0
      %v925 = vadd.f32 %v414, %v924
      %v926 = vpop.f32.mrf.mxu0
      %v927 = vadd.f32 %v414, %v926
      %928 = vmatmul.bf16.gmra.mxu0 %v662
      %v929 = vpop.f32.mrf.mxu0
      %v930 = vadd.f32 %v414, %v929
      %v931 = vpop.f32.mrf.mxu0
      %v932 = vadd.f32 %v414, %v931
      %933 = vmatmul.bf16.gmra.mxu0 %v663
      %v934 = vpop.f32.mrf.mxu0
      %v935 = vadd.f32 %v414, %v934
      %v936 = vpop.f32.mrf.mxu0
      %v937 = vadd.f32 %v414, %v936
      %938 = vmatmul.bf16.gmra.mxu0 %v664
      %v939 = vpop.f32.mrf.mxu0
      %v940 = vadd.f32 %v414, %v939
      %v941 = vpop.f32.mrf.mxu0
      %v942 = vadd.f32 %v414, %v941
      %943 = vmatmul.bf16.gmra.mxu0 %v665
      %v944 = vpop.f32.mrf.mxu0
      %v945 = vadd.f32 %v414, %v944
      %v946 = vpop.f32.mrf.mxu0
      %v947 = vadd.f32 %v414, %v946
      %948 = vmatmul.bf16.gmra.mxu0 %v666
      %v949 = vpop.f32.mrf.mxu0
      %v950 = vadd.f32 %v414, %v949
      %v951 = vpop.f32.mrf.mxu0
      %v952 = vadd.f32 %v414, %v951
      %953 = vmatmul.bf16.gmra.mxu0 %v667
      %v954 = vpop.f32.mrf.mxu0
      %v955 = vadd.f32 %v414, %v954
      %v956 = vpop.f32.mrf.mxu0
      %v957 = vadd.f32 %v414, %v956
      %958 = vmatmul.bf16.gmra.mxu0 %v668
      %v959 = vpop.f32.mrf.mxu0
      %v960 = vadd.f32 %v414, %v959
      %v961 = vpop.f32.mrf.mxu0
      %v962 = vadd.f32 %v414, %v961
      %963 = vmatmul.bf16.gmra.mxu0 %v669
      %v964 = vpop.f32.mrf.mxu0
      %v965 = vadd.f32 %v414, %v964
      %v966 = vpop.f32.mrf.mxu0
      %v967 = vadd.f32 %v414, %v966
      %968 = vmatmul.bf16.gmra.mxu0 %v670
      %v969 = vpop.f32.mrf.mxu0
      %v970 = vadd.f32 %v414, %v969
      %v971 = vpop.f32.mrf.mxu0
      %v972 = vadd.f32 %v414, %v971
      %973 = vmatmul.bf16.gmra.mxu0 %v671
      %v974 = vpop.f32.mrf.mxu0
      %v975 = vadd.f32 %v414, %v974
      %v976 = vpop.f32.mrf.mxu0
      %v977 = vadd.f32 %v414, %v976
      %978 = vmatmul.bf16.gmra.mxu0 %v672
      %v979 = vpop.f32.mrf.mxu0
      %v980 = vadd.f32 %v414, %v979
      %v981 = vpop.f32.mrf.mxu0
      %v982 = vadd.f32 %v414, %v981
      %983 = vmatmul.bf16.gmra.mxu0 %v673
      %v984 = vpop.f32.mrf.mxu0
      %v985 = vadd.f32 %v414, %v984
      %v986 = vpop.f32.mrf.mxu0
      %v987 = vadd.f32 %v414, %v986
      %988 = vmatmul.bf16.gmra.mxu0 %v674
      %v989 = vpop.f32.mrf.mxu0
      %v990 = vadd.f32 %v414, %v989
      %v991 = vpop.f32.mrf.mxu0
      %v992 = vadd.f32 %v414, %v991
      %993 = vmatmul.bf16.gmra.mxu0 %v675
      %v994 = vpop.f32.mrf.mxu0
      %v995 = vadd.f32 %v414, %v994
      %v996 = vpop.f32.mrf.mxu0
      %v997 = vadd.f32 %v414, %v996
      %998 = vmatmul.bf16.gmra.mxu0 %v676
      %v999 = vpop.f32.mrf.mxu0
      %v1000 = vadd.f32 %v414, %v999
      %v1001 = vpop.f32.mrf.mxu0
      %v1002 = vadd.f32 %v414, %v1001
      %1003 = vmatmul.bf16.gmra.mxu0 %v677
      %v1004 = vpop.f32.mrf.mxu0
      %v1005 = vadd.f32 %v414, %v1004
      %v1006 = vpop.f32.mrf.mxu0
      %v1007 = vadd.f32 %v414, %v1006
      %1008 = vmatmul.bf16.gmra.mxu0 %v678
      %v1009 = vpop.f32.mrf.mxu0
      %v1010 = vadd.f32 %v414, %v1009
      %v1011 = vpop.f32.mrf.mxu0
      %v1012 = vadd.f32 %v414, %v1011
      %1013 = vmatmul.bf16.gmra.mxu0 %v679
      %v1014 = vpop.f32.mrf.mxu0
      %v1015 = vadd.f32 %v414, %v1014
      %v1016 = vpop.f32.mrf.mxu0
      %v1017 = vadd.f32 %v414, %v1016
      %1018 = vmatmul.bf16.gmra.mxu0 %v680
      %v1019 = vpop.f32.mrf.mxu0
      %v1020 = vadd.f32 %v414, %v1019
      %v1021 = vpop.f32.mrf.mxu0
      %v1022 = vadd.f32 %v414, %v1021
      %1023 = vmatmul.bf16.gmra.mxu0 %v681
      %v1024 = vpop.f32.mrf.mxu0
      %v1025 = vadd.f32 %v414, %v1024
      %v1026 = vpop.f32.mrf.mxu0
      %v1027 = vadd.f32 %v414, %v1026
      %1028 = vmatmul.bf16.gmra.mxu0 %v682
      %v1029 = vpop.f32.mrf.mxu0
      %v1030 = vadd.f32 %v414, %v1029
      %v1031 = vpop.f32.mrf.mxu0
      %v1032 = vadd.f32 %v414, %v1031
      %1033 = vmatmul.bf16.gmra.mxu0 %v683
      %v1034 = vpop.f32.mrf.mxu0
      %v1035 = vadd.f32 %v414, %v1034
      %v1036 = vpop.f32.mrf.mxu0
      %v1037 = vadd.f32 %v414, %v1036
      %1038 = vmatmul.bf16.gmra.mxu0 %v684
      %v1039 = vpop.f32.mrf.mxu0
      %v1040 = vadd.f32 %v414, %v1039
      %v1041 = vpop.f32.mrf.mxu0
      %v1042 = vadd.f32 %v414, %v1041
      %1043 = vmatmul.bf16.gmra.mxu0 %v685
      %v1044 = vpop.f32.mrf.mxu0
      %v1045 = vadd.f32 %v414, %v1044
      %v1046 = vpop.f32.mrf.mxu0
      %v1047 = vadd.f32 %v414, %v1046
      %1048 = vmatmul.bf16.gmra.mxu0 %v686
      %v1049 = vpop.f32.mrf.mxu0
      %v1050 = vadd.f32 %v414, %v1049
      %v1051 = vpop.f32.mrf.mxu0
      %v1052 = vadd.f32 %v414, %v1051
      %1053 = vmatmul.bf16.gmra.mxu0 %v687
      %v1054 = vpop.f32.mrf.mxu0
      %v1055 = vadd.f32 %v414, %v1054
      %v1056 = vpop.f32.mrf.mxu0
      %v1057 = vadd.f32 %v414, %v1056
      %1058 = vmatmul.bf16.gmra.mxu0 %v688
      %v1059 = vpop.f32.mrf.mxu0
      %v1060 = vadd.f32 %v414, %v1059
      %v1061 = vpop.f32.mrf.mxu0
      %v1062 = vadd.f32 %v414, %v1061
      %1063 = vmatmul.bf16.gmra.mxu0 %v689
      %v1064 = vpop.f32.mrf.mxu0
      %v1065 = vadd.f32 %v414, %v1064
      %v1066 = vpop.f32.mrf.mxu0
      %v1067 = vadd.f32 %v414, %v1066
      %1068 = vmatmul.bf16.gmra.mxu0 %v690
      %v1069 = vpop.f32.mrf.mxu0
      %v1070 = vadd.f32 %v414, %v1069
      %v1071 = vpop.f32.mrf.mxu0
      %v1072 = vadd.f32 %v414, %v1071
      %1073 = vmatmul.bf16.gmra.mxu0 %v691
      %v1074 = vpop.f32.mrf.mxu0
      %v1075 = vadd.f32 %v414, %v1074
      %v1076 = vpop.f32.mrf.mxu0
      %v1077 = vadd.f32 %v414, %v1076
      %1078 = vmatmul.bf16.gmra.mxu0 %v692
      %v1079 = vpop.f32.mrf.mxu0
      %v1080 = vadd.f32 %v414, %v1079
      %v1081 = vpop.f32.mrf.mxu0
      %v1082 = vadd.f32 %v414, %v1081
      %1083 = vmatmul.bf16.gmra.mxu0 %v693
      %v1084 = vpop.f32.mrf.mxu0
      %v1085 = vadd.f32 %v414, %v1084
      %v1086 = vpop.f32.mrf.mxu0
      %v1087 = vadd.f32 %v414, %v1086
      %1088 = vmatmul.bf16.gmra.mxu0 %v694
      %v1089 = vpop.f32.mrf.mxu0
      %v1090 = vadd.f32 %v414, %v1089
      %v1091 = vpop.f32.mrf.mxu0
      %v1092 = vadd.f32 %v414, %v1091
      %1093 = vmatmul.bf16.gmra.mxu0 %v695
      %v1094 = vpop.f32.mrf.mxu0
      %v1095 = vadd.f32 %v414, %v1094
      %v1096 = vpop.f32.mrf.mxu0
      %v1097 = vadd.f32 %v414, %v1096
      %1098 = vmatmul.bf16.gmra.mxu0 %v696
      %v1099 = vpop.f32.mrf.mxu0
      %v1100 = vadd.f32 %v414, %v1099
      %v1101 = vpop.f32.mrf.mxu0
      %v1102 = vadd.f32 %v414, %v1101
      %1103 = vmatmul.bf16.gmra.mxu0 %v697
      %v1104 = vpop.f32.mrf.mxu0
      %v1105 = vadd.f32 %v414, %v1104
      %v1106 = vpop.f32.mrf.mxu0
      %v1107 = vadd.f32 %v414, %v1106
      %1108 = vmatmul.bf16.gmra.mxu0 %v698
      %v1109 = vpop.f32.mrf.mxu0
      %v1110 = vadd.f32 %v414, %v1109
      %v1111 = vpop.f32.mrf.mxu0
      %v1112 = vadd.f32 %v414, %v1111
      %1113 = vmatmul.bf16.gmra.mxu0 %v699
      %v1114 = vpop.f32.mrf.mxu0
      %v1115 = vadd.f32 %v414, %v1114
      %v1116 = vpop.f32.mrf.mxu0
      %v1117 = vadd.f32 %v414, %v1116
      %1118 = vmatmul.bf16.gmra.mxu0 %v700
      %v1119 = vpop.f32.mrf.mxu0
      %v1120 = vadd.f32 %v414, %v1119
      %v1121 = vpop.f32.mrf.mxu0
      %v1122 = vadd.f32 %v414, %v1121
      %1123 = vmatmul.bf16.gmra.mxu0 %v701
      %v1124 = vpop.f32.mrf.mxu0
      %v1125 = vadd.f32 %v414, %v1124
      %v1126 = vpop.f32.mrf.mxu0
      %v1127 = vadd.f32 %v414, %v1126
      %1128 = vmatmul.bf16.gmra.mxu0 %v702
      %v1129 = vpop.f32.mrf.mxu0
      %v1130 = vadd.f32 %v414, %v1129
      %v1131 = vpop.f32.mrf.mxu0
      %v1132 = vadd.f32 %v414, %v1131
      %1133 = vdwg.mxu0
      %1134 = vmatpush.bf16.msra.mxu0 %v823
      %1135 = vmatpush.bf16.msra.mxu0 %v821
      %1136 = vmatpush.bf16.msra.mxu0 %v819
      %1137 = vmatpush.bf16.msra.mxu0 %v817
      %1138 = vmatpush.bf16.msra.mxu0 %v815
      %1139 = vmatpush.bf16.msra.mxu0 %v813
      %1140 = vmatpush.bf16.msra.mxu0 %v811
      %1141 = vmatpush.bf16.msra.mxu0 %v809
      %1142 = vmatmul.bf16.gmra.mxu0 %v646
      %v1143 = vpop.f32.mrf.mxu0
      %v1144 = vadd.f32 %v415, %v1143
      %v1145 = vpop.f32.mrf.mxu0
      %v1146 = vadd.f32 %v415, %v1145
      %1147 = vmatmul.bf16.gmra.mxu0 %v647
      %v1148 = vpop.f32.mrf.mxu0
      %v1149 = vadd.f32 %v415, %v1148
      %v1150 = vpop.f32.mrf.mxu0
      %v1151 = vadd.f32 %v415, %v1150
      %1152 = vmatmul.bf16.gmra.mxu0 %v648
      %v1153 = vpop.f32.mrf.mxu0
      %v1154 = vadd.f32 %v415, %v1153
      %v1155 = vpop.f32.mrf.mxu0
      %v1156 = vadd.f32 %v415, %v1155
      %1157 = vmatmul.bf16.gmra.mxu0 %v649
      %v1158 = vpop.f32.mrf.mxu0
      %v1159 = vadd.f32 %v415, %v1158
      %v1160 = vpop.f32.mrf.mxu0
      %v1161 = vadd.f32 %v415, %v1160
      %1162 = vmatmul.bf16.gmra.mxu0 %v650
      %v1163 = vpop.f32.mrf.mxu0
      %v1164 = vadd.f32 %v415, %v1163
      %v1165 = vpop.f32.mrf.mxu0
      %v1166 = vadd.f32 %v415, %v1165
      %1167 = vmatmul.bf16.gmra.mxu0 %v651
      %v1168 = vpop.f32.mrf.mxu0
      %v1169 = vadd.f32 %v415, %v1168
      %v1170 = vpop.f32.mrf.mxu0
      %v1171 = vadd.f32 %v415, %v1170
      %1172 = vmatmul.bf16.gmra.mxu0 %v652
      %v1173 = vpop.f32.mrf.mxu0
      %v1174 = vadd.f32 %v415, %v1173
      %v1175 = vpop.f32.mrf.mxu0
      %v1176 = vadd.f32 %v415, %v1175
      %1177 = vmatmul.bf16.gmra.mxu0 %v653
      %v1178 = vpop.f32.mrf.mxu0
      %v1179 = vadd.f32 %v415, %v1178
      %v1180 = vpop.f32.mrf.mxu0
      %v1181 = vadd.f32 %v415, %v1180
      %1182 = vmatmul.bf16.gmra.mxu0 %v654
      %v1183 = vpop.f32.mrf.mxu0
      %v1184 = vadd.f32 %v415, %v1183
      %v1185 = vpop.f32.mrf.mxu0
      %v1186 = vadd.f32 %v415, %v1185
      %1187 = vmatmul.bf16.gmra.mxu0 %v655
      %v1188 = vpop.f32.mrf.mxu0
      %v1189 = vadd.f32 %v415, %v1188
      %v1190 = vpop.f32.mrf.mxu0
      %v1191 = vadd.f32 %v415, %v1190
      %1192 = vmatmul.bf16.gmra.mxu0 %v656
      %v1193 = vpop.f32.mrf.mxu0
      %v1194 = vadd.f32 %v415, %v1193
      %v1195 = vpop.f32.mrf.mxu0
      %v1196 = vadd.f32 %v415, %v1195
      %1197 = vmatmul.bf16.gmra.mxu0 %v657
      %v1198 = vpop.f32.mrf.mxu0
      %v1199 = vadd.f32 %v415, %v1198
      %v1200 = vpop.f32.mrf.mxu0
      %v1201 = vadd.f32 %v415, %v1200
      %1202 = vmatmul.bf16.gmra.mxu0 %v658
      %v1203 = vpop.f32.mrf.mxu0
      %v1204 = vadd.f32 %v415, %v1203
      %v1205 = vpop.f32.mrf.mxu0
      %v1206 = vadd.f32 %v415, %v1205
      %1207 = vmatmul.bf16.gmra.mxu0 %v659
      %v1208 = vpop.f32.mrf.mxu0
      %v1209 = vadd.f32 %v415, %v1208
      %v1210 = vpop.f32.mrf.mxu0
      %v1211 = vadd.f32 %v415, %v1210
      %1212 = vmatmul.bf16.gmra.mxu0 %v660
      %v1213 = vpop.f32.mrf.mxu0
      %v1214 = vadd.f32 %v415, %v1213
      %v1215 = vpop.f32.mrf.mxu0
      %v1216 = vadd.f32 %v415, %v1215
      %1217 = vmatmul.bf16.gmra.mxu0 %v661
      %v1218 = vpop.f32.mrf.mxu0
      %v1219 = vadd.f32 %v415, %v1218
      %v1220 = vpop.f32.mrf.mxu0
      %v1221 = vadd.f32 %v415, %v1220
      %1222 = vmatmul.bf16.gmra.mxu0 %v662
      %v1223 = vpop.f32.mrf.mxu0
      %v1224 = vadd.f32 %v415, %v1223
      %v1225 = vpop.f32.mrf.mxu0
      %v1226 = vadd.f32 %v415, %v1225
      %1227 = vmatmul.bf16.gmra.mxu0 %v663
      %v1228 = vpop.f32.mrf.mxu0
      %v1229 = vadd.f32 %v415, %v1228
      %v1230 = vpop.f32.mrf.mxu0
      %v1231 = vadd.f32 %v415, %v1230
      %1232 = vmatmul.bf16.gmra.mxu0 %v664
      %v1233 = vpop.f32.mrf.mxu0
      %v1234 = vadd.f32 %v415, %v1233
      %v1235 = vpop.f32.mrf.mxu0
      %v1236 = vadd.f32 %v415, %v1235
      %1237 = vmatmul.bf16.gmra.mxu0 %v665
      %v1238 = vpop.f32.mrf.mxu0
      %v1239 = vadd.f32 %v415, %v1238
      %v1240 = vpop.f32.mrf.mxu0
      %v1241 = vadd.f32 %v415, %v1240
      %1242 = vmatmul.bf16.gmra.mxu0 %v666
      %v1243 = vpop.f32.mrf.mxu0
      %v1244 = vadd.f32 %v415, %v1243
      %v1245 = vpop.f32.mrf.mxu0
      %v1246 = vadd.f32 %v415, %v1245
      %1247 = vmatmul.bf16.gmra.mxu0 %v667
      %v1248 = vpop.f32.mrf.mxu0
      %v1249 = vadd.f32 %v415, %v1248
      %v1250 = vpop.f32.mrf.mxu0
      %v1251 = vadd.f32 %v415, %v1250
      %1252 = vmatmul.bf16.gmra.mxu0 %v668
      %v1253 = vpop.f32.mrf.mxu0
      %v1254 = vadd.f32 %v415, %v1253
      %v1255 = vpop.f32.mrf.mxu0
      %v1256 = vadd.f32 %v415, %v1255
      %1257 = vmatmul.bf16.gmra.mxu0 %v669
      %v1258 = vpop.f32.mrf.mxu0
      %v1259 = vadd.f32 %v415, %v1258
      %v1260 = vpop.f32.mrf.mxu0
      %v1261 = vadd.f32 %v415, %v1260
      %1262 = vmatmul.bf16.gmra.mxu0 %v670
      %v1263 = vpop.f32.mrf.mxu0
      %v1264 = vadd.f32 %v415, %v1263
      %v1265 = vpop.f32.mrf.mxu0
      %v1266 = vadd.f32 %v415, %v1265
      %1267 = vmatmul.bf16.gmra.mxu0 %v671
      %v1268 = vpop.f32.mrf.mxu0
      %v1269 = vadd.f32 %v415, %v1268
      %v1270 = vpop.f32.mrf.mxu0
      %v1271 = vadd.f32 %v415, %v1270
      %1272 = vmatmul.bf16.gmra.mxu0 %v672
      %v1273 = vpop.f32.mrf.mxu0
      %v1274 = vadd.f32 %v415, %v1273
      %v1275 = vpop.f32.mrf.mxu0
      %v1276 = vadd.f32 %v415, %v1275
      %1277 = vmatmul.bf16.gmra.mxu0 %v673
      %v1278 = vpop.f32.mrf.mxu0
      %v1279 = vadd.f32 %v415, %v1278
      %v1280 = vpop.f32.mrf.mxu0
      %v1281 = vadd.f32 %v415, %v1280
      %1282 = vmatmul.bf16.gmra.mxu0 %v674
      %v1283 = vpop.f32.mrf.mxu0
      %v1284 = vadd.f32 %v415, %v1283
      %v1285 = vpop.f32.mrf.mxu0
      %v1286 = vadd.f32 %v415, %v1285
      %1287 = vmatmul.bf16.gmra.mxu0 %v675
      %v1288 = vpop.f32.mrf.mxu0
      %v1289 = vadd.f32 %v415, %v1288
      %v1290 = vpop.f32.mrf.mxu0
      %v1291 = vadd.f32 %v415, %v1290
      %1292 = vmatmul.bf16.gmra.mxu0 %v676
      %v1293 = vpop.f32.mrf.mxu0
      %v1294 = vadd.f32 %v415, %v1293
      %v1295 = vpop.f32.mrf.mxu0
      %v1296 = vadd.f32 %v415, %v1295
      %1297 = vmatmul.bf16.gmra.mxu0 %v677
      %v1298 = vpop.f32.mrf.mxu0
      %v1299 = vadd.f32 %v415, %v1298
      %v1300 = vpop.f32.mrf.mxu0
      %v1301 = vadd.f32 %v415, %v1300
      %1302 = vmatmul.bf16.gmra.mxu0 %v678
      %v1303 = vpop.f32.mrf.mxu0
      %v1304 = vadd.f32 %v415, %v1303
      %v1305 = vpop.f32.mrf.mxu0
      %v1306 = vadd.f32 %v415, %v1305
      %1307 = vmatmul.bf16.gmra.mxu0 %v679
      %v1308 = vpop.f32.mrf.mxu0
      %v1309 = vadd.f32 %v415, %v1308
      %v1310 = vpop.f32.mrf.mxu0
      %v1311 = vadd.f32 %v415, %v1310
      %1312 = vmatmul.bf16.gmra.mxu0 %v680
      %v1313 = vpop.f32.mrf.mxu0
      %v1314 = vadd.f32 %v415, %v1313
      %v1315 = vpop.f32.mrf.mxu0
      %v1316 = vadd.f32 %v415, %v1315
      %1317 = vmatmul.bf16.gmra.mxu0 %v681
      %v1318 = vpop.f32.mrf.mxu0
      %v1319 = vadd.f32 %v415, %v1318
      %v1320 = vpop.f32.mrf.mxu0
      %v1321 = vadd.f32 %v415, %v1320
      %1322 = vmatmul.bf16.gmra.mxu0 %v682
      %v1323 = vpop.f32.mrf.mxu0
      %v1324 = vadd.f32 %v415, %v1323
      %v1325 = vpop.f32.mrf.mxu0
      %v1326 = vadd.f32 %v415, %v1325
      %1327 = vmatmul.bf16.gmra.mxu0 %v683
      %v1328 = vpop.f32.mrf.mxu0
      %v1329 = vadd.f32 %v415, %v1328
      %v1330 = vpop.f32.mrf.mxu0
      %v1331 = vadd.f32 %v415, %v1330
      %1332 = vmatmul.bf16.gmra.mxu0 %v684
      %v1333 = vpop.f32.mrf.mxu0
      %v1334 = vadd.f32 %v415, %v1333
      %v1335 = vpop.f32.mrf.mxu0
      %v1336 = vadd.f32 %v415, %v1335
      %1337 = vmatmul.bf16.gmra.mxu0 %v685
      %v1338 = vpop.f32.mrf.mxu0
      %v1339 = vadd.f32 %v415, %v1338
      %v1340 = vpop.f32.mrf.mxu0
      %v1341 = vadd.f32 %v415, %v1340
      %1342 = vmatmul.bf16.gmra.mxu0 %v686
      %v1343 = vpop.f32.mrf.mxu0
      %v1344 = vadd.f32 %v415, %v1343
      %v1345 = vpop.f32.mrf.mxu0
      %v1346 = vadd.f32 %v415, %v1345
      %1347 = vmatmul.bf16.gmra.mxu0 %v687
      %v1348 = vpop.f32.mrf.mxu0
      %v1349 = vadd.f32 %v415, %v1348
      %v1350 = vpop.f32.mrf.mxu0
      %v1351 = vadd.f32 %v415, %v1350
      %1352 = vmatmul.bf16.gmra.mxu0 %v688
      %v1353 = vpop.f32.mrf.mxu0
      %v1354 = vadd.f32 %v415, %v1353
      %v1355 = vpop.f32.mrf.mxu0
      %v1356 = vadd.f32 %v415, %v1355
      %1357 = vmatmul.bf16.gmra.mxu0 %v689
      %v1358 = vpop.f32.mrf.mxu0
      %v1359 = vadd.f32 %v415, %v1358
      %v1360 = vpop.f32.mrf.mxu0
      %v1361 = vadd.f32 %v415, %v1360
      %1362 = vmatmul.bf16.gmra.mxu0 %v690
      %v1363 = vpop.f32.mrf.mxu0
      %v1364 = vadd.f32 %v415, %v1363
      %v1365 = vpop.f32.mrf.mxu0
      %v1366 = vadd.f32 %v415, %v1365
      %1367 = vmatmul.bf16.gmra.mxu0 %v691
      %v1368 = vpop.f32.mrf.mxu0
      %v1369 = vadd.f32 %v415, %v1368
      %v1370 = vpop.f32.mrf.mxu0
      %v1371 = vadd.f32 %v415, %v1370
      %1372 = vmatmul.bf16.gmra.mxu0 %v692
      %v1373 = vpop.f32.mrf.mxu0
      %v1374 = vadd.f32 %v415, %v1373
      %v1375 = vpop.f32.mrf.mxu0
      %v1376 = vadd.f32 %v415, %v1375
      %1377 = vmatmul.bf16.gmra.mxu0 %v693
      %v1378 = vpop.f32.mrf.mxu0
      %v1379 = vadd.f32 %v415, %v1378
      %v1380 = vpop.f32.mrf.mxu0
      %v1381 = vadd.f32 %v415, %v1380
      %1382 = vmatmul.bf16.gmra.mxu0 %v694
      %v1383 = vpop.f32.mrf.mxu0
      %v1384 = vadd.f32 %v415, %v1383
      %v1385 = vpop.f32.mrf.mxu0
      %v1386 = vadd.f32 %v415, %v1385
      %1387 = vmatmul.bf16.gmra.mxu0 %v695
      %v1388 = vpop.f32.mrf.mxu0
      %v1389 = vadd.f32 %v415, %v1388
      %v1390 = vpop.f32.mrf.mxu0
      %v1391 = vadd.f32 %v415, %v1390
      %1392 = vmatmul.bf16.gmra.mxu0 %v696
      %v1393 = vpop.f32.mrf.mxu0
      %v1394 = vadd.f32 %v415, %v1393
      %v1395 = vpop.f32.mrf.mxu0
      %v1396 = vadd.f32 %v415, %v1395
      %1397 = vmatmul.bf16.gmra.mxu0 %v697
      %v1398 = vpop.f32.mrf.mxu0
      %v1399 = vadd.f32 %v415, %v1398
      %v1400 = vpop.f32.mrf.mxu0
      %v1401 = vadd.f32 %v415, %v1400
      %1402 = vmatmul.bf16.gmra.mxu0 %v698
      %v1403 = vpop.f32.mrf.mxu0
      %v1404 = vadd.f32 %v415, %v1403
      %v1405 = vpop.f32.mrf.mxu0
      %v1406 = vadd.f32 %v415, %v1405
      %1407 = vmatmul.bf16.gmra.mxu0 %v699
      %v1408 = vpop.f32.mrf.mxu0
      %v1409 = vadd.f32 %v415, %v1408
      %v1410 = vpop.f32.mrf.mxu0
      %v1411 = vadd.f32 %v415, %v1410
      %1412 = vmatmul.bf16.gmra.mxu0 %v700
      %v1413 = vpop.f32.mrf.mxu0
      %v1414 = vadd.f32 %v415, %v1413
      %v1415 = vpop.f32.mrf.mxu0
      %v1416 = vadd.f32 %v415, %v1415
      %1417 = vmatmul.bf16.gmra.mxu0 %v701
      %v1418 = vpop.f32.mrf.mxu0
      %v1419 = vadd.f32 %v415, %v1418
      %v1420 = vpop.f32.mrf.mxu0
      %v1421 = vadd.f32 %v415, %v1420
      %1422 = vmatmul.bf16.gmra.mxu0 %v702
      %v1423 = vpop.f32.mrf.mxu0
      %v1424 = vadd.f32 %v415, %v1423
      %v1425 = vpop.f32.mrf.mxu0
      %v1426 = vadd.f32 %v415, %v1425
      %1427 = vdwg.mxu0
      %v1428 = vmax.f32 %v850, 0.0
      %v1429 = vmax.f32 %v1144, 0.0
      %v1430 = vmax.f32 %v852, 0.0
      %v1431 = vmax.f32 %v1146, 0.0
      %v1432 = vmax.f32 %v855, 0.0
      %v1433 = vmax.f32 %v1149, 0.0
      %v1434 = vmax.f32 %v857, 0.0
      %v1435 = vmax.f32 %v1151, 0.0
      %v1436 = vmax.f32 %v860, 0.0
      %v1437 = vmax.f32 %v1154, 0.0
      %v1438 = vmax.f32 %v862, 0.0
      %v1439 = vmax.f32 %v1156, 0.0
      %v1440 = vmax.f32 %v865, 0.0
      %v1441 = vmax.f32 %v1159, 0.0
      %v1442 = vmax.f32 %v867, 0.0
      %v1443 = vmax.f32 %v1161, 0.0
      %v1444 = vmax.f32 %v870, 0.0
      %v1445 = vmax.f32 %v1164, 0.0
      %v1446 = vmax.f32 %v872, 0.0
      %v1447 = vmax.f32 %v1166, 0.0
      %v1448 = vmax.f32 %v875, 0.0
      %v1449 = vmax.f32 %v1169, 0.0
      %v1450 = vmax.f32 %v877, 0.0
      %v1451 = vmax.f32 %v1171, 0.0
      %v1452 = vmax.f32 %v880, 0.0
      %v1453 = vmax.f32 %v1174, 0.0
      %v1454 = vmax.f32 %v882, 0.0
      %v1455 = vmax.f32 %v1176, 0.0
      %v1456 = vmax.f32 %v885, 0.0
      %v1457 = vmax.f32 %v1179, 0.0
      %v1458 = vmax.f32 %v887, 0.0
      %v1459 = vmax.f32 %v1181, 0.0
      %v1460 = vmax.f32 %v890, 0.0
      %v1461 = vmax.f32 %v1184, 0.0
      %v1462 = vmax.f32 %v892, 0.0
      %v1463 = vmax.f32 %v1186, 0.0
      %v1464 = vmax.f32 %v895, 0.0
      %v1465 = vmax.f32 %v1189, 0.0
      %v1466 = vmax.f32 %v897, 0.0
      %v1467 = vmax.f32 %v1191, 0.0
      %v1468 = vmax.f32 %v900, 0.0
      %v1469 = vmax.f32 %v1194, 0.0
      %v1470 = vmax.f32 %v902, 0.0
      %v1471 = vmax.f32 %v1196, 0.0
      %v1472 = vmax.f32 %v905, 0.0
      %v1473 = vmax.f32 %v1199, 0.0
      %v1474 = vmax.f32 %v907, 0.0
      %v1475 = vmax.f32 %v1201, 0.0
      %v1476 = vmax.f32 %v910, 0.0
      %v1477 = vmax.f32 %v1204, 0.0
      %v1478 = vmax.f32 %v912, 0.0
      %v1479 = vmax.f32 %v1206, 0.0
      %v1480 = vmax.f32 %v915, 0.0
      %v1481 = vmax.f32 %v1209, 0.0
      %v1482 = vmax.f32 %v917, 0.0
      %v1483 = vmax.f32 %v1211, 0.0
      %v1484 = vmax.f32 %v920, 0.0
      %v1485 = vmax.f32 %v1214, 0.0
      %v1486 = vmax.f32 %v922, 0.0
      %v1487 = vmax.f32 %v1216, 0.0
      %v1488 = vmax.f32 %v925, 0.0
      %v1489 = vmax.f32 %v1219, 0.0
      %v1490 = vmax.f32 %v927, 0.0
      %v1491 = vmax.f32 %v1221, 0.0
      %v1492 = vmax.f32 %v930, 0.0
      %v1493 = vmax.f32 %v1224, 0.0
      %v1494 = vmax.f32 %v932, 0.0
      %v1495 = vmax.f32 %v1226, 0.0
      %v1496 = vmax.f32 %v935, 0.0
      %v1497 = vmax.f32 %v1229, 0.0
      %v1498 = vmax.f32 %v937, 0.0
      %v1499 = vmax.f32 %v1231, 0.0
      %v1500 = vmax.f32 %v940, 0.0
      %v1501 = vmax.f32 %v1234, 0.0
      %v1502 = vmax.f32 %v942, 0.0
      %v1503 = vmax.f32 %v1236, 0.0
      %v1504 = vmax.f32 %v945, 0.0
      %v1505 = vmax.f32 %v1239, 0.0
      %v1506 = vmax.f32 %v947, 0.0
      %v1507 = vmax.f32 %v1241, 0.0
      %v1508 = vmax.f32 %v950, 0.0
      %v1509 = vmax.f32 %v1244, 0.0
      %v1510 = vmax.f32 %v952, 0.0
      %v1511 = vmax.f32 %v1246, 0.0
      %v1512 = vmax.f32 %v955, 0.0
      %v1513 = vmax.f32 %v1249, 0.0
      %v1514 = vmax.f32 %v957, 0.0
      %v1515 = vmax.f32 %v1251, 0.0
      %v1516 = vmax.f32 %v960, 0.0
      %v1517 = vmax.f32 %v1254, 0.0
      %v1518 = vmax.f32 %v962, 0.0
      %v1519 = vmax.f32 %v1256, 0.0
      %v1520 = vmax.f32 %v965, 0.0
      %v1521 = vmax.f32 %v1259, 0.0
      %v1522 = vmax.f32 %v967, 0.0
      %v1523 = vmax.f32 %v1261, 0.0
      %v1524 = vmax.f32 %v970, 0.0
      %v1525 = vmax.f32 %v1264, 0.0
      %v1526 = vmax.f32 %v972, 0.0
      %v1527 = vmax.f32 %v1266, 0.0
      %v1528 = vmax.f32 %v975, 0.0
      %v1529 = vmax.f32 %v1269, 0.0
      %v1530 = vmax.f32 %v977, 0.0
      %v1531 = vmax.f32 %v1271, 0.0
      %v1532 = vmax.f32 %v980, 0.0
      %v1533 = vmax.f32 %v1274, 0.0
      %v1534 = vmax.f32 %v982, 0.0
      %v1535 = vmax.f32 %v1276, 0.0
      %v1536 = vmax.f32 %v985, 0.0
      %v1537 = vmax.f32 %v1279, 0.0
      %v1538 = vmax.f32 %v987, 0.0
      %v1539 = vmax.f32 %v1281, 0.0
      %v1540 = vmax.f32 %v990, 0.0
      %v1541 = vmax.f32 %v1284, 0.0
      %v1542 = vmax.f32 %v992, 0.0
      %v1543 = vmax.f32 %v1286, 0.0
      %v1544 = vmax.f32 %v995, 0.0
      %v1545 = vmax.f32 %v1289, 0.0
      %v1546 = vmax.f32 %v997, 0.0
      %v1547 = vmax.f32 %v1291, 0.0
      %v1548 = vmax.f32 %v1000, 0.0
      %v1549 = vmax.f32 %v1294, 0.0
      %v1550 = vmax.f32 %v1002, 0.0
      %v1551 = vmax.f32 %v1296, 0.0
      %v1552 = vmax.f32 %v1005, 0.0
      %v1553 = vmax.f32 %v1299, 0.0
      %v1554 = vmax.f32 %v1007, 0.0
      %v1555 = vmax.f32 %v1301, 0.0
      %v1556 = vmax.f32 %v1010, 0.0
      %v1557 = vmax.f32 %v1304, 0.0
      %v1558 = vmax.f32 %v1012, 0.0
      %v1559 = vmax.f32 %v1306, 0.0
      %v1560 = vmax.f32 %v1015, 0.0
      %v1561 = vmax.f32 %v1309, 0.0
      %v1562 = vmax.f32 %v1017, 0.0
      %v1563 = vmax.f32 %v1311, 0.0
      %v1564 = vmax.f32 %v1020, 0.0
      %v1565 = vmax.f32 %v1314, 0.0
      %v1566 = vmax.f32 %v1022, 0.0
      %v1567 = vmax.f32 %v1316, 0.0
      %v1568 = vmax.f32 %v1025, 0.0
      %v1569 = vmax.f32 %v1319, 0.0
      %v1570 = vmax.f32 %v1027, 0.0
      %v1571 = vmax.f32 %v1321, 0.0
      %v1572 = vmax.f32 %v1030, 0.0
      %v1573 = vmax.f32 %v1324, 0.0
      %v1574 = vmax.f32 %v1032, 0.0
      %v1575 = vmax.f32 %v1326, 0.0
      %v1576 = vmax.f32 %v1035, 0.0
      %v1577 = vmax.f32 %v1329, 0.0
      %v1578 = vmax.f32 %v1037, 0.0
      %v1579 = vmax.f32 %v1331, 0.0
      %v1580 = vmax.f32 %v1040, 0.0
      %v1581 = vmax.f32 %v1334, 0.0
      %v1582 = vmax.f32 %v1042, 0.0
      %v1583 = vmax.f32 %v1336, 0.0
      %v1584 = vmax.f32 %v1045, 0.0
      %v1585 = vmax.f32 %v1339, 0.0
      %v1586 = vmax.f32 %v1047, 0.0
      %v1587 = vmax.f32 %v1341, 0.0
      %v1588 = vmax.f32 %v1050, 0.0
      %v1589 = vmax.f32 %v1344, 0.0
      %v1590 = vmax.f32 %v1052, 0.0
      %v1591 = vmax.f32 %v1346, 0.0
      %v1592 = vmax.f32 %v1055, 0.0
      %v1593 = vmax.f32 %v1349, 0.0
      %v1594 = vmax.f32 %v1057, 0.0
      %v1595 = vmax.f32 %v1351, 0.0
      %v1596 = vmax.f32 %v1060, 0.0
      %v1597 = vmax.f32 %v1354, 0.0
      %v1598 = vmax.f32 %v1062, 0.0
      %v1599 = vmax.f32 %v1356, 0.0
      %v1600 = vmax.f32 %v1065, 0.0
      %v1601 = vmax.f32 %v1359, 0.0
      %v1602 = vmax.f32 %v1067, 0.0
      %v1603 = vmax.f32 %v1361, 0.0
      %v1604 = vmax.f32 %v1070, 0.0
      %v1605 = vmax.f32 %v1364, 0.0
      %v1606 = vmax.f32 %v1072, 0.0
      %v1607 = vmax.f32 %v1366, 0.0
      %v1608 = vmax.f32 %v1075, 0.0
      %v1609 = vmax.f32 %v1369, 0.0
      %v1610 = vmax.f32 %v1077, 0.0
      %v1611 = vmax.f32 %v1371, 0.0
      %v1612 = vmax.f32 %v1080, 0.0
      %v1613 = vmax.f32 %v1374, 0.0
      %v1614 = vmax.f32 %v1082, 0.0
      %v1615 = vmax.f32 %v1376, 0.0
      %v1616 = vmax.f32 %v1085, 0.0
      %v1617 = vmax.f32 %v1379, 0.0
      %v1618 = vmax.f32 %v1087, 0.0
      %v1619 = vmax.f32 %v1381, 0.0
      %v1620 = vmax.f32 %v1090, 0.0
      %v1621 = vmax.f32 %v1384, 0.0
      %v1622 = vmax.f32 %v1092, 0.0
      %v1623 = vmax.f32 %v1386, 0.0
      %v1624 = vmax.f32 %v1095, 0.0
      %v1625 = vmax.f32 %v1389, 0.0
      %v1626 = vmax.f32 %v1097, 0.0
      %v1627 = vmax.f32 %v1391, 0.0
      %v1628 = vmax.f32 %v1100, 0.0
      %v1629 = vmax.f32 %v1394, 0.0
      %v1630 = vmax.f32 %v1102, 0.0
      %v1631 = vmax.f32 %v1396, 0.0
      %v1632 = vmax.f32 %v1105, 0.0
      %v1633 = vmax.f32 %v1399, 0.0
      %v1634 = vmax.f32 %v1107, 0.0
      %v1635 = vmax.f32 %v1401, 0.0
      %v1636 = vmax.f32 %v1110, 0.0
      %v1637 = vmax.f32 %v1404, 0.0
      %v1638 = vmax.f32 %v1112, 0.0
      %v1639 = vmax.f32 %v1406, 0.0
      %v1640 = vmax.f32 %v1115, 0.0
      %v1641 = vmax.f32 %v1409, 0.0
      %v1642 = vmax.f32 %v1117, 0.0
      %v1643 = vmax.f32 %v1411, 0.0
      %v1644 = vmax.f32 %v1120, 0.0
      %v1645 = vmax.f32 %v1414, 0.0
      %v1646 = vmax.f32 %v1122, 0.0
      %v1647 = vmax.f32 %v1416, 0.0
      %v1648 = vmax.f32 %v1125, 0.0
      %v1649 = vmax.f32 %v1419, 0.0
      %v1650 = vmax.f32 %v1127, 0.0
      %v1651 = vmax.f32 %v1421, 0.0
      %v1652 = vmax.f32 %v1130, 0.0
      %v1653 = vmax.f32 %v1424, 0.0
      %v1654 = vmax.f32 %v1132, 0.0
      %v1655 = vmax.f32 %v1426, 0.0
      %v1656 = vpack.c.bf16 %v1430, %v1428
      %v1657 = vpack.c.bf16 %v1431, %v1429
      %v1658 = vpack.c.bf16 %v1434, %v1432
      %v1659 = vpack.c.bf16 %v1435, %v1433
      %v1660 = vpack.c.bf16 %v1438, %v1436
      %v1661 = vpack.c.bf16 %v1439, %v1437
      %v1662 = vpack.c.bf16 %v1442, %v1440
      %v1663 = vpack.c.bf16 %v1443, %v1441
      %v1664 = vpack.c.bf16 %v1446, %v1444
      %v1665 = vpack.c.bf16 %v1447, %v1445
      %v1666 = vpack.c.bf16 %v1450, %v1448
      %v1667 = vpack.c.bf16 %v1451, %v1449
      %v1668 = vpack.c.bf16 %v1454, %v1452
      %v1669 = vpack.c.bf16 %v1455, %v1453
      %v1670 = vpack.c.bf16 %v1458, %v1456
      %v1671 = vpack.c.bf16 %v1459, %v1457
      %v1672 = vpack.c.bf16 %v1462, %v1460
      %v1673 = vpack.c.bf16 %v1463, %v1461
      %v1674 = vpack.c.bf16 %v1466, %v1464
      %v1675 = vpack.c.bf16 %v1467, %v1465
      %v1676 = vpack.c.bf16 %v1470, %v1468
      %v1677 = vpack.c.bf16 %v1471, %v1469
      %v1678 = vpack.c.bf16 %v1474, %v1472
      %v1679 = vpack.c.bf16 %v1475, %v1473
      %v1680 = vpack.c.bf16 %v1478, %v1476
      %v1681 = vpack.c.bf16 %v1479, %v1477
      %v1682 = vpack.c.bf16 %v1482, %v1480
      %v1683 = vpack.c.bf16 %v1483, %v1481
      %v1684 = vpack.c.bf16 %v1486, %v1484
      %v1685 = vpack.c.bf16 %v1487, %v1485
      %v1686 = vpack.c.bf16 %v1490, %v1488
      %v1687 = vpack.c.bf16 %v1491, %v1489
      %v1688 = vpack.c.bf16 %v1494, %v1492
      %v1689 = vpack.c.bf16 %v1495, %v1493
      %v1690 = vpack.c.bf16 %v1498, %v1496
      %v1691 = vpack.c.bf16 %v1499, %v1497
      %v1692 = vpack.c.bf16 %v1502, %v1500
      %v1693 = vpack.c.bf16 %v1503, %v1501
      %v1694 = vpack.c.bf16 %v1506, %v1504
      %v1695 = vpack.c.bf16 %v1507, %v1505
      %v1696 = vpack.c.bf16 %v1510, %v1508
      %v1697 = vpack.c.bf16 %v1511, %v1509
      %v1698 = vpack.c.bf16 %v1514, %v1512
      %v1699 = vpack.c.bf16 %v1515, %v1513
      %v1700 = vpack.c.bf16 %v1518, %v1516
      %v1701 = vpack.c.bf16 %v1519, %v1517
      %v1702 = vpack.c.bf16 %v1522, %v1520
      %v1703 = vpack.c.bf16 %v1523, %v1521
      %v1704 = vpack.c.bf16 %v1526, %v1524
      %v1705 = vpack.c.bf16 %v1527, %v1525
      %v1706 = vpack.c.bf16 %v1530, %v1528
      %v1707 = vpack.c.bf16 %v1531, %v1529
      %v1708 = vpack.c.bf16 %v1534, %v1532
      %v1709 = vpack.c.bf16 %v1535, %v1533
      %v1710 = vpack.c.bf16 %v1538, %v1536
      %v1711 = vpack.c.bf16 %v1539, %v1537
      %v1712 = vpack.c.bf16 %v1542, %v1540
      %v1713 = vpack.c.bf16 %v1543, %v1541
      %v1714 = vpack.c.bf16 %v1546, %v1544
      %v1715 = vpack.c.bf16 %v1547, %v1545
      %v1716 = vpack.c.bf16 %v1550, %v1548
      %v1717 = vpack.c.bf16 %v1551, %v1549
      %v1718 = vpack.c.bf16 %v1554, %v1552
      %v1719 = vpack.c.bf16 %v1555, %v1553
      %v1720 = vpack.c.bf16 %v1558, %v1556
      %v1721 = vpack.c.bf16 %v1559, %v1557
      %v1722 = vpack.c.bf16 %v1562, %v1560
      %v1723 = vpack.c.bf16 %v1563, %v1561
      %v1724 = vpack.c.bf16 %v1566, %v1564
      %v1725 = vpack.c.bf16 %v1567, %v1565
      %v1726 = vpack.c.bf16 %v1570, %v1568
      %v1727 = vpack.c.bf16 %v1571, %v1569
      %v1728 = vpack.c.bf16 %v1574, %v1572
      %v1729 = vpack.c.bf16 %v1575, %v1573
      %v1730 = vpack.c.bf16 %v1578, %v1576
      %v1731 = vpack.c.bf16 %v1579, %v1577
      %v1732 = vpack.c.bf16 %v1582, %v1580
      %v1733 = vpack.c.bf16 %v1583, %v1581
      %v1734 = vpack.c.bf16 %v1586, %v1584
      %v1735 = vpack.c.bf16 %v1587, %v1585
      %v1736 = vpack.c.bf16 %v1590, %v1588
      %v1737 = vpack.c.bf16 %v1591, %v1589
      %v1738 = vpack.c.bf16 %v1594, %v1592
      %v1739 = vpack.c.bf16 %v1595, %v1593
      %v1740 = vpack.c.bf16 %v1598, %v1596
      %v1741 = vpack.c.bf16 %v1599, %v1597
      %v1742 = vpack.c.bf16 %v1602, %v1600
      %v1743 = vpack.c.bf16 %v1603, %v1601
      %v1744 = vpack.c.bf16 %v1606, %v1604
      %v1745 = vpack.c.bf16 %v1607, %v1605
      %v1746 = vpack.c.bf16 %v1610, %v1608
      %v1747 = vpack.c.bf16 %v1611, %v1609
      %v1748 = vpack.c.bf16 %v1614, %v1612
      %v1749 = vpack.c.bf16 %v1615, %v1613
      %v1750 = vpack.c.bf16 %v1618, %v1616
      %v1751 = vpack.c.bf16 %v1619, %v1617
      %v1752 = vpack.c.bf16 %v1622, %v1620
      %v1753 = vpack.c.bf16 %v1623, %v1621
      %v1754 = vpack.c.bf16 %v1626, %v1624
      %v1755 = vpack.c.bf16 %v1627, %v1625
      %v1756 = vpack.c.bf16 %v1630, %v1628
      %v1757 = vpack.c.bf16 %v1631, %v1629
      %v1758 = vpack.c.bf16 %v1634, %v1632
      %v1759 = vpack.c.bf16 %v1635, %v1633
      %v1760 = vpack.c.bf16 %v1638, %v1636
      %v1761 = vpack.c.bf16 %v1639, %v1637
      %v1762 = vpack.c.bf16 %v1642, %v1640
      %v1763 = vpack.c.bf16 %v1643, %v1641
      %v1764 = vpack.c.bf16 %v1646, %v1644
      %v1765 = vpack.c.bf16 %v1647, %v1645
      %v1766 = vpack.c.bf16 %v1650, %v1648
      %v1767 = vpack.c.bf16 %v1651, %v1649
      %v1768 = vpack.c.bf16 %v1654, %v1652
      %v1769 = vpack.c.bf16 %v1655, %v1653
      %v1770 = vld [vmem:[%s2] sm:$0xff]
      %v1771 = vld [vmem:[%s2 + $0x8] sm:$0xff]
      %v1772 = vld [vmem:[%s2 + $0x10] sm:$0xff]
      %v1773 = vld [vmem:[%s2 + $0x18] sm:$0xff]
      %v1774 = vld [vmem:[%s2 + $0x20] sm:$0xff]
      %v1775 = vld [vmem:[%s2 + $0x28] sm:$0xff]
      %v1776 = vld [vmem:[%s2 + $0x30] sm:$0xff]
      %v1777 = vld [vmem:[%s2 + $0x38] sm:$0xff]
      %v1778 = vld [vmem:[%s2 + $0x40] sm:$0xff]
      %v1779 = vld [vmem:[%s2 + $0x48] sm:$0xff]
      %v1780 = vld [vmem:[%s2 + $0x50] sm:$0xff]
      %v1781 = vld [vmem:[%s2 + $0x58] sm:$0xff]
      %v1782 = vld [vmem:[%s2 + $0x60] sm:$0xff]
      %v1783 = vld [vmem:[%s2 + $0x68] sm:$0xff]
      %v1784 = vld [vmem:[%s2 + $0x70] sm:$0xff]
      %v1785 = vld [vmem:[%s2 + $0x78] sm:$0xff]
      %v1786 = vld [vmem:[%s2 + $0x80] sm:$0xff]
      %v1787 = vld [vmem:[%s2 + $0x88] sm:$0xff]
      %v1788 = vld [vmem:[%s2 + $0x90] sm:$0xff]
      %v1789 = vld [vmem:[%s2 + $0x98] sm:$0xff]
      %v1790 = vld [vmem:[%s2 + $0xa0] sm:$0xff]
      %v1791 = vld [vmem:[%s2 + $0xa8] sm:$0xff]
      %v1792 = vld [vmem:[%s2 + $0xb0] sm:$0xff]
      %v1793 = vld [vmem:[%s2 + $0xb8] sm:$0xff]
      %v1794 = vld [vmem:[%s2 + $0xc0] sm:$0xff]
      %v1795 = vld [vmem:[%s2 + $0xc8] sm:$0xff]
      %v1796 = vld [vmem:[%s2 + $0xd0] sm:$0xff]
      %v1797 = vld [vmem:[%s2 + $0xd8] sm:$0xff]
      %v1798 = vld [vmem:[%s2 + $0xe0] sm:$0xff]
      %v1799 = vld [vmem:[%s2 + $0xe8] sm:$0xff]
      %v1800 = vld [vmem:[%s2 + $0xf0] sm:$0xff]
      %v1801 = vld [vmem:[%s2 + $0xf8] sm:$0xff]
      %v1802 = vld [vmem:[%s5] sm:$0x3]
      %v1804 = vperm.slane %v1802, 0
      %v1805 = vperm.slane %v1802, 1
      %v1840 = vunpack.c.l.b16 %v1770
      %v1841 = vunpack.c.h.b16 %v1770
      %v1842 = vunpack.c.l.b16 %v1771
      %v1843 = vunpack.c.h.b16 %v1771
      %v1844 = vunpack.c.l.b16 %v1772
      %v1845 = vunpack.c.h.b16 %v1772
      %v1846 = vunpack.c.l.b16 %v1773
      %v1847 = vunpack.c.h.b16 %v1773
      %v1848 = vunpack.c.l.b16 %v1774
      %v1849 = vunpack.c.h.b16 %v1774
      %v1850 = vunpack.c.l.b16 %v1775
      %v1851 = vunpack.c.h.b16 %v1775
      %v1852 = vunpack.c.l.b16 %v1776
      %v1853 = vunpack.c.h.b16 %v1776
      %v1854 = vunpack.c.l.b16 %v1777
      %v1855 = vunpack.c.h.b16 %v1777
      %v1856 = vunpack.c.l.b16 %v1778
      %v1857 = vunpack.c.h.b16 %v1778
      %v1858 = vunpack.c.l.b16 %v1779
      %v1859 = vunpack.c.h.b16 %v1779
      %v1860 = vunpack.c.l.b16 %v1780
      %v1861 = vunpack.c.h.b16 %v1780
      %v1862 = vunpack.c.l.b16 %v1781
      %v1863 = vunpack.c.h.b16 %v1781
      %v1864 = vunpack.c.l.b16 %v1782
      %v1865 = vunpack.c.h.b16 %v1782
      %v1866 = vunpack.c.l.b16 %v1783
      %v1867 = vunpack.c.h.b16 %v1783
      %v1868 = vunpack.c.l.b16 %v1784
      %v1869 = vunpack.c.h.b16 %v1784
      %v1870 = vunpack.c.l.b16 %v1785
      %v1871 = vunpack.c.h.b16 %v1785
      %v1872 = vunpack.c.l.b16 %v1786
      %v1873 = vunpack.c.h.b16 %v1786
      %v1874 = vunpack.c.l.b16 %v1787
      %v1875 = vunpack.c.h.b16 %v1787
      %v1876 = vunpack.c.l.b16 %v1788
      %v1877 = vunpack.c.h.b16 %v1788
      %v1878 = vunpack.c.l.b16 %v1789
      %v1879 = vunpack.c.h.b16 %v1789
      %v1880 = vunpack.c.l.b16 %v1790
      %v1881 = vunpack.c.h.b16 %v1790
      %v1882 = vunpack.c.l.b16 %v1791
      %v1883 = vunpack.c.h.b16 %v1791
      %v1884 = vunpack.c.l.b16 %v1792
      %v1885 = vunpack.c.h.b16 %v1792
      %v1886 = vunpack.c.l.b16 %v1793
      %v1887 = vunpack.c.h.b16 %v1793
      %v1888 = vunpack.c.l.b16 %v1794
      %v1889 = vunpack.c.h.b16 %v1794
      %v1890 = vunpack.c.l.b16 %v1795
      %v1891 = vunpack.c.h.b16 %v1795
      %v1892 = vunpack.c.l.b16 %v1796
      %v1893 = vunpack.c.h.b16 %v1796
      %v1894 = vunpack.c.l.b16 %v1797
      %v1895 = vunpack.c.h.b16 %v1797
      %v1896 = vunpack.c.l.b16 %v1798
      %v1897 = vunpack.c.h.b16 %v1798
      %v1898 = vunpack.c.l.b16 %v1799
      %v1899 = vunpack.c.h.b16 %v1799
      %v1900 = vunpack.c.l.b16 %v1800
      %v1901 = vunpack.c.h.b16 %v1800
      %v1902 = vunpack.c.l.b16 %v1801
      %v1903 = vunpack.c.h.b16 %v1801
      %v1904 = vpack.c.b16 %v1842, %v1840
      %v1905 = vpack.c.b16 %v1843, %v1841
      %v1906 = vpack.c.b16 %v1846, %v1844
      %v1907 = vpack.c.b16 %v1847, %v1845
      %v1908 = vpack.c.b16 %v1850, %v1848
      %v1909 = vpack.c.b16 %v1851, %v1849
      %v1910 = vpack.c.b16 %v1854, %v1852
      %v1911 = vpack.c.b16 %v1855, %v1853
      %v1912 = vpack.c.b16 %v1858, %v1856
      %v1913 = vpack.c.b16 %v1859, %v1857
      %v1914 = vpack.c.b16 %v1862, %v1860
      %v1915 = vpack.c.b16 %v1863, %v1861
      %v1916 = vpack.c.b16 %v1866, %v1864
      %v1917 = vpack.c.b16 %v1867, %v1865
      %v1918 = vpack.c.b16 %v1870, %v1868
      %v1919 = vpack.c.b16 %v1871, %v1869
      %v1920 = vpack.c.b16 %v1874, %v1872
      %v1921 = vpack.c.b16 %v1875, %v1873
      %v1922 = vpack.c.b16 %v1878, %v1876
      %v1923 = vpack.c.b16 %v1879, %v1877
      %v1924 = vpack.c.b16 %v1882, %v1880
      %v1925 = vpack.c.b16 %v1883, %v1881
      %v1926 = vpack.c.b16 %v1886, %v1884
      %v1927 = vpack.c.b16 %v1887, %v1885
      %v1928 = vpack.c.b16 %v1890, %v1888
      %v1929 = vpack.c.b16 %v1891, %v1889
      %v1930 = vpack.c.b16 %v1894, %v1892
      %v1931 = vpack.c.b16 %v1895, %v1893
      %v1932 = vpack.c.b16 %v1898, %v1896
      %v1933 = vpack.c.b16 %v1899, %v1897
      %v1934 = vpack.c.b16 %v1902, %v1900
      %v1935 = vpack.c.b16 %v1903, %v1901
      %1968 = vmatpush.bf16.msra.mxu0 %v1918
      %1969 = vmatpush.bf16.msra.mxu0 %v1916
      %1970 = vmatpush.bf16.msra.mxu0 %v1914
      %1971 = vmatpush.bf16.msra.mxu0 %v1912
      %1972 = vmatpush.bf16.msra.mxu0 %v1910
      %1973 = vmatpush.bf16.msra.mxu0 %v1908
      %1974 = vmatpush.bf16.msra.mxu0 %v1906
      %1975 = vmatpush.bf16.msra.mxu0 %v1904
      %1976 = vmatmul.bf16.gmra.mxu0 %v1656
      %v1977 = vpop.f32.mrf.mxu0
      %v1978 = vadd.f32 %v1804, %v1977
      %v1979 = vpop.f32.mrf.mxu0
      %v1980 = vadd.f32 %v1804, %v1979
      %1981 = vmatmul.bf16.gmra.mxu0 %v1658
      %v1982 = vpop.f32.mrf.mxu0
      %v1983 = vadd.f32 %v1804, %v1982
      %v1984 = vpop.f32.mrf.mxu0
      %v1985 = vadd.f32 %v1804, %v1984
      %1986 = vmatmul.bf16.gmra.mxu0 %v1660
      %v1987 = vpop.f32.mrf.mxu0
      %v1988 = vadd.f32 %v1804, %v1987
      %v1989 = vpop.f32.mrf.mxu0
      %v1990 = vadd.f32 %v1804, %v1989
      %1991 = vmatmul.bf16.gmra.mxu0 %v1662
      %v1992 = vpop.f32.mrf.mxu0
      %v1993 = vadd.f32 %v1804, %v1992
      %v1994 = vpop.f32.mrf.mxu0
      %v1995 = vadd.f32 %v1804, %v1994
      %1996 = vmatmul.bf16.gmra.mxu0 %v1664
      %v1997 = vpop.f32.mrf.mxu0
      %v1998 = vadd.f32 %v1804, %v1997
      %v1999 = vpop.f32.mrf.mxu0
      %v2000 = vadd.f32 %v1804, %v1999
      %2001 = vmatmul.bf16.gmra.mxu0 %v1666
      %v2002 = vpop.f32.mrf.mxu0
      %v2003 = vadd.f32 %v1804, %v2002
      %v2004 = vpop.f32.mrf.mxu0
      %v2005 = vadd.f32 %v1804, %v2004
      %2006 = vmatmul.bf16.gmra.mxu0 %v1668
      %v2007 = vpop.f32.mrf.mxu0
      %v2008 = vadd.f32 %v1804, %v2007
      %v2009 = vpop.f32.mrf.mxu0
      %v2010 = vadd.f32 %v1804, %v2009
      %2011 = vmatmul.bf16.gmra.mxu0 %v1670
      %v2012 = vpop.f32.mrf.mxu0
      %v2013 = vadd.f32 %v1804, %v2012
      %v2014 = vpop.f32.mrf.mxu0
      %v2015 = vadd.f32 %v1804, %v2014
      %2016 = vmatmul.bf16.gmra.mxu0 %v1672
      %v2017 = vpop.f32.mrf.mxu0
      %v2018 = vadd.f32 %v1804, %v2017
      %v2019 = vpop.f32.mrf.mxu0
      %v2020 = vadd.f32 %v1804, %v2019
      %2021 = vmatmul.bf16.gmra.mxu0 %v1674
      %v2022 = vpop.f32.mrf.mxu0
      %v2023 = vadd.f32 %v1804, %v2022
      %v2024 = vpop.f32.mrf.mxu0
      %v2025 = vadd.f32 %v1804, %v2024
      %2026 = vmatmul.bf16.gmra.mxu0 %v1676
      %v2027 = vpop.f32.mrf.mxu0
      %v2028 = vadd.f32 %v1804, %v2027
      %v2029 = vpop.f32.mrf.mxu0
      %v2030 = vadd.f32 %v1804, %v2029
      %2031 = vmatmul.bf16.gmra.mxu0 %v1678
      %v2032 = vpop.f32.mrf.mxu0
      %v2033 = vadd.f32 %v1804, %v2032
      %v2034 = vpop.f32.mrf.mxu0
      %v2035 = vadd.f32 %v1804, %v2034
      %2036 = vmatmul.bf16.gmra.mxu0 %v1680
      %v2037 = vpop.f32.mrf.mxu0
      %v2038 = vadd.f32 %v1804, %v2037
      %v2039 = vpop.f32.mrf.mxu0
      %v2040 = vadd.f32 %v1804, %v2039
      %2041 = vmatmul.bf16.gmra.mxu0 %v1682
      %v2042 = vpop.f32.mrf.mxu0
      %v2043 = vadd.f32 %v1804, %v2042
      %v2044 = vpop.f32.mrf.mxu0
      %v2045 = vadd.f32 %v1804, %v2044
      %2046 = vmatmul.bf16.gmra.mxu0 %v1684
      %v2047 = vpop.f32.mrf.mxu0
      %v2048 = vadd.f32 %v1804, %v2047
      %v2049 = vpop.f32.mrf.mxu0
      %v2050 = vadd.f32 %v1804, %v2049
      %2051 = vmatmul.bf16.gmra.mxu0 %v1686
      %v2052 = vpop.f32.mrf.mxu0
      %v2053 = vadd.f32 %v1804, %v2052
      %v2054 = vpop.f32.mrf.mxu0
      %v2055 = vadd.f32 %v1804, %v2054
      %2056 = vmatmul.bf16.gmra.mxu0 %v1688
      %v2057 = vpop.f32.mrf.mxu0
      %v2058 = vadd.f32 %v1804, %v2057
      %v2059 = vpop.f32.mrf.mxu0
      %v2060 = vadd.f32 %v1804, %v2059
      %2061 = vmatmul.bf16.gmra.mxu0 %v1690
      %v2062 = vpop.f32.mrf.mxu0
      %v2063 = vadd.f32 %v1804, %v2062
      %v2064 = vpop.f32.mrf.mxu0
      %v2065 = vadd.f32 %v1804, %v2064
      %2066 = vmatmul.bf16.gmra.mxu0 %v1692
      %v2067 = vpop.f32.mrf.mxu0
      %v2068 = vadd.f32 %v1804, %v2067
      %v2069 = vpop.f32.mrf.mxu0
      %v2070 = vadd.f32 %v1804, %v2069
      %2071 = vmatmul.bf16.gmra.mxu0 %v1694
      %v2072 = vpop.f32.mrf.mxu0
      %v2073 = vadd.f32 %v1804, %v2072
      %v2074 = vpop.f32.mrf.mxu0
      %v2075 = vadd.f32 %v1804, %v2074
      %2076 = vmatmul.bf16.gmra.mxu0 %v1696
      %v2077 = vpop.f32.mrf.mxu0
      %v2078 = vadd.f32 %v1804, %v2077
      %v2079 = vpop.f32.mrf.mxu0
      %v2080 = vadd.f32 %v1804, %v2079
      %2081 = vmatmul.bf16.gmra.mxu0 %v1698
      %v2082 = vpop.f32.mrf.mxu0
      %v2083 = vadd.f32 %v1804, %v2082
      %v2084 = vpop.f32.mrf.mxu0
      %v2085 = vadd.f32 %v1804, %v2084
      %2086 = vmatmul.bf16.gmra.mxu0 %v1700
      %v2087 = vpop.f32.mrf.mxu0
      %v2088 = vadd.f32 %v1804, %v2087
      %v2089 = vpop.f32.mrf.mxu0
      %v2090 = vadd.f32 %v1804, %v2089
      %2091 = vmatmul.bf16.gmra.mxu0 %v1702
      %v2092 = vpop.f32.mrf.mxu0
      %v2093 = vadd.f32 %v1804, %v2092
      %v2094 = vpop.f32.mrf.mxu0
      %v2095 = vadd.f32 %v1804, %v2094
      %2096 = vmatmul.bf16.gmra.mxu0 %v1704
      %v2097 = vpop.f32.mrf.mxu0
      %v2098 = vadd.f32 %v1804, %v2097
      %v2099 = vpop.f32.mrf.mxu0
      %v2100 = vadd.f32 %v1804, %v2099
      %2101 = vmatmul.bf16.gmra.mxu0 %v1706
      %v2102 = vpop.f32.mrf.mxu0
      %v2103 = vadd.f32 %v1804, %v2102
      %v2104 = vpop.f32.mrf.mxu0
      %v2105 = vadd.f32 %v1804, %v2104
      %2106 = vmatmul.bf16.gmra.mxu0 %v1708
      %v2107 = vpop.f32.mrf.mxu0
      %v2108 = vadd.f32 %v1804, %v2107
      %v2109 = vpop.f32.mrf.mxu0
      %v2110 = vadd.f32 %v1804, %v2109
      %2111 = vmatmul.bf16.gmra.mxu0 %v1710
      %v2112 = vpop.f32.mrf.mxu0
      %v2113 = vadd.f32 %v1804, %v2112
      %v2114 = vpop.f32.mrf.mxu0
      %v2115 = vadd.f32 %v1804, %v2114
      %2116 = vmatmul.bf16.gmra.mxu0 %v1712
      %v2117 = vpop.f32.mrf.mxu0
      %v2118 = vadd.f32 %v1804, %v2117
      %v2119 = vpop.f32.mrf.mxu0
      %v2120 = vadd.f32 %v1804, %v2119
      %2121 = vmatmul.bf16.gmra.mxu0 %v1714
      %v2122 = vpop.f32.mrf.mxu0
      %v2123 = vadd.f32 %v1804, %v2122
      %v2124 = vpop.f32.mrf.mxu0
      %v2125 = vadd.f32 %v1804, %v2124
      %2126 = vmatmul.bf16.gmra.mxu0 %v1716
      %v2127 = vpop.f32.mrf.mxu0
      %v2128 = vadd.f32 %v1804, %v2127
      %v2129 = vpop.f32.mrf.mxu0
      %v2130 = vadd.f32 %v1804, %v2129
      %2131 = vmatmul.bf16.gmra.mxu0 %v1718
      %v2132 = vpop.f32.mrf.mxu0
      %v2133 = vadd.f32 %v1804, %v2132
      %v2134 = vpop.f32.mrf.mxu0
      %v2135 = vadd.f32 %v1804, %v2134
      %2136 = vmatmul.bf16.gmra.mxu0 %v1720
      %v2137 = vpop.f32.mrf.mxu0
      %v2138 = vadd.f32 %v1804, %v2137
      %v2139 = vpop.f32.mrf.mxu0
      %v2140 = vadd.f32 %v1804, %v2139
      %2141 = vmatmul.bf16.gmra.mxu0 %v1722
      %v2142 = vpop.f32.mrf.mxu0
      %v2143 = vadd.f32 %v1804, %v2142
      %v2144 = vpop.f32.mrf.mxu0
      %v2145 = vadd.f32 %v1804, %v2144
      %2146 = vmatmul.bf16.gmra.mxu0 %v1724
      %v2147 = vpop.f32.mrf.mxu0
      %v2148 = vadd.f32 %v1804, %v2147
      %v2149 = vpop.f32.mrf.mxu0
      %v2150 = vadd.f32 %v1804, %v2149
      %2151 = vmatmul.bf16.gmra.mxu0 %v1726
      %v2152 = vpop.f32.mrf.mxu0
      %v2153 = vadd.f32 %v1804, %v2152
      %v2154 = vpop.f32.mrf.mxu0
      %v2155 = vadd.f32 %v1804, %v2154
      %2156 = vmatmul.bf16.gmra.mxu0 %v1728
      %v2157 = vpop.f32.mrf.mxu0
      %v2158 = vadd.f32 %v1804, %v2157
      %v2159 = vpop.f32.mrf.mxu0
      %v2160 = vadd.f32 %v1804, %v2159
      %2161 = vmatmul.bf16.gmra.mxu0 %v1730
      %v2162 = vpop.f32.mrf.mxu0
      %v2163 = vadd.f32 %v1804, %v2162
      %v2164 = vpop.f32.mrf.mxu0
      %v2165 = vadd.f32 %v1804, %v2164
      %2166 = vmatmul.bf16.gmra.mxu0 %v1732
      %v2167 = vpop.f32.mrf.mxu0
      %v2168 = vadd.f32 %v1804, %v2167
      %v2169 = vpop.f32.mrf.mxu0
      %v2170 = vadd.f32 %v1804, %v2169
      %2171 = vmatmul.bf16.gmra.mxu0 %v1734
      %v2172 = vpop.f32.mrf.mxu0
      %v2173 = vadd.f32 %v1804, %v2172
      %v2174 = vpop.f32.mrf.mxu0
      %v2175 = vadd.f32 %v1804, %v2174
      %2176 = vmatmul.bf16.gmra.mxu0 %v1736
      %v2177 = vpop.f32.mrf.mxu0
      %v2178 = vadd.f32 %v1804, %v2177
      %v2179 = vpop.f32.mrf.mxu0
      %v2180 = vadd.f32 %v1804, %v2179
      %2181 = vmatmul.bf16.gmra.mxu0 %v1738
      %v2182 = vpop.f32.mrf.mxu0
      %v2183 = vadd.f32 %v1804, %v2182
      %v2184 = vpop.f32.mrf.mxu0
      %v2185 = vadd.f32 %v1804, %v2184
      %2186 = vmatmul.bf16.gmra.mxu0 %v1740
      %v2187 = vpop.f32.mrf.mxu0
      %v2188 = vadd.f32 %v1804, %v2187
      %v2189 = vpop.f32.mrf.mxu0
      %v2190 = vadd.f32 %v1804, %v2189
      %2191 = vmatmul.bf16.gmra.mxu0 %v1742
      %v2192 = vpop.f32.mrf.mxu0
      %v2193 = vadd.f32 %v1804, %v2192
      %v2194 = vpop.f32.mrf.mxu0
      %v2195 = vadd.f32 %v1804, %v2194
      %2196 = vmatmul.bf16.gmra.mxu0 %v1744
      %v2197 = vpop.f32.mrf.mxu0
      %v2198 = vadd.f32 %v1804, %v2197
      %v2199 = vpop.f32.mrf.mxu0
      %v2200 = vadd.f32 %v1804, %v2199
      %2201 = vmatmul.bf16.gmra.mxu0 %v1746
      %v2202 = vpop.f32.mrf.mxu0
      %v2203 = vadd.f32 %v1804, %v2202
      %v2204 = vpop.f32.mrf.mxu0
      %v2205 = vadd.f32 %v1804, %v2204
      %2206 = vmatmul.bf16.gmra.mxu0 %v1748
      %v2207 = vpop.f32.mrf.mxu0
      %v2208 = vadd.f32 %v1804, %v2207
      %v2209 = vpop.f32.mrf.mxu0
      %v2210 = vadd.f32 %v1804, %v2209
      %2211 = vmatmul.bf16.gmra.mxu0 %v1750
      %v2212 = vpop.f32.mrf.mxu0
      %v2213 = vadd.f32 %v1804, %v2212
      %v2214 = vpop.f32.mrf.mxu0
      %v2215 = vadd.f32 %v1804, %v2214
      %2216 = vmatmul.bf16.gmra.mxu0 %v1752
      %v2217 = vpop.f32.mrf.mxu0
      %v2218 = vadd.f32 %v1804, %v2217
      %v2219 = vpop.f32.mrf.mxu0
      %v2220 = vadd.f32 %v1804, %v2219
      %2221 = vmatmul.bf16.gmra.mxu0 %v1754
      %v2222 = vpop.f32.mrf.mxu0
      %v2223 = vadd.f32 %v1804, %v2222
      %v2224 = vpop.f32.mrf.mxu0
      %v2225 = vadd.f32 %v1804, %v2224
      %2226 = vmatmul.bf16.gmra.mxu0 %v1756
      %v2227 = vpop.f32.mrf.mxu0
      %v2228 = vadd.f32 %v1804, %v2227
      %v2229 = vpop.f32.mrf.mxu0
      %v2230 = vadd.f32 %v1804, %v2229
      %2231 = vmatmul.bf16.gmra.mxu0 %v1758
      %v2232 = vpop.f32.mrf.mxu0
      %v2233 = vadd.f32 %v1804, %v2232
      %v2234 = vpop.f32.mrf.mxu0
      %v2235 = vadd.f32 %v1804, %v2234
      %2236 = vmatmul.bf16.gmra.mxu0 %v1760
      %v2237 = vpop.f32.mrf.mxu0
      %v2238 = vadd.f32 %v1804, %v2237
      %v2239 = vpop.f32.mrf.mxu0
      %v2240 = vadd.f32 %v1804, %v2239
      %2241 = vmatmul.bf16.gmra.mxu0 %v1762
      %v2242 = vpop.f32.mrf.mxu0
      %v2243 = vadd.f32 %v1804, %v2242
      %v2244 = vpop.f32.mrf.mxu0
      %v2245 = vadd.f32 %v1804, %v2244
      %2246 = vmatmul.bf16.gmra.mxu0 %v1764
      %v2247 = vpop.f32.mrf.mxu0
      %v2248 = vadd.f32 %v1804, %v2247
      %v2249 = vpop.f32.mrf.mxu0
      %v2250 = vadd.f32 %v1804, %v2249
      %2251 = vmatmul.bf16.gmra.mxu0 %v1766
      %v2252 = vpop.f32.mrf.mxu0
      %v2253 = vadd.f32 %v1804, %v2252
      %v2254 = vpop.f32.mrf.mxu0
      %v2255 = vadd.f32 %v1804, %v2254
      %2256 = vmatmul.bf16.gmra.mxu0 %v1768
      %v2257 = vpop.f32.mrf.mxu0
      %v2258 = vadd.f32 %v1804, %v2257
      %v2259 = vpop.f32.mrf.mxu0
      %v2260 = vadd.f32 %v1804, %v2259
      %2261 = vdwg.mxu0
      %2262 = vmatpush.bf16.msra.mxu0 %v1934
      %2263 = vmatpush.bf16.msra.mxu0 %v1932
      %2264 = vmatpush.bf16.msra.mxu0 %v1930
      %2265 = vmatpush.bf16.msra.mxu0 %v1928
      %2266 = vmatpush.bf16.msra.mxu0 %v1926
      %2267 = vmatpush.bf16.msra.mxu0 %v1924
      %2268 = vmatpush.bf16.msra.mxu0 %v1922
      %2269 = vmatpush.bf16.msra.mxu0 %v1920
      %2270 = vmatmul.bf16.gmra.mxu0 %v1657
      %v2271 = vpop.f32.mrf.mxu0
      %v2272 = vadd.f32 %v1978, %v2271
      %v2273 = vpop.f32.mrf.mxu0
      %v2274 = vadd.f32 %v1980, %v2273
      %2275 = vmatmul.bf16.gmra.mxu0 %v1659
      %v2276 = vpop.f32.mrf.mxu0
      %v2277 = vadd.f32 %v1983, %v2276
      %v2278 = vpop.f32.mrf.mxu0
      %v2279 = vadd.f32 %v1985, %v2278
      %2280 = vmatmul.bf16.gmra.mxu0 %v1661
      %v2281 = vpop.f32.mrf.mxu0
      %v2282 = vadd.f32 %v1988, %v2281
      %v2283 = vpop.f32.mrf.mxu0
      %v2284 = vadd.f32 %v1990, %v2283
      %2285 = vmatmul.bf16.gmra.mxu0 %v1663
      %v2286 = vpop.f32.mrf.mxu0
      %v2287 = vadd.f32 %v1993, %v2286
      %v2288 = vpop.f32.mrf.mxu0
      %v2289 = vadd.f32 %v1995, %v2288
      %2290 = vmatmul.bf16.gmra.mxu0 %v1665
      %v2291 = vpop.f32.mrf.mxu0
      %v2292 = vadd.f32 %v1998, %v2291
      %v2293 = vpop.f32.mrf.mxu0
      %v2294 = vadd.f32 %v2000, %v2293
      %2295 = vmatmul.bf16.gmra.mxu0 %v1667
      %v2296 = vpop.f32.mrf.mxu0
      %v2297 = vadd.f32 %v2003, %v2296
      %v2298 = vpop.f32.mrf.mxu0
      %v2299 = vadd.f32 %v2005, %v2298
      %2300 = vmatmul.bf16.gmra.mxu0 %v1669
      %v2301 = vpop.f32.mrf.mxu0
      %v2302 = vadd.f32 %v2008, %v2301
      %v2303 = vpop.f32.mrf.mxu0
      %v2304 = vadd.f32 %v2010, %v2303
      %2305 = vmatmul.bf16.gmra.mxu0 %v1671
      %v2306 = vpop.f32.mrf.mxu0
      %v2307 = vadd.f32 %v2013, %v2306
      %v2308 = vpop.f32.mrf.mxu0
      %v2309 = vadd.f32 %v2015, %v2308
      %2310 = vmatmul.bf16.gmra.mxu0 %v1673
      %v2311 = vpop.f32.mrf.mxu0
      %v2312 = vadd.f32 %v2018, %v2311
      %v2313 = vpop.f32.mrf.mxu0
      %v2314 = vadd.f32 %v2020, %v2313
      %2315 = vmatmul.bf16.gmra.mxu0 %v1675
      %v2316 = vpop.f32.mrf.mxu0
      %v2317 = vadd.f32 %v2023, %v2316
      %v2318 = vpop.f32.mrf.mxu0
      %v2319 = vadd.f32 %v2025, %v2318
      %2320 = vmatmul.bf16.gmra.mxu0 %v1677
      %v2321 = vpop.f32.mrf.mxu0
      %v2322 = vadd.f32 %v2028, %v2321
      %v2323 = vpop.f32.mrf.mxu0
      %v2324 = vadd.f32 %v2030, %v2323
      %2325 = vmatmul.bf16.gmra.mxu0 %v1679
      %v2326 = vpop.f32.mrf.mxu0
      %v2327 = vadd.f32 %v2033, %v2326
      %v2328 = vpop.f32.mrf.mxu0
      %v2329 = vadd.f32 %v2035, %v2328
      %2330 = vmatmul.bf16.gmra.mxu0 %v1681
      %v2331 = vpop.f32.mrf.mxu0
      %v2332 = vadd.f32 %v2038, %v2331
      %v2333 = vpop.f32.mrf.mxu0
      %v2334 = vadd.f32 %v2040, %v2333
      %2335 = vmatmul.bf16.gmra.mxu0 %v1683
      %v2336 = vpop.f32.mrf.mxu0
      %v2337 = vadd.f32 %v2043, %v2336
      %v2338 = vpop.f32.mrf.mxu0
      %v2339 = vadd.f32 %v2045, %v2338
      %2340 = vmatmul.bf16.gmra.mxu0 %v1685
      %v2341 = vpop.f32.mrf.mxu0
      %v2342 = vadd.f32 %v2048, %v2341
      %v2343 = vpop.f32.mrf.mxu0
      %v2344 = vadd.f32 %v2050, %v2343
      %2345 = vmatmul.bf16.gmra.mxu0 %v1687
      %v2346 = vpop.f32.mrf.mxu0
      %v2347 = vadd.f32 %v2053, %v2346
      %v2348 = vpop.f32.mrf.mxu0
      %v2349 = vadd.f32 %v2055, %v2348
      %2350 = vmatmul.bf16.gmra.mxu0 %v1689
      %v2351 = vpop.f32.mrf.mxu0
      %v2352 = vadd.f32 %v2058, %v2351
      %v2353 = vpop.f32.mrf.mxu0
      %v2354 = vadd.f32 %v2060, %v2353
      %2355 = vmatmul.bf16.gmra.mxu0 %v1691
      %v2356 = vpop.f32.mrf.mxu0
      %v2357 = vadd.f32 %v2063, %v2356
      %v2358 = vpop.f32.mrf.mxu0
      %v2359 = vadd.f32 %v2065, %v2358
      %2360 = vmatmul.bf16.gmra.mxu0 %v1693
      %v2361 = vpop.f32.mrf.mxu0
      %v2362 = vadd.f32 %v2068, %v2361
      %v2363 = vpop.f32.mrf.mxu0
      %v2364 = vadd.f32 %v2070, %v2363
      %2365 = vmatmul.bf16.gmra.mxu0 %v1695
      %v2366 = vpop.f32.mrf.mxu0
      %v2367 = vadd.f32 %v2073, %v2366
      %v2368 = vpop.f32.mrf.mxu0
      %v2369 = vadd.f32 %v2075, %v2368
      %2370 = vmatmul.bf16.gmra.mxu0 %v1697
      %v2371 = vpop.f32.mrf.mxu0
      %v2372 = vadd.f32 %v2078, %v2371
      %v2373 = vpop.f32.mrf.mxu0
      %v2374 = vadd.f32 %v2080, %v2373
      %2375 = vmatmul.bf16.gmra.mxu0 %v1699
      %v2376 = vpop.f32.mrf.mxu0
      %v2377 = vadd.f32 %v2083, %v2376
      %v2378 = vpop.f32.mrf.mxu0
      %v2379 = vadd.f32 %v2085, %v2378
      %2380 = vmatmul.bf16.gmra.mxu0 %v1701
      %v2381 = vpop.f32.mrf.mxu0
      %v2382 = vadd.f32 %v2088, %v2381
      %v2383 = vpop.f32.mrf.mxu0
      %v2384 = vadd.f32 %v2090, %v2383
      %2385 = vmatmul.bf16.gmra.mxu0 %v1703
      %v2386 = vpop.f32.mrf.mxu0
      %v2387 = vadd.f32 %v2093, %v2386
      %v2388 = vpop.f32.mrf.mxu0
      %v2389 = vadd.f32 %v2095, %v2388
      %2390 = vmatmul.bf16.gmra.mxu0 %v1705
      %v2391 = vpop.f32.mrf.mxu0
      %v2392 = vadd.f32 %v2098, %v2391
      %v2393 = vpop.f32.mrf.mxu0
      %v2394 = vadd.f32 %v2100, %v2393
      %2395 = vmatmul.bf16.gmra.mxu0 %v1707
      %v2396 = vpop.f32.mrf.mxu0
      %v2397 = vadd.f32 %v2103, %v2396
      %v2398 = vpop.f32.mrf.mxu0
      %v2399 = vadd.f32 %v2105, %v2398
      %2400 = vmatmul.bf16.gmra.mxu0 %v1709
      %v2401 = vpop.f32.mrf.mxu0
      %v2402 = vadd.f32 %v2108, %v2401
      %v2403 = vpop.f32.mrf.mxu0
      %v2404 = vadd.f32 %v2110, %v2403
      %2405 = vmatmul.bf16.gmra.mxu0 %v1711
      %v2406 = vpop.f32.mrf.mxu0
      %v2407 = vadd.f32 %v2113, %v2406
      %v2408 = vpop.f32.mrf.mxu0
      %v2409 = vadd.f32 %v2115, %v2408
      %2410 = vmatmul.bf16.gmra.mxu0 %v1713
      %v2411 = vpop.f32.mrf.mxu0
      %v2412 = vadd.f32 %v2118, %v2411
      %v2413 = vpop.f32.mrf.mxu0
      %v2414 = vadd.f32 %v2120, %v2413
      %2415 = vmatmul.bf16.gmra.mxu0 %v1715
      %v2416 = vpop.f32.mrf.mxu0
      %v2417 = vadd.f32 %v2123, %v2416
      %v2418 = vpop.f32.mrf.mxu0
      %v2419 = vadd.f32 %v2125, %v2418
      %2420 = vmatmul.bf16.gmra.mxu0 %v1717
      %v2421 = vpop.f32.mrf.mxu0
      %v2422 = vadd.f32 %v2128, %v2421
      %v2423 = vpop.f32.mrf.mxu0
      %v2424 = vadd.f32 %v2130, %v2423
      %2425 = vmatmul.bf16.gmra.mxu0 %v1719
      %v2426 = vpop.f32.mrf.mxu0
      %v2427 = vadd.f32 %v2133, %v2426
      %v2428 = vpop.f32.mrf.mxu0
      %v2429 = vadd.f32 %v2135, %v2428
      %2430 = vmatmul.bf16.gmra.mxu0 %v1721
      %v2431 = vpop.f32.mrf.mxu0
      %v2432 = vadd.f32 %v2138, %v2431
      %v2433 = vpop.f32.mrf.mxu0
      %v2434 = vadd.f32 %v2140, %v2433
      %2435 = vmatmul.bf16.gmra.mxu0 %v1723
      %v2436 = vpop.f32.mrf.mxu0
      %v2437 = vadd.f32 %v2143, %v2436
      %v2438 = vpop.f32.mrf.mxu0
      %v2439 = vadd.f32 %v2145, %v2438
      %2440 = vmatmul.bf16.gmra.mxu0 %v1725
      %v2441 = vpop.f32.mrf.mxu0
      %v2442 = vadd.f32 %v2148, %v2441
      %v2443 = vpop.f32.mrf.mxu0
      %v2444 = vadd.f32 %v2150, %v2443
      %2445 = vmatmul.bf16.gmra.mxu0 %v1727
      %v2446 = vpop.f32.mrf.mxu0
      %v2447 = vadd.f32 %v2153, %v2446
      %v2448 = vpop.f32.mrf.mxu0
      %v2449 = vadd.f32 %v2155, %v2448
      %2450 = vmatmul.bf16.gmra.mxu0 %v1729
      %v2451 = vpop.f32.mrf.mxu0
      %v2452 = vadd.f32 %v2158, %v2451
      %v2453 = vpop.f32.mrf.mxu0
      %v2454 = vadd.f32 %v2160, %v2453
      %2455 = vmatmul.bf16.gmra.mxu0 %v1731
      %v2456 = vpop.f32.mrf.mxu0
      %v2457 = vadd.f32 %v2163, %v2456
      %v2458 = vpop.f32.mrf.mxu0
      %v2459 = vadd.f32 %v2165, %v2458
      %2460 = vmatmul.bf16.gmra.mxu0 %v1733
      %v2461 = vpop.f32.mrf.mxu0
      %v2462 = vadd.f32 %v2168, %v2461
      %v2463 = vpop.f32.mrf.mxu0
      %v2464 = vadd.f32 %v2170, %v2463
      %2465 = vmatmul.bf16.gmra.mxu0 %v1735
      %v2466 = vpop.f32.mrf.mxu0
      %v2467 = vadd.f32 %v2173, %v2466
      %v2468 = vpop.f32.mrf.mxu0
      %v2469 = vadd.f32 %v2175, %v2468
      %2470 = vmatmul.bf16.gmra.mxu0 %v1737
      %v2471 = vpop.f32.mrf.mxu0
      %v2472 = vadd.f32 %v2178, %v2471
      %v2473 = vpop.f32.mrf.mxu0
      %v2474 = vadd.f32 %v2180, %v2473
      %2475 = vmatmul.bf16.gmra.mxu0 %v1739
      %v2476 = vpop.f32.mrf.mxu0
      %v2477 = vadd.f32 %v2183, %v2476
      %v2478 = vpop.f32.mrf.mxu0
      %v2479 = vadd.f32 %v2185, %v2478
      %2480 = vmatmul.bf16.gmra.mxu0 %v1741
      %v2481 = vpop.f32.mrf.mxu0
      %v2482 = vadd.f32 %v2188, %v2481
      %v2483 = vpop.f32.mrf.mxu0
      %v2484 = vadd.f32 %v2190, %v2483
      %2485 = vmatmul.bf16.gmra.mxu0 %v1743
      %v2486 = vpop.f32.mrf.mxu0
      %v2487 = vadd.f32 %v2193, %v2486
      %v2488 = vpop.f32.mrf.mxu0
      %v2489 = vadd.f32 %v2195, %v2488
      %2490 = vmatmul.bf16.gmra.mxu0 %v1745
      %v2491 = vpop.f32.mrf.mxu0
      %v2492 = vadd.f32 %v2198, %v2491
      %v2493 = vpop.f32.mrf.mxu0
      %v2494 = vadd.f32 %v2200, %v2493
      %2495 = vmatmul.bf16.gmra.mxu0 %v1747
      %v2496 = vpop.f32.mrf.mxu0
      %v2497 = vadd.f32 %v2203, %v2496
      %v2498 = vpop.f32.mrf.mxu0
      %v2499 = vadd.f32 %v2205, %v2498
      %2500 = vmatmul.bf16.gmra.mxu0 %v1749
      %v2501 = vpop.f32.mrf.mxu0
      %v2502 = vadd.f32 %v2208, %v2501
      %v2503 = vpop.f32.mrf.mxu0
      %v2504 = vadd.f32 %v2210, %v2503
      %2505 = vmatmul.bf16.gmra.mxu0 %v1751
      %v2506 = vpop.f32.mrf.mxu0
      %v2507 = vadd.f32 %v2213, %v2506
      %v2508 = vpop.f32.mrf.mxu0
      %v2509 = vadd.f32 %v2215, %v2508
      %2510 = vmatmul.bf16.gmra.mxu0 %v1753
      %v2511 = vpop.f32.mrf.mxu0
      %v2512 = vadd.f32 %v2218, %v2511
      %v2513 = vpop.f32.mrf.mxu0
      %v2514 = vadd.f32 %v2220, %v2513
      %2515 = vmatmul.bf16.gmra.mxu0 %v1755
      %v2516 = vpop.f32.mrf.mxu0
      %v2517 = vadd.f32 %v2223, %v2516
      %v2518 = vpop.f32.mrf.mxu0
      %v2519 = vadd.f32 %v2225, %v2518
      %2520 = vmatmul.bf16.gmra.mxu0 %v1757
      %v2521 = vpop.f32.mrf.mxu0
      %v2522 = vadd.f32 %v2228, %v2521
      %v2523 = vpop.f32.mrf.mxu0
      %v2524 = vadd.f32 %v2230, %v2523
      %2525 = vmatmul.bf16.gmra.mxu0 %v1759
      %v2526 = vpop.f32.mrf.mxu0
      %v2527 = vadd.f32 %v2233, %v2526
      %v2528 = vpop.f32.mrf.mxu0
      %v2529 = vadd.f32 %v2235, %v2528
      %2530 = vmatmul.bf16.gmra.mxu0 %v1761
      %v2531 = vpop.f32.mrf.mxu0
      %v2532 = vadd.f32 %v2238, %v2531
      %v2533 = vpop.f32.mrf.mxu0
      %v2534 = vadd.f32 %v2240, %v2533
      %2535 = vmatmul.bf16.gmra.mxu0 %v1763
      %v2536 = vpop.f32.mrf.mxu0
      %v2537 = vadd.f32 %v2243, %v2536
      %v2538 = vpop.f32.mrf.mxu0
      %v2539 = vadd.f32 %v2245, %v2538
      %2540 = vmatmul.bf16.gmra.mxu0 %v1765
      %v2541 = vpop.f32.mrf.mxu0
      %v2542 = vadd.f32 %v2248, %v2541
      %v2543 = vpop.f32.mrf.mxu0
      %v2544 = vadd.f32 %v2250, %v2543
      %2545 = vmatmul.bf16.gmra.mxu0 %v1767
      %v2546 = vpop.f32.mrf.mxu0
      %v2547 = vadd.f32 %v2253, %v2546
      %v2548 = vpop.f32.mrf.mxu0
      %v2549 = vadd.f32 %v2255, %v2548
      %2550 = vmatmul.bf16.gmra.mxu0 %v1769
      %v2551 = vpop.f32.mrf.mxu0
      %v2552 = vadd.f32 %v2258, %v2551
      %v2553 = vpop.f32.mrf.mxu0
      %v2554 = vadd.f32 %v2260, %v2553
      %2555 = vdwg.mxu0
      %2556 = vmatpush.bf16.msra.mxu0 %v1919
      %2557 = vmatpush.bf16.msra.mxu0 %v1917
      %2558 = vmatpush.bf16.msra.mxu0 %v1915
      %2559 = vmatpush.bf16.msra.mxu0 %v1913
      %2560 = vmatpush.bf16.msra.mxu0 %v1911
      %2561 = vmatpush.bf16.msra.mxu0 %v1909
      %2562 = vmatpush.bf16.msra.mxu0 %v1907
      %2563 = vmatpush.bf16.msra.mxu0 %v1905
      %2564 = vmatmul.bf16.gmra.mxu0 %v1656
      %v2565 = vpop.f32.mrf.mxu0
      %v2566 = vadd.f32 %v1805, %v2565
      %v2567 = vpop.f32.mrf.mxu0
      %v2568 = vadd.f32 %v1805, %v2567
      %2569 = vmatmul.bf16.gmra.mxu0 %v1658
      %v2570 = vpop.f32.mrf.mxu0
      %v2571 = vadd.f32 %v1805, %v2570
      %v2572 = vpop.f32.mrf.mxu0
      %v2573 = vadd.f32 %v1805, %v2572
      %2574 = vmatmul.bf16.gmra.mxu0 %v1660
      %v2575 = vpop.f32.mrf.mxu0
      %v2576 = vadd.f32 %v1805, %v2575
      %v2577 = vpop.f32.mrf.mxu0
      %v2578 = vadd.f32 %v1805, %v2577
      %2579 = vmatmul.bf16.gmra.mxu0 %v1662
      %v2580 = vpop.f32.mrf.mxu0
      %v2581 = vadd.f32 %v1805, %v2580
      %v2582 = vpop.f32.mrf.mxu0
      %v2583 = vadd.f32 %v1805, %v2582
      %2584 = vmatmul.bf16.gmra.mxu0 %v1664
      %v2585 = vpop.f32.mrf.mxu0
      %v2586 = vadd.f32 %v1805, %v2585
      %v2587 = vpop.f32.mrf.mxu0
      %v2588 = vadd.f32 %v1805, %v2587
      %2589 = vmatmul.bf16.gmra.mxu0 %v1666
      %v2590 = vpop.f32.mrf.mxu0
      %v2591 = vadd.f32 %v1805, %v2590
      %v2592 = vpop.f32.mrf.mxu0
      %v2593 = vadd.f32 %v1805, %v2592
      %2594 = vmatmul.bf16.gmra.mxu0 %v1668
      %v2595 = vpop.f32.mrf.mxu0
      %v2596 = vadd.f32 %v1805, %v2595
      %v2597 = vpop.f32.mrf.mxu0
      %v2598 = vadd.f32 %v1805, %v2597
      %2599 = vmatmul.bf16.gmra.mxu0 %v1670
      %v2600 = vpop.f32.mrf.mxu0
      %v2601 = vadd.f32 %v1805, %v2600
      %v2602 = vpop.f32.mrf.mxu0
      %v2603 = vadd.f32 %v1805, %v2602
      %2604 = vmatmul.bf16.gmra.mxu0 %v1672
      %v2605 = vpop.f32.mrf.mxu0
      %v2606 = vadd.f32 %v1805, %v2605
      %v2607 = vpop.f32.mrf.mxu0
      %v2608 = vadd.f32 %v1805, %v2607
      %2609 = vmatmul.bf16.gmra.mxu0 %v1674
      %v2610 = vpop.f32.mrf.mxu0
      %v2611 = vadd.f32 %v1805, %v2610
      %v2612 = vpop.f32.mrf.mxu0
      %v2613 = vadd.f32 %v1805, %v2612
      %2614 = vmatmul.bf16.gmra.mxu0 %v1676
      %v2615 = vpop.f32.mrf.mxu0
      %v2616 = vadd.f32 %v1805, %v2615
      %v2617 = vpop.f32.mrf.mxu0
      %v2618 = vadd.f32 %v1805, %v2617
      %2619 = vmatmul.bf16.gmra.mxu0 %v1678
      %v2620 = vpop.f32.mrf.mxu0
      %v2621 = vadd.f32 %v1805, %v2620
      %v2622 = vpop.f32.mrf.mxu0
      %v2623 = vadd.f32 %v1805, %v2622
      %2624 = vmatmul.bf16.gmra.mxu0 %v1680
      %v2625 = vpop.f32.mrf.mxu0
      %v2626 = vadd.f32 %v1805, %v2625
      %v2627 = vpop.f32.mrf.mxu0
      %v2628 = vadd.f32 %v1805, %v2627
      %2629 = vmatmul.bf16.gmra.mxu0 %v1682
      %v2630 = vpop.f32.mrf.mxu0
      %v2631 = vadd.f32 %v1805, %v2630
      %v2632 = vpop.f32.mrf.mxu0
      %v2633 = vadd.f32 %v1805, %v2632
      %2634 = vmatmul.bf16.gmra.mxu0 %v1684
      %v2635 = vpop.f32.mrf.mxu0
      %v2636 = vadd.f32 %v1805, %v2635
      %v2637 = vpop.f32.mrf.mxu0
      %v2638 = vadd.f32 %v1805, %v2637
      %2639 = vmatmul.bf16.gmra.mxu0 %v1686
      %v2640 = vpop.f32.mrf.mxu0
      %v2641 = vadd.f32 %v1805, %v2640
      %v2642 = vpop.f32.mrf.mxu0
      %v2643 = vadd.f32 %v1805, %v2642
      %2644 = vmatmul.bf16.gmra.mxu0 %v1688
      %v2645 = vpop.f32.mrf.mxu0
      %v2646 = vadd.f32 %v1805, %v2645
      %v2647 = vpop.f32.mrf.mxu0
      %v2648 = vadd.f32 %v1805, %v2647
      %2649 = vmatmul.bf16.gmra.mxu0 %v1690
      %v2650 = vpop.f32.mrf.mxu0
      %v2651 = vadd.f32 %v1805, %v2650
      %v2652 = vpop.f32.mrf.mxu0
      %v2653 = vadd.f32 %v1805, %v2652
      %2654 = vmatmul.bf16.gmra.mxu0 %v1692
      %v2655 = vpop.f32.mrf.mxu0
      %v2656 = vadd.f32 %v1805, %v2655
      %v2657 = vpop.f32.mrf.mxu0
      %v2658 = vadd.f32 %v1805, %v2657
      %2659 = vmatmul.bf16.gmra.mxu0 %v1694
      %v2660 = vpop.f32.mrf.mxu0
      %v2661 = vadd.f32 %v1805, %v2660
      %v2662 = vpop.f32.mrf.mxu0
      %v2663 = vadd.f32 %v1805, %v2662
      %2664 = vmatmul.bf16.gmra.mxu0 %v1696
      %v2665 = vpop.f32.mrf.mxu0
      %v2666 = vadd.f32 %v1805, %v2665
      %v2667 = vpop.f32.mrf.mxu0
      %v2668 = vadd.f32 %v1805, %v2667
      %2669 = vmatmul.bf16.gmra.mxu0 %v1698
      %v2670 = vpop.f32.mrf.mxu0
      %v2671 = vadd.f32 %v1805, %v2670
      %v2672 = vpop.f32.mrf.mxu0
      %v2673 = vadd.f32 %v1805, %v2672
      %2674 = vmatmul.bf16.gmra.mxu0 %v1700
      %v2675 = vpop.f32.mrf.mxu0
      %v2676 = vadd.f32 %v1805, %v2675
      %v2677 = vpop.f32.mrf.mxu0
      %v2678 = vadd.f32 %v1805, %v2677
      %2679 = vmatmul.bf16.gmra.mxu0 %v1702
      %v2680 = vpop.f32.mrf.mxu0
      %v2681 = vadd.f32 %v1805, %v2680
      %v2682 = vpop.f32.mrf.mxu0
      %v2683 = vadd.f32 %v1805, %v2682
      %2684 = vmatmul.bf16.gmra.mxu0 %v1704
      %v2685 = vpop.f32.mrf.mxu0
      %v2686 = vadd.f32 %v1805, %v2685
      %v2687 = vpop.f32.mrf.mxu0
      %v2688 = vadd.f32 %v1805, %v2687
      %2689 = vmatmul.bf16.gmra.mxu0 %v1706
      %v2690 = vpop.f32.mrf.mxu0
      %v2691 = vadd.f32 %v1805, %v2690
      %v2692 = vpop.f32.mrf.mxu0
      %v2693 = vadd.f32 %v1805, %v2692
      %2694 = vmatmul.bf16.gmra.mxu0 %v1708
      %v2695 = vpop.f32.mrf.mxu0
      %v2696 = vadd.f32 %v1805, %v2695
      %v2697 = vpop.f32.mrf.mxu0
      %v2698 = vadd.f32 %v1805, %v2697
      %2699 = vmatmul.bf16.gmra.mxu0 %v1710
      %v2700 = vpop.f32.mrf.mxu0
      %v2701 = vadd.f32 %v1805, %v2700
      %v2702 = vpop.f32.mrf.mxu0
      %v2703 = vadd.f32 %v1805, %v2702
      %2704 = vmatmul.bf16.gmra.mxu0 %v1712
      %v2705 = vpop.f32.mrf.mxu0
      %v2706 = vadd.f32 %v1805, %v2705
      %v2707 = vpop.f32.mrf.mxu0
      %v2708 = vadd.f32 %v1805, %v2707
      %2709 = vmatmul.bf16.gmra.mxu0 %v1714
      %v2710 = vpop.f32.mrf.mxu0
      %v2711 = vadd.f32 %v1805, %v2710
      %v2712 = vpop.f32.mrf.mxu0
      %v2713 = vadd.f32 %v1805, %v2712
      %2714 = vmatmul.bf16.gmra.mxu0 %v1716
      %v2715 = vpop.f32.mrf.mxu0
      %v2716 = vadd.f32 %v1805, %v2715
      %v2717 = vpop.f32.mrf.mxu0
      %v2718 = vadd.f32 %v1805, %v2717
      %2719 = vmatmul.bf16.gmra.mxu0 %v1718
      %v2720 = vpop.f32.mrf.mxu0
      %v2721 = vadd.f32 %v1805, %v2720
      %v2722 = vpop.f32.mrf.mxu0
      %v2723 = vadd.f32 %v1805, %v2722
      %2724 = vmatmul.bf16.gmra.mxu0 %v1720
      %v2725 = vpop.f32.mrf.mxu0
      %v2726 = vadd.f32 %v1805, %v2725
      %v2727 = vpop.f32.mrf.mxu0
      %v2728 = vadd.f32 %v1805, %v2727
      %2729 = vmatmul.bf16.gmra.mxu0 %v1722
      %v2730 = vpop.f32.mrf.mxu0
      %v2731 = vadd.f32 %v1805, %v2730
      %v2732 = vpop.f32.mrf.mxu0
      %v2733 = vadd.f32 %v1805, %v2732
      %2734 = vmatmul.bf16.gmra.mxu0 %v1724
      %v2735 = vpop.f32.mrf.mxu0
      %v2736 = vadd.f32 %v1805, %v2735
      %v2737 = vpop.f32.mrf.mxu0
      %v2738 = vadd.f32 %v1805, %v2737
      %2739 = vmatmul.bf16.gmra.mxu0 %v1726
      %v2740 = vpop.f32.mrf.mxu0
      %v2741 = vadd.f32 %v1805, %v2740
      %v2742 = vpop.f32.mrf.mxu0
      %v2743 = vadd.f32 %v1805, %v2742
      %2744 = vmatmul.bf16.gmra.mxu0 %v1728
      %v2745 = vpop.f32.mrf.mxu0
      %v2746 = vadd.f32 %v1805, %v2745
      %v2747 = vpop.f32.mrf.mxu0
      %v2748 = vadd.f32 %v1805, %v2747
      %2749 = vmatmul.bf16.gmra.mxu0 %v1730
      %v2750 = vpop.f32.mrf.mxu0
      %v2751 = vadd.f32 %v1805, %v2750
      %v2752 = vpop.f32.mrf.mxu0
      %v2753 = vadd.f32 %v1805, %v2752
      %2754 = vmatmul.bf16.gmra.mxu0 %v1732
      %v2755 = vpop.f32.mrf.mxu0
      %v2756 = vadd.f32 %v1805, %v2755
      %v2757 = vpop.f32.mrf.mxu0
      %v2758 = vadd.f32 %v1805, %v2757
      %2759 = vmatmul.bf16.gmra.mxu0 %v1734
      %v2760 = vpop.f32.mrf.mxu0
      %v2761 = vadd.f32 %v1805, %v2760
      %v2762 = vpop.f32.mrf.mxu0
      %v2763 = vadd.f32 %v1805, %v2762
      %2764 = vmatmul.bf16.gmra.mxu0 %v1736
      %v2765 = vpop.f32.mrf.mxu0
      %v2766 = vadd.f32 %v1805, %v2765
      %v2767 = vpop.f32.mrf.mxu0
      %v2768 = vadd.f32 %v1805, %v2767
      %2769 = vmatmul.bf16.gmra.mxu0 %v1738
      %v2770 = vpop.f32.mrf.mxu0
      %v2771 = vadd.f32 %v1805, %v2770
      %v2772 = vpop.f32.mrf.mxu0
      %v2773 = vadd.f32 %v1805, %v2772
      %2774 = vmatmul.bf16.gmra.mxu0 %v1740
      %v2775 = vpop.f32.mrf.mxu0
      %v2776 = vadd.f32 %v1805, %v2775
      %v2777 = vpop.f32.mrf.mxu0
      %v2778 = vadd.f32 %v1805, %v2777
      %2779 = vmatmul.bf16.gmra.mxu0 %v1742
      %v2780 = vpop.f32.mrf.mxu0
      %v2781 = vadd.f32 %v1805, %v2780
      %v2782 = vpop.f32.mrf.mxu0
      %v2783 = vadd.f32 %v1805, %v2782
      %2784 = vmatmul.bf16.gmra.mxu0 %v1744
      %v2785 = vpop.f32.mrf.mxu0
      %v2786 = vadd.f32 %v1805, %v2785
      %v2787 = vpop.f32.mrf.mxu0
      %v2788 = vadd.f32 %v1805, %v2787
      %2789 = vmatmul.bf16.gmra.mxu0 %v1746
      %v2790 = vpop.f32.mrf.mxu0
      %v2791 = vadd.f32 %v1805, %v2790
      %v2792 = vpop.f32.mrf.mxu0
      %v2793 = vadd.f32 %v1805, %v2792
      %2794 = vmatmul.bf16.gmra.mxu0 %v1748
      %v2795 = vpop.f32.mrf.mxu0
      %v2796 = vadd.f32 %v1805, %v2795
      %v2797 = vpop.f32.mrf.mxu0
      %v2798 = vadd.f32 %v1805, %v2797
      %2799 = vmatmul.bf16.gmra.mxu0 %v1750
      %v2800 = vpop.f32.mrf.mxu0
      %v2801 = vadd.f32 %v1805, %v2800
      %v2802 = vpop.f32.mrf.mxu0
      %v2803 = vadd.f32 %v1805, %v2802
      %2804 = vmatmul.bf16.gmra.mxu0 %v1752
      %v2805 = vpop.f32.mrf.mxu0
      %v2806 = vadd.f32 %v1805, %v2805
      %v2807 = vpop.f32.mrf.mxu0
      %v2808 = vadd.f32 %v1805, %v2807
      %2809 = vmatmul.bf16.gmra.mxu0 %v1754
      %v2810 = vpop.f32.mrf.mxu0
      %v2811 = vadd.f32 %v1805, %v2810
      %v2812 = vpop.f32.mrf.mxu0
      %v2813 = vadd.f32 %v1805, %v2812
      %2814 = vmatmul.bf16.gmra.mxu0 %v1756
      %v2815 = vpop.f32.mrf.mxu0
      %v2816 = vadd.f32 %v1805, %v2815
      %v2817 = vpop.f32.mrf.mxu0
      %v2818 = vadd.f32 %v1805, %v2817
      %2819 = vmatmul.bf16.gmra.mxu0 %v1758
      %v2820 = vpop.f32.mrf.mxu0
      %v2821 = vadd.f32 %v1805, %v2820
      %v2822 = vpop.f32.mrf.mxu0
      %v2823 = vadd.f32 %v1805, %v2822
      %2824 = vmatmul.bf16.gmra.mxu0 %v1760
      %v2825 = vpop.f32.mrf.mxu0
      %v2826 = vadd.f32 %v1805, %v2825
      %v2827 = vpop.f32.mrf.mxu0
      %v2828 = vadd.f32 %v1805, %v2827
      %2829 = vmatmul.bf16.gmra.mxu0 %v1762
      %v2830 = vpop.f32.mrf.mxu0
      %v2831 = vadd.f32 %v1805, %v2830
      %v2832 = vpop.f32.mrf.mxu0
      %v2833 = vadd.f32 %v1805, %v2832
      %2834 = vmatmul.bf16.gmra.mxu0 %v1764
      %v2835 = vpop.f32.mrf.mxu0
      %v2836 = vadd.f32 %v1805, %v2835
      %v2837 = vpop.f32.mrf.mxu0
      %v2838 = vadd.f32 %v1805, %v2837
      %2839 = vmatmul.bf16.gmra.mxu0 %v1766
      %v2840 = vpop.f32.mrf.mxu0
      %v2841 = vadd.f32 %v1805, %v2840
      %v2842 = vpop.f32.mrf.mxu0
      %v2843 = vadd.f32 %v1805, %v2842
      %2844 = vmatmul.bf16.gmra.mxu0 %v1768
      %v2845 = vpop.f32.mrf.mxu0
      %v2846 = vadd.f32 %v1805, %v2845
      %v2847 = vpop.f32.mrf.mxu0
      %v2848 = vadd.f32 %v1805, %v2847
      %2849 = vdwg.mxu0
      %2850 = vmatpush.bf16.msra.mxu0 %v1935
      %2851 = vmatpush.bf16.msra.mxu0 %v1933
      %2852 = vmatpush.bf16.msra.mxu0 %v1931
      %2853 = vmatpush.bf16.msra.mxu0 %v1929
      %2854 = vmatpush.bf16.msra.mxu0 %v1927
      %2855 = vmatpush.bf16.msra.mxu0 %v1925
      %2856 = vmatpush.bf16.msra.mxu0 %v1923
      %2857 = vmatpush.bf16.msra.mxu0 %v1921
      %2858 = vmatmul.bf16.gmra.mxu0 %v1657
      %v2859 = vpop.f32.mrf.mxu0
      %v2860 = vadd.f32 %v2566, %v2859
      %v2861 = vpop.f32.mrf.mxu0
      %v2862 = vadd.f32 %v2568, %v2861
      %2863 = vmatmul.bf16.gmra.mxu0 %v1659
      %v2864 = vpop.f32.mrf.mxu0
      %v2865 = vadd.f32 %v2571, %v2864
      %v2866 = vpop.f32.mrf.mxu0
      %v2867 = vadd.f32 %v2573, %v2866
      %2868 = vmatmul.bf16.gmra.mxu0 %v1661
      %v2869 = vpop.f32.mrf.mxu0
      %v2870 = vadd.f32 %v2576, %v2869
      %v2871 = vpop.f32.mrf.mxu0
      %v2872 = vadd.f32 %v2578, %v2871
      %2873 = vmatmul.bf16.gmra.mxu0 %v1663
      %v2874 = vpop.f32.mrf.mxu0
      %v2875 = vadd.f32 %v2581, %v2874
      %v2876 = vpop.f32.mrf.mxu0
      %v2877 = vadd.f32 %v2583, %v2876
      %2878 = vmatmul.bf16.gmra.mxu0 %v1665
      %v2879 = vpop.f32.mrf.mxu0
      %v2880 = vadd.f32 %v2586, %v2879
      %v2881 = vpop.f32.mrf.mxu0
      %v2882 = vadd.f32 %v2588, %v2881
      %2883 = vmatmul.bf16.gmra.mxu0 %v1667
      %v2884 = vpop.f32.mrf.mxu0
      %v2885 = vadd.f32 %v2591, %v2884
      %v2886 = vpop.f32.mrf.mxu0
      %v2887 = vadd.f32 %v2593, %v2886
      %2888 = vmatmul.bf16.gmra.mxu0 %v1669
      %v2889 = vpop.f32.mrf.mxu0
      %v2890 = vadd.f32 %v2596, %v2889
      %v2891 = vpop.f32.mrf.mxu0
      %v2892 = vadd.f32 %v2598, %v2891
      %2893 = vmatmul.bf16.gmra.mxu0 %v1671
      %v2894 = vpop.f32.mrf.mxu0
      %v2895 = vadd.f32 %v2601, %v2894
      %v2896 = vpop.f32.mrf.mxu0
      %v2897 = vadd.f32 %v2603, %v2896
      %2898 = vmatmul.bf16.gmra.mxu0 %v1673
      %v2899 = vpop.f32.mrf.mxu0
      %v2900 = vadd.f32 %v2606, %v2899
      %v2901 = vpop.f32.mrf.mxu0
      %v2902 = vadd.f32 %v2608, %v2901
      %2903 = vmatmul.bf16.gmra.mxu0 %v1675
      %v2904 = vpop.f32.mrf.mxu0
      %v2905 = vadd.f32 %v2611, %v2904
      %v2906 = vpop.f32.mrf.mxu0
      %v2907 = vadd.f32 %v2613, %v2906
      %2908 = vmatmul.bf16.gmra.mxu0 %v1677
      %v2909 = vpop.f32.mrf.mxu0
      %v2910 = vadd.f32 %v2616, %v2909
      %v2911 = vpop.f32.mrf.mxu0
      %v2912 = vadd.f32 %v2618, %v2911
      %2913 = vmatmul.bf16.gmra.mxu0 %v1679
      %v2914 = vpop.f32.mrf.mxu0
      %v2915 = vadd.f32 %v2621, %v2914
      %v2916 = vpop.f32.mrf.mxu0
      %v2917 = vadd.f32 %v2623, %v2916
      %2918 = vmatmul.bf16.gmra.mxu0 %v1681
      %v2919 = vpop.f32.mrf.mxu0
      %v2920 = vadd.f32 %v2626, %v2919
      %v2921 = vpop.f32.mrf.mxu0
      %v2922 = vadd.f32 %v2628, %v2921
      %2923 = vmatmul.bf16.gmra.mxu0 %v1683
      %v2924 = vpop.f32.mrf.mxu0
      %v2925 = vadd.f32 %v2631, %v2924
      %v2926 = vpop.f32.mrf.mxu0
      %v2927 = vadd.f32 %v2633, %v2926
      %2928 = vmatmul.bf16.gmra.mxu0 %v1685
      %v2929 = vpop.f32.mrf.mxu0
      %v2930 = vadd.f32 %v2636, %v2929
      %v2931 = vpop.f32.mrf.mxu0
      %v2932 = vadd.f32 %v2638, %v2931
      %2933 = vmatmul.bf16.gmra.mxu0 %v1687
      %v2934 = vpop.f32.mrf.mxu0
      %v2935 = vadd.f32 %v2641, %v2934
      %v2936 = vpop.f32.mrf.mxu0
      %v2937 = vadd.f32 %v2643, %v2936
      %2938 = vmatmul.bf16.gmra.mxu0 %v1689
      %v2939 = vpop.f32.mrf.mxu0
      %v2940 = vadd.f32 %v2646, %v2939
      %v2941 = vpop.f32.mrf.mxu0
      %v2942 = vadd.f32 %v2648, %v2941
      %2943 = vmatmul.bf16.gmra.mxu0 %v1691
      %v2944 = vpop.f32.mrf.mxu0
      %v2945 = vadd.f32 %v2651, %v2944
      %v2946 = vpop.f32.mrf.mxu0
      %v2947 = vadd.f32 %v2653, %v2946
      %2948 = vmatmul.bf16.gmra.mxu0 %v1693
      %v2949 = vpop.f32.mrf.mxu0
      %v2950 = vadd.f32 %v2656, %v2949
      %v2951 = vpop.f32.mrf.mxu0
      %v2952 = vadd.f32 %v2658, %v2951
      %2953 = vmatmul.bf16.gmra.mxu0 %v1695
      %v2954 = vpop.f32.mrf.mxu0
      %v2955 = vadd.f32 %v2661, %v2954
      %v2956 = vpop.f32.mrf.mxu0
      %v2957 = vadd.f32 %v2663, %v2956
      %2958 = vmatmul.bf16.gmra.mxu0 %v1697
      %v2959 = vpop.f32.mrf.mxu0
      %v2960 = vadd.f32 %v2666, %v2959
      %v2961 = vpop.f32.mrf.mxu0
      %v2962 = vadd.f32 %v2668, %v2961
      %2963 = vmatmul.bf16.gmra.mxu0 %v1699
      %v2964 = vpop.f32.mrf.mxu0
      %v2965 = vadd.f32 %v2671, %v2964
      %v2966 = vpop.f32.mrf.mxu0
      %v2967 = vadd.f32 %v2673, %v2966
      %2968 = vmatmul.bf16.gmra.mxu0 %v1701
      %v2969 = vpop.f32.mrf.mxu0
      %v2970 = vadd.f32 %v2676, %v2969
      %v2971 = vpop.f32.mrf.mxu0
      %v2972 = vadd.f32 %v2678, %v2971
      %2973 = vmatmul.bf16.gmra.mxu0 %v1703
      %v2974 = vpop.f32.mrf.mxu0
      %v2975 = vadd.f32 %v2681, %v2974
      %v2976 = vpop.f32.mrf.mxu0
      %v2977 = vadd.f32 %v2683, %v2976
      %2978 = vmatmul.bf16.gmra.mxu0 %v1705
      %v2979 = vpop.f32.mrf.mxu0
      %v2980 = vadd.f32 %v2686, %v2979
      %v2981 = vpop.f32.mrf.mxu0
      %v2982 = vadd.f32 %v2688, %v2981
      %2983 = vmatmul.bf16.gmra.mxu0 %v1707
      %v2984 = vpop.f32.mrf.mxu0
      %v2985 = vadd.f32 %v2691, %v2984
      %v2986 = vpop.f32.mrf.mxu0
      %v2987 = vadd.f32 %v2693, %v2986
      %2988 = vmatmul.bf16.gmra.mxu0 %v1709
      %v2989 = vpop.f32.mrf.mxu0
      %v2990 = vadd.f32 %v2696, %v2989
      %v2991 = vpop.f32.mrf.mxu0
      %v2992 = vadd.f32 %v2698, %v2991
      %2993 = vmatmul.bf16.gmra.mxu0 %v1711
      %v2994 = vpop.f32.mrf.mxu0
      %v2995 = vadd.f32 %v2701, %v2994
      %v2996 = vpop.f32.mrf.mxu0
      %v2997 = vadd.f32 %v2703, %v2996
      %2998 = vmatmul.bf16.gmra.mxu0 %v1713
      %v2999 = vpop.f32.mrf.mxu0
      %v3000 = vadd.f32 %v2706, %v2999
      %v3001 = vpop.f32.mrf.mxu0
      %v3002 = vadd.f32 %v2708, %v3001
      %3003 = vmatmul.bf16.gmra.mxu0 %v1715
      %v3004 = vpop.f32.mrf.mxu0
      %v3005 = vadd.f32 %v2711, %v3004
      %v3006 = vpop.f32.mrf.mxu0
      %v3007 = vadd.f32 %v2713, %v3006
      %3008 = vmatmul.bf16.gmra.mxu0 %v1717
      %v3009 = vpop.f32.mrf.mxu0
      %v3010 = vadd.f32 %v2716, %v3009
      %v3011 = vpop.f32.mrf.mxu0
      %v3012 = vadd.f32 %v2718, %v3011
      %3013 = vmatmul.bf16.gmra.mxu0 %v1719
      %v3014 = vpop.f32.mrf.mxu0
      %v3015 = vadd.f32 %v2721, %v3014
      %v3016 = vpop.f32.mrf.mxu0
      %v3017 = vadd.f32 %v2723, %v3016
      %3018 = vmatmul.bf16.gmra.mxu0 %v1721
      %v3019 = vpop.f32.mrf.mxu0
      %v3020 = vadd.f32 %v2726, %v3019
      %v3021 = vpop.f32.mrf.mxu0
      %v3022 = vadd.f32 %v2728, %v3021
      %3023 = vmatmul.bf16.gmra.mxu0 %v1723
      %v3024 = vpop.f32.mrf.mxu0
      %v3025 = vadd.f32 %v2731, %v3024
      %v3026 = vpop.f32.mrf.mxu0
      %v3027 = vadd.f32 %v2733, %v3026
      %3028 = vmatmul.bf16.gmra.mxu0 %v1725
      %v3029 = vpop.f32.mrf.mxu0
      %v3030 = vadd.f32 %v2736, %v3029
      %v3031 = vpop.f32.mrf.mxu0
      %v3032 = vadd.f32 %v2738, %v3031
      %3033 = vmatmul.bf16.gmra.mxu0 %v1727
      %v3034 = vpop.f32.mrf.mxu0
      %v3035 = vadd.f32 %v2741, %v3034
      %v3036 = vpop.f32.mrf.mxu0
      %v3037 = vadd.f32 %v2743, %v3036
      %3038 = vmatmul.bf16.gmra.mxu0 %v1729
      %v3039 = vpop.f32.mrf.mxu0
      %v3040 = vadd.f32 %v2746, %v3039
      %v3041 = vpop.f32.mrf.mxu0
      %v3042 = vadd.f32 %v2748, %v3041
      %3043 = vmatmul.bf16.gmra.mxu0 %v1731
      %v3044 = vpop.f32.mrf.mxu0
      %v3045 = vadd.f32 %v2751, %v3044
      %v3046 = vpop.f32.mrf.mxu0
      %v3047 = vadd.f32 %v2753, %v3046
      %3048 = vmatmul.bf16.gmra.mxu0 %v1733
      %v3049 = vpop.f32.mrf.mxu0
      %v3050 = vadd.f32 %v2756, %v3049
      %v3051 = vpop.f32.mrf.mxu0
      %v3052 = vadd.f32 %v2758, %v3051
      %3053 = vmatmul.bf16.gmra.mxu0 %v1735
      %v3054 = vpop.f32.mrf.mxu0
      %v3055 = vadd.f32 %v2761, %v3054
      %v3056 = vpop.f32.mrf.mxu0
      %v3057 = vadd.f32 %v2763, %v3056
      %3058 = vmatmul.bf16.gmra.mxu0 %v1737
      %v3059 = vpop.f32.mrf.mxu0
      %v3060 = vadd.f32 %v2766, %v3059
      %v3061 = vpop.f32.mrf.mxu0
      %v3062 = vadd.f32 %v2768, %v3061
      %3063 = vmatmul.bf16.gmra.mxu0 %v1739
      %v3064 = vpop.f32.mrf.mxu0
      %v3065 = vadd.f32 %v2771, %v3064
      %v3066 = vpop.f32.mrf.mxu0
      %v3067 = vadd.f32 %v2773, %v3066
      %3068 = vmatmul.bf16.gmra.mxu0 %v1741
      %v3069 = vpop.f32.mrf.mxu0
      %v3070 = vadd.f32 %v2776, %v3069
      %v3071 = vpop.f32.mrf.mxu0
      %v3072 = vadd.f32 %v2778, %v3071
      %3073 = vmatmul.bf16.gmra.mxu0 %v1743
      %v3074 = vpop.f32.mrf.mxu0
      %v3075 = vadd.f32 %v2781, %v3074
      %v3076 = vpop.f32.mrf.mxu0
      %v3077 = vadd.f32 %v2783, %v3076
      %3078 = vmatmul.bf16.gmra.mxu0 %v1745
      %v3079 = vpop.f32.mrf.mxu0
      %v3080 = vadd.f32 %v2786, %v3079
      %v3081 = vpop.f32.mrf.mxu0
      %v3082 = vadd.f32 %v2788, %v3081
      %3083 = vmatmul.bf16.gmra.mxu0 %v1747
      %v3084 = vpop.f32.mrf.mxu0
      %v3085 = vadd.f32 %v2791, %v3084
      %v3086 = vpop.f32.mrf.mxu0
      %v3087 = vadd.f32 %v2793, %v3086
      %3088 = vmatmul.bf16.gmra.mxu0 %v1749
      %v3089 = vpop.f32.mrf.mxu0
      %v3090 = vadd.f32 %v2796, %v3089
      %v3091 = vpop.f32.mrf.mxu0
      %v3092 = vadd.f32 %v2798, %v3091
      %3093 = vmatmul.bf16.gmra.mxu0 %v1751
      %v3094 = vpop.f32.mrf.mxu0
      %v3095 = vadd.f32 %v2801, %v3094
      %v3096 = vpop.f32.mrf.mxu0
      %v3097 = vadd.f32 %v2803, %v3096
      %3098 = vmatmul.bf16.gmra.mxu0 %v1753
      %v3099 = vpop.f32.mrf.mxu0
      %v3100 = vadd.f32 %v2806, %v3099
      %v3101 = vpop.f32.mrf.mxu0
      %v3102 = vadd.f32 %v2808, %v3101
      %3103 = vmatmul.bf16.gmra.mxu0 %v1755
      %v3104 = vpop.f32.mrf.mxu0
      %v3105 = vadd.f32 %v2811, %v3104
      %v3106 = vpop.f32.mrf.mxu0
      %v3107 = vadd.f32 %v2813, %v3106
      %3108 = vmatmul.bf16.gmra.mxu0 %v1757
      %v3109 = vpop.f32.mrf.mxu0
      %v3110 = vadd.f32 %v2816, %v3109
      %v3111 = vpop.f32.mrf.mxu0
      %v3112 = vadd.f32 %v2818, %v3111
      %3113 = vmatmul.bf16.gmra.mxu0 %v1759
      %v3114 = vpop.f32.mrf.mxu0
      %v3115 = vadd.f32 %v2821, %v3114
      %v3116 = vpop.f32.mrf.mxu0
      %v3117 = vadd.f32 %v2823, %v3116
      %3118 = vmatmul.bf16.gmra.mxu0 %v1761
      %v3119 = vpop.f32.mrf.mxu0
      %v3120 = vadd.f32 %v2826, %v3119
      %v3121 = vpop.f32.mrf.mxu0
      %v3122 = vadd.f32 %v2828, %v3121
      %3123 = vmatmul.bf16.gmra.mxu0 %v1763
      %v3124 = vpop.f32.mrf.mxu0
      %v3125 = vadd.f32 %v2831, %v3124
      %v3126 = vpop.f32.mrf.mxu0
      %v3127 = vadd.f32 %v2833, %v3126
      %3128 = vmatmul.bf16.gmra.mxu0 %v1765
      %v3129 = vpop.f32.mrf.mxu0
      %v3130 = vadd.f32 %v2836, %v3129
      %v3131 = vpop.f32.mrf.mxu0
      %v3132 = vadd.f32 %v2838, %v3131
      %3133 = vmatmul.bf16.gmra.mxu0 %v1767
      %v3134 = vpop.f32.mrf.mxu0
      %v3135 = vadd.f32 %v2841, %v3134
      %v3136 = vpop.f32.mrf.mxu0
      %v3137 = vadd.f32 %v2843, %v3136
      %3138 = vmatmul.bf16.gmra.mxu0 %v1769
      %v3139 = vpop.f32.mrf.mxu0
      %v3140 = vadd.f32 %v2846, %v3139
      %v3141 = vpop.f32.mrf.mxu0
      %v3142 = vadd.f32 %v2848, %v3141
      %3143 = vdwg.mxu0
      %v3144 = vmax.f32 %v2272, 0.0
      %v3145 = vmax.f32 %v2860, 0.0
      %v3146 = vmax.f32 %v2274, 0.0
      %v3147 = vmax.f32 %v2862, 0.0
      %v3148 = vmax.f32 %v2277, 0.0
      %v3149 = vmax.f32 %v2865, 0.0
      %v3150 = vmax.f32 %v2279, 0.0
      %v3151 = vmax.f32 %v2867, 0.0
      %v3152 = vmax.f32 %v2282, 0.0
      %v3153 = vmax.f32 %v2870, 0.0
      %v3154 = vmax.f32 %v2284, 0.0
      %v3155 = vmax.f32 %v2872, 0.0
      %v3156 = vmax.f32 %v2287, 0.0
      %v3157 = vmax.f32 %v2875, 0.0
      %v3158 = vmax.f32 %v2289, 0.0
      %v3159 = vmax.f32 %v2877, 0.0
      %v3160 = vmax.f32 %v2292, 0.0
      %v3161 = vmax.f32 %v2880, 0.0
      %v3162 = vmax.f32 %v2294, 0.0
      %v3163 = vmax.f32 %v2882, 0.0
      %v3164 = vmax.f32 %v2297, 0.0
      %v3165 = vmax.f32 %v2885, 0.0
      %v3166 = vmax.f32 %v2299, 0.0
      %v3167 = vmax.f32 %v2887, 0.0
      %v3168 = vmax.f32 %v2302, 0.0
      %v3169 = vmax.f32 %v2890, 0.0
      %v3170 = vmax.f32 %v2304, 0.0
      %v3171 = vmax.f32 %v2892, 0.0
      %v3172 = vmax.f32 %v2307, 0.0
      %v3173 = vmax.f32 %v2895, 0.0
      %v3174 = vmax.f32 %v2309, 0.0
      %v3175 = vmax.f32 %v2897, 0.0
      %v3176 = vmax.f32 %v2312, 0.0
      %v3177 = vmax.f32 %v2900, 0.0
      %v3178 = vmax.f32 %v2314, 0.0
      %v3179 = vmax.f32 %v2902, 0.0
      %v3180 = vmax.f32 %v2317, 0.0
      %v3181 = vmax.f32 %v2905, 0.0
      %v3182 = vmax.f32 %v2319, 0.0
      %v3183 = vmax.f32 %v2907, 0.0
      %v3184 = vmax.f32 %v2322, 0.0
      %v3185 = vmax.f32 %v2910, 0.0
      %v3186 = vmax.f32 %v2324, 0.0
      %v3187 = vmax.f32 %v2912, 0.0
      %v3188 = vmax.f32 %v2327, 0.0
      %v3189 = vmax.f32 %v2915, 0.0
      %v3190 = vmax.f32 %v2329, 0.0
      %v3191 = vmax.f32 %v2917, 0.0
      %v3192 = vmax.f32 %v2332, 0.0
      %v3193 = vmax.f32 %v2920, 0.0
      %v3194 = vmax.f32 %v2334, 0.0
      %v3195 = vmax.f32 %v2922, 0.0
      %v3196 = vmax.f32 %v2337, 0.0
      %v3197 = vmax.f32 %v2925, 0.0
      %v3198 = vmax.f32 %v2339, 0.0
      %v3199 = vmax.f32 %v2927, 0.0
      %v3200 = vmax.f32 %v2342, 0.0
      %v3201 = vmax.f32 %v2930, 0.0
      %v3202 = vmax.f32 %v2344, 0.0
      %v3203 = vmax.f32 %v2932, 0.0
      %v3204 = vmax.f32 %v2347, 0.0
      %v3205 = vmax.f32 %v2935, 0.0
      %v3206 = vmax.f32 %v2349, 0.0
      %v3207 = vmax.f32 %v2937, 0.0
      %v3208 = vmax.f32 %v2352, 0.0
      %v3209 = vmax.f32 %v2940, 0.0
      %v3210 = vmax.f32 %v2354, 0.0
      %v3211 = vmax.f32 %v2942, 0.0
      %v3212 = vmax.f32 %v2357, 0.0
      %v3213 = vmax.f32 %v2945, 0.0
      %v3214 = vmax.f32 %v2359, 0.0
      %v3215 = vmax.f32 %v2947, 0.0
      %v3216 = vmax.f32 %v2362, 0.0
      %v3217 = vmax.f32 %v2950, 0.0
      %v3218 = vmax.f32 %v2364, 0.0
      %v3219 = vmax.f32 %v2952, 0.0
      %v3220 = vmax.f32 %v2367, 0.0
      %v3221 = vmax.f32 %v2955, 0.0
      %v3222 = vmax.f32 %v2369, 0.0
      %v3223 = vmax.f32 %v2957, 0.0
      %v3224 = vmax.f32 %v2372, 0.0
      %v3225 = vmax.f32 %v2960, 0.0
      %v3226 = vmax.f32 %v2374, 0.0
      %v3227 = vmax.f32 %v2962, 0.0
      %v3228 = vmax.f32 %v2377, 0.0
      %v3229 = vmax.f32 %v2965, 0.0
      %v3230 = vmax.f32 %v2379, 0.0
      %v3231 = vmax.f32 %v2967, 0.0
      %v3232 = vmax.f32 %v2382, 0.0
      %v3233 = vmax.f32 %v2970, 0.0
      %v3234 = vmax.f32 %v2384, 0.0
      %v3235 = vmax.f32 %v2972, 0.0
      %v3236 = vmax.f32 %v2387, 0.0
      %v3237 = vmax.f32 %v2975, 0.0
      %v3238 = vmax.f32 %v2389, 0.0
      %v3239 = vmax.f32 %v2977, 0.0
      %v3240 = vmax.f32 %v2392, 0.0
      %v3241 = vmax.f32 %v2980, 0.0
      %v3242 = vmax.f32 %v2394, 0.0
      %v3243 = vmax.f32 %v2982, 0.0
      %v3244 = vmax.f32 %v2397, 0.0
      %v3245 = vmax.f32 %v2985, 0.0
      %v3246 = vmax.f32 %v2399, 0.0
      %v3247 = vmax.f32 %v2987, 0.0
      %v3248 = vmax.f32 %v2402, 0.0
      %v3249 = vmax.f32 %v2990, 0.0
      %v3250 = vmax.f32 %v2404, 0.0
      %v3251 = vmax.f32 %v2992, 0.0
      %v3252 = vmax.f32 %v2407, 0.0
      %v3253 = vmax.f32 %v2995, 0.0
      %v3254 = vmax.f32 %v2409, 0.0
      %v3255 = vmax.f32 %v2997, 0.0
      %v3256 = vmax.f32 %v2412, 0.0
      %v3257 = vmax.f32 %v3000, 0.0
      %v3258 = vmax.f32 %v2414, 0.0
      %v3259 = vmax.f32 %v3002, 0.0
      %v3260 = vmax.f32 %v2417, 0.0
      %v3261 = vmax.f32 %v3005, 0.0
      %v3262 = vmax.f32 %v2419, 0.0
      %v3263 = vmax.f32 %v3007, 0.0
      %v3264 = vmax.f32 %v2422, 0.0
      %v3265 = vmax.f32 %v3010, 0.0
      %v3266 = vmax.f32 %v2424, 0.0
      %v3267 = vmax.f32 %v3012, 0.0
      %v3268 = vmax.f32 %v2427, 0.0
      %v3269 = vmax.f32 %v3015, 0.0
      %v3270 = vmax.f32 %v2429, 0.0
      %v3271 = vmax.f32 %v3017, 0.0
      %v3272 = vmax.f32 %v2432, 0.0
      %v3273 = vmax.f32 %v3020, 0.0
      %v3274 = vmax.f32 %v2434, 0.0
      %v3275 = vmax.f32 %v3022, 0.0
      %v3276 = vmax.f32 %v2437, 0.0
      %v3277 = vmax.f32 %v3025, 0.0
      %v3278 = vmax.f32 %v2439, 0.0
      %v3279 = vmax.f32 %v3027, 0.0
      %v3280 = vmax.f32 %v2442, 0.0
      %v3281 = vmax.f32 %v3030, 0.0
      %v3282 = vmax.f32 %v2444, 0.0
      %v3283 = vmax.f32 %v3032, 0.0
      %v3284 = vmax.f32 %v2447, 0.0
      %v3285 = vmax.f32 %v3035, 0.0
      %v3286 = vmax.f32 %v2449, 0.0
      %v3287 = vmax.f32 %v3037, 0.0
      %v3288 = vmax.f32 %v2452, 0.0
      %v3289 = vmax.f32 %v3040, 0.0
      %v3290 = vmax.f32 %v2454, 0.0
      %v3291 = vmax.f32 %v3042, 0.0
      %v3292 = vmax.f32 %v2457, 0.0
      %v3293 = vmax.f32 %v3045, 0.0
      %v3294 = vmax.f32 %v2459, 0.0
      %v3295 = vmax.f32 %v3047, 0.0
      %v3296 = vmax.f32 %v2462, 0.0
      %v3297 = vmax.f32 %v3050, 0.0
      %v3298 = vmax.f32 %v2464, 0.0
      %v3299 = vmax.f32 %v3052, 0.0
      %v3300 = vmax.f32 %v2467, 0.0
      %v3301 = vmax.f32 %v3055, 0.0
      %v3302 = vmax.f32 %v2469, 0.0
      %v3303 = vmax.f32 %v3057, 0.0
      %v3304 = vmax.f32 %v2472, 0.0
      %v3305 = vmax.f32 %v3060, 0.0
      %v3306 = vmax.f32 %v2474, 0.0
      %v3307 = vmax.f32 %v3062, 0.0
      %v3308 = vmax.f32 %v2477, 0.0
      %v3309 = vmax.f32 %v3065, 0.0
      %v3310 = vmax.f32 %v2479, 0.0
      %v3311 = vmax.f32 %v3067, 0.0
      %v3312 = vmax.f32 %v2482, 0.0
      %v3313 = vmax.f32 %v3070, 0.0
      %v3314 = vmax.f32 %v2484, 0.0
      %v3315 = vmax.f32 %v3072, 0.0
      %v3316 = vmax.f32 %v2487, 0.0
      %v3317 = vmax.f32 %v3075, 0.0
      %v3318 = vmax.f32 %v2489, 0.0
      %v3319 = vmax.f32 %v3077, 0.0
      %v3320 = vmax.f32 %v2492, 0.0
      %v3321 = vmax.f32 %v3080, 0.0
      %v3322 = vmax.f32 %v2494, 0.0
      %v3323 = vmax.f32 %v3082, 0.0
      %v3324 = vmax.f32 %v2497, 0.0
      %v3325 = vmax.f32 %v3085, 0.0
      %v3326 = vmax.f32 %v2499, 0.0
      %v3327 = vmax.f32 %v3087, 0.0
      %v3328 = vmax.f32 %v2502, 0.0
      %v3329 = vmax.f32 %v3090, 0.0
      %v3330 = vmax.f32 %v2504, 0.0
      %v3331 = vmax.f32 %v3092, 0.0
      %v3332 = vmax.f32 %v2507, 0.0
      %v3333 = vmax.f32 %v3095, 0.0
      %v3334 = vmax.f32 %v2509, 0.0
      %v3335 = vmax.f32 %v3097, 0.0
      %v3336 = vmax.f32 %v2512, 0.0
      %v3337 = vmax.f32 %v3100, 0.0
      %v3338 = vmax.f32 %v2514, 0.0
      %v3339 = vmax.f32 %v3102, 0.0
      %v3340 = vmax.f32 %v2517, 0.0
      %v3341 = vmax.f32 %v3105, 0.0
      %v3342 = vmax.f32 %v2519, 0.0
      %v3343 = vmax.f32 %v3107, 0.0
      %v3344 = vmax.f32 %v2522, 0.0
      %v3345 = vmax.f32 %v3110, 0.0
      %v3346 = vmax.f32 %v2524, 0.0
      %v3347 = vmax.f32 %v3112, 0.0
      %v3348 = vmax.f32 %v2527, 0.0
      %v3349 = vmax.f32 %v3115, 0.0
      %v3350 = vmax.f32 %v2529, 0.0
      %v3351 = vmax.f32 %v3117, 0.0
      %v3352 = vmax.f32 %v2532, 0.0
      %v3353 = vmax.f32 %v3120, 0.0
      %v3354 = vmax.f32 %v2534, 0.0
      %v3355 = vmax.f32 %v3122, 0.0
      %v3356 = vmax.f32 %v2537, 0.0
      %v3357 = vmax.f32 %v3125, 0.0
      %v3358 = vmax.f32 %v2539, 0.0
      %v3359 = vmax.f32 %v3127, 0.0
      %v3360 = vmax.f32 %v2542, 0.0
      %v3361 = vmax.f32 %v3130, 0.0
      %v3362 = vmax.f32 %v2544, 0.0
      %v3363 = vmax.f32 %v3132, 0.0
      %v3364 = vmax.f32 %v2547, 0.0
      %v3365 = vmax.f32 %v3135, 0.0
      %v3366 = vmax.f32 %v2549, 0.0
      %v3367 = vmax.f32 %v3137, 0.0
      %v3368 = vmax.f32 %v2552, 0.0
      %v3369 = vmax.f32 %v3140, 0.0
      %v3370 = vmax.f32 %v2554, 0.0
      %v3371 = vmax.f32 %v3142, 0.0
      %v3372 = vpack.c.bf16 %v3146, %v3144
      %v3373 = vpack.c.bf16 %v3147, %v3145
      %v3374 = vpack.c.bf16 %v3150, %v3148
      %v3375 = vpack.c.bf16 %v3151, %v3149
      %v3376 = vpack.c.bf16 %v3154, %v3152
      %v3377 = vpack.c.bf16 %v3155, %v3153
      %v3378 = vpack.c.bf16 %v3158, %v3156
      %v3379 = vpack.c.bf16 %v3159, %v3157
      %v3380 = vpack.c.bf16 %v3162, %v3160
      %v3381 = vpack.c.bf16 %v3163, %v3161
      %v3382 = vpack.c.bf16 %v3166, %v3164
      %v3383 = vpack.c.bf16 %v3167, %v3165
      %v3384 = vpack.c.bf16 %v3170, %v3168
      %v3385 = vpack.c.bf16 %v3171, %v3169
      %v3386 = vpack.c.bf16 %v3174, %v3172
      %v3387 = vpack.c.bf16 %v3175, %v3173
      %v3388 = vpack.c.bf16 %v3178, %v3176
      %v3389 = vpack.c.bf16 %v3179, %v3177
      %v3390 = vpack.c.bf16 %v3182, %v3180
      %v3391 = vpack.c.bf16 %v3183, %v3181
      %v3392 = vpack.c.bf16 %v3186, %v3184
      %v3393 = vpack.c.bf16 %v3187, %v3185
      %v3394 = vpack.c.bf16 %v3190, %v3188
      %v3395 = vpack.c.bf16 %v3191, %v3189
      %v3396 = vpack.c.bf16 %v3194, %v3192
      %v3397 = vpack.c.bf16 %v3195, %v3193
      %v3398 = vpack.c.bf16 %v3198, %v3196
      %v3399 = vpack.c.bf16 %v3199, %v3197
      %v3400 = vpack.c.bf16 %v3202, %v3200
      %v3401 = vpack.c.bf16 %v3203, %v3201
      %v3402 = vpack.c.bf16 %v3206, %v3204
      %v3403 = vpack.c.bf16 %v3207, %v3205
      %v3404 = vpack.c.bf16 %v3210, %v3208
      %v3405 = vpack.c.bf16 %v3211, %v3209
      %v3406 = vpack.c.bf16 %v3214, %v3212
      %v3407 = vpack.c.bf16 %v3215, %v3213
      %v3408 = vpack.c.bf16 %v3218, %v3216
      %v3409 = vpack.c.bf16 %v3219, %v3217
      %v3410 = vpack.c.bf16 %v3222, %v3220
      %v3411 = vpack.c.bf16 %v3223, %v3221
      %v3412 = vpack.c.bf16 %v3226, %v3224
      %v3413 = vpack.c.bf16 %v3227, %v3225
      %v3414 = vpack.c.bf16 %v3230, %v3228
      %v3415 = vpack.c.bf16 %v3231, %v3229
      %v3416 = vpack.c.bf16 %v3234, %v3232
      %v3417 = vpack.c.bf16 %v3235, %v3233
      %v3418 = vpack.c.bf16 %v3238, %v3236
      %v3419 = vpack.c.bf16 %v3239, %v3237
      %v3420 = vpack.c.bf16 %v3242, %v3240
      %v3421 = vpack.c.bf16 %v3243, %v3241
      %v3422 = vpack.c.bf16 %v3246, %v3244
      %v3423 = vpack.c.bf16 %v3247, %v3245
      %v3424 = vpack.c.bf16 %v3250, %v3248
      %v3425 = vpack.c.bf16 %v3251, %v3249
      %v3426 = vpack.c.bf16 %v3254, %v3252
      %v3427 = vpack.c.bf16 %v3255, %v3253
      %v3428 = vpack.c.bf16 %v3258, %v3256
      %v3429 = vpack.c.bf16 %v3259, %v3257
      %v3430 = vpack.c.bf16 %v3262, %v3260
      %v3431 = vpack.c.bf16 %v3263, %v3261
      %v3432 = vpack.c.bf16 %v3266, %v3264
      %v3433 = vpack.c.bf16 %v3267, %v3265
      %v3434 = vpack.c.bf16 %v3270, %v3268
      %v3435 = vpack.c.bf16 %v3271, %v3269
      %v3436 = vpack.c.bf16 %v3274, %v3272
      %v3437 = vpack.c.bf16 %v3275, %v3273
      %v3438 = vpack.c.bf16 %v3278, %v3276
      %v3439 = vpack.c.bf16 %v3279, %v3277
      %v3440 = vpack.c.bf16 %v3282, %v3280
      %v3441 = vpack.c.bf16 %v3283, %v3281
      %v3442 = vpack.c.bf16 %v3286, %v3284
      %v3443 = vpack.c.bf16 %v3287, %v3285
      %v3444 = vpack.c.bf16 %v3290, %v3288
      %v3445 = vpack.c.bf16 %v3291, %v3289
      %v3446 = vpack.c.bf16 %v3294, %v3292
      %v3447 = vpack.c.bf16 %v3295, %v3293
      %v3448 = vpack.c.bf16 %v3298, %v3296
      %v3449 = vpack.c.bf16 %v3299, %v3297
      %v3450 = vpack.c.bf16 %v3302, %v3300
      %v3451 = vpack.c.bf16 %v3303, %v3301
      %v3452 = vpack.c.bf16 %v3306, %v3304
      %v3453 = vpack.c.bf16 %v3307, %v3305
      %v3454 = vpack.c.bf16 %v3310, %v3308
      %v3455 = vpack.c.bf16 %v3311, %v3309
      %v3456 = vpack.c.bf16 %v3314, %v3312
      %v3457 = vpack.c.bf16 %v3315, %v3313
      %v3458 = vpack.c.bf16 %v3318, %v3316
      %v3459 = vpack.c.bf16 %v3319, %v3317
      %v3460 = vpack.c.bf16 %v3322, %v3320
      %v3461 = vpack.c.bf16 %v3323, %v3321
      %v3462 = vpack.c.bf16 %v3326, %v3324
      %v3463 = vpack.c.bf16 %v3327, %v3325
      %v3464 = vpack.c.bf16 %v3330, %v3328
      %v3465 = vpack.c.bf16 %v3331, %v3329
      %v3466 = vpack.c.bf16 %v3334, %v3332
      %v3467 = vpack.c.bf16 %v3335, %v3333
      %v3468 = vpack.c.bf16 %v3338, %v3336
      %v3469 = vpack.c.bf16 %v3339, %v3337
      %v3470 = vpack.c.bf16 %v3342, %v3340
      %v3471 = vpack.c.bf16 %v3343, %v3341
      %v3472 = vpack.c.bf16 %v3346, %v3344
      %v3473 = vpack.c.bf16 %v3347, %v3345
      %v3474 = vpack.c.bf16 %v3350, %v3348
      %v3475 = vpack.c.bf16 %v3351, %v3349
      %v3476 = vpack.c.bf16 %v3354, %v3352
      %v3477 = vpack.c.bf16 %v3355, %v3353
      %v3478 = vpack.c.bf16 %v3358, %v3356
      %v3479 = vpack.c.bf16 %v3359, %v3357
      %v3480 = vpack.c.bf16 %v3362, %v3360
      %v3481 = vpack.c.bf16 %v3363, %v3361
      %v3482 = vpack.c.bf16 %v3366, %v3364
      %v3483 = vpack.c.bf16 %v3367, %v3365
      %v3484 = vpack.c.bf16 %v3370, %v3368
      %v3485 = vpack.c.bf16 %v3371, %v3369
      %v3486 = vld [vmem:[%s3] sm:$0xf]
      %v3487 = vld [vmem:[%s3 + $0x4] sm:$0xf]
      %v3488 = vld [vmem:[%s3 + $0x8] sm:$0xf]
      %v3489 = vld [vmem:[%s3 + $0xc] sm:$0xf]
      %v3490 = vld [vmem:[%s3 + $0x10] sm:$0xf]
      %v3491 = vld [vmem:[%s3 + $0x14] sm:$0xf]
      %v3492 = vld [vmem:[%s3 + $0x18] sm:$0xf]
      %v3493 = vld [vmem:[%s3 + $0x1c] sm:$0xf]
      %v3494 = vld [vmem:[%s3 + $0x20] sm:$0xf]
      %v3495 = vld [vmem:[%s3 + $0x24] sm:$0xf]
      %v3496 = vld [vmem:[%s3 + $0x28] sm:$0xf]
      %v3497 = vld [vmem:[%s3 + $0x2c] sm:$0xf]
      %v3498 = vld [vmem:[%s3 + $0x30] sm:$0xf]
      %v3499 = vld [vmem:[%s3 + $0x34] sm:$0xf]
      %v3500 = vld [vmem:[%s3 + $0x38] sm:$0xf]
      %v3501 = vld [vmem:[%s3 + $0x3c] sm:$0xf]
      %v3502 = vld [vmem:[%s3 + $0x40] sm:$0xf]
      %v3503 = vld [vmem:[%s3 + $0x44] sm:$0xf]
      %v3504 = vld [vmem:[%s3 + $0x48] sm:$0xf]
      %v3505 = vld [vmem:[%s3 + $0x4c] sm:$0xf]
      %v3506 = vld [vmem:[%s3 + $0x50] sm:$0xf]
      %v3507 = vld [vmem:[%s3 + $0x54] sm:$0xf]
      %v3508 = vld [vmem:[%s3 + $0x58] sm:$0xf]
      %v3509 = vld [vmem:[%s3 + $0x5c] sm:$0xf]
      %v3510 = vld [vmem:[%s3 + $0x60] sm:$0xf]
      %v3511 = vld [vmem:[%s3 + $0x64] sm:$0xf]
      %v3512 = vld [vmem:[%s3 + $0x68] sm:$0xf]
      %v3513 = vld [vmem:[%s3 + $0x6c] sm:$0xf]
      %v3514 = vld [vmem:[%s3 + $0x70] sm:$0xf]
      %v3515 = vld [vmem:[%s3 + $0x74] sm:$0xf]
      %v3516 = vld [vmem:[%s3 + $0x78] sm:$0xf]
      %v3517 = vld [vmem:[%s3 + $0x7c] sm:$0xf]
      %v3518 = vld [vmem:[%s6] sm:$0x1]
      %v3520 = vperm.slane %v3518, 0
      %v3554 = vunpack.c.l.b16 %v3486
      %v3555 = vunpack.c.l.b16 %v3487
      %v3556 = vunpack.c.l.b16 %v3488
      %v3557 = vunpack.c.l.b16 %v3489
      %v3558 = vunpack.c.l.b16 %v3490
      %v3559 = vunpack.c.l.b16 %v3491
      %v3560 = vunpack.c.l.b16 %v3492
      %v3561 = vunpack.c.l.b16 %v3493
      %v3562 = vunpack.c.l.b16 %v3494
      %v3563 = vunpack.c.l.b16 %v3495
      %v3564 = vunpack.c.l.b16 %v3496
      %v3565 = vunpack.c.l.b16 %v3497
      %v3566 = vunpack.c.l.b16 %v3498
      %v3567 = vunpack.c.l.b16 %v3499
      %v3568 = vunpack.c.l.b16 %v3500
      %v3569 = vunpack.c.l.b16 %v3501
      %v3570 = vunpack.c.l.b16 %v3502
      %v3571 = vunpack.c.l.b16 %v3503
      %v3572 = vunpack.c.l.b16 %v3504
      %v3573 = vunpack.c.l.b16 %v3505
      %v3574 = vunpack.c.l.b16 %v3506
      %v3575 = vunpack.c.l.b16 %v3507
      %v3576 = vunpack.c.l.b16 %v3508
      %v3577 = vunpack.c.l.b16 %v3509
      %v3578 = vunpack.c.l.b16 %v3510
      %v3579 = vunpack.c.l.b16 %v3511
      %v3580 = vunpack.c.l.b16 %v3512
      %v3581 = vunpack.c.l.b16 %v3513
      %v3582 = vunpack.c.l.b16 %v3514
      %v3583 = vunpack.c.l.b16 %v3515
      %v3584 = vunpack.c.l.b16 %v3516
      %v3585 = vunpack.c.l.b16 %v3517
      %v3586 = vpack.c.b16 %v3555, %v3554
      %v3587 = vpack.c.b16 %v3557, %v3556
      %v3588 = vpack.c.b16 %v3559, %v3558
      %v3589 = vpack.c.b16 %v3561, %v3560
      %v3590 = vpack.c.b16 %v3563, %v3562
      %v3591 = vpack.c.b16 %v3565, %v3564
      %v3592 = vpack.c.b16 %v3567, %v3566
      %v3593 = vpack.c.b16 %v3569, %v3568
      %v3594 = vpack.c.b16 %v3571, %v3570
      %v3595 = vpack.c.b16 %v3573, %v3572
      %v3596 = vpack.c.b16 %v3575, %v3574
      %v3597 = vpack.c.b16 %v3577, %v3576
      %v3598 = vpack.c.b16 %v3579, %v3578
      %v3599 = vpack.c.b16 %v3581, %v3580
      %v3600 = vpack.c.b16 %v3583, %v3582
      %v3601 = vpack.c.b16 %v3585, %v3584
      %3618 = vmatpush.bf16.msra.mxu0 %v3593
      %3619 = vmatpush.bf16.msra.mxu0 %v3592
      %3620 = vmatpush.bf16.msra.mxu0 %v3591
      %3621 = vmatpush.bf16.msra.mxu0 %v3590
      %3622 = vmatpush.bf16.msra.mxu0 %v3589
      %3623 = vmatpush.bf16.msra.mxu0 %v3588
      %3624 = vmatpush.bf16.msra.mxu0 %v3587
      %3625 = vmatpush.bf16.msra.mxu0 %v3586
      %3626 = vmatmul.bf16.gmra.mxu0 %v3372
      %v3627 = vpop.f32.mrf.mxu0
      %v3628 = vadd.f32 %v3520, %v3627
      %v3629 = vpop.f32.mrf.mxu0
      %v3630 = vadd.f32 %v3520, %v3629
      %3631 = vmatmul.bf16.gmra.mxu0 %v3374
      %v3632 = vpop.f32.mrf.mxu0
      %v3633 = vadd.f32 %v3520, %v3632
      %v3634 = vpop.f32.mrf.mxu0
      %v3635 = vadd.f32 %v3520, %v3634
      %3636 = vmatmul.bf16.gmra.mxu0 %v3376
      %v3637 = vpop.f32.mrf.mxu0
      %v3638 = vadd.f32 %v3520, %v3637
      %v3639 = vpop.f32.mrf.mxu0
      %v3640 = vadd.f32 %v3520, %v3639
      %3641 = vmatmul.bf16.gmra.mxu0 %v3378
      %v3642 = vpop.f32.mrf.mxu0
      %v3643 = vadd.f32 %v3520, %v3642
      %v3644 = vpop.f32.mrf.mxu0
      %v3645 = vadd.f32 %v3520, %v3644
      %3646 = vmatmul.bf16.gmra.mxu0 %v3380
      %v3647 = vpop.f32.mrf.mxu0
      %v3648 = vadd.f32 %v3520, %v3647
      %v3649 = vpop.f32.mrf.mxu0
      %v3650 = vadd.f32 %v3520, %v3649
      %3651 = vmatmul.bf16.gmra.mxu0 %v3382
      %v3652 = vpop.f32.mrf.mxu0
      %v3653 = vadd.f32 %v3520, %v3652
      %v3654 = vpop.f32.mrf.mxu0
      %v3655 = vadd.f32 %v3520, %v3654
      %3656 = vmatmul.bf16.gmra.mxu0 %v3384
      %v3657 = vpop.f32.mrf.mxu0
      %v3658 = vadd.f32 %v3520, %v3657
      %v3659 = vpop.f32.mrf.mxu0
      %v3660 = vadd.f32 %v3520, %v3659
      %3661 = vmatmul.bf16.gmra.mxu0 %v3386
      %v3662 = vpop.f32.mrf.mxu0
      %v3663 = vadd.f32 %v3520, %v3662
      %v3664 = vpop.f32.mrf.mxu0
      %v3665 = vadd.f32 %v3520, %v3664
      %3666 = vmatmul.bf16.gmra.mxu0 %v3388
      %v3667 = vpop.f32.mrf.mxu0
      %v3668 = vadd.f32 %v3520, %v3667
      %v3669 = vpop.f32.mrf.mxu0
      %v3670 = vadd.f32 %v3520, %v3669
      %3671 = vmatmul.bf16.gmra.mxu0 %v3390
      %v3672 = vpop.f32.mrf.mxu0
      %v3673 = vadd.f32 %v3520, %v3672
      %v3674 = vpop.f32.mrf.mxu0
      %v3675 = vadd.f32 %v3520, %v3674
      %3676 = vmatmul.bf16.gmra.mxu0 %v3392
      %v3677 = vpop.f32.mrf.mxu0
      %v3678 = vadd.f32 %v3520, %v3677
      %v3679 = vpop.f32.mrf.mxu0
      %v3680 = vadd.f32 %v3520, %v3679
      %3681 = vmatmul.bf16.gmra.mxu0 %v3394
      %v3682 = vpop.f32.mrf.mxu0
      %v3683 = vadd.f32 %v3520, %v3682
      %v3684 = vpop.f32.mrf.mxu0
      %v3685 = vadd.f32 %v3520, %v3684
      %3686 = vmatmul.bf16.gmra.mxu0 %v3396
      %v3687 = vpop.f32.mrf.mxu0
      %v3688 = vadd.f32 %v3520, %v3687
      %v3689 = vpop.f32.mrf.mxu0
      %v3690 = vadd.f32 %v3520, %v3689
      %3691 = vmatmul.bf16.gmra.mxu0 %v3398
      %v3692 = vpop.f32.mrf.mxu0
      %v3693 = vadd.f32 %v3520, %v3692
      %v3694 = vpop.f32.mrf.mxu0
      %v3695 = vadd.f32 %v3520, %v3694
      %3696 = vmatmul.bf16.gmra.mxu0 %v3400
      %v3697 = vpop.f32.mrf.mxu0
      %v3698 = vadd.f32 %v3520, %v3697
      %v3699 = vpop.f32.mrf.mxu0
      %v3700 = vadd.f32 %v3520, %v3699
      %3701 = vmatmul.bf16.gmra.mxu0 %v3402
      %v3702 = vpop.f32.mrf.mxu0
      %v3703 = vadd.f32 %v3520, %v3702
      %v3704 = vpop.f32.mrf.mxu0
      %v3705 = vadd.f32 %v3520, %v3704
      %3706 = vmatmul.bf16.gmra.mxu0 %v3404
      %v3707 = vpop.f32.mrf.mxu0
      %v3708 = vadd.f32 %v3520, %v3707
      %v3709 = vpop.f32.mrf.mxu0
      %v3710 = vadd.f32 %v3520, %v3709
      %3711 = vmatmul.bf16.gmra.mxu0 %v3406
      %v3712 = vpop.f32.mrf.mxu0
      %v3713 = vadd.f32 %v3520, %v3712
      %v3714 = vpop.f32.mrf.mxu0
      %v3715 = vadd.f32 %v3520, %v3714
      %3716 = vmatmul.bf16.gmra.mxu0 %v3408
      %v3717 = vpop.f32.mrf.mxu0
      %v3718 = vadd.f32 %v3520, %v3717
      %v3719 = vpop.f32.mrf.mxu0
      %v3720 = vadd.f32 %v3520, %v3719
      %3721 = vmatmul.bf16.gmra.mxu0 %v3410
      %v3722 = vpop.f32.mrf.mxu0
      %v3723 = vadd.f32 %v3520, %v3722
      %v3724 = vpop.f32.mrf.mxu0
      %v3725 = vadd.f32 %v3520, %v3724
      %3726 = vmatmul.bf16.gmra.mxu0 %v3412
      %v3727 = vpop.f32.mrf.mxu0
      %v3728 = vadd.f32 %v3520, %v3727
      %v3729 = vpop.f32.mrf.mxu0
      %v3730 = vadd.f32 %v3520, %v3729
      %3731 = vmatmul.bf16.gmra.mxu0 %v3414
      %v3732 = vpop.f32.mrf.mxu0
      %v3733 = vadd.f32 %v3520, %v3732
      %v3734 = vpop.f32.mrf.mxu0
      %v3735 = vadd.f32 %v3520, %v3734
      %3736 = vmatmul.bf16.gmra.mxu0 %v3416
      %v3737 = vpop.f32.mrf.mxu0
      %v3738 = vadd.f32 %v3520, %v3737
      %v3739 = vpop.f32.mrf.mxu0
      %v3740 = vadd.f32 %v3520, %v3739
      %3741 = vmatmul.bf16.gmra.mxu0 %v3418
      %v3742 = vpop.f32.mrf.mxu0
      %v3743 = vadd.f32 %v3520, %v3742
      %v3744 = vpop.f32.mrf.mxu0
      %v3745 = vadd.f32 %v3520, %v3744
      %3746 = vmatmul.bf16.gmra.mxu0 %v3420
      %v3747 = vpop.f32.mrf.mxu0
      %v3748 = vadd.f32 %v3520, %v3747
      %v3749 = vpop.f32.mrf.mxu0
      %v3750 = vadd.f32 %v3520, %v3749
      %3751 = vmatmul.bf16.gmra.mxu0 %v3422
      %v3752 = vpop.f32.mrf.mxu0
      %v3753 = vadd.f32 %v3520, %v3752
      %v3754 = vpop.f32.mrf.mxu0
      %v3755 = vadd.f32 %v3520, %v3754
      %3756 = vmatmul.bf16.gmra.mxu0 %v3424
      %v3757 = vpop.f32.mrf.mxu0
      %v3758 = vadd.f32 %v3520, %v3757
      %v3759 = vpop.f32.mrf.mxu0
      %v3760 = vadd.f32 %v3520, %v3759
      %3761 = vmatmul.bf16.gmra.mxu0 %v3426
      %v3762 = vpop.f32.mrf.mxu0
      %v3763 = vadd.f32 %v3520, %v3762
      %v3764 = vpop.f32.mrf.mxu0
      %v3765 = vadd.f32 %v3520, %v3764
      %3766 = vmatmul.bf16.gmra.mxu0 %v3428
      %v3767 = vpop.f32.mrf.mxu0
      %v3768 = vadd.f32 %v3520, %v3767
      %v3769 = vpop.f32.mrf.mxu0
      %v3770 = vadd.f32 %v3520, %v3769
      %3771 = vmatmul.bf16.gmra.mxu0 %v3430
      %v3772 = vpop.f32.mrf.mxu0
      %v3773 = vadd.f32 %v3520, %v3772
      %v3774 = vpop.f32.mrf.mxu0
      %v3775 = vadd.f32 %v3520, %v3774
      %3776 = vmatmul.bf16.gmra.mxu0 %v3432
      %v3777 = vpop.f32.mrf.mxu0
      %v3778 = vadd.f32 %v3520, %v3777
      %v3779 = vpop.f32.mrf.mxu0
      %v3780 = vadd.f32 %v3520, %v3779
      %3781 = vmatmul.bf16.gmra.mxu0 %v3434
      %v3782 = vpop.f32.mrf.mxu0
      %v3783 = vadd.f32 %v3520, %v3782
      %v3784 = vpop.f32.mrf.mxu0
      %v3785 = vadd.f32 %v3520, %v3784
      %3786 = vmatmul.bf16.gmra.mxu0 %v3436
      %v3787 = vpop.f32.mrf.mxu0
      %v3788 = vadd.f32 %v3520, %v3787
      %v3789 = vpop.f32.mrf.mxu0
      %v3790 = vadd.f32 %v3520, %v3789
      %3791 = vmatmul.bf16.gmra.mxu0 %v3438
      %v3792 = vpop.f32.mrf.mxu0
      %v3793 = vadd.f32 %v3520, %v3792
      %v3794 = vpop.f32.mrf.mxu0
      %v3795 = vadd.f32 %v3520, %v3794
      %3796 = vmatmul.bf16.gmra.mxu0 %v3440
      %v3797 = vpop.f32.mrf.mxu0
      %v3798 = vadd.f32 %v3520, %v3797
      %v3799 = vpop.f32.mrf.mxu0
      %v3800 = vadd.f32 %v3520, %v3799
      %3801 = vmatmul.bf16.gmra.mxu0 %v3442
      %v3802 = vpop.f32.mrf.mxu0
      %v3803 = vadd.f32 %v3520, %v3802
      %v3804 = vpop.f32.mrf.mxu0
      %v3805 = vadd.f32 %v3520, %v3804
      %3806 = vmatmul.bf16.gmra.mxu0 %v3444
      %v3807 = vpop.f32.mrf.mxu0
      %v3808 = vadd.f32 %v3520, %v3807
      %v3809 = vpop.f32.mrf.mxu0
      %v3810 = vadd.f32 %v3520, %v3809
      %3811 = vmatmul.bf16.gmra.mxu0 %v3446
      %v3812 = vpop.f32.mrf.mxu0
      %v3813 = vadd.f32 %v3520, %v3812
      %v3814 = vpop.f32.mrf.mxu0
      %v3815 = vadd.f32 %v3520, %v3814
      %3816 = vmatmul.bf16.gmra.mxu0 %v3448
      %v3817 = vpop.f32.mrf.mxu0
      %v3818 = vadd.f32 %v3520, %v3817
      %v3819 = vpop.f32.mrf.mxu0
      %v3820 = vadd.f32 %v3520, %v3819
      %3821 = vmatmul.bf16.gmra.mxu0 %v3450
      %v3822 = vpop.f32.mrf.mxu0
      %v3823 = vadd.f32 %v3520, %v3822
      %v3824 = vpop.f32.mrf.mxu0
      %v3825 = vadd.f32 %v3520, %v3824
      %3826 = vmatmul.bf16.gmra.mxu0 %v3452
      %v3827 = vpop.f32.mrf.mxu0
      %v3828 = vadd.f32 %v3520, %v3827
      %v3829 = vpop.f32.mrf.mxu0
      %v3830 = vadd.f32 %v3520, %v3829
      %3831 = vmatmul.bf16.gmra.mxu0 %v3454
      %v3832 = vpop.f32.mrf.mxu0
      %v3833 = vadd.f32 %v3520, %v3832
      %v3834 = vpop.f32.mrf.mxu0
      %v3835 = vadd.f32 %v3520, %v3834
      %3836 = vmatmul.bf16.gmra.mxu0 %v3456
      %v3837 = vpop.f32.mrf.mxu0
      %v3838 = vadd.f32 %v3520, %v3837
      %v3839 = vpop.f32.mrf.mxu0
      %v3840 = vadd.f32 %v3520, %v3839
      %3841 = vmatmul.bf16.gmra.mxu0 %v3458
      %v3842 = vpop.f32.mrf.mxu0
      %v3843 = vadd.f32 %v3520, %v3842
      %v3844 = vpop.f32.mrf.mxu0
      %v3845 = vadd.f32 %v3520, %v3844
      %3846 = vmatmul.bf16.gmra.mxu0 %v3460
      %v3847 = vpop.f32.mrf.mxu0
      %v3848 = vadd.f32 %v3520, %v3847
      %v3849 = vpop.f32.mrf.mxu0
      %v3850 = vadd.f32 %v3520, %v3849
      %3851 = vmatmul.bf16.gmra.mxu0 %v3462
      %v3852 = vpop.f32.mrf.mxu0
      %v3853 = vadd.f32 %v3520, %v3852
      %v3854 = vpop.f32.mrf.mxu0
      %v3855 = vadd.f32 %v3520, %v3854
      %3856 = vmatmul.bf16.gmra.mxu0 %v3464
      %v3857 = vpop.f32.mrf.mxu0
      %v3858 = vadd.f32 %v3520, %v3857
      %v3859 = vpop.f32.mrf.mxu0
      %v3860 = vadd.f32 %v3520, %v3859
      %3861 = vmatmul.bf16.gmra.mxu0 %v3466
      %v3862 = vpop.f32.mrf.mxu0
      %v3863 = vadd.f32 %v3520, %v3862
      %v3864 = vpop.f32.mrf.mxu0
      %v3865 = vadd.f32 %v3520, %v3864
      %3866 = vmatmul.bf16.gmra.mxu0 %v3468
      %v3867 = vpop.f32.mrf.mxu0
      %v3868 = vadd.f32 %v3520, %v3867
      %v3869 = vpop.f32.mrf.mxu0
      %v3870 = vadd.f32 %v3520, %v3869
      %3871 = vmatmul.bf16.gmra.mxu0 %v3470
      %v3872 = vpop.f32.mrf.mxu0
      %v3873 = vadd.f32 %v3520, %v3872
      %v3874 = vpop.f32.mrf.mxu0
      %v3875 = vadd.f32 %v3520, %v3874
      %3876 = vmatmul.bf16.gmra.mxu0 %v3472
      %v3877 = vpop.f32.mrf.mxu0
      %v3878 = vadd.f32 %v3520, %v3877
      %v3879 = vpop.f32.mrf.mxu0
      %v3880 = vadd.f32 %v3520, %v3879
      %3881 = vmatmul.bf16.gmra.mxu0 %v3474
      %v3882 = vpop.f32.mrf.mxu0
      %v3883 = vadd.f32 %v3520, %v3882
      %v3884 = vpop.f32.mrf.mxu0
      %v3885 = vadd.f32 %v3520, %v3884
      %3886 = vmatmul.bf16.gmra.mxu0 %v3476
      %v3887 = vpop.f32.mrf.mxu0
      %v3888 = vadd.f32 %v3520, %v3887
      %v3889 = vpop.f32.mrf.mxu0
      %v3890 = vadd.f32 %v3520, %v3889
      %3891 = vmatmul.bf16.gmra.mxu0 %v3478
      %v3892 = vpop.f32.mrf.mxu0
      %v3893 = vadd.f32 %v3520, %v3892
      %v3894 = vpop.f32.mrf.mxu0
      %v3895 = vadd.f32 %v3520, %v3894
      %3896 = vmatmul.bf16.gmra.mxu0 %v3480
      %v3897 = vpop.f32.mrf.mxu0
      %v3898 = vadd.f32 %v3520, %v3897
      %v3899 = vpop.f32.mrf.mxu0
      %v3900 = vadd.f32 %v3520, %v3899
      %3901 = vmatmul.bf16.gmra.mxu0 %v3482
      %v3902 = vpop.f32.mrf.mxu0
      %v3903 = vadd.f32 %v3520, %v3902
      %v3904 = vpop.f32.mrf.mxu0
      %v3905 = vadd.f32 %v3520, %v3904
      %3906 = vmatmul.bf16.gmra.mxu0 %v3484
      %v3907 = vpop.f32.mrf.mxu0
      %v3908 = vadd.f32 %v3520, %v3907
      %v3909 = vpop.f32.mrf.mxu0
      %v3910 = vadd.f32 %v3520, %v3909
      %3911 = vdwg.mxu0
      %3912 = vmatpush.bf16.msra.mxu0 %v3601
      %3913 = vmatpush.bf16.msra.mxu0 %v3600
      %3914 = vmatpush.bf16.msra.mxu0 %v3599
      %3915 = vmatpush.bf16.msra.mxu0 %v3598
      %3916 = vmatpush.bf16.msra.mxu0 %v3597
      %3917 = vmatpush.bf16.msra.mxu0 %v3596
      %3918 = vmatpush.bf16.msra.mxu0 %v3595
      %3919 = vmatpush.bf16.msra.mxu0 %v3594
      %3920 = vmatmul.bf16.gmra.mxu0 %v3373
      %v3921 = vpop.f32.mrf.mxu0
      %v3922 = vadd.f32 %v3628, %v3921
      %v3923 = vpop.f32.mrf.mxu0
      %v3924 = vadd.f32 %v3630, %v3923
      %3925 = vmatmul.bf16.gmra.mxu0 %v3375
      %v3926 = vpop.f32.mrf.mxu0
      %v3927 = vadd.f32 %v3633, %v3926
      %v3928 = vpop.f32.mrf.mxu0
      %v3929 = vadd.f32 %v3635, %v3928
      %3930 = vmatmul.bf16.gmra.mxu0 %v3377
      %v3931 = vpop.f32.mrf.mxu0
      %v3932 = vadd.f32 %v3638, %v3931
      %v3933 = vpop.f32.mrf.mxu0
      %v3934 = vadd.f32 %v3640, %v3933
      %3935 = vmatmul.bf16.gmra.mxu0 %v3379
      %v3936 = vpop.f32.mrf.mxu0
      %v3937 = vadd.f32 %v3643, %v3936
      %v3938 = vpop.f32.mrf.mxu0
      %v3939 = vadd.f32 %v3645, %v3938
      %3940 = vmatmul.bf16.gmra.mxu0 %v3381
      %v3941 = vpop.f32.mrf.mxu0
      %v3942 = vadd.f32 %v3648, %v3941
      %v3943 = vpop.f32.mrf.mxu0
      %v3944 = vadd.f32 %v3650, %v3943
      %3945 = vmatmul.bf16.gmra.mxu0 %v3383
      %v3946 = vpop.f32.mrf.mxu0
      %v3947 = vadd.f32 %v3653, %v3946
      %v3948 = vpop.f32.mrf.mxu0
      %v3949 = vadd.f32 %v3655, %v3948
      %3950 = vmatmul.bf16.gmra.mxu0 %v3385
      %v3951 = vpop.f32.mrf.mxu0
      %v3952 = vadd.f32 %v3658, %v3951
      %v3953 = vpop.f32.mrf.mxu0
      %v3954 = vadd.f32 %v3660, %v3953
      %3955 = vmatmul.bf16.gmra.mxu0 %v3387
      %v3956 = vpop.f32.mrf.mxu0
      %v3957 = vadd.f32 %v3663, %v3956
      %v3958 = vpop.f32.mrf.mxu0
      %v3959 = vadd.f32 %v3665, %v3958
      %3960 = vmatmul.bf16.gmra.mxu0 %v3389
      %v3961 = vpop.f32.mrf.mxu0
      %v3962 = vadd.f32 %v3668, %v3961
      %v3963 = vpop.f32.mrf.mxu0
      %v3964 = vadd.f32 %v3670, %v3963
      %3965 = vmatmul.bf16.gmra.mxu0 %v3391
      %v3966 = vpop.f32.mrf.mxu0
      %v3967 = vadd.f32 %v3673, %v3966
      %v3968 = vpop.f32.mrf.mxu0
      %v3969 = vadd.f32 %v3675, %v3968
      %3970 = vmatmul.bf16.gmra.mxu0 %v3393
      %v3971 = vpop.f32.mrf.mxu0
      %v3972 = vadd.f32 %v3678, %v3971
      %v3973 = vpop.f32.mrf.mxu0
      %v3974 = vadd.f32 %v3680, %v3973
      %3975 = vmatmul.bf16.gmra.mxu0 %v3395
      %v3976 = vpop.f32.mrf.mxu0
      %v3977 = vadd.f32 %v3683, %v3976
      %v3978 = vpop.f32.mrf.mxu0
      %v3979 = vadd.f32 %v3685, %v3978
      %3980 = vmatmul.bf16.gmra.mxu0 %v3397
      %v3981 = vpop.f32.mrf.mxu0
      %v3982 = vadd.f32 %v3688, %v3981
      %v3983 = vpop.f32.mrf.mxu0
      %v3984 = vadd.f32 %v3690, %v3983
      %3985 = vmatmul.bf16.gmra.mxu0 %v3399
      %v3986 = vpop.f32.mrf.mxu0
      %v3987 = vadd.f32 %v3693, %v3986
      %v3988 = vpop.f32.mrf.mxu0
      %v3989 = vadd.f32 %v3695, %v3988
      %3990 = vmatmul.bf16.gmra.mxu0 %v3401
      %v3991 = vpop.f32.mrf.mxu0
      %v3992 = vadd.f32 %v3698, %v3991
      %v3993 = vpop.f32.mrf.mxu0
      %v3994 = vadd.f32 %v3700, %v3993
      %3995 = vmatmul.bf16.gmra.mxu0 %v3403
      %v3996 = vpop.f32.mrf.mxu0
      %v3997 = vadd.f32 %v3703, %v3996
      %v3998 = vpop.f32.mrf.mxu0
      %v3999 = vadd.f32 %v3705, %v3998
      %4000 = vmatmul.bf16.gmra.mxu0 %v3405
      %v4001 = vpop.f32.mrf.mxu0
      %v4002 = vadd.f32 %v3708, %v4001
      %v4003 = vpop.f32.mrf.mxu0
      %v4004 = vadd.f32 %v3710, %v4003
      %4005 = vmatmul.bf16.gmra.mxu0 %v3407
      %v4006 = vpop.f32.mrf.mxu0
      %v4007 = vadd.f32 %v3713, %v4006
      %v4008 = vpop.f32.mrf.mxu0
      %v4009 = vadd.f32 %v3715, %v4008
      %4010 = vmatmul.bf16.gmra.mxu0 %v3409
      %v4011 = vpop.f32.mrf.mxu0
      %v4012 = vadd.f32 %v3718, %v4011
      %v4013 = vpop.f32.mrf.mxu0
      %v4014 = vadd.f32 %v3720, %v4013
      %4015 = vmatmul.bf16.gmra.mxu0 %v3411
      %v4016 = vpop.f32.mrf.mxu0
      %v4017 = vadd.f32 %v3723, %v4016
      %v4018 = vpop.f32.mrf.mxu0
      %v4019 = vadd.f32 %v3725, %v4018
      %4020 = vmatmul.bf16.gmra.mxu0 %v3413
      %v4021 = vpop.f32.mrf.mxu0
      %v4022 = vadd.f32 %v3728, %v4021
      %v4023 = vpop.f32.mrf.mxu0
      %v4024 = vadd.f32 %v3730, %v4023
      %4025 = vmatmul.bf16.gmra.mxu0 %v3415
      %v4026 = vpop.f32.mrf.mxu0
      %v4027 = vadd.f32 %v3733, %v4026
      %v4028 = vpop.f32.mrf.mxu0
      %v4029 = vadd.f32 %v3735, %v4028
      %4030 = vmatmul.bf16.gmra.mxu0 %v3417
      %v4031 = vpop.f32.mrf.mxu0
      %v4032 = vadd.f32 %v3738, %v4031
      %v4033 = vpop.f32.mrf.mxu0
      %v4034 = vadd.f32 %v3740, %v4033
      %4035 = vmatmul.bf16.gmra.mxu0 %v3419
      %v4036 = vpop.f32.mrf.mxu0
      %v4037 = vadd.f32 %v3743, %v4036
      %v4038 = vpop.f32.mrf.mxu0
      %v4039 = vadd.f32 %v3745, %v4038
      %4040 = vmatmul.bf16.gmra.mxu0 %v3421
      %v4041 = vpop.f32.mrf.mxu0
      %v4042 = vadd.f32 %v3748, %v4041
      %v4043 = vpop.f32.mrf.mxu0
      %v4044 = vadd.f32 %v3750, %v4043
      %4045 = vmatmul.bf16.gmra.mxu0 %v3423
      %v4046 = vpop.f32.mrf.mxu0
      %v4047 = vadd.f32 %v3753, %v4046
      %v4048 = vpop.f32.mrf.mxu0
      %v4049 = vadd.f32 %v3755, %v4048
      %4050 = vmatmul.bf16.gmra.mxu0 %v3425
      %v4051 = vpop.f32.mrf.mxu0
      %v4052 = vadd.f32 %v3758, %v4051
      %v4053 = vpop.f32.mrf.mxu0
      %v4054 = vadd.f32 %v3760, %v4053
      %4055 = vmatmul.bf16.gmra.mxu0 %v3427
      %v4056 = vpop.f32.mrf.mxu0
      %v4057 = vadd.f32 %v3763, %v4056
      %v4058 = vpop.f32.mrf.mxu0
      %v4059 = vadd.f32 %v3765, %v4058
      %4060 = vmatmul.bf16.gmra.mxu0 %v3429
      %v4061 = vpop.f32.mrf.mxu0
      %v4062 = vadd.f32 %v3768, %v4061
      %v4063 = vpop.f32.mrf.mxu0
      %v4064 = vadd.f32 %v3770, %v4063
      %4065 = vmatmul.bf16.gmra.mxu0 %v3431
      %v4066 = vpop.f32.mrf.mxu0
      %v4067 = vadd.f32 %v3773, %v4066
      %v4068 = vpop.f32.mrf.mxu0
      %v4069 = vadd.f32 %v3775, %v4068
      %4070 = vmatmul.bf16.gmra.mxu0 %v3433
      %v4071 = vpop.f32.mrf.mxu0
      %v4072 = vadd.f32 %v3778, %v4071
      %v4073 = vpop.f32.mrf.mxu0
      %v4074 = vadd.f32 %v3780, %v4073
      %4075 = vmatmul.bf16.gmra.mxu0 %v3435
      %v4076 = vpop.f32.mrf.mxu0
      %v4077 = vadd.f32 %v3783, %v4076
      %v4078 = vpop.f32.mrf.mxu0
      %v4079 = vadd.f32 %v3785, %v4078
      %4080 = vmatmul.bf16.gmra.mxu0 %v3437
      %v4081 = vpop.f32.mrf.mxu0
      %v4082 = vadd.f32 %v3788, %v4081
      %v4083 = vpop.f32.mrf.mxu0
      %v4084 = vadd.f32 %v3790, %v4083
      %4085 = vmatmul.bf16.gmra.mxu0 %v3439
      %v4086 = vpop.f32.mrf.mxu0
      %v4087 = vadd.f32 %v3793, %v4086
      %v4088 = vpop.f32.mrf.mxu0
      %v4089 = vadd.f32 %v3795, %v4088
      %4090 = vmatmul.bf16.gmra.mxu0 %v3441
      %v4091 = vpop.f32.mrf.mxu0
      %v4092 = vadd.f32 %v3798, %v4091
      %v4093 = vpop.f32.mrf.mxu0
      %v4094 = vadd.f32 %v3800, %v4093
      %4095 = vmatmul.bf16.gmra.mxu0 %v3443
      %v4096 = vpop.f32.mrf.mxu0
      %v4097 = vadd.f32 %v3803, %v4096
      %v4098 = vpop.f32.mrf.mxu0
      %v4099 = vadd.f32 %v3805, %v4098
      %4100 = vmatmul.bf16.gmra.mxu0 %v3445
      %v4101 = vpop.f32.mrf.mxu0
      %v4102 = vadd.f32 %v3808, %v4101
      %v4103 = vpop.f32.mrf.mxu0
      %v4104 = vadd.f32 %v3810, %v4103
      %4105 = vmatmul.bf16.gmra.mxu0 %v3447
      %v4106 = vpop.f32.mrf.mxu0
      %v4107 = vadd.f32 %v3813, %v4106
      %v4108 = vpop.f32.mrf.mxu0
      %v4109 = vadd.f32 %v3815, %v4108
      %4110 = vmatmul.bf16.gmra.mxu0 %v3449
      %v4111 = vpop.f32.mrf.mxu0
      %v4112 = vadd.f32 %v3818, %v4111
      %v4113 = vpop.f32.mrf.mxu0
      %v4114 = vadd.f32 %v3820, %v4113
      %4115 = vmatmul.bf16.gmra.mxu0 %v3451
      %v4116 = vpop.f32.mrf.mxu0
      %v4117 = vadd.f32 %v3823, %v4116
      %v4118 = vpop.f32.mrf.mxu0
      %v4119 = vadd.f32 %v3825, %v4118
      %4120 = vmatmul.bf16.gmra.mxu0 %v3453
      %v4121 = vpop.f32.mrf.mxu0
      %v4122 = vadd.f32 %v3828, %v4121
      %v4123 = vpop.f32.mrf.mxu0
      %v4124 = vadd.f32 %v3830, %v4123
      %4125 = vmatmul.bf16.gmra.mxu0 %v3455
      %v4126 = vpop.f32.mrf.mxu0
      %v4127 = vadd.f32 %v3833, %v4126
      %v4128 = vpop.f32.mrf.mxu0
      %v4129 = vadd.f32 %v3835, %v4128
      %4130 = vmatmul.bf16.gmra.mxu0 %v3457
      %v4131 = vpop.f32.mrf.mxu0
      %v4132 = vadd.f32 %v3838, %v4131
      %v4133 = vpop.f32.mrf.mxu0
      %v4134 = vadd.f32 %v3840, %v4133
      %4135 = vmatmul.bf16.gmra.mxu0 %v3459
      %v4136 = vpop.f32.mrf.mxu0
      %v4137 = vadd.f32 %v3843, %v4136
      %v4138 = vpop.f32.mrf.mxu0
      %v4139 = vadd.f32 %v3845, %v4138
      %4140 = vmatmul.bf16.gmra.mxu0 %v3461
      %v4141 = vpop.f32.mrf.mxu0
      %v4142 = vadd.f32 %v3848, %v4141
      %v4143 = vpop.f32.mrf.mxu0
      %v4144 = vadd.f32 %v3850, %v4143
      %4145 = vmatmul.bf16.gmra.mxu0 %v3463
      %v4146 = vpop.f32.mrf.mxu0
      %v4147 = vadd.f32 %v3853, %v4146
      %v4148 = vpop.f32.mrf.mxu0
      %v4149 = vadd.f32 %v3855, %v4148
      %4150 = vmatmul.bf16.gmra.mxu0 %v3465
      %v4151 = vpop.f32.mrf.mxu0
      %v4152 = vadd.f32 %v3858, %v4151
      %v4153 = vpop.f32.mrf.mxu0
      %v4154 = vadd.f32 %v3860, %v4153
      %4155 = vmatmul.bf16.gmra.mxu0 %v3467
      %v4156 = vpop.f32.mrf.mxu0
      %v4157 = vadd.f32 %v3863, %v4156
      %v4158 = vpop.f32.mrf.mxu0
      %v4159 = vadd.f32 %v3865, %v4158
      %4160 = vmatmul.bf16.gmra.mxu0 %v3469
      %v4161 = vpop.f32.mrf.mxu0
      %v4162 = vadd.f32 %v3868, %v4161
      %v4163 = vpop.f32.mrf.mxu0
      %v4164 = vadd.f32 %v3870, %v4163
      %4165 = vmatmul.bf16.gmra.mxu0 %v3471
      %v4166 = vpop.f32.mrf.mxu0
      %v4167 = vadd.f32 %v3873, %v4166
      %v4168 = vpop.f32.mrf.mxu0
      %v4169 = vadd.f32 %v3875, %v4168
      %4170 = vmatmul.bf16.gmra.mxu0 %v3473
      %v4171 = vpop.f32.mrf.mxu0
      %v4172 = vadd.f32 %v3878, %v4171
      %v4173 = vpop.f32.mrf.mxu0
      %v4174 = vadd.f32 %v3880, %v4173
      %4175 = vmatmul.bf16.gmra.mxu0 %v3475
      %v4176 = vpop.f32.mrf.mxu0
      %v4177 = vadd.f32 %v3883, %v4176
      %v4178 = vpop.f32.mrf.mxu0
      %v4179 = vadd.f32 %v3885, %v4178
      %4180 = vmatmul.bf16.gmra.mxu0 %v3477
      %v4181 = vpop.f32.mrf.mxu0
      %v4182 = vadd.f32 %v3888, %v4181
      %v4183 = vpop.f32.mrf.mxu0
      %v4184 = vadd.f32 %v3890, %v4183
      %4185 = vmatmul.bf16.gmra.mxu0 %v3479
      %v4186 = vpop.f32.mrf.mxu0
      %v4187 = vadd.f32 %v3893, %v4186
      %v4188 = vpop.f32.mrf.mxu0
      %v4189 = vadd.f32 %v3895, %v4188
      %4190 = vmatmul.bf16.gmra.mxu0 %v3481
      %v4191 = vpop.f32.mrf.mxu0
      %v4192 = vadd.f32 %v3898, %v4191
      %v4193 = vpop.f32.mrf.mxu0
      %v4194 = vadd.f32 %v3900, %v4193
      %4195 = vmatmul.bf16.gmra.mxu0 %v3483
      %v4196 = vpop.f32.mrf.mxu0
      %v4197 = vadd.f32 %v3903, %v4196
      %v4198 = vpop.f32.mrf.mxu0
      %v4199 = vadd.f32 %v3905, %v4198
      %4200 = vmatmul.bf16.gmra.mxu0 %v3485
      %v4201 = vpop.f32.mrf.mxu0
      %v4202 = vadd.f32 %v3908, %v4201
      %v4203 = vpop.f32.mrf.mxu0
      %v4204 = vadd.f32 %v3910, %v4203
      %4205 = vdwg.mxu0
      %v4206 = vmax.f32 %v3922, 0.0
      %v4207 = vmax.f32 %v3924, 0.0
      %v4208 = vmax.f32 %v3927, 0.0
      %v4209 = vmax.f32 %v3929, 0.0
      %v4210 = vmax.f32 %v3932, 0.0
      %v4211 = vmax.f32 %v3934, 0.0
      %v4212 = vmax.f32 %v3937, 0.0
      %v4213 = vmax.f32 %v3939, 0.0
      %v4214 = vmax.f32 %v3942, 0.0
      %v4215 = vmax.f32 %v3944, 0.0
      %v4216 = vmax.f32 %v3947, 0.0
      %v4217 = vmax.f32 %v3949, 0.0
      %v4218 = vmax.f32 %v3952, 0.0
      %v4219 = vmax.f32 %v3954, 0.0
      %v4220 = vmax.f32 %v3957, 0.0
      %v4221 = vmax.f32 %v3959, 0.0
      %v4222 = vmax.f32 %v3962, 0.0
      %v4223 = vmax.f32 %v3964, 0.0
      %v4224 = vmax.f32 %v3967, 0.0
      %v4225 = vmax.f32 %v3969, 0.0
      %v4226 = vmax.f32 %v3972, 0.0
      %v4227 = vmax.f32 %v3974, 0.0
      %v4228 = vmax.f32 %v3977, 0.0
      %v4229 = vmax.f32 %v3979, 0.0
      %v4230 = vmax.f32 %v3982, 0.0
      %v4231 = vmax.f32 %v3984, 0.0
      %v4232 = vmax.f32 %v3987, 0.0
      %v4233 = vmax.f32 %v3989, 0.0
      %v4234 = vmax.f32 %v3992, 0.0
      %v4235 = vmax.f32 %v3994, 0.0
      %v4236 = vmax.f32 %v3997, 0.0
      %v4237 = vmax.f32 %v3999, 0.0
      %v4238 = vmax.f32 %v4002, 0.0
      %v4239 = vmax.f32 %v4004, 0.0
      %v4240 = vmax.f32 %v4007, 0.0
      %v4241 = vmax.f32 %v4009, 0.0
      %v4242 = vmax.f32 %v4012, 0.0
      %v4243 = vmax.f32 %v4014, 0.0
      %v4244 = vmax.f32 %v4017, 0.0
      %v4245 = vmax.f32 %v4019, 0.0
      %v4246 = vmax.f32 %v4022, 0.0
      %v4247 = vmax.f32 %v4024, 0.0
      %v4248 = vmax.f32 %v4027, 0.0
      %v4249 = vmax.f32 %v4029, 0.0
      %v4250 = vmax.f32 %v4032, 0.0
      %v4251 = vmax.f32 %v4034, 0.0
      %v4252 = vmax.f32 %v4037, 0.0
      %v4253 = vmax.f32 %v4039, 0.0
      %v4254 = vmax.f32 %v4042, 0.0
      %v4255 = vmax.f32 %v4044, 0.0
      %v4256 = vmax.f32 %v4047, 0.0
      %v4257 = vmax.f32 %v4049, 0.0
      %v4258 = vmax.f32 %v4052, 0.0
      %v4259 = vmax.f32 %v4054, 0.0
      %v4260 = vmax.f32 %v4057, 0.0
      %v4261 = vmax.f32 %v4059, 0.0
      %v4262 = vmax.f32 %v4062, 0.0
      %v4263 = vmax.f32 %v4064, 0.0
      %v4264 = vmax.f32 %v4067, 0.0
      %v4265 = vmax.f32 %v4069, 0.0
      %v4266 = vmax.f32 %v4072, 0.0
      %v4267 = vmax.f32 %v4074, 0.0
      %v4268 = vmax.f32 %v4077, 0.0
      %v4269 = vmax.f32 %v4079, 0.0
      %v4270 = vmax.f32 %v4082, 0.0
      %v4271 = vmax.f32 %v4084, 0.0
      %v4272 = vmax.f32 %v4087, 0.0
      %v4273 = vmax.f32 %v4089, 0.0
      %v4274 = vmax.f32 %v4092, 0.0
      %v4275 = vmax.f32 %v4094, 0.0
      %v4276 = vmax.f32 %v4097, 0.0
      %v4277 = vmax.f32 %v4099, 0.0
      %v4278 = vmax.f32 %v4102, 0.0
      %v4279 = vmax.f32 %v4104, 0.0
      %v4280 = vmax.f32 %v4107, 0.0
      %v4281 = vmax.f32 %v4109, 0.0
      %v4282 = vmax.f32 %v4112, 0.0
      %v4283 = vmax.f32 %v4114, 0.0
      %v4284 = vmax.f32 %v4117, 0.0
      %v4285 = vmax.f32 %v4119, 0.0
      %v4286 = vmax.f32 %v4122, 0.0
      %v4287 = vmax.f32 %v4124, 0.0
      %v4288 = vmax.f32 %v4127, 0.0
      %v4289 = vmax.f32 %v4129, 0.0
      %v4290 = vmax.f32 %v4132, 0.0
      %v4291 = vmax.f32 %v4134, 0.0
      %v4292 = vmax.f32 %v4137, 0.0
      %v4293 = vmax.f32 %v4139, 0.0
      %v4294 = vmax.f32 %v4142, 0.0
      %v4295 = vmax.f32 %v4144, 0.0
      %v4296 = vmax.f32 %v4147, 0.0
      %v4297 = vmax.f32 %v4149, 0.0
      %v4298 = vmax.f32 %v4152, 0.0
      %v4299 = vmax.f32 %v4154, 0.0
      %v4300 = vmax.f32 %v4157, 0.0
      %v4301 = vmax.f32 %v4159, 0.0
      %v4302 = vmax.f32 %v4162, 0.0
      %v4303 = vmax.f32 %v4164, 0.0
      %v4304 = vmax.f32 %v4167, 0.0
      %v4305 = vmax.f32 %v4169, 0.0
      %v4306 = vmax.f32 %v4172, 0.0
      %v4307 = vmax.f32 %v4174, 0.0
      %v4308 = vmax.f32 %v4177, 0.0
      %v4309 = vmax.f32 %v4179, 0.0
      %v4310 = vmax.f32 %v4182, 0.0
      %v4311 = vmax.f32 %v4184, 0.0
      %v4312 = vmax.f32 %v4187, 0.0
      %v4313 = vmax.f32 %v4189, 0.0
      %v4314 = vmax.f32 %v4192, 0.0
      %v4315 = vmax.f32 %v4194, 0.0
      %v4316 = vmax.f32 %v4197, 0.0
      %v4317 = vmax.f32 %v4199, 0.0
      %v4318 = vmax.f32 %v4202, 0.0
      %v4319 = vmax.f32 %v4204, 0.0
      %v4320 = vpack.c.bf16 %v4206, %v4206
      %v4321 = vpack.c.bf16 %v4207, %v4207
      %v4322 = vpack.c.bf16 %v4208, %v4208
      %v4323 = vpack.c.bf16 %v4209, %v4209
      %v4324 = vpack.c.bf16 %v4210, %v4210
      %v4325 = vpack.c.bf16 %v4211, %v4211
      %v4326 = vpack.c.bf16 %v4212, %v4212
      %v4327 = vpack.c.bf16 %v4213, %v4213
      %v4328 = vpack.c.bf16 %v4214, %v4214
      %v4329 = vpack.c.bf16 %v4215, %v4215
      %v4330 = vpack.c.bf16 %v4216, %v4216
      %v4331 = vpack.c.bf16 %v4217, %v4217
      %v4332 = vpack.c.bf16 %v4218, %v4218
      %v4333 = vpack.c.bf16 %v4219, %v4219
      %v4334 = vpack.c.bf16 %v4220, %v4220
      %v4335 = vpack.c.bf16 %v4221, %v4221
      %v4336 = vpack.c.bf16 %v4222, %v4222
      %v4337 = vpack.c.bf16 %v4223, %v4223
      %v4338 = vpack.c.bf16 %v4224, %v4224
      %v4339 = vpack.c.bf16 %v4225, %v4225
      %v4340 = vpack.c.bf16 %v4226, %v4226
      %v4341 = vpack.c.bf16 %v4227, %v4227
      %v4342 = vpack.c.bf16 %v4228, %v4228
      %v4343 = vpack.c.bf16 %v4229, %v4229
      %v4344 = vpack.c.bf16 %v4230, %v4230
      %v4345 = vpack.c.bf16 %v4231, %v4231
      %v4346 = vpack.c.bf16 %v4232, %v4232
      %v4347 = vpack.c.bf16 %v4233, %v4233
      %v4348 = vpack.c.bf16 %v4234, %v4234
      %v4349 = vpack.c.bf16 %v4235, %v4235
      %v4350 = vpack.c.bf16 %v4236, %v4236
      %v4351 = vpack.c.bf16 %v4237, %v4237
      %v4352 = vpack.c.bf16 %v4238, %v4238
      %v4353 = vpack.c.bf16 %v4239, %v4239
      %v4354 = vpack.c.bf16 %v4240, %v4240
      %v4355 = vpack.c.bf16 %v4241, %v4241
      %v4356 = vpack.c.bf16 %v4242, %v4242
      %v4357 = vpack.c.bf16 %v4243, %v4243
      %v4358 = vpack.c.bf16 %v4244, %v4244
      %v4359 = vpack.c.bf16 %v4245, %v4245
      %v4360 = vpack.c.bf16 %v4246, %v4246
      %v4361 = vpack.c.bf16 %v4247, %v4247
      %v4362 = vpack.c.bf16 %v4248, %v4248
      %v4363 = vpack.c.bf16 %v4249, %v4249
      %v4364 = vpack.c.bf16 %v4250, %v4250
      %v4365 = vpack.c.bf16 %v4251, %v4251
      %v4366 = vpack.c.bf16 %v4252, %v4252
      %v4367 = vpack.c.bf16 %v4253, %v4253
      %v4368 = vpack.c.bf16 %v4254, %v4254
      %v4369 = vpack.c.bf16 %v4255, %v4255
      %v4370 = vpack.c.bf16 %v4256, %v4256
      %v4371 = vpack.c.bf16 %v4257, %v4257
      %v4372 = vpack.c.bf16 %v4258, %v4258
      %v4373 = vpack.c.bf16 %v4259, %v4259
      %v4374 = vpack.c.bf16 %v4260, %v4260
      %v4375 = vpack.c.bf16 %v4261, %v4261
      %v4376 = vpack.c.bf16 %v4262, %v4262
      %v4377 = vpack.c.bf16 %v4263, %v4263
      %v4378 = vpack.c.bf16 %v4264, %v4264
      %v4379 = vpack.c.bf16 %v4265, %v4265
      %v4380 = vpack.c.bf16 %v4266, %v4266
      %v4381 = vpack.c.bf16 %v4267, %v4267
      %v4382 = vpack.c.bf16 %v4268, %v4268
      %v4383 = vpack.c.bf16 %v4269, %v4269
      %v4384 = vpack.c.bf16 %v4270, %v4270
      %v4385 = vpack.c.bf16 %v4271, %v4271
      %v4386 = vpack.c.bf16 %v4272, %v4272
      %v4387 = vpack.c.bf16 %v4273, %v4273
      %v4388 = vpack.c.bf16 %v4274, %v4274
      %v4389 = vpack.c.bf16 %v4275, %v4275
      %v4390 = vpack.c.bf16 %v4276, %v4276
      %v4391 = vpack.c.bf16 %v4277, %v4277
      %v4392 = vpack.c.bf16 %v4278, %v4278
      %v4393 = vpack.c.bf16 %v4279, %v4279
      %v4394 = vpack.c.bf16 %v4280, %v4280
      %v4395 = vpack.c.bf16 %v4281, %v4281
      %v4396 = vpack.c.bf16 %v4282, %v4282
      %v4397 = vpack.c.bf16 %v4283, %v4283
      %v4398 = vpack.c.bf16 %v4284, %v4284
      %v4399 = vpack.c.bf16 %v4285, %v4285
      %v4400 = vpack.c.bf16 %v4286, %v4286
      %v4401 = vpack.c.bf16 %v4287, %v4287
      %v4402 = vpack.c.bf16 %v4288, %v4288
      %v4403 = vpack.c.bf16 %v4289, %v4289
      %v4404 = vpack.c.bf16 %v4290, %v4290
      %v4405 = vpack.c.bf16 %v4291, %v4291
      %v4406 = vpack.c.bf16 %v4292, %v4292
      %v4407 = vpack.c.bf16 %v4293, %v4293
      %v4408 = vpack.c.bf16 %v4294, %v4294
      %v4409 = vpack.c.bf16 %v4295, %v4295
      %v4410 = vpack.c.bf16 %v4296, %v4296
      %v4411 = vpack.c.bf16 %v4297, %v4297
      %v4412 = vpack.c.bf16 %v4298, %v4298
      %v4413 = vpack.c.bf16 %v4299, %v4299
      %v4414 = vpack.c.bf16 %v4300, %v4300
      %v4415 = vpack.c.bf16 %v4301, %v4301
      %v4416 = vpack.c.bf16 %v4302, %v4302
      %v4417 = vpack.c.bf16 %v4303, %v4303
      %v4418 = vpack.c.bf16 %v4304, %v4304
      %v4419 = vpack.c.bf16 %v4305, %v4305
      %v4420 = vpack.c.bf16 %v4306, %v4306
      %v4421 = vpack.c.bf16 %v4307, %v4307
      %v4422 = vpack.c.bf16 %v4308, %v4308
      %v4423 = vpack.c.bf16 %v4309, %v4309
      %v4424 = vpack.c.bf16 %v4310, %v4310
      %v4425 = vpack.c.bf16 %v4311, %v4311
      %v4426 = vpack.c.bf16 %v4312, %v4312
      %v4427 = vpack.c.bf16 %v4313, %v4313
      %v4428 = vpack.c.bf16 %v4314, %v4314
      %v4429 = vpack.c.bf16 %v4315, %v4315
      %v4430 = vpack.c.bf16 %v4316, %v4316
      %v4431 = vpack.c.bf16 %v4317, %v4317
      %v4432 = vpack.c.bf16 %v4318, %v4318
      %v4433 = vpack.c.bf16 %v4319, %v4319
      %4434 = vst [vmem:[%s280] sm:$0xf] %v4320
      %4435 = vst [vmem:[%s280 + $0x4] sm:$0xf] %v4321
      %4436 = vst [vmem:[%s280 + $0x8] sm:$0xf] %v4322
      %4437 = vst [vmem:[%s280 + $0xc] sm:$0xf] %v4323
      %4438 = vst [vmem:[%s280 + $0x10] sm:$0xf] %v4324
      %4439 = vst [vmem:[%s280 + $0x14] sm:$0xf] %v4325
      %4440 = vst [vmem:[%s280 + $0x18] sm:$0xf] %v4326
      %4441 = vst [vmem:[%s280 + $0x1c] sm:$0xf] %v4327
      %4442 = vst [vmem:[%s280 + $0x20] sm:$0xf] %v4328
      %4443 = vst [vmem:[%s280 + $0x24] sm:$0xf] %v4329
      %4444 = vst [vmem:[%s280 + $0x28] sm:$0xf] %v4330
      %4445 = vst [vmem:[%s280 + $0x2c] sm:$0xf] %v4331
      %4446 = vst [vmem:[%s280 + $0x30] sm:$0xf] %v4332
      %4447 = vst [vmem:[%s280 + $0x34] sm:$0xf] %v4333
      %4448 = vst [vmem:[%s280 + $0x38] sm:$0xf] %v4334
      %4449 = vst [vmem:[%s280 + $0x3c] sm:$0xf] %v4335
      %4450 = vst [vmem:[%s280 + $0x40] sm:$0xf] %v4336
      %4451 = vst [vmem:[%s280 + $0x44] sm:$0xf] %v4337
      %4452 = vst [vmem:[%s280 + $0x48] sm:$0xf] %v4338
      %4453 = vst [vmem:[%s280 + $0x4c] sm:$0xf] %v4339
      %4454 = vst [vmem:[%s280 + $0x50] sm:$0xf] %v4340
      %4455 = vst [vmem:[%s280 + $0x54] sm:$0xf] %v4341
      %4456 = vst [vmem:[%s280 + $0x58] sm:$0xf] %v4342
      %4457 = vst [vmem:[%s280 + $0x5c] sm:$0xf] %v4343
      %4458 = vst [vmem:[%s280 + $0x60] sm:$0xf] %v4344
      %4459 = vst [vmem:[%s280 + $0x64] sm:$0xf] %v4345
      %4460 = vst [vmem:[%s280 + $0x68] sm:$0xf] %v4346
      %4461 = vst [vmem:[%s280 + $0x6c] sm:$0xf] %v4347
      %4462 = vst [vmem:[%s280 + $0x70] sm:$0xf] %v4348
      %4463 = vst [vmem:[%s280 + $0x74] sm:$0xf] %v4349
      %4464 = vst [vmem:[%s280 + $0x78] sm:$0xf] %v4350
      %4465 = vst [vmem:[%s280 + $0x7c] sm:$0xf] %v4351
      %4466 = vst [vmem:[%s280 + $0x80] sm:$0xf] %v4352
      %4467 = vst [vmem:[%s280 + $0x84] sm:$0xf] %v4353
      %4468 = vst [vmem:[%s280 + $0x88] sm:$0xf] %v4354
      %4469 = vst [vmem:[%s280 + $0x8c] sm:$0xf] %v4355
      %4470 = vst [vmem:[%s280 + $0x90] sm:$0xf] %v4356
      %4471 = vst [vmem:[%s280 + $0x94] sm:$0xf] %v4357
      %4472 = vst [vmem:[%s280 + $0x98] sm:$0xf] %v4358
      %4473 = vst [vmem:[%s280 + $0x9c] sm:$0xf] %v4359
      %4474 = vst [vmem:[%s280 + $0xa0] sm:$0xf] %v4360
      %4475 = vst [vmem:[%s280 + $0xa4] sm:$0xf] %v4361
      %4476 = vst [vmem:[%s280 + $0xa8] sm:$0xf] %v4362
      %4477 = vst [vmem:[%s280 + $0xac] sm:$0xf] %v4363
      %4478 = vst [vmem:[%s280 + $0xb0] sm:$0xf] %v4364
      %4479 = vst [vmem:[%s280 + $0xb4] sm:$0xf] %v4365
      %4480 = vst [vmem:[%s280 + $0xb8] sm:$0xf] %v4366
      %4481 = vst [vmem:[%s280 + $0xbc] sm:$0xf] %v4367
      %4482 = vst [vmem:[%s280 + $0xc0] sm:$0xf] %v4368
      %4483 = vst [vmem:[%s280 + $0xc4] sm:$0xf] %v4369
      %4484 = vst [vmem:[%s280 + $0xc8] sm:$0xf] %v4370
      %4485 = vst [vmem:[%s280 + $0xcc] sm:$0xf] %v4371
      %4486 = vst [vmem:[%s280 + $0xd0] sm:$0xf] %v4372
      %4487 = vst [vmem:[%s280 + $0xd4] sm:$0xf] %v4373
      %4488 = vst [vmem:[%s280 + $0xd8] sm:$0xf] %v4374
      %4489 = vst [vmem:[%s280 + $0xdc] sm:$0xf] %v4375
      %4490 = vst [vmem:[%s280 + $0xe0] sm:$0xf] %v4376
      %4491 = vst [vmem:[%s280 + $0xe4] sm:$0xf] %v4377
      %4492 = vst [vmem:[%s280 + $0xe8] sm:$0xf] %v4378
      %4493 = vst [vmem:[%s280 + $0xec] sm:$0xf] %v4379
      %4494 = vst [vmem:[%s280 + $0xf0] sm:$0xf] %v4380
      %4495 = vst [vmem:[%s280 + $0xf4] sm:$0xf] %v4381
      %4496 = vst [vmem:[%s280 + $0xf8] sm:$0xf] %v4382
      %4497 = vst [vmem:[%s280 + $0xfc] sm:$0xf] %v4383
      %4498 = vst [vmem:[%s280 + $0x100] sm:$0xf] %v4384
      %4499 = vst [vmem:[%s280 + $0x104] sm:$0xf] %v4385
      %4500 = vst [vmem:[%s280 + $0x108] sm:$0xf] %v4386
      %4501 = vst [vmem:[%s280 + $0x10c] sm:$0xf] %v4387
      %4502 = vst [vmem:[%s280 + $0x110] sm:$0xf] %v4388
      %4503 = vst [vmem:[%s280 + $0x114] sm:$0xf] %v4389
      %4504 = vst [vmem:[%s280 + $0x118] sm:$0xf] %v4390
      %4505 = vst [vmem:[%s280 + $0x11c] sm:$0xf] %v4391
      %4506 = vst [vmem:[%s280 + $0x120] sm:$0xf] %v4392
      %4507 = vst [vmem:[%s280 + $0x124] sm:$0xf] %v4393
      %4508 = vst [vmem:[%s280 + $0x128] sm:$0xf] %v4394
      %4509 = vst [vmem:[%s280 + $0x12c] sm:$0xf] %v4395
      %4510 = vst [vmem:[%s280 + $0x130] sm:$0xf] %v4396
      %4511 = vst [vmem:[%s280 + $0x134] sm:$0xf] %v4397
      %4512 = vst [vmem:[%s280 + $0x138] sm:$0xf] %v4398
      %4513 = vst [vmem:[%s280 + $0x13c] sm:$0xf] %v4399
      %4514 = vst [vmem:[%s280 + $0x140] sm:$0xf] %v4400
      %4515 = vst [vmem:[%s280 + $0x144] sm:$0xf] %v4401
      %4516 = vst [vmem:[%s280 + $0x148] sm:$0xf] %v4402
      %4517 = vst [vmem:[%s280 + $0x14c] sm:$0xf] %v4403
      %4518 = vst [vmem:[%s280 + $0x150] sm:$0xf] %v4404
      %4519 = vst [vmem:[%s280 + $0x154] sm:$0xf] %v4405
      %4520 = vst [vmem:[%s280 + $0x158] sm:$0xf] %v4406
      %4521 = vst [vmem:[%s280 + $0x15c] sm:$0xf] %v4407
      %4522 = vst [vmem:[%s280 + $0x160] sm:$0xf] %v4408
      %4523 = vst [vmem:[%s280 + $0x164] sm:$0xf] %v4409
      %4524 = vst [vmem:[%s280 + $0x168] sm:$0xf] %v4410
      %4525 = vst [vmem:[%s280 + $0x16c] sm:$0xf] %v4411
      %4526 = vst [vmem:[%s280 + $0x170] sm:$0xf] %v4412
      %4527 = vst [vmem:[%s280 + $0x174] sm:$0xf] %v4413
      %4528 = vst [vmem:[%s280 + $0x178] sm:$0xf] %v4414
      %4529 = vst [vmem:[%s280 + $0x17c] sm:$0xf] %v4415
      %4530 = vst [vmem:[%s280 + $0x180] sm:$0xf] %v4416
      %4531 = vst [vmem:[%s280 + $0x184] sm:$0xf] %v4417
      %4532 = vst [vmem:[%s280 + $0x188] sm:$0xf] %v4418
      %4533 = vst [vmem:[%s280 + $0x18c] sm:$0xf] %v4419
      %4534 = vst [vmem:[%s280 + $0x190] sm:$0xf] %v4420
      %4535 = vst [vmem:[%s280 + $0x194] sm:$0xf] %v4421
      %4536 = vst [vmem:[%s280 + $0x198] sm:$0xf] %v4422
      %4537 = vst [vmem:[%s280 + $0x19c] sm:$0xf] %v4423
      %4538 = vst [vmem:[%s280 + $0x1a0] sm:$0xf] %v4424
      %4539 = vst [vmem:[%s280 + $0x1a4] sm:$0xf] %v4425
      %4540 = vst [vmem:[%s280 + $0x1a8] sm:$0xf] %v4426
      %4541 = vst [vmem:[%s280 + $0x1ac] sm:$0xf] %v4427
      %4542 = vst [vmem:[%s280 + $0x1b0] sm:$0xf] %v4428
      %4543 = vst [vmem:[%s280 + $0x1b4] sm:$0xf] %v4429
      %4544 = vst [vmem:[%s280 + $0x1b8] sm:$0xf] %v4430
      %4545 = vst [vmem:[%s280 + $0x1bc] sm:$0xf] %v4431
      %4546 = vst [vmem:[%s280 + $0x1c0] sm:$0xf] %v4432
      %4547 = vst [vmem:[%s280 + $0x1c4] sm:$0xf] %v4433
      %s4548 = smul.u32 114, %s18
      %p4549 = scmp.lt.s32.totalorder %s4548, 227
      %s4550 = scalar_select %p4549, %s4548, 227
      %s4551 = smul.addr %s4550, 4
      %s4552 = scalar_lea.vmem %s7, %s4551
      // Predicated region
      $region49: #{nin_forward.3} parent=47 // pred_check
        %p4553 = pneg %p188
      $region50: #{nin_forward.3} parent=47 // pred_check_branch
        %4555 = sbr.rel (%p4553) target = $region52
      $region51: #{nin_forward.3} parent=47 // pred_region
        %s4556 = smul.u32 114, %s18
      $region52: #{nin_forward.3} parent=47 // pred_fallthru
        _
    $region48: #{nin_forward.3} parent=5 // pred_fallthru
      _
    %p4557 = scmp.le.s32.totalorder 2, %s13
    // Predicated region
    $region53: #{nin_forward.3} parent=5 // pred_check
      %p4558 = pneg %p4557
    $region54: #{nin_forward.3} parent=5 // pred_check_branch
      %4560 = sbr.rel (%p4558) target = $region56
    $region55: #{nin_forward.3} parent=5 // pred_region
      %s4561 = ssub.s32 %s13, 2
      // Predicated region
      $region57: #{nin_forward.3} parent=55 // pred_check
        %p4562 = pneg %p194
      $region58: #{nin_forward.3} parent=55 // pred_check_branch
        %4564 = sbr.rel (%p4562) target = $region60
      $region59: #{nin_forward.3} parent=55 // pred_region
        %s4565 = smul.u32 114, %s19
        %p4566 = scmp.lt.s32.totalorder %s4565, 227
        %s4567 = scalar_select %p4566, %s4565, 227
        %s4568 = smul.addr %s4567, 4
        %s4569 = scalar_lea.vmem %s7, %s4568
      $region60: #{nin_forward.3} parent=55 // pred_fallthru
        _
    $region56: #{nin_forward.3} parent=5 // pred_fallthru
      _
  $region6: #{nin_forward.3} parent=0 // loop_footer
    %s17 = sadd.s32 1, %s13
  $region7: #{nin_forward.3} parent=0 // loop_footer_branch
    %12 = sbr.rel target = $region3
  $region8: #{nin_forward.3} parent=0 // loop_exit
    _

// kernel: nin_forward.4
$region0: #{nin_forward.4}
  #allocation0 [shape = 'u32[]', space=smem, size = 0x4, offset = 0x4, fixed_abs, tag = 'smem constant byte address 0x4 - core index']
  #allocation1 [shape = 'u32[72,128]{1,0:T(1,128)}', space=vmem, size = 0x9000, scoped, tag = 'internal scratch']
  %s0 = inlined_call_operand.vmem [shape: bf16[128,2432], index: 0, kind: input, shape index: {}]
  %s1 = inlined_call_operand.vmem [shape: bf16[2432,256], index: 1, kind: input, shape index: {}]
  %s2 = inlined_call_operand.vmem [shape: bf16[256,256], index: 2, kind: input, shape index: {}]
  %s3 = inlined_call_operand.vmem [shape: bf16[256,256], index: 3, kind: input, shape index: {}]
  %s4 = inlined_call_operand.vmem [shape: f32[1,256], index: 4, kind: input, shape index: {}]
  %s5 = inlined_call_operand.vmem [shape: f32[1,256], index: 5, kind: input, shape index: {}]
  %s6 = inlined_call_operand.vmem [shape: f32[1,256], index: 6, kind: input, shape index: {}]
  %s7 = inlined_call_operand.vmem [shape: bf16[128,256], index: 7, kind: output, shape index: {}]
  %s8 = sld [smem:[#allocation0]]
  $region61: #{nin_forward.4} parent=0
    _
  %s10 = ssub.s32 1, %s8
  %s11 = scalar_select 0, %s10, %s8
  loop: start=0, step=1, limit=4
  $region2: #{nin_forward.4} parent=0 // loop_pre_header
    _
  $region3: #{nin_forward.4} parent=0 // loop_header
    %s13 = sphi 0, %s17
    %p14 = scmp.ge.s32.totalorder %s13, 4
    %s23 = sphi 0, %s25
    %s26 = sphi 0, %s23
    %s27 = sphi 0, %s26
    %s43 = sphi 0, %s27
    %s47 = sphi 0, %s47
    %s49 = sphi 0, %s47
    %s50 = sphi 0, %s49
    %s64 = sphi 0, %s50
    %s68 = sphi 0, %s68
    %s70 = sphi 0, %s68
    %s71 = sphi 0, %s70
    %s85 = sphi 0, %s71
    %s89 = sphi 0, %s89
    %s91 = sphi 0, %s89
    %s92 = sphi 0, %s91
    %s106 = sphi 0, %s92
    %s110 = sphi 0, %s110
    %s112 = sphi 0, %s110
    %s113 = sphi 0, %s112
    %s127 = sphi 0, %s113
    %s131 = sphi 0, %s131
    %s133 = sphi 0, %s131
    %s134 = sphi 0, %s133
    %s148 = sphi 0, %s134
    %s152 = sphi 0, %s152
    %s154 = sphi 0, %s152
    %s155 = sphi 0, %s154
    %s169 = sphi 0, %s155
    %s175 = sphi 0, %s177
    %s178 = sphi 0, %s175
    %s179 = sphi 0, %s178
    %s195 = sphi 0, %s179
  $region4: #{nin_forward.4} parent=0 // loop_header_branch
    %16 = sbr.rel (%p14) target = $region8
  $region5: #{nin_forward.4} parent=0 // loop_body
    %s18 = ssub.s32 %s13, 1
    %s19 = ssub.s32 %s13, 2
    %s20 = sadd.s32 %s13, 1
    %s21 = ssub.s32 %s13, %s20
    %p22 = scmp.eq.s32.totalorder %s21, 0
    %s24 = sadd.s32 %s23, 1
    %s25 = scalar_select %p22, %s23, %s24
    %p28 = pneg %p22
    %p29 = scmp.eq.s32.totalorder %s13, 1
    %p30 = por %p28, %p29
    %p31 = scmp.ne.s32.totalorder %s23, %s26
    %p32 = scmp.eq.s32.totalorder %s13, 0
    %p33 = por %p31, %p32
    %p34 = scmp.ne.s32.totalorder %s23, %s26
    %p35 = scmp.eq.s32.totalorder %s18, 1
    %p36 = por %p34, %p35
    %p37 = scmp.ne.s32.totalorder %s26, %s27
    %p38 = scmp.eq.s32.totalorder %s18, 0
    %p39 = por %p37, %p38
    %p40 = scmp.ne.s32.totalorder %s26, %s27
    %p41 = scmp.eq.s32.totalorder %s19, 1
    %p42 = por %p40, %p41
    %p44 = scmp.ne.s32.totalorder %s27, %s43
    %p45 = scmp.eq.s32.totalorder %s19, 0
    %p46 = por %p44, %p45
    %s48 = sadd.s32 %s47, 1
    %p51 = scmp.eq.s32.totalorder %s13, 1
    %p52 = scmp.ne.s32.totalorder %s47, %s49
    %p53 = scmp.eq.s32.totalorder %s13, 0
    %p54 = por %p52, %p53
    %p55 = scmp.ne.s32.totalorder %s47, %s49
    %p56 = scmp.eq.s32.totalorder %s18, 1
    %p57 = por %p55, %p56
    %p58 = scmp.ne.s32.totalorder %s49, %s50
    %p59 = scmp.eq.s32.totalorder %s18, 0
    %p60 = por %p58, %p59
    %p61 = scmp.ne.s32.totalorder %s49, %s50
    %p62 = scmp.eq.s32.totalorder %s19, 1
    %p63 = por %p61, %p62
    %p65 = scmp.ne.s32.totalorder %s50, %s64
    %p66 = scmp.eq.s32.totalorder %s19, 0
    %p67 = por %p65, %p66
    %s69 = sadd.s32 %s68, 1
    %p72 = scmp.eq.s32.totalorder %s13, 1
    %p73 = scmp.ne.s32.totalorder %s68, %s70
    %p74 = scmp.eq.s32.totalorder %s13, 0
    %p75 = por %p73, %p74
    %p76 = scmp.ne.s32.totalorder %s68, %s70
    %p77 = scmp.eq.s32.totalorder %s18, 1
    %p78 = por %p76, %p77
    %p79 = scmp.ne.s32.totalorder %s70, %s71
    %p80 = scmp.eq.s32.totalorder %s18, 0
    %p81 = por %p79, %p80
    %p82 = scmp.ne.s32.totalorder %s70, %s71
    %p83 = scmp.eq.s32.totalorder %s19, 1
    %p84 = por %p82, %p83
    %p86 = scmp.ne.s32.totalorder %s71, %s85
    %p87 = scmp.eq.s32.totalorder %s19, 0
    %p88 = por %p86, %p87
    %s90 = sadd.s32 %s89, 1
    %p93 = scmp.eq.s32.totalorder %s13, 1
    %p94 = scmp.ne.s32.totalorder %s89, %s91
    %p95 = scmp.eq.s32.totalorder %s13, 0
    %p96 = por %p94, %p95
    %p97 = scmp.ne.s32.totalorder %s89, %s91
    %p98 = scmp.eq.s32.totalorder %s18, 1
    %p99 = por %p97, %p98
    %p100 = scmp.ne.s32.totalorder %s91, %s92
    %p101 = scmp.eq.s32.totalorder %s18, 0
    %p102 = por %p100, %p101
    %p103 = scmp.ne.s32.totalorder %s91, %s92
    %p104 = scmp.eq.s32.totalorder %s19, 1
    %p105 = por %p103, %p104
    %p107 = scmp.ne.s32.totalorder %s92, %s106
    %p108 = scmp.eq.s32.totalorder %s19, 0
    %p109 = por %p107, %p108
    %s111 = sadd.s32 %s110, 1
    %p114 = scmp.eq.s32.totalorder %s13, 1
    %p115 = scmp.ne.s32.totalorder %s110, %s112
    %p116 = scmp.eq.s32.totalorder %s13, 0
    %p117 = por %p115, %p116
    %p118 = scmp.ne.s32.totalorder %s110, %s112
    %p119 = scmp.eq.s32.totalorder %s18, 1
    %p120 = por %p118, %p119
    %p121 = scmp.ne.s32.totalorder %s112, %s113
    %p122 = scmp.eq.s32.totalorder %s18, 0
    %p123 = por %p121, %p122
    %p124 = scmp.ne.s32.totalorder %s112, %s113
    %p125 = scmp.eq.s32.totalorder %s19, 1
    %p126 = por %p124, %p125
    %p128 = scmp.ne.s32.totalorder %s113, %s127
    %p129 = scmp.eq.s32.totalorder %s19, 0
    %p130 = por %p128, %p129
    %s132 = sadd.s32 %s131, 1
    %p135 = scmp.eq.s32.totalorder %s13, 1
    %p136 = scmp.ne.s32.totalorder %s131, %s133
    %p137 = scmp.eq.s32.totalorder %s13, 0
    %p138 = por %p136, %p137
    %p139 = scmp.ne.s32.totalorder %s131, %s133
    %p140 = scmp.eq.s32.totalorder %s18, 1
    %p141 = por %p139, %p140
    %p142 = scmp.ne.s32.totalorder %s133, %s134
    %p143 = scmp.eq.s32.totalorder %s18, 0
    %p144 = por %p142, %p143
    %p145 = scmp.ne.s32.totalorder %s133, %s134
    %p146 = scmp.eq.s32.totalorder %s19, 1
    %p147 = por %p145, %p146
    %p149 = scmp.ne.s32.totalorder %s134, %s148
    %p150 = scmp.eq.s32.totalorder %s19, 0
    %p151 = por %p149, %p150
    %s153 = sadd.s32 %s152, 1
    %p156 = scmp.eq.s32.totalorder %s13, 1
    %p157 = scmp.ne.s32.totalorder %s152, %s154
    %p158 = scmp.eq.s32.totalorder %s13, 0
    %p159 = por %p157, %p158
    %p160 = scmp.ne.s32.totalorder %s152, %s154
    %p161 = scmp.eq.s32.totalorder %s18, 1
    %p162 = por %p160, %p161
    %p163 = scmp.ne.s32.totalorder %s154, %s155
    %p164 = scmp.eq.s32.totalorder %s18, 0
    %p165 = por %p163, %p164
    %p166 = scmp.ne.s32.totalorder %s154, %s155
    %p167 = scmp.eq.s32.totalorder %s19, 1
    %p168 = por %p166, %p167
    %p170 = scmp.ne.s32.totalorder %s155, %s169
    %p171 = scmp.eq.s32.totalorder %s19, 0
    %p172 = por %p170, %p171
    %s173 = ssub.s32 %s13, %s20
    %p174 = scmp.eq.s32.totalorder %s173, 0
    %s176 = sadd.s32 %s175, 1
    %s177 = scalar_select %p174, %s175, %s176
    %p180 = pneg %p174
    %p181 = scmp.eq.s32.totalorder %s13, 1
    %p182 = por %p180, %p181
    %p183 = scmp.ne.s32.totalorder %s175, %s178
    %p184 = scmp.eq.s32.totalorder %s13, 0
    %p185 = por %p183, %p184
    %p186 = scmp.ne.s32.totalorder %s175, %s178
    %p187 = scmp.eq.s32.totalorder %s18, 1
    %p188 = por %p186, %p187
    %p189 = scmp.ne.s32.totalorder %s178, %s179
    %p190 = scmp.eq.s32.totalorder %s18, 0
    %p191 = por %p189, %p190
    %p192 = scmp.ne.s32.totalorder %s178, %s179
    %p193 = scmp.eq.s32.totalorder %s19, 1
    %p194 = por %p192, %p193
    %p196 = scmp.ne.s32.totalorder %s179, %s195
    %p197 = scmp.eq.s32.totalorder %s19, 0
    %p198 = por %p196, %p197
    %p199 = scmp.le.s32.totalorder 1, %s13
    %p200 = scmp.lt.s32.totalorder %s13, 3
    %p201 = pnand %p199, %p200
    %p202 = pneg %p201
    // Predicated region
    $region9: #{nin_forward.4} parent=5 // pred_check
      _
    $region10: #{nin_forward.4} parent=5 // pred_check_branch
      %204 = sbr.rel (%p201) target = $region12
    $region11: #{nin_forward.4} parent=5 // pred_region
      %s205 = ssub.s32 %s13, 1
      // Predicated region
      $region13: #{nin_forward.4} parent=11 // pred_check
        %p206 = pneg %p60
      $region14: #{nin_forward.4} parent=11 // pred_check_branch
        %208 = sbr.rel (%p206) target = $region16
      $region15: #{nin_forward.4} parent=11 // pred_region
        _
      $region16: #{nin_forward.4} parent=11 // pred_fallthru
        _
      // Predicated region
      $region17: #{nin_forward.4} parent=11 // pred_check
        %p209 = pneg %p81
      $region18: #{nin_forward.4} parent=11 // pred_check_branch
        %211 = sbr.rel (%p209) target = $region20
      $region19: #{nin_forward.4} parent=11 // pred_region
        _
      $region20: #{nin_forward.4} parent=11 // pred_fallthru
        _
      // Predicated region
      $region21: #{nin_forward.4} parent=11 // pred_check
        %p212 = pneg %p102
      $region22: #{nin_forward.4} parent=11 // pred_check_branch
        %214 = sbr.rel (%p212) target = $region24
      $region23: #{nin_forward.4} parent=11 // pred_region
        _
      $region24: #{nin_forward.4} parent=11 // pred_fallthru
        _
      // Predicated region
      $region25: #{nin_forward.4} parent=11 // pred_check
        %p215 = pneg %p123
      $region26: #{nin_forward.4} parent=11 // pred_check_branch
        %217 = sbr.rel (%p215) target = $region28
      $region27: #{nin_forward.4} parent=11 // pred_region
        _
      $region28: #{nin_forward.4} parent=11 // pred_fallthru
        _
      // Predicated region
      $region29: #{nin_forward.4} parent=11 // pred_check
        %p218 = pneg %p144
      $region30: #{nin_forward.4} parent=11 // pred_check_branch
        %220 = sbr.rel (%p218) target = $region32
      $region31: #{nin_forward.4} parent=11 // pred_region
        _
      $region32: #{nin_forward.4} parent=11 // pred_fallthru
        _
      // Predicated region
      $region33: #{nin_forward.4} parent=11 // pred_check
        %p221 = pneg %p165
      $region34: #{nin_forward.4} parent=11 // pred_check_branch
        %223 = sbr.rel (%p221) target = $region36
      $region35: #{nin_forward.4} parent=11 // pred_region
        _
      $region36: #{nin_forward.4} parent=11 // pred_fallthru
        _
    $region12: #{nin_forward.4} parent=5 // pred_fallthru
      _
    %p224 = scmp.lt.s32.totalorder %s13, 2
    // Predicated region
    $region37: #{nin_forward.4} parent=5 // pred_check
      %p225 = pneg %p224
    $region38: #{nin_forward.4} parent=5 // pred_check_branch
      %227 = sbr.rel (%p225) target = $region40
    $region39: #{nin_forward.4} parent=5 // pred_region
      // Predicated region
      $region41: #{nin_forward.4} parent=39 // pred_check
        %p228 = pneg %p33
      $region42: #{nin_forward.4} parent=39 // pred_check_branch
        %230 = sbr.rel (%p228) target = $region44
      $region43: #{nin_forward.4} parent=39 // pred_region
        %s231 = smul.u32 8, %s13
        %p232 = scmp.lt.s32.totalorder %s231, 15
        %s233 = scalar_select %p232, %s231, 15
        %s234 = smul.addr %s233, 19
        %s235 = smul.addr %s234, 4
        %s236 = scalar_lea.vmem %s0, %s235
        %s237 = smul.u32 8, %s13
      $region44: #{nin_forward.4} parent=39 // pred_fallthru
        _
    $region40: #{nin_forward.4} parent=5 // pred_fallthru
      _
    %p238 = scmp.le.s32.totalorder 1, %s13
    %p239 = scmp.lt.s32.totalorder %s13, 3
    %p240 = pnand %p238, %p239
    %p241 = pneg %p240
    // Predicated region
    $region45: #{nin_forward.4} parent=5 // pred_check
      _
    $region46: #{nin_forward.4} parent=5 // pred_check_branch
      %243 = sbr.rel (%p240) target = $region48
    $region47: #{nin_forward.4} parent=5 // pred_region
      %s244 = ssub.s32 %s13, 1
      %s245 = smul.u32 8, %s18
      %p246 = scmp.lt.s32.totalorder %s245, 15
      %s247 = scalar_select %p246, %s245, 15
      %s248 = smul.addr %s247, 19
      %s249 = smul.addr %s248, 4
      %s250 = scalar_lea.vmem %s0, %s249
      %p251 = pneg %p39
      %p252 = pneg %p36
      %p253 = pneg %p60
      %p254 = pneg %p57
      %p255 = pneg %p81
      %p256 = pneg %p78
      %p257 = pneg %p102
      %p258 = pneg %p99
      %p259 = pneg %p123
      %p260 = pneg %p120
      %p261 = pneg %p144
      %p262 = pneg %p141
      %p263 = pneg %p165
      %p264 = pneg %p162
      %p265 = pneg %p191
      %p266 = pneg %p188
      %s267 = smul.u32 8, %s18
      %p268 = scmp.lt.s32.totalorder %s267, 15
      %s269 = scalar_select %p268, %s267, 15
      %s270 = smul.addr %s269, 2
      %s271 = smul.addr %s270, 4
      %s272 = scalar_lea.vmem %s7, %s271
      %s273 = smul.u32 8, %s18
      %p274 = scmp.lt.s32.totalorder %s273, 15
      %s275 = scalar_select %p274, %s273, 15
      %s276 = smul.addr %s275, 19
      %s277 = smul.addr %s276, 4
      %s278 = scalar_lea.vmem %s0, %s277
      %s279 = smul.u32 8, %s18
      %s280 = smul.u32 8, %s18
      %p281 = scmp.lt.s32.totalorder %s280, 15
      %s282 = scalar_select %p281, %s280, 15
      %s283 = smul.addr %s282, 2
      %s284 = smul.addr %s283, 4
      %s285 = scalar_lea.vmem %s7, %s284
      %s286 = smul.u32 8, %s18
      %v287 = vld [vmem:[%s278] sm:$0xff]
      %v288 = vld [vmem:[%s278 + $0x8] sm:$0xff]
      %v289 = vld [vmem:[%s278 + $0x10] sm:$0xff]
      %v290 = vld [vmem:[%s278 + $0x18] sm:$0xff]
      %v291 = vld [vmem:[%s278 + $0x20] sm:$0xff]
      %v292 = vld [vmem:[%s278 + $0x28] sm:$0xff]
      %v293 = vld [vmem:[%s278 + $0x30] sm:$0xff]
      %v294 = vld [vmem:[%s278 + $0x38] sm:$0xff]
      %v295 = vld [vmem:[%s278 + $0x40] sm:$0xff]
      %v296 = vld [vmem:[%s278 + $0x48] sm:$0xf]
      %v297 = vld [vmem:[%s278 + $0x4c] sm:$0xff]
      %v298 = vld [vmem:[%s278 + $0x54] sm:$0xff]
      %v299 = vld [vmem:[%s278 + $0x5c] sm:$0xff]
      %v300 = vld [vmem:[%s278 + $0x64] sm:$0xff]
      %v301 = vld [vmem:[%s278 + $0x6c] sm:$0xff]
      %v302 = vld [vmem:[%s278 + $0x74] sm:$0xff]
      %v303 = vld [vmem:[%s278 + $0x7c] sm:$0xff]
      %v304 = vld [vmem:[%s278 + $0x84] sm:$0xff]
      %v305 = vld [vmem:[%s278 + $0x8c] sm:$0xff]
      %v306 = vld [vmem:[%s278 + $0x94] sm:$0xf]
      %v307 = vld [vmem:[%s278 + $0x98] sm:$0xff]
      %v308 = vld [vmem:[%s278 + $0xa0] sm:$0xff]
      %v309 = vld [vmem:[%s278 + $0xa8] sm:$0xff]
      %v310 = vld [vmem:[%s278 + $0xb0] sm:$0xff]
      %v311 = vld [vmem:[%s278 + $0xb8] sm:$0xff]
      %v312 = vld [vmem:[%s278 + $0xc0] sm:$0xff]
      %v313 = vld [vmem:[%s278 + $0xc8] sm:$0xff]
      %v314 = vld [vmem:[%s278 + $0xd0] sm:$0xff]
      %v315 = vld [vmem:[%s278 + $0xd8] sm:$0xff]
      %v316 = vld [vmem:[%s278 + $0xe0] sm:$0xf]
      %v317 = vld [vmem:[%s278 + $0xe4] sm:$0xff]
      %v318 = vld [vmem:[%s278 + $0xec] sm:$0xff]
      %v319 = vld [vmem:[%s278 + $0xf4] sm:$0xff]
      %v320 = vld [vmem:[%s278 + $0xfc] sm:$0xff]
      %v321 = vld [vmem:[%s278 + $0x104] sm:$0xff]
      %v322 = vld [vmem:[%s278 + $0x10c] sm:$0xff]
      %v323 = vld [vmem:[%s278 + $0x114] sm:$0xff]
      %v324 = vld [vmem:[%s278 + $0x11c] sm:$0xff]
      %v325 = vld [vmem:[%s278 + $0x124] sm:$0xff]
      %v326 = vld [vmem:[%s278 + $0x12c] sm:$0xf]
      %v327 = vld [vmem:[%s278 + $0x130] sm:$0xff]
      %v328 = vld [vmem:[%s278 + $0x138] sm:$0xff]
      %v329 = vld [vmem:[%s278 + $0x140] sm:$0xff]
      %v330 = vld [vmem:[%s278 + $0x148] sm:$0xff]
      %v331 = vld [vmem:[%s278 + $0x150] sm:$0xff]
      %v332 = vld [vmem:[%s278 + $0x158] sm:$0xff]
      %v333 = vld [vmem:[%s278 + $0x160] sm:$0xff]
      %v334 = vld [vmem:[%s278 + $0x168] sm:$0xff]
      %v335 = vld [vmem:[%s278 + $0x170] sm:$0xff]
      %v336 = vld [vmem:[%s278 + $0x178] sm:$0xf]
      %v337 = vld [vmem:[%s278 + $0x17c] sm:$0xff]
      %v338 = vld [vmem:[%s278 + $0x184] sm:$0xff]
      %v339 = vld [vmem:[%s278 + $0x18c] sm:$0xff]
      %v340 = vld [vmem:[%s278 + $0x194] sm:$0xff]
      %v341 = vld [vmem:[%s278 + $0x19c] sm:$0xff]
      %v342 = vld [vmem:[%s278 + $0x1a4] sm:$0xff]
      %v343 = vld [vmem:[%s278 + $0x1ac] sm:$0xff]
      %v344 = vld [vmem:[%s278 + $0x1b4] sm:$0xff]
      %v345 = vld [vmem:[%s278 + $0x1bc] sm:$0xff]
      %v346 = vld [vmem:[%s278 + $0x1c4] sm:$0xf]
      %v347 = vld [vmem:[%s278 + $0x1c8] sm:$0xff]
      %v348 = vld [vmem:[%s278 + $0x1d0] sm:$0xff]
      %v349 = vld [vmem:[%s278 + $0x1d8] sm:$0xff]
      %v350 = vld [vmem:[%s278 + $0x1e0] sm:$0xff]
      %v351 = vld [vmem:[%s278 + $0x1e8] sm:$0xff]
      %v352 = vld [vmem:[%s278 + $0x1f0] sm:$0xff]
      %v353 = vld [vmem:[%s278 + $0x1f8] sm:$0xff]
      %v354 = vld [vmem:[%s278 + $0x200] sm:$0xff]
      %v355 = vld [vmem:[%s278 + $0x208] sm:$0xff]
      %v356 = vld [vmem:[%s278 + $0x210] sm:$0xf]
      %v357 = vld [vmem:[%s278 + $0x214] sm:$0xff]
      %v358 = vld [vmem:[%s278 + $0x21c] sm:$0xff]
      %v359 = vld [vmem:[%s278 + $0x224] sm:$0xff]
      %v360 = vld [vmem:[%s278 + $0x22c] sm:$0xff]
      %v361 = vld [vmem:[%s278 + $0x234] sm:$0xff]
      %v362 = vld [vmem:[%s278 + $0x23c] sm:$0xff]
      %v363 = vld [vmem:[%s278 + $0x244] sm:$0xff]
      %v364 = vld [vmem:[%s278 + $0x24c] sm:$0xff]
      %v365 = vld [vmem:[%s278 + $0x254] sm:$0xff]
      %v366 = vld [vmem:[%s278 + $0x25c] sm:$0xf]
      %v367 = vld [vmem:[%s1] sm:$0xff]
      %v368 = vld [vmem:[%s1 + $0x8] sm:$0xff]
      %v369 = vld [vmem:[%s1 + $0x10] sm:$0xff]
      %v370 = vld [vmem:[%s1 + $0x18] sm:$0xff]
      %v371 = vld [vmem:[%s1 + $0x20] sm:$0xff]
      %v372 = vld [vmem:[%s1 + $0x28] sm:$0xff]
      %v373 = vld [vmem:[%s1 + $0x30] sm:$0xff]
      %v374 = vld [vmem:[%s1 + $0x38] sm:$0xff]
      %v375 = vld [vmem:[%s1 + $0x40] sm:$0xff]
      %v376 = vld [vmem:[%s1 + $0x48] sm:$0xff]
      %v377 = vld [vmem:[%s1 + $0x50] sm:$0xff]
      %v378 = vld [vmem:[%s1 + $0x58] sm:$0xff]
      %v379 = vld [vmem:[%s1 + $0x60] sm:$0xff]
      %v380 = vld [vmem:[%s1 + $0x68] sm:$0xff]
      %v381 = vld [vmem:[%s1 + $0x70] sm:$0xff]
      %v382 = vld [vmem:[%s1 + $0x78] sm:$0xff]
      %v383 = vld [vmem:[%s1 + $0x80] sm:$0xff]
      %v384 = vld [vmem:[%s1 + $0x88] sm:$0xff]
      %v385 = vld [vmem:[%s1 + $0x90] sm:$0xff]
      %v386 = vld [vmem:[%s1 + $0x98] sm:$0xff]
      %v387 = vld [vmem:[%s1 + $0xa0] sm:$0xff]
      %v388 = vld [vmem:[%s1 + $0xa8] sm:$0xff]
      %v389 = vld [vmem:[%s1 + $0xb0] sm:$0xff]
      %v390 = vld [vmem:[%s1 + $0xb8] sm:$0xff]
      %v391 = vld [vmem:[%s1 + $0xc0] sm:$0xff]
      %v392 = vld [vmem:[%s1 + $0xc8] sm:$0xff]
      %v393 = vld [vmem:[%s1 + $0xd0] sm:$0xff]
      %v394 = vld [vmem:[%s1 + $0xd8] sm:$0xff]
      %v395 = vld [vmem:[%s1 + $0xe0] sm:$0xff]
      %v396 = vld [vmem:[%s1 + $0xe8] sm:$0xff]
      %v397 = vld [vmem:[%s1 + $0xf0] sm:$0xff]
      %v398 = vld [vmem:[%s1 + $0xf8] sm:$0xff]
      %v399 = vld [vmem:[%s1 + $0x100] sm:$0xff]
      %v400 = vld [vmem:[%s1 + $0x108] sm:$0xff]
      %v401 = vld [vmem:[%s1 + $0x110] sm:$0xff]
      %v402 = vld [vmem:[%s1 + $0x118] sm:$0xff]
      %v403 = vld [vmem:[%s1 + $0x120] sm:$0xff]
      %v404 = vld [vmem:[%s1 + $0x128] sm:$0xff]
      %v405 = vld [vmem:[%s1 + $0x130] sm:$0xff]
      %v406 = vld [vmem:[%s1 + $0x138] sm:$0xff]
      %v407 = vld [vmem:[%s1 + $0x140] sm:$0xff]
      %v408 = vld [vmem:[%s1 + $0x148] sm:$0xff]
      %v409 = vld [vmem:[%s1 + $0x150] sm:$0xff]
      %v410 = vld [vmem:[%s1 + $0x158] sm:$0xff]
      %v411 = vld [vmem:[%s1 + $0x160] sm:$0xff]
      %v412 = vld [vmem:[%s1 + $0x168] sm:$0xff]
      %v413 = vld [vmem:[%s1 + $0x170] sm:$0xff]
      %v414 = vld [vmem:[%s1 + $0x178] sm:$0xff]
      %v415 = vld [vmem:[%s1 + $0x180] sm:$0xff]
      %v416 = vld [vmem:[%s1 + $0x188] sm:$0xff]
      %v417 = vld [vmem:[%s1 + $0x190] sm:$0xff]
      %v418 = vld [vmem:[%s1 + $0x198] sm:$0xff]
      %v419 = vld [vmem:[%s1 + $0x1a0] sm:$0xff]
      %v420 = vld [vmem:[%s1 + $0x1a8] sm:$0xff]
      %v421 = vld [vmem:[%s1 + $0x1b0] sm:$0xff]
      %v422 = vld [vmem:[%s1 + $0x1b8] sm:$0xff]
      %v423 = vld [vmem:[%s1 + $0x1c0] sm:$0xff]
      %v424 = vld [vmem:[%s1 + $0x1c8] sm:$0xff]
      %v425 = vld [vmem:[%s1 + $0x1d0] sm:$0xff]
      %v426 = vld [vmem:[%s1 + $0x1d8] sm:$0xff]
      %v427 = vld [vmem:[%s1 + $0x1e0] sm:$0xff]
      %v428 = vld [vmem:[%s1 + $0x1e8] sm:$0xff]
      %v429 = vld [vmem:[%s1 + $0x1f0] sm:$0xff]
      %v430 = vld [vmem:[%s1 + $0x1f8] sm:$0xff]
      %v431 = vld [vmem:[%s1 + $0x200] sm:$0xff]
      %v432 = vld [vmem:[%s1 + $0x208] sm:$0xff]
      %v433 = vld [vmem:[%s1 + $0x210] sm:$0xff]
      %v434 = vld [vmem:[%s1 + $0x218] sm:$0xff]
      %v435 = vld [vmem:[%s1 + $0x220] sm:$0xff]
      %v436 = vld [vmem:[%s1 + $0x228] sm:$0xff]
      %v437 = vld [vmem:[%s1 + $0x230] sm:$0xff]
      %v438 = vld [vmem:[%s1 + $0x238] sm:$0xff]
      %v439 = vld [vmem:[%s1 + $0x240] sm:$0xff]
      %v440 = vld [vmem:[%s1 + $0x248] sm:$0xff]
      %v441 = vld [vmem:[%s1 + $0x250] sm:$0xff]
      %v442 = vld [vmem:[%s1 + $0x258] sm:$0xff]
      %v443 = vld [vmem:[%s1 + $0x260] sm:$0xff]
      %v444 = vld [vmem:[%s1 + $0x268] sm:$0xff]
      %v445 = vld [vmem:[%s1 + $0x270] sm:$0xff]
      %v446 = vld [vmem:[%s1 + $0x278] sm:$0xff]
      %v447 = vld [vmem:[%s1 + $0x280] sm:$0xff]
      %v448 = vld [vmem:[%s1 + $0x288] sm:$0xff]
      %v449 = vld [vmem:[%s1 + $0x290] sm:$0xff]
      %v450 = vld [vmem:[%s1 + $0x298] sm:$0xff]
      %v451 = vld [vmem:[%s1 + $0x2a0] sm:$0xff]
      %v452 = vld [vmem:[%s1 + $0x2a8] sm:$0xff]
      %v453 = vld [vmem:[%s1 + $0x2b0] sm:$0xff]
      %v454 = vld [vmem:[%s1 + $0x2b8] sm:$0xff]
      %v455 = vld [vmem:[%s1 + $0x2c0] sm:$0xff]
      %v456 = vld [vmem:[%s1 + $0x2c8] sm:$0xff]
      %v457 = vld [vmem:[%s1 + $0x2d0] sm:$0xff]
      %v458 = vld [vmem:[%s1 + $0x2d8] sm:$0xff]
      %v459 = vld [vmem:[%s1 + $0x2e0] sm:$0xff]
      %v460 = vld [vmem:[%s1 + $0x2e8] sm:$0xff]
      %v461 = vld [vmem:[%s1 + $0x2f0] sm:$0xff]
      %v462 = vld [vmem:[%s1 + $0x2f8] sm:$0xff]
      %v463 = vld [vmem:[%s1 + $0x300] sm:$0xff]
      %v464 = vld [vmem:[%s1 + $0x308] sm:$0xff]
      %v465 = vld [vmem:[%s1 + $0x310] sm:$0xff]
      %v466 = vld [vmem:[%s1 + $0x318] sm:$0xff]
      %v467 = vld [vmem:[%s1 + $0x320] sm:$0xff]
      %v468 = vld [vmem:[%s1 + $0x328] sm:$0xff]
      %v469 = vld [vmem:[%s1 + $0x330] sm:$0xff]
      %v470 = vld [vmem:[%s1 + $0x338] sm:$0xff]
      %v471 = vld [vmem:[%s1 + $0x340] sm:$0xff]
      %v472 = vld [vmem:[%s1 + $0x348] sm:$0xff]
      %v473 = vld [vmem:[%s1 + $0x350] sm:$0xff]
      %v474 = vld [vmem:[%s1 + $0x358] sm:$0xff]
      %v475 = vld [vmem:[%s1 + $0x360] sm:$0xff]
      %v476 = vld [vmem:[%s1 + $0x368] sm:$0xff]
      %v477 = vld [vmem:[%s1 + $0x370] sm:$0xff]
      %v478 = vld [vmem:[%s1 + $0x378] sm:$0xff]
      %v479 = vld [vmem:[%s1 + $0x380] sm:$0xff]
      %v480 = vld [vmem:[%s1 + $0x388] sm:$0xff]
      %v481 = vld [vmem:[%s1 + $0x390] sm:$0xff]
      %v482 = vld [vmem:[%s1 + $0x398] sm:$0xff]
      %v483 = vld [vmem:[%s1 + $0x3a0] sm:$0xff]
      %v484 = vld [vmem:[%s1 + $0x3a8] sm:$0xff]
      %v485 = vld [vmem:[%s1 + $0x3b0] sm:$0xff]
      %v486 = vld [vmem:[%s1 + $0x3b8] sm:$0xff]
      %v487 = vld [vmem:[%s1 + $0x3c0] sm:$0xff]
      %v488 = vld [vmem:[%s1 + $0x3c8] sm:$0xff]
      %v489 = vld [vmem:[%s1 + $0x3d0] sm:$0xff]
      %v490 = vld [vmem:[%s1 + $0x3d8] sm:$0xff]
      %v491 = vld [vmem:[%s1 + $0x3e0] sm:$0xff]
      %v492 = vld [vmem:[%s1 + $0x3e8] sm:$0xff]
      %v493 = vld [vmem:[%s1 + $0x3f0] sm:$0xff]
      %v494 = vld [vmem:[%s1 + $0x3f8] sm:$0xff]
      %v495 = vld [vmem:[%s1 + $0x400] sm:$0xff]
      %v496 = vld [vmem:[%s1 + $0x408] sm:$0xff]
      %v497 = vld [vmem:[%s1 + $0x410] sm:$0xff]
      %v498 = vld [vmem:[%s1 + $0x418] sm:$0xff]
      %v499 = vld [vmem:[%s1 + $0x420] sm:$0xff]
      %v500 = vld [vmem:[%s1 + $0x428] sm:$0xff]
      %v501 = vld [vmem:[%s1 + $0x430] sm:$0xff]
      %v502 = vld [vmem:[%s1 + $0x438] sm:$0xff]
      %v503 = vld [vmem:[%s1 + $0x440] sm:$0xff]
      %v504 = vld [vmem:[%s1 + $0x448] sm:$0xff]
      %v505 = vld [vmem:[%s1 + $0x450] sm:$0xff]
      %v506 = vld [vmem:[%s1 + $0x458] sm:$0xff]
      %v507 = vld [vmem:[%s1 + $0x460] sm:$0xff]
      %v508 = vld [vmem:[%s1 + $0x468] sm:$0xff]
      %v509 = vld [vmem:[%s1 + $0x470] sm:$0xff]
      %v510 = vld [vmem:[%s1 + $0x478] sm:$0xff]
      %v511 = vld [vmem:[%s1 + $0x480] sm:$0xff]
      %v512 = vld [vmem:[%s1 + $0x488] sm:$0xff]
      %v513 = vld [vmem:[%s1 + $0x490] sm:$0xff]
      %v514 = vld [vmem:[%s1 + $0x498] sm:$0xff]
      %v515 = vld [vmem:[%s1 + $0x4a0] sm:$0xff]
      %v516 = vld [vmem:[%s1 + $0x4a8] sm:$0xff]
      %v517 = vld [vmem:[%s1 + $0x4b0] sm:$0xff]
      %v518 = vld [vmem:[%s1 + $0x4b8] sm:$0xff]
      %v519 = vld [vmem:[%s1 + $0x4c0] sm:$0xff]
      %v520 = vld [vmem:[%s1 + $0x4c8] sm:$0xff]
      %v521 = vld [vmem:[%s1 + $0x4d0] sm:$0xff]
      %v522 = vld [vmem:[%s1 + $0x4d8] sm:$0xff]
      %v523 = vld [vmem:[%s1 + $0x4e0] sm:$0xff]
      %v524 = vld [vmem:[%s1 + $0x4e8] sm:$0xff]
      %v525 = vld [vmem:[%s1 + $0x4f0] sm:$0xff]
      %v526 = vld [vmem:[%s1 + $0x4f8] sm:$0xff]
      %v527 = vld [vmem:[%s1 + $0x500] sm:$0xff]
      %v528 = vld [vmem:[%s1 + $0x508] sm:$0xff]
      %v529 = vld [vmem:[%s1 + $0x510] sm:$0xff]
      %v530 = vld [vmem:[%s1 + $0x518] sm:$0xff]
      %v531 = vld [vmem:[%s1 + $0x520] sm:$0xff]
      %v532 = vld [vmem:[%s1 + $0x528] sm:$0xff]
      %v533 = vld [vmem:[%s1 + $0x530] sm:$0xff]
      %v534 = vld [vmem:[%s1 + $0x538] sm:$0xff]
      %v535 = vld [vmem:[%s1 + $0x540] sm:$0xff]
      %v536 = vld [vmem:[%s1 + $0x548] sm:$0xff]
      %v537 = vld [vmem:[%s1 + $0x550] sm:$0xff]
      %v538 = vld [vmem:[%s1 + $0x558] sm:$0xff]
      %v539 = vld [vmem:[%s1 + $0x560] sm:$0xff]
      %v540 = vld [vmem:[%s1 + $0x568] sm:$0xff]
      %v541 = vld [vmem:[%s1 + $0x570] sm:$0xff]
      %v542 = vld [vmem:[%s1 + $0x578] sm:$0xff]
      %v543 = vld [vmem:[%s1 + $0x580] sm:$0xff]
      %v544 = vld [vmem:[%s1 + $0x588] sm:$0xff]
      %v545 = vld [vmem:[%s1 + $0x590] sm:$0xff]
      %v546 = vld [vmem:[%s1 + $0x598] sm:$0xff]
      %v547 = vld [vmem:[%s1 + $0x5a0] sm:$0xff]
      %v548 = vld [vmem:[%s1 + $0x5a8] sm:$0xff]
      %v549 = vld [vmem:[%s1 + $0x5b0] sm:$0xff]
      %v550 = vld [vmem:[%s1 + $0x5b8] sm:$0xff]
      %v551 = vld [vmem:[%s1 + $0x5c0] sm:$0xff]
      %v552 = vld [vmem:[%s1 + $0x5c8] sm:$0xff]
      %v553 = vld [vmem:[%s1 + $0x5d0] sm:$0xff]
      %v554 = vld [vmem:[%s1 + $0x5d8] sm:$0xff]
      %v555 = vld [vmem:[%s1 + $0x5e0] sm:$0xff]
      %v556 = vld [vmem:[%s1 + $0x5e8] sm:$0xff]
      %v557 = vld [vmem:[%s1 + $0x5f0] sm:$0xff]
      %v558 = vld [vmem:[%s1 + $0x5f8] sm:$0xff]
      %v559 = vld [vmem:[%s1 + $0x600] sm:$0xff]
      %v560 = vld [vmem:[%s1 + $0x608] sm:$0xff]
      %v561 = vld [vmem:[%s1 + $0x610] sm:$0xff]
      %v562 = vld [vmem:[%s1 + $0x618] sm:$0xff]
      %v563 = vld [vmem:[%s1 + $0x620] sm:$0xff]
      %v564 = vld [vmem:[%s1 + $0x628] sm:$0xff]
      %v565 = vld [vmem:[%s1 + $0x630] sm:$0xff]
      %v566 = vld [vmem:[%s1 + $0x638] sm:$0xff]
      %v567 = vld [vmem:[%s1 + $0x640] sm:$0xff]
      %v568 = vld [vmem:[%s1 + $0x648] sm:$0xff]
      %v569 = vld [vmem:[%s1 + $0x650] sm:$0xff]
      %v570 = vld [vmem:[%s1 + $0x658] sm:$0xff]
      %v571 = vld [vmem:[%s1 + $0x660] sm:$0xff]
      %v572 = vld [vmem:[%s1 + $0x668] sm:$0xff]
      %v573 = vld [vmem:[%s1 + $0x670] sm:$0xff]
      %v574 = vld [vmem:[%s1 + $0x678] sm:$0xff]
      %v575 = vld [vmem:[%s1 + $0x680] sm:$0xff]
      %v576 = vld [vmem:[%s1 + $0x688] sm:$0xff]
      %v577 = vld [vmem:[%s1 + $0x690] sm:$0xff]
      %v578 = vld [vmem:[%s1 + $0x698] sm:$0xff]
      %v579 = vld [vmem:[%s1 + $0x6a0] sm:$0xff]
      %v580 = vld [vmem:[%s1 + $0x6a8] sm:$0xff]
      %v581 = vld [vmem:[%s1 + $0x6b0] sm:$0xff]
      %v582 = vld [vmem:[%s1 + $0x6b8] sm:$0xff]
      %v583 = vld [vmem:[%s1 + $0x6c0] sm:$0xff]
      %v584 = vld [vmem:[%s1 + $0x6c8] sm:$0xff]
      %v585 = vld [vmem:[%s1 + $0x6d0] sm:$0xff]
      %v586 = vld [vmem:[%s1 + $0x6d8] sm:$0xff]
      %v587 = vld [vmem:[%s1 + $0x6e0] sm:$0xff]
      %v588 = vld [vmem:[%s1 + $0x6e8] sm:$0xff]
      %v589 = vld [vmem:[%s1 + $0x6f0] sm:$0xff]
      %v590 = vld [vmem:[%s1 + $0x6f8] sm:$0xff]
      %v591 = vld [vmem:[%s1 + $0x700] sm:$0xff]
      %v592 = vld [vmem:[%s1 + $0x708] sm:$0xff]
      %v593 = vld [vmem:[%s1 + $0x710] sm:$0xff]
      %v594 = vld [vmem:[%s1 + $0x718] sm:$0xff]
      %v595 = vld [vmem:[%s1 + $0x720] sm:$0xff]
      %v596 = vld [vmem:[%s1 + $0x728] sm:$0xff]
      %v597 = vld [vmem:[%s1 + $0x730] sm:$0xff]
      %v598 = vld [vmem:[%s1 + $0x738] sm:$0xff]
      %v599 = vld [vmem:[%s1 + $0x740] sm:$0xff]
      %v600 = vld [vmem:[%s1 + $0x748] sm:$0xff]
      %v601 = vld [vmem:[%s1 + $0x750] sm:$0xff]
      %v602 = vld [vmem:[%s1 + $0x758] sm:$0xff]
      %v603 = vld [vmem:[%s1 + $0x760] sm:$0xff]
      %v604 = vld [vmem:[%s1 + $0x768] sm:$0xff]
      %v605 = vld [vmem:[%s1 + $0x770] sm:$0xff]
      %v606 = vld [vmem:[%s1 + $0x778] sm:$0xff]
      %v607 = vld [vmem:[%s1 + $0x780] sm:$0xff]
      %v608 = vld [vmem:[%s1 + $0x788] sm:$0xff]
      %v609 = vld [vmem:[%s1 + $0x790] sm:$0xff]
      %v610 = vld [vmem:[%s1 + $0x798] sm:$0xff]
      %v611 = vld [vmem:[%s1 + $0x7a0] sm:$0xff]
      %v612 = vld [vmem:[%s1 + $0x7a8] sm:$0xff]
      %v613 = vld [vmem:[%s1 + $0x7b0] sm:$0xff]
      %v614 = vld [vmem:[%s1 + $0x7b8] sm:$0xff]
      %v615 = vld [vmem:[%s1 + $0x7c0] sm:$0xff]
      %v616 = vld [vmem:[%s1 + $0x7c8] sm:$0xff]
      %v617 = vld [vmem:[%s1 + $0x7d0] sm:$0xff]
      %v618 = vld [vmem:[%s1 + $0x7d8] sm:$0xff]
      %v619 = vld [vmem:[%s1 + $0x7e0] sm:$0xff]
      %v620 = vld [vmem:[%s1 + $0x7e8] sm:$0xff]
      %v621 = vld [vmem:[%s1 + $0x7f0] sm:$0xff]
      %v622 = vld [vmem:[%s1 + $0x7f8] sm:$0xff]
      %v623 = vld [vmem:[%s1 + $0x800] sm:$0xff]
      %v624 = vld [vmem:[%s1 + $0x808] sm:$0xff]
      %v625 = vld [vmem:[%s1 + $0x810] sm:$0xff]
      %v626 = vld [vmem:[%s1 + $0x818] sm:$0xff]
      %v627 = vld [vmem:[%s1 + $0x820] sm:$0xff]
      %v628 = vld [vmem:[%s1 + $0x828] sm:$0xff]
      %v629 = vld [vmem:[%s1 + $0x830] sm:$0xff]
      %v630 = vld [vmem:[%s1 + $0x838] sm:$0xff]
      %v631 = vld [vmem:[%s1 + $0x840] sm:$0xff]
      %v632 = vld [vmem:[%s1 + $0x848] sm:$0xff]
      %v633 = vld [vmem:[%s1 + $0x850] sm:$0xff]
      %v634 = vld [vmem:[%s1 + $0x858] sm:$0xff]
      %v635 = vld [vmem:[%s1 + $0x860] sm:$0xff]
      %v636 = vld [vmem:[%s1 + $0x868] sm:$0xff]
      %v637 = vld [vmem:[%s1 + $0x870] sm:$0xff]
      %v638 = vld [vmem:[%s1 + $0x878] sm:$0xff]
      %v639 = vld [vmem:[%s1 + $0x880] sm:$0xff]
      %v640 = vld [vmem:[%s1 + $0x888] sm:$0xff]
      %v641 = vld [vmem:[%s1 + $0x890] sm:$0xff]
      %v642 = vld [vmem:[%s1 + $0x898] sm:$0xff]
      %v643 = vld [vmem:[%s1 + $0x8a0] sm:$0xff]
      %v644 = vld [vmem:[%s1 + $0x8a8] sm:$0xff]
      %v645 = vld [vmem:[%s1 + $0x8b0] sm:$0xff]
      %v646 = vld [vmem:[%s1 + $0x8b8] sm:$0xff]
      %v647 = vld [vmem:[%s1 + $0x8c0] sm:$0xff]
      %v648 = vld [vmem:[%s1 + $0x8c8] sm:$0xff]
      %v649 = vld [vmem:[%s1 + $0x8d0] sm:$0xff]
      %v650 = vld [vmem:[%s1 + $0x8d8] sm:$0xff]
      %v651 = vld [vmem:[%s1 + $0x8e0] sm:$0xff]
      %v652 = vld [vmem:[%s1 + $0x8e8] sm:$0xff]
      %v653 = vld [vmem:[%s1 + $0x8f0] sm:$0xff]
      %v654 = vld [vmem:[%s1 + $0x8f8] sm:$0xff]
      %v655 = vld [vmem:[%s1 + $0x900] sm:$0xff]
      %v656 = vld [vmem:[%s1 + $0x908] sm:$0xff]
      %v657 = vld [vmem:[%s1 + $0x910] sm:$0xff]
      %v658 = vld [vmem:[%s1 + $0x918] sm:$0xff]
      %v659 = vld [vmem:[%s1 + $0x920] sm:$0xff]
      %v660 = vld [vmem:[%s1 + $0x928] sm:$0xff]
      %v661 = vld [vmem:[%s1 + $0x930] sm:$0xff]
      %v662 = vld [vmem:[%s1 + $0x938] sm:$0xff]
      %v663 = vld [vmem:[%s1 + $0x940] sm:$0xff]
      %v664 = vld [vmem:[%s1 + $0x948] sm:$0xff]
      %v665 = vld [vmem:[%s1 + $0x950] sm:$0xff]
      %v666 = vld [vmem:[%s1 + $0x958] sm:$0xff]
      %v667 = vld [vmem:[%s1 + $0x960] sm:$0xff]
      %v668 = vld [vmem:[%s1 + $0x968] sm:$0xff]
      %v669 = vld [vmem:[%s1 + $0x970] sm:$0xff]
      %v670 = vld [vmem:[%s1 + $0x978] sm:$0xff]
      %v671 = vld [vmem:[%s4] sm:$0x3]
      %v673 = vperm.slane %v671, 0
      %v674 = vperm.slane %v671, 1
      %v757 = vunpack.c.l.b16 %v287
      %v758 = vunpack.c.h.b16 %v287
      %v759 = vunpack.c.l.b16 %v288
      %v760 = vunpack.c.h.b16 %v288
      %v761 = vunpack.c.l.b16 %v289
      %v762 = vunpack.c.h.b16 %v289
      %v763 = vunpack.c.l.b16 %v290
      %v764 = vunpack.c.h.b16 %v290
      %v765 = vunpack.c.l.b16 %v291
      %v766 = vunpack.c.h.b16 %v291
      %v767 = vunpack.c.l.b16 %v292
      %v768 = vunpack.c.h.b16 %v292
      %v769 = vunpack.c.l.b16 %v293
      %v770 = vunpack.c.h.b16 %v293
      %v771 = vunpack.c.l.b16 %v294
      %v772 = vunpack.c.h.b16 %v294
      %v773 = vunpack.c.l.b16 %v295
      %v774 = vunpack.c.h.b16 %v295
      %v775 = vunpack.c.l.b16 %v296
      %v776 = vunpack.c.l.b16 %v297
      %v777 = vunpack.c.h.b16 %v297
      %v778 = vunpack.c.l.b16 %v298
      %v779 = vunpack.c.h.b16 %v298
      %v780 = vunpack.c.l.b16 %v299
      %v781 = vunpack.c.h.b16 %v299
      %v782 = vunpack.c.l.b16 %v300
      %v783 = vunpack.c.h.b16 %v300
      %v784 = vunpack.c.l.b16 %v301
      %v785 = vunpack.c.h.b16 %v301
      %v786 = vunpack.c.l.b16 %v302
      %v787 = vunpack.c.h.b16 %v302
      %v788 = vunpack.c.l.b16 %v303
      %v789 = vunpack.c.h.b16 %v303
      %v790 = vunpack.c.l.b16 %v304
      %v791 = vunpack.c.h.b16 %v304
      %v792 = vunpack.c.l.b16 %v305
      %v793 = vunpack.c.h.b16 %v305
      %v794 = vunpack.c.l.b16 %v306
      %v795 = vunpack.c.l.b16 %v307
      %v796 = vunpack.c.h.b16 %v307
      %v797 = vunpack.c.l.b16 %v308
      %v798 = vunpack.c.h.b16 %v308
      %v799 = vunpack.c.l.b16 %v309
      %v800 = vunpack.c.h.b16 %v309
      %v801 = vunpack.c.l.b16 %v310
      %v802 = vunpack.c.h.b16 %v310
      %v803 = vunpack.c.l.b16 %v311
      %v804 = vunpack.c.h.b16 %v311
      %v805 = vunpack.c.l.b16 %v312
      %v806 = vunpack.c.h.b16 %v312
      %v807 = vunpack.c.l.b16 %v313
      %v808 = vunpack.c.h.b16 %v313
      %v809 = vunpack.c.l.b16 %v314
      %v810 = vunpack.c.h.b16 %v314
      %v811 = vunpack.c.l.b16 %v315
      %v812 = vunpack.c.h.b16 %v315
      %v813 = vunpack.c.l.b16 %v316
      %v814 = vunpack.c.l.b16 %v317
      %v815 = vunpack.c.h.b16 %v317
      %v816 = vunpack.c.l.b16 %v318
      %v817 = vunpack.c.h.b16 %v318
      %v818 = vunpack.c.l.b16 %v319
      %v819 = vunpack.c.h.b16 %v319
      %v820 = vunpack.c.l.b16 %v320
      %v821 = vunpack.c.h.b16 %v320
      %v822 = vunpack.c.l.b16 %v321
      %v823 = vunpack.c.h.b16 %v321
      %v824 = vunpack.c.l.b16 %v322
      %v825 = vunpack.c.h.b16 %v322
      %v826 = vunpack.c.l.b16 %v323
      %v827 = vunpack.c.h.b16 %v323
      %v828 = vunpack.c.l.b16 %v324
      %v829 = vunpack.c.h.b16 %v324
      %v830 = vunpack.c.l.b16 %v325
      %v831 = vunpack.c.h.b16 %v325
      %v832 = vunpack.c.l.b16 %v326
      %v833 = vunpack.c.l.b16 %v327
      %v834 = vunpack.c.h.b16 %v327
      %v835 = vunpack.c.l.b16 %v328
      %v836 = vunpack.c.h.b16 %v328
      %v837 = vunpack.c.l.b16 %v329
      %v838 = vunpack.c.h.b16 %v329
      %v839 = vunpack.c.l.b16 %v330
      %v840 = vunpack.c.h.b16 %v330
      %v841 = vunpack.c.l.b16 %v331
      %v842 = vunpack.c.h.b16 %v331
      %v843 = vunpack.c.l.b16 %v332
      %v844 = vunpack.c.h.b16 %v332
      %v845 = vunpack.c.l.b16 %v333
      %v846 = vunpack.c.h.b16 %v333
      %v847 = vunpack.c.l.b16 %v334
      %v848 = vunpack.c.h.b16 %v334
      %v849 = vunpack.c.l.b16 %v335
      %v850 = vunpack.c.h.b16 %v335
      %v851 = vunpack.c.l.b16 %v336
      %v852 = vunpack.c.l.b16 %v337
      %v853 = vunpack.c.h.b16 %v337
      %v854 = vunpack.c.l.b16 %v338
      %v855 = vunpack.c.h.b16 %v338
      %v856 = vunpack.c.l.b16 %v339
      %v857 = vunpack.c.h.b16 %v339
      %v858 = vunpack.c.l.b16 %v340
      %v859 = vunpack.c.h.b16 %v340
      %v860 = vunpack.c.l.b16 %v341
      %v861 = vunpack.c.h.b16 %v341
      %v862 = vunpack.c.l.b16 %v342
      %v863 = vunpack.c.h.b16 %v342
      %v864 = vunpack.c.l.b16 %v343
      %v865 = vunpack.c.h.b16 %v343
      %v866 = vunpack.c.l.b16 %v344
      %v867 = vunpack.c.h.b16 %v344
      %v868 = vunpack.c.l.b16 %v345
      %v869 = vunpack.c.h.b16 %v345
      %v870 = vunpack.c.l.b16 %v346
      %v871 = vunpack.c.l.b16 %v347
      %v872 = vunpack.c.h.b16 %v347
      %v873 = vunpack.c.l.b16 %v348
      %v874 = vunpack.c.h.b16 %v348
      %v875 = vunpack.c.l.b16 %v349
      %v876 = vunpack.c.h.b16 %v349
      %v877 = vunpack.c.l.b16 %v350
      %v878 = vunpack.c.h.b16 %v350
      %v879 = vunpack.c.l.b16 %v351
      %v880 = vunpack.c.h.b16 %v351
      %v881 = vunpack.c.l.b16 %v352
      %v882 = vunpack.c.h.b16 %v352
      %v883 = vunpack.c.l.b16 %v353
      %v884 = vunpack.c.h.b16 %v353
      %v885 = vunpack.c.l.b16 %v354
      %v886 = vunpack.c.h.b16 %v354
      %v887 = vunpack.c.l.b16 %v355
      %v888 = vunpack.c.h.b16 %v355
      %v889 = vunpack.c.l.b16 %v356
      %v890 = vunpack.c.l.b16 %v357
      %v891 = vunpack.c.h.b16 %v357
      %v892 = vunpack.c.l.b16 %v358
      %v893 = vunpack.c.h.b16 %v358
      %v894 = vunpack.c.l.b16 %v359
      %v895 = vunpack.c.h.b16 %v359
      %v896 = vunpack.c.l.b16 %v360
      %v897 = vunpack.c.h.b16 %v360
      %v898 = vunpack.c.l.b16 %v361
      %v899 = vunpack.c.h.b16 %v361
      %v900 = vunpack.c.l.b16 %v362
      %v901 = vunpack.c.h.b16 %v362
      %v902 = vunpack.c.l.b16 %v363
      %v903 = vunpack.c.h.b16 %v363
      %v904 = vunpack.c.l.b16 %v364
      %v905 = vunpack.c.h.b16 %v364
      %v906 = vunpack.c.l.b16 %v365
      %v907 = vunpack.c.h.b16 %v365
      %v908 = vunpack.c.l.b16 %v366
      %v909 = vpack.c.b16 %v776, %v757
      %v910 = vpack.c.b16 %v777, %v758
      %v911 = vpack.c.b16 %v778, %v759
      %v912 = vpack.c.b16 %v779, %v760
      %v913 = vpack.c.b16 %v780, %v761
      %v914 = vpack.c.b16 %v781, %v762
      %v915 = vpack.c.b16 %v782, %v763
      %v916 = vpack.c.b16 %v783, %v764
      %v917 = vpack.c.b16 %v784, %v765
      %v918 = vpack.c.b16 %v785, %v766
      %v919 = vpack.c.b16 %v786, %v767
      %v920 = vpack.c.b16 %v787, %v768
      %v921 = vpack.c.b16 %v788, %v769
      %v922 = vpack.c.b16 %v789, %v770
      %v923 = vpack.c.b16 %v790, %v771
      %v924 = vpack.c.b16 %v791, %v772
      %v925 = vpack.c.b16 %v792, %v773
      %v926 = vpack.c.b16 %v793, %v774
      %v927 = vpack.c.b16 %v794, %v775
      %v928 = vpack.c.b16 %v814, %v795
      %v929 = vpack.c.b16 %v815, %v796
      %v930 = vpack.c.b16 %v816, %v797
      %v931 = vpack.c.b16 %v817, %v798
      %v932 = vpack.c.b16 %v818, %v799
      %v933 = vpack.c.b16 %v819, %v800
      %v934 = vpack.c.b16 %v820, %v801
      %v935 = vpack.c.b16 %v821, %v802
      %v936 = vpack.c.b16 %v822, %v803
      %v937 = vpack.c.b16 %v823, %v804
      %v938 = vpack.c.b16 %v824, %v805
      %v939 = vpack.c.b16 %v825, %v806
      %v940 = vpack.c.b16 %v826, %v807
      %v941 = vpack.c.b16 %v827, %v808
      %v942 = vpack.c.b16 %v828, %v809
      %v943 = vpack.c.b16 %v829, %v810
      %v944 = vpack.c.b16 %v830, %v811
      %v945 = vpack.c.b16 %v831, %v812
      %v946 = vpack.c.b16 %v832, %v813
      %v947 = vpack.c.b16 %v852, %v833
      %v948 = vpack.c.b16 %v853, %v834
      %v949 = vpack.c.b16 %v854, %v835
      %v950 = vpack.c.b16 %v855, %v836
      %v951 = vpack.c.b16 %v856, %v837
      %v952 = vpack.c.b16 %v857, %v838
      %v953 = vpack.c.b16 %v858, %v839
      %v954 = vpack.c.b16 %v859, %v840
      %v955 = vpack.c.b16 %v860, %v841
      %v956 = vpack.c.b16 %v861, %v842
      %v957 = vpack.c.b16 %v862, %v843
      %v958 = vpack.c.b16 %v863, %v844
      %v959 = vpack.c.b16 %v864, %v845
      %v960 = vpack.c.b16 %v865, %v846
      %v961 = vpack.c.b16 %v866, %v847
      %v962 = vpack.c.b16 %v867, %v848
      %v963 = vpack.c.b16 %v868, %v849
      %v964 = vpack.c.b16 %v869, %v850
      %v965 = vpack.c.b16 %v870, %v851
      %v966 = vpack.c.b16 %v890, %v871
      %v967 = vpack.c.b16 %v891, %v872
      %v968 = vpack.c.b16 %v892, %v873
      %v969 = vpack.c.b16 %v893, %v874
      %v970 = vpack.c.b16 %v894, %v875
      %v971 = vpack.c.b16 %v895, %v876
      %v972 = vpack.c.b16 %v896, %v877
      %v973 = vpack.c.b16 %v897, %v878
      %v974 = vpack.c.b16 %v898, %v879
      %v975 = vpack.c.b16 %v899, %v880
      %v976 = vpack.c.b16 %v900, %v881
      %v977 = vpack.c.b16 %v901, %v882
      %v978 = vpack.c.b16 %v902, %v883
      %v979 = vpack.c.b16 %v903, %v884
      %v980 = vpack.c.b16 %v904, %v885
      %v981 = vpack.c.b16 %v905, %v886
      %v982 = vpack.c.b16 %v906, %v887
      %v983 = vpack.c.b16 %v907, %v888
      %v984 = vpack.c.b16 %v908, %v889
      %v1365 = vunpack.c.l.b16 %v367
      %v1366 = vunpack.c.h.b16 %v367
      %v1367 = vunpack.c.l.b16 %v368
      %v1368 = vunpack.c.h.b16 %v368
      %v1369 = vunpack.c.l.b16 %v369
      %v1370 = vunpack.c.h.b16 %v369
      %v1371 = vunpack.c.l.b16 %v370
      %v1372 = vunpack.c.h.b16 %v370
      %v1373 = vunpack.c.l.b16 %v371
      %v1374 = vunpack.c.h.b16 %v371
      %v1375 = vunpack.c.l.b16 %v372
      %v1376 = vunpack.c.h.b16 %v372
      %v1377 = vunpack.c.l.b16 %v373
      %v1378 = vunpack.c.h.b16 %v373
      %v1379 = vunpack.c.l.b16 %v374
      %v1380 = vunpack.c.h.b16 %v374
      %v1381 = vunpack.c.l.b16 %v375
      %v1382 = vunpack.c.h.b16 %v375
      %v1383 = vunpack.c.l.b16 %v376
      %v1384 = vunpack.c.h.b16 %v376
      %v1385 = vunpack.c.l.b16 %v377
      %v1386 = vunpack.c.h.b16 %v377
      %v1387 = vunpack.c.l.b16 %v378
      %v1388 = vunpack.c.h.b16 %v378
      %v1389 = vunpack.c.l.b16 %v379
      %v1390 = vunpack.c.h.b16 %v379
      %v1391 = vunpack.c.l.b16 %v380
      %v1392 = vunpack.c.h.b16 %v380
      %v1393 = vunpack.c.l.b16 %v381
      %v1394 = vunpack.c.h.b16 %v381
      %v1395 = vunpack.c.l.b16 %v382
      %v1396 = vunpack.c.h.b16 %v382
      %v1397 = vunpack.c.l.b16 %v383
      %v1398 = vunpack.c.h.b16 %v383
      %v1399 = vunpack.c.l.b16 %v384
      %v1400 = vunpack.c.h.b16 %v384
      %v1401 = vunpack.c.l.b16 %v385
      %v1402 = vunpack.c.h.b16 %v385
      %v1403 = vunpack.c.l.b16 %v386
      %v1404 = vunpack.c.h.b16 %v386
      %v1405 = vunpack.c.l.b16 %v387
      %v1406 = vunpack.c.h.b16 %v387
      %v1407 = vunpack.c.l.b16 %v388
      %v1408 = vunpack.c.h.b16 %v388
      %v1409 = vunpack.c.l.b16 %v389
      %v1410 = vunpack.c.h.b16 %v389
      %v1411 = vunpack.c.l.b16 %v390
      %v1412 = vunpack.c.h.b16 %v390
      %v1413 = vunpack.c.l.b16 %v391
      %v1414 = vunpack.c.h.b16 %v391
      %v1415 = vunpack.c.l.b16 %v392
      %v1416 = vunpack.c.h.b16 %v392
      %v1417 = vunpack.c.l.b16 %v393
      %v1418 = vunpack.c.h.b16 %v393
      %v1419 = vunpack.c.l.b16 %v394
      %v1420 = vunpack.c.h.b16 %v394
      %v1421 = vunpack.c.l.b16 %v395
      %v1422 = vunpack.c.h.b16 %v395
      %v1423 = vunpack.c.l.b16 %v396
      %v1424 = vunpack.c.h.b16 %v396
      %v1425 = vunpack.c.l.b16 %v397
      %v1426 = vunpack.c.h.b16 %v397
      %v1427 = vunpack.c.l.b16 %v398
      %v1428 = vunpack.c.h.b16 %v398
      %v1429 = vunpack.c.l.b16 %v399
      %v1430 = vunpack.c.h.b16 %v399
      %v1431 = vunpack.c.l.b16 %v400
      %v1432 = vunpack.c.h.b16 %v400
      %v1433 = vunpack.c.l.b16 %v401
      %v1434 = vunpack.c.h.b16 %v401
      %v1435 = vunpack.c.l.b16 %v402
      %v1436 = vunpack.c.h.b16 %v402
      %v1437 = vunpack.c.l.b16 %v403
      %v1438 = vunpack.c.h.b16 %v403
      %v1439 = vunpack.c.l.b16 %v404
      %v1440 = vunpack.c.h.b16 %v404
      %v1441 = vunpack.c.l.b16 %v405
      %v1442 = vunpack.c.h.b16 %v405
      %v1443 = vunpack.c.l.b16 %v406
      %v1444 = vunpack.c.h.b16 %v406
      %v1445 = vunpack.c.l.b16 %v407
      %v1446 = vunpack.c.h.b16 %v407
      %v1447 = vunpack.c.l.b16 %v408
      %v1448 = vunpack.c.h.b16 %v408
      %v1449 = vunpack.c.l.b16 %v409
      %v1450 = vunpack.c.h.b16 %v409
      %v1451 = vunpack.c.l.b16 %v410
      %v1452 = vunpack.c.h.b16 %v410
      %v1453 = vunpack.c.l.b16 %v411
      %v1454 = vunpack.c.h.b16 %v411
      %v1455 = vunpack.c.l.b16 %v412
      %v1456 = vunpack.c.h.b16 %v412
      %v1457 = vunpack.c.l.b16 %v413
      %v1458 = vunpack.c.h.b16 %v413
      %v1459 = vunpack.c.l.b16 %v414
      %v1460 = vunpack.c.h.b16 %v414
      %v1461 = vunpack.c.l.b16 %v415
      %v1462 = vunpack.c.h.b16 %v415
      %v1463 = vunpack.c.l.b16 %v416
      %v1464 = vunpack.c.h.b16 %v416
      %v1465 = vunpack.c.l.b16 %v417
      %v1466 = vunpack.c.h.b16 %v417
      %v1467 = vunpack.c.l.b16 %v418
      %v1468 = vunpack.c.h.b16 %v418
      %v1469 = vunpack.c.l.b16 %v419
      %v1470 = vunpack.c.h.b16 %v419
      %v1471 = vunpack.c.l.b16 %v420
      %v1472 = vunpack.c.h.b16 %v420
      %v1473 = vunpack.c.l.b16 %v421
      %v1474 = vunpack.c.h.b16 %v421
      %v1475 = vunpack.c.l.b16 %v422
      %v1476 = vunpack.c.h.b16 %v422
      %v1477 = vunpack.c.l.b16 %v423
      %v1478 = vunpack.c.h.b16 %v423
      %v1479 = vunpack.c.l.b16 %v424
      %v1480 = vunpack.c.h.b16 %v424
      %v1481 = vunpack.c.l.b16 %v425
      %v1482 = vunpack.c.h.b16 %v425
      %v1483 = vunpack.c.l.b16 %v426
      %v1484 = vunpack.c.h.b16 %v426
      %v1485 = vunpack.c.l.b16 %v427
      %v1486 = vunpack.c.h.b16 %v427
      %v1487 = vunpack.c.l.b16 %v428
      %v1488 = vunpack.c.h.b16 %v428
      %v1489 = vunpack.c.l.b16 %v429
      %v1490 = vunpack.c.h.b16 %v429
      %v1491 = vunpack.c.l.b16 %v430
      %v1492 = vunpack.c.h.b16 %v430
      %v1493 = vunpack.c.l.b16 %v431
      %v1494 = vunpack.c.h.b16 %v431
      %v1495 = vunpack.c.l.b16 %v432
      %v1496 = vunpack.c.h.b16 %v432
      %v1497 = vunpack.c.l.b16 %v433
      %v1498 = vunpack.c.h.b16 %v433
      %v1499 = vunpack.c.l.b16 %v434
      %v1500 = vunpack.c.h.b16 %v434
      %v1501 = vunpack.c.l.b16 %v435
      %v1502 = vunpack.c.h.b16 %v435
      %v1503 = vunpack.c.l.b16 %v436
      %v1504 = vunpack.c.h.b16 %v436
      %v1505 = vunpack.c.l.b16 %v437
      %v1506 = vunpack.c.h.b16 %v437
      %v1507 = vunpack.c.l.b16 %v438
      %v1508 = vunpack.c.h.b16 %v438
      %v1509 = vunpack.c.l.b16 %v439
      %v1510 = vunpack.c.h.b16 %v439
      %v1511 = vunpack.c.l.b16 %v440
      %v1512 = vunpack.c.h.b16 %v440
      %v1513 = vunpack.c.l.b16 %v441
      %v1514 = vunpack.c.h.b16 %v441
      %v1515 = vunpack.c.l.b16 %v442
      %v1516 = vunpack.c.h.b16 %v442
      %v1517 = vunpack.c.l.b16 %v443
      %v1518 = vunpack.c.h.b16 %v443
      %v1519 = vunpack.c.l.b16 %v444
      %v1520 = vunpack.c.h.b16 %v444
      %v1521 = vunpack.c.l.b16 %v445
      %v1522 = vunpack.c.h.b16 %v445
      %v1523 = vunpack.c.l.b16 %v446
      %v1524 = vunpack.c.h.b16 %v446
      %v1525 = vunpack.c.l.b16 %v447
      %v1526 = vunpack.c.h.b16 %v447
      %v1527 = vunpack.c.l.b16 %v448
      %v1528 = vunpack.c.h.b16 %v448
      %v1529 = vunpack.c.l.b16 %v449
      %v1530 = vunpack.c.h.b16 %v449
      %v1531 = vunpack.c.l.b16 %v450
      %v1532 = vunpack.c.h.b16 %v450
      %v1533 = vunpack.c.l.b16 %v451
      %v1534 = vunpack.c.h.b16 %v451
      %v1535 = vunpack.c.l.b16 %v452
      %v1536 = vunpack.c.h.b16 %v452
      %v1537 = vunpack.c.l.b16 %v453
      %v1538 = vunpack.c.h.b16 %v453
      %v1539 = vunpack.c.l.b16 %v454
      %v1540 = vunpack.c.h.b16 %v454
      %v1541 = vunpack.c.l.b16 %v455
      %v1542 = vunpack.c.h.b16 %v455
      %v1543 = vunpack.c.l.b16 %v456
      %v1544 = vunpack.c.h.b16 %v456
      %v1545 = vunpack.c.l.b16 %v457
      %v1546 = vunpack.c.h.b16 %v457
      %v1547 = vunpack.c.l.b16 %v458
      %v1548 = vunpack.c.h.b16 %v458
      %v1549 = vunpack.c.l.b16 %v459
      %v1550 = vunpack.c.h.b16 %v459
      %v1551 = vunpack.c.l.b16 %v460
      %v1552 = vunpack.c.h.b16 %v460
      %v1553 = vunpack.c.l.b16 %v461
      %v1554 = vunpack.c.h.b16 %v461
      %v1555 = vunpack.c.l.b16 %v462
      %v1556 = vunpack.c.h.b16 %v462
      %v1557 = vunpack.c.l.b16 %v463
      %v1558 = vunpack.c.h.b16 %v463
      %v1559 = vunpack.c.l.b16 %v464
      %v1560 = vunpack.c.h.b16 %v464
      %v1561 = vunpack.c.l.b16 %v465
      %v1562 = vunpack.c.h.b16 %v465
      %v1563 = vunpack.c.l.b16 %v466
      %v1564 = vunpack.c.h.b16 %v466
      %v1565 = vunpack.c.l.b16 %v467
      %v1566 = vunpack.c.h.b16 %v467
      %v1567 = vunpack.c.l.b16 %v468
      %v1568 = vunpack.c.h.b16 %v468
      %v1569 = vunpack.c.l.b16 %v469
      %v1570 = vunpack.c.h.b16 %v469
      %v1571 = vunpack.c.l.b16 %v470
      %v1572 = vunpack.c.h.b16 %v470
      %v1573 = vunpack.c.l.b16 %v471
      %v1574 = vunpack.c.h.b16 %v471
      %v1575 = vunpack.c.l.b16 %v472
      %v1576 = vunpack.c.h.b16 %v472
      %v1577 = vunpack.c.l.b16 %v473
      %v1578 = vunpack.c.h.b16 %v473
      %v1579 = vunpack.c.l.b16 %v474
      %v1580 = vunpack.c.h.b16 %v474
      %v1581 = vunpack.c.l.b16 %v475
      %v1582 = vunpack.c.h.b16 %v475
      %v1583 = vunpack.c.l.b16 %v476
      %v1584 = vunpack.c.h.b16 %v476
      %v1585 = vunpack.c.l.b16 %v477
      %v1586 = vunpack.c.h.b16 %v477
      %v1587 = vunpack.c.l.b16 %v478
      %v1588 = vunpack.c.h.b16 %v478
      %v1589 = vunpack.c.l.b16 %v479
      %v1590 = vunpack.c.h.b16 %v479
      %v1591 = vunpack.c.l.b16 %v480
      %v1592 = vunpack.c.h.b16 %v480
      %v1593 = vunpack.c.l.b16 %v481
      %v1594 = vunpack.c.h.b16 %v481
      %v1595 = vunpack.c.l.b16 %v482
      %v1596 = vunpack.c.h.b16 %v482
      %v1597 = vunpack.c.l.b16 %v483
      %v1598 = vunpack.c.h.b16 %v483
      %v1599 = vunpack.c.l.b16 %v484
      %v1600 = vunpack.c.h.b16 %v484
      %v1601 = vunpack.c.l.b16 %v485
      %v1602 = vunpack.c.h.b16 %v485
      %v1603 = vunpack.c.l.b16 %v486
      %v1604 = vunpack.c.h.b16 %v486
      %v1605 = vunpack.c.l.b16 %v487
      %v1606 = vunpack.c.h.b16 %v487
      %v1607 = vunpack.c.l.b16 %v488
      %v1608 = vunpack.c.h.b16 %v488
      %v1609 = vunpack.c.l.b16 %v489
      %v1610 = vunpack.c.h.b16 %v489
      %v1611 = vunpack.c.l.b16 %v490
      %v1612 = vunpack.c.h.b16 %v490
      %v1613 = vunpack.c.l.b16 %v491
      %v1614 = vunpack.c.h.b16 %v491
      %v1615 = vunpack.c.l.b16 %v492
      %v1616 = vunpack.c.h.b16 %v492
      %v1617 = vunpack.c.l.b16 %v493
      %v1618 = vunpack.c.h.b16 %v493
      %v1619 = vunpack.c.l.b16 %v494
      %v1620 = vunpack.c.h.b16 %v494
      %v1621 = vunpack.c.l.b16 %v495
      %v1622 = vunpack.c.h.b16 %v495
      %v1623 = vunpack.c.l.b16 %v496
      %v1624 = vunpack.c.h.b16 %v496
      %v1625 = vunpack.c.l.b16 %v497
      %v1626 = vunpack.c.h.b16 %v497
      %v1627 = vunpack.c.l.b16 %v498
      %v1628 = vunpack.c.h.b16 %v498
      %v1629 = vunpack.c.l.b16 %v499
      %v1630 = vunpack.c.h.b16 %v499
      %v1631 = vunpack.c.l.b16 %v500
      %v1632 = vunpack.c.h.b16 %v500
      %v1633 = vunpack.c.l.b16 %v501
      %v1634 = vunpack.c.h.b16 %v501
      %v1635 = vunpack.c.l.b16 %v502
      %v1636 = vunpack.c.h.b16 %v502
      %v1637 = vunpack.c.l.b16 %v503
      %v1638 = vunpack.c.h.b16 %v503
      %v1639 = vunpack.c.l.b16 %v504
      %v1640 = vunpack.c.h.b16 %v504
      %v1641 = vunpack.c.l.b16 %v505
      %v1642 = vunpack.c.h.b16 %v505
      %v1643 = vunpack.c.l.b16 %v506
      %v1644 = vunpack.c.h.b16 %v506
      %v1645 = vunpack.c.l.b16 %v507
      %v1646 = vunpack.c.h.b16 %v507
      %v1647 = vunpack.c.l.b16 %v508
      %v1648 = vunpack.c.h.b16 %v508
      %v1649 = vunpack.c.l.b16 %v509
      %v1650 = vunpack.c.h.b16 %v509
      %v1651 = vunpack.c.l.b16 %v510
      %v1652 = vunpack.c.h.b16 %v510
      %v1653 = vunpack.c.l.b16 %v511
      %v1654 = vunpack.c.h.b16 %v511
      %v1655 = vunpack.c.l.b16 %v512
      %v1656 = vunpack.c.h.b16 %v512
      %v1657 = vunpack.c.l.b16 %v513
      %v1658 = vunpack.c.h.b16 %v513
      %v1659 = vunpack.c.l.b16 %v514
      %v1660 = vunpack.c.h.b16 %v514
      %v1661 = vunpack.c.l.b16 %v515
      %v1662 = vunpack.c.h.b16 %v515
      %v1663 = vunpack.c.l.b16 %v516
      %v1664 = vunpack.c.h.b16 %v516
      %v1665 = vunpack.c.l.b16 %v517
      %v1666 = vunpack.c.h.b16 %v517
      %v1667 = vunpack.c.l.b16 %v518
      %v1668 = vunpack.c.h.b16 %v518
      %v1669 = vunpack.c.l.b16 %v519
      %v1670 = vunpack.c.h.b16 %v519
      %v1671 = vunpack.c.l.b16 %v520
      %v1672 = vunpack.c.h.b16 %v520
      %v1673 = vunpack.c.l.b16 %v521
      %v1674 = vunpack.c.h.b16 %v521
      %v1675 = vunpack.c.l.b16 %v522
      %v1676 = vunpack.c.h.b16 %v522
      %v1677 = vunpack.c.l.b16 %v523
      %v1678 = vunpack.c.h.b16 %v523
      %v1679 = vunpack.c.l.b16 %v524
      %v1680 = vunpack.c.h.b16 %v524
      %v1681 = vunpack.c.l.b16 %v525
      %v1682 = vunpack.c.h.b16 %v525
      %v1683 = vunpack.c.l.b16 %v526
      %v1684 = vunpack.c.h.b16 %v526
      %v1685 = vunpack.c.l.b16 %v527
      %v1686 = vunpack.c.h.b16 %v527
      %v1687 = vunpack.c.l.b16 %v528
      %v1688 = vunpack.c.h.b16 %v528
      %v1689 = vunpack.c.l.b16 %v529
      %v1690 = vunpack.c.h.b16 %v529
      %v1691 = vunpack.c.l.b16 %v530
      %v1692 = vunpack.c.h.b16 %v530
      %v1693 = vunpack.c.l.b16 %v531
      %v1694 = vunpack.c.h.b16 %v531
      %v1695 = vunpack.c.l.b16 %v532
      %v1696 = vunpack.c.h.b16 %v532
      %v1697 = vunpack.c.l.b16 %v533
      %v1698 = vunpack.c.h.b16 %v533
      %v1699 = vunpack.c.l.b16 %v534
      %v1700 = vunpack.c.h.b16 %v534
      %v1701 = vunpack.c.l.b16 %v535
      %v1702 = vunpack.c.h.b16 %v535
      %v1703 = vunpack.c.l.b16 %v536
      %v1704 = vunpack.c.h.b16 %v536
      %v1705 = vunpack.c.l.b16 %v537
      %v1706 = vunpack.c.h.b16 %v537
      %v1707 = vunpack.c.l.b16 %v538
      %v1708 = vunpack.c.h.b16 %v538
      %v1709 = vunpack.c.l.b16 %v539
      %v1710 = vunpack.c.h.b16 %v539
      %v1711 = vunpack.c.l.b16 %v540
      %v1712 = vunpack.c.h.b16 %v540
      %v1713 = vunpack.c.l.b16 %v541
      %v1714 = vunpack.c.h.b16 %v541
      %v1715 = vunpack.c.l.b16 %v542
      %v1716 = vunpack.c.h.b16 %v542
      %v1717 = vunpack.c.l.b16 %v543
      %v1718 = vunpack.c.h.b16 %v543
      %v1719 = vunpack.c.l.b16 %v544
      %v1720 = vunpack.c.h.b16 %v544
      %v1721 = vunpack.c.l.b16 %v545
      %v1722 = vunpack.c.h.b16 %v545
      %v1723 = vunpack.c.l.b16 %v546
      %v1724 = vunpack.c.h.b16 %v546
      %v1725 = vunpack.c.l.b16 %v547
      %v1726 = vunpack.c.h.b16 %v547
      %v1727 = vunpack.c.l.b16 %v548
      %v1728 = vunpack.c.h.b16 %v548
      %v1729 = vunpack.c.l.b16 %v549
      %v1730 = vunpack.c.h.b16 %v549
      %v1731 = vunpack.c.l.b16 %v550
      %v1732 = vunpack.c.h.b16 %v550
      %v1733 = vunpack.c.l.b16 %v551
      %v1734 = vunpack.c.h.b16 %v551
      %v1735 = vunpack.c.l.b16 %v552
      %v1736 = vunpack.c.h.b16 %v552
      %v1737 = vunpack.c.l.b16 %v553
      %v1738 = vunpack.c.h.b16 %v553
      %v1739 = vunpack.c.l.b16 %v554
      %v1740 = vunpack.c.h.b16 %v554
      %v1741 = vunpack.c.l.b16 %v555
      %v1742 = vunpack.c.h.b16 %v555
      %v1743 = vunpack.c.l.b16 %v556
      %v1744 = vunpack.c.h.b16 %v556
      %v1745 = vunpack.c.l.b16 %v557
      %v1746 = vunpack.c.h.b16 %v557
      %v1747 = vunpack.c.l.b16 %v558
      %v1748 = vunpack.c.h.b16 %v558
      %v1749 = vunpack.c.l.b16 %v559
      %v1750 = vunpack.c.h.b16 %v559
      %v1751 = vunpack.c.l.b16 %v560
      %v1752 = vunpack.c.h.b16 %v560
      %v1753 = vunpack.c.l.b16 %v561
      %v1754 = vunpack.c.h.b16 %v561
      %v1755 = vunpack.c.l.b16 %v562
      %v1756 = vunpack.c.h.b16 %v562
      %v1757 = vunpack.c.l.b16 %v563
      %v1758 = vunpack.c.h.b16 %v563
      %v1759 = vunpack.c.l.b16 %v564
      %v1760 = vunpack.c.h.b16 %v564
      %v1761 = vunpack.c.l.b16 %v565
      %v1762 = vunpack.c.h.b16 %v565
      %v1763 = vunpack.c.l.b16 %v566
      %v1764 = vunpack.c.h.b16 %v566
      %v1765 = vunpack.c.l.b16 %v567
      %v1766 = vunpack.c.h.b16 %v567
      %v1767 = vunpack.c.l.b16 %v568
      %v1768 = vunpack.c.h.b16 %v568
      %v1769 = vunpack.c.l.b16 %v569
      %v1770 = vunpack.c.h.b16 %v569
      %v1771 = vunpack.c.l.b16 %v570
      %v1772 = vunpack.c.h.b16 %v570
      %v1773 = vunpack.c.l.b16 %v571
      %v1774 = vunpack.c.h.b16 %v571
      %v1775 = vunpack.c.l.b16 %v572
      %v1776 = vunpack.c.h.b16 %v572
      %v1777 = vunpack.c.l.b16 %v573
      %v1778 = vunpack.c.h.b16 %v573
      %v1779 = vunpack.c.l.b16 %v574
      %v1780 = vunpack.c.h.b16 %v574
      %v1781 = vunpack.c.l.b16 %v575
      %v1782 = vunpack.c.h.b16 %v575
      %v1783 = vunpack.c.l.b16 %v576
      %v1784 = vunpack.c.h.b16 %v576
      %v1785 = vunpack.c.l.b16 %v577
      %v1786 = vunpack.c.h.b16 %v577
      %v1787 = vunpack.c.l.b16 %v578
      %v1788 = vunpack.c.h.b16 %v578
      %v1789 = vunpack.c.l.b16 %v579
      %v1790 = vunpack.c.h.b16 %v579
      %v1791 = vunpack.c.l.b16 %v580
      %v1792 = vunpack.c.h.b16 %v580
      %v1793 = vunpack.c.l.b16 %v581
      %v1794 = vunpack.c.h.b16 %v581
      %v1795 = vunpack.c.l.b16 %v582
      %v1796 = vunpack.c.h.b16 %v582
      %v1797 = vunpack.c.l.b16 %v583
      %v1798 = vunpack.c.h.b16 %v583
      %v1799 = vunpack.c.l.b16 %v584
      %v1800 = vunpack.c.h.b16 %v584
      %v1801 = vunpack.c.l.b16 %v585
      %v1802 = vunpack.c.h.b16 %v585
      %v1803 = vunpack.c.l.b16 %v586
      %v1804 = vunpack.c.h.b16 %v586
      %v1805 = vunpack.c.l.b16 %v587
      %v1806 = vunpack.c.h.b16 %v587
      %v1807 = vunpack.c.l.b16 %v588
      %v1808 = vunpack.c.h.b16 %v588
      %v1809 = vunpack.c.l.b16 %v589
      %v1810 = vunpack.c.h.b16 %v589
      %v1811 = vunpack.c.l.b16 %v590
      %v1812 = vunpack.c.h.b16 %v590
      %v1813 = vunpack.c.l.b16 %v591
      %v1814 = vunpack.c.h.b16 %v591
      %v1815 = vunpack.c.l.b16 %v592
      %v1816 = vunpack.c.h.b16 %v592
      %v1817 = vunpack.c.l.b16 %v593
      %v1818 = vunpack.c.h.b16 %v593
      %v1819 = vunpack.c.l.b16 %v594
      %v1820 = vunpack.c.h.b16 %v594
      %v1821 = vunpack.c.l.b16 %v595
      %v1822 = vunpack.c.h.b16 %v595
      %v1823 = vunpack.c.l.b16 %v596
      %v1824 = vunpack.c.h.b16 %v596
      %v1825 = vunpack.c.l.b16 %v597
      %v1826 = vunpack.c.h.b16 %v597
      %v1827 = vunpack.c.l.b16 %v598
      %v1828 = vunpack.c.h.b16 %v598
      %v1829 = vunpack.c.l.b16 %v599
      %v1830 = vunpack.c.h.b16 %v599
      %v1831 = vunpack.c.l.b16 %v600
      %v1832 = vunpack.c.h.b16 %v600
      %v1833 = vunpack.c.l.b16 %v601
      %v1834 = vunpack.c.h.b16 %v601
      %v1835 = vunpack.c.l.b16 %v602
      %v1836 = vunpack.c.h.b16 %v602
      %v1837 = vunpack.c.l.b16 %v603
      %v1838 = vunpack.c.h.b16 %v603
      %v1839 = vunpack.c.l.b16 %v604
      %v1840 = vunpack.c.h.b16 %v604
      %v1841 = vunpack.c.l.b16 %v605
      %v1842 = vunpack.c.h.b16 %v605
      %v1843 = vunpack.c.l.b16 %v606
      %v1844 = vunpack.c.h.b16 %v606
      %v1845 = vunpack.c.l.b16 %v607
      %v1846 = vunpack.c.h.b16 %v607
      %v1847 = vunpack.c.l.b16 %v608
      %v1848 = vunpack.c.h.b16 %v608
      %v1849 = vunpack.c.l.b16 %v609
      %v1850 = vunpack.c.h.b16 %v609
      %v1851 = vunpack.c.l.b16 %v610
      %v1852 = vunpack.c.h.b16 %v610
      %v1853 = vunpack.c.l.b16 %v611
      %v1854 = vunpack.c.h.b16 %v611
      %v1855 = vunpack.c.l.b16 %v612
      %v1856 = vunpack.c.h.b16 %v612
      %v1857 = vunpack.c.l.b16 %v613
      %v1858 = vunpack.c.h.b16 %v613
      %v1859 = vunpack.c.l.b16 %v614
      %v1860 = vunpack.c.h.b16 %v614
      %v1861 = vunpack.c.l.b16 %v615
      %v1862 = vunpack.c.h.b16 %v615
      %v1863 = vunpack.c.l.b16 %v616
      %v1864 = vunpack.c.h.b16 %v616
      %v1865 = vunpack.c.l.b16 %v617
      %v1866 = vunpack.c.h.b16 %v617
      %v1867 = vunpack.c.l.b16 %v618
      %v1868 = vunpack.c.h.b16 %v618
      %v1869 = vunpack.c.l.b16 %v619
      %v1870 = vunpack.c.h.b16 %v619
      %v1871 = vunpack.c.l.b16 %v620
      %v1872 = vunpack.c.h.b16 %v620
      %v1873 = vunpack.c.l.b16 %v621
      %v1874 = vunpack.c.h.b16 %v621
      %v1875 = vunpack.c.l.b16 %v622
      %v1876 = vunpack.c.h.b16 %v622
      %v1877 = vunpack.c.l.b16 %v623
      %v1878 = vunpack.c.h.b16 %v623
      %v1879 = vunpack.c.l.b16 %v624
      %v1880 = vunpack.c.h.b16 %v624
      %v1881 = vunpack.c.l.b16 %v625
      %v1882 = vunpack.c.h.b16 %v625
      %v1883 = vunpack.c.l.b16 %v626
      %v1884 = vunpack.c.h.b16 %v626
      %v1885 = vunpack.c.l.b16 %v627
      %v1886 = vunpack.c.h.b16 %v627
      %v1887 = vunpack.c.l.b16 %v628
      %v1888 = vunpack.c.h.b16 %v628
      %v1889 = vunpack.c.l.b16 %v629
      %v1890 = vunpack.c.h.b16 %v629
      %v1891 = vunpack.c.l.b16 %v630
      %v1892 = vunpack.c.h.b16 %v630
      %v1893 = vunpack.c.l.b16 %v631
      %v1894 = vunpack.c.h.b16 %v631
      %v1895 = vunpack.c.l.b16 %v632
      %v1896 = vunpack.c.h.b16 %v632
      %v1897 = vunpack.c.l.b16 %v633
      %v1898 = vunpack.c.h.b16 %v633
      %v1899 = vunpack.c.l.b16 %v634
      %v1900 = vunpack.c.h.b16 %v634
      %v1901 = vunpack.c.l.b16 %v635
      %v1902 = vunpack.c.h.b16 %v635
      %v1903 = vunpack.c.l.b16 %v636
      %v1904 = vunpack.c.h.b16 %v636
      %v1905 = vunpack.c.l.b16 %v637
      %v1906 = vunpack.c.h.b16 %v637
      %v1907 = vunpack.c.l.b16 %v638
      %v1908 = vunpack.c.h.b16 %v638
      %v1909 = vunpack.c.l.b16 %v639
      %v1910 = vunpack.c.h.b16 %v639
      %v1911 = vunpack.c.l.b16 %v640
      %v1912 = vunpack.c.h.b16 %v640
      %v1913 = vunpack.c.l.b16 %v641
      %v1914 = vunpack.c.h.b16 %v641
      %v1915 = vunpack.c.l.b16 %v642
      %v1916 = vunpack.c.h.b16 %v642
      %v1917 = vunpack.c.l.b16 %v643
      %v1918 = vunpack.c.h.b16 %v643
      %v1919 = vunpack.c.l.b16 %v644
      %v1920 = vunpack.c.h.b16 %v644
      %v1921 = vunpack.c.l.b16 %v645
      %v1922 = vunpack.c.h.b16 %v645
      %v1923 = vunpack.c.l.b16 %v646
      %v1924 = vunpack.c.h.b16 %v646
      %v1925 = vunpack.c.l.b16 %v647
      %v1926 = vunpack.c.h.b16 %v647
      %v1927 = vunpack.c.l.b16 %v648
      %v1928 = vunpack.c.h.b16 %v648
      %v1929 = vunpack.c.l.b16 %v649
      %v1930 = vunpack.c.h.b16 %v649
      %v1931 = vunpack.c.l.b16 %v650
      %v1932 = vunpack.c.h.b16 %v650
      %v1933 = vunpack.c.l.b16 %v651
      %v1934 = vunpack.c.h.b16 %v651
      %v1935 = vunpack.c.l.b16 %v652
      %v1936 = vunpack.c.h.b16 %v652
      %v1937 = vunpack.c.l.b16 %v653
      %v1938 = vunpack.c.h.b16 %v653
      %v1939 = vunpack.c.l.b16 %v654
      %v1940 = vunpack.c.h.b16 %v654
      %v1941 = vunpack.c.l.b16 %v655
      %v1942 = vunpack.c.h.b16 %v655
      %v1943 = vunpack.c.l.b16 %v656
      %v1944 = vunpack.c.h.b16 %v656
      %v1945 = vunpack.c.l.b16 %v657
      %v1946 = vunpack.c.h.b16 %v657
      %v1947 = vunpack.c.l.b16 %v658
      %v1948 = vunpack.c.h.b16 %v658
      %v1949 = vunpack.c.l.b16 %v659
      %v1950 = vunpack.c.h.b16 %v659
      %v1951 = vunpack.c.l.b16 %v660
      %v1952 = vunpack.c.h.b16 %v660
      %v1953 = vunpack.c.l.b16 %v661
      %v1954 = vunpack.c.h.b16 %v661
      %v1955 = vunpack.c.l.b16 %v662
      %v1956 = vunpack.c.h.b16 %v662
      %v1957 = vunpack.c.l.b16 %v663
      %v1958 = vunpack.c.h.b16 %v663
      %v1959 = vunpack.c.l.b16 %v664
      %v1960 = vunpack.c.h.b16 %v664
      %v1961 = vunpack.c.l.b16 %v665
      %v1962 = vunpack.c.h.b16 %v665
      %v1963 = vunpack.c.l.b16 %v666
      %v1964 = vunpack.c.h.b16 %v666
      %v1965 = vunpack.c.l.b16 %v667
      %v1966 = vunpack.c.h.b16 %v667
      %v1967 = vunpack.c.l.b16 %v668
      %v1968 = vunpack.c.h.b16 %v668
      %v1969 = vunpack.c.l.b16 %v669
      %v1970 = vunpack.c.h.b16 %v669
      %v1971 = vunpack.c.l.b16 %v670
      %v1972 = vunpack.c.h.b16 %v670
      %v1973 = vpack.c.b16 %v1367, %v1365
      %v1974 = vpack.c.b16 %v1368, %v1366
      %v1975 = vpack.c.b16 %v1371, %v1369
      %v1976 = vpack.c.b16 %v1372, %v1370
      %v1977 = vpack.c.b16 %v1375, %v1373
      %v1978 = vpack.c.b16 %v1376, %v1374
      %v1979 = vpack.c.b16 %v1379, %v1377
      %v1980 = vpack.c.b16 %v1380, %v1378
      %v1981 = vpack.c.b16 %v1383, %v1381
      %v1982 = vpack.c.b16 %v1384, %v1382
      %v1983 = vpack.c.b16 %v1387, %v1385
      %v1984 = vpack.c.b16 %v1388, %v1386
      %v1985 = vpack.c.b16 %v1391, %v1389
      %v1986 = vpack.c.b16 %v1392, %v1390
      %v1987 = vpack.c.b16 %v1395, %v1393
      %v1988 = vpack.c.b16 %v1396, %v1394
      %v1989 = vpack.c.b16 %v1399, %v1397
      %v1990 = vpack.c.b16 %v1400, %v1398
      %v1991 = vpack.c.b16 %v1403, %v1401
      %v1992 = vpack.c.b16 %v1404, %v1402
      %v1993 = vpack.c.b16 %v1407, %v1405
      %v1994 = vpack.c.b16 %v1408, %v1406
      %v1995 = vpack.c.b16 %v1411, %v1409
      %v1996 = vpack.c.b16 %v1412, %v1410
      %v1997 = vpack.c.b16 %v1415, %v1413
      %v1998 = vpack.c.b16 %v1416, %v1414
      %v1999 = vpack.c.b16 %v1419, %v1417
      %v2000 = vpack.c.b16 %v1420, %v1418
      %v2001 = vpack.c.b16 %v1423, %v1421
      %v2002 = vpack.c.b16 %v1424, %v1422
      %v2003 = vpack.c.b16 %v1427, %v1425
      %v2004 = vpack.c.b16 %v1428, %v1426
      %v2005 = vpack.c.b16 %v1431, %v1429
      %v2006 = vpack.c.b16 %v1432, %v1430
      %v2007 = vpack.c.b16 %v1435, %v1433
      %v2008 = vpack.c.b16 %v1436, %v1434
      %v2009 = vpack.c.b16 %v1439, %v1437
      %v2010 = vpack.c.b16 %v1440, %v1438
      %v2011 = vpack.c.b16 %v1443, %v1441
      %v2012 = vpack.c.b16 %v1444, %v1442
      %v2013 = vpack.c.b16 %v1447, %v1445
      %v2014 = vpack.c.b16 %v1448, %v1446
      %v2015 = vpack.c.b16 %v1451, %v1449
      %v2016 = vpack.c.b16 %v1452, %v1450
      %v2017 = vpack.c.b16 %v1455, %v1453
      %v2018 = vpack.c.b16 %v1456, %v1454
      %v2019 = vpack.c.b16 %v1459, %v1457
      %v2020 = vpack.c.b16 %v1460, %v1458
      %v2021 = vpack.c.b16 %v1463, %v1461
      %v2022 = vpack.c.b16 %v1464, %v1462
      %v2023 = vpack.c.b16 %v1467, %v1465
      %v2024 = vpack.c.b16 %v1468, %v1466
      %v2025 = vpack.c.b16 %v1471, %v1469
      %v2026 = vpack.c.b16 %v1472, %v1470
      %v2027 = vpack.c.b16 %v1475, %v1473
      %v2028 = vpack.c.b16 %v1476, %v1474
      %v2029 = vpack.c.b16 %v1479, %v1477
      %v2030 = vpack.c.b16 %v1480, %v1478
      %v2031 = vpack.c.b16 %v1483, %v1481
      %v2032 = vpack.c.b16 %v1484, %v1482
      %v2033 = vpack.c.b16 %v1487, %v1485
      %v2034 = vpack.c.b16 %v1488, %v1486
      %v2035 = vpack.c.b16 %v1491, %v1489
      %v2036 = vpack.c.b16 %v1492, %v1490
      %v2037 = vpack.c.b16 %v1495, %v1493
      %v2038 = vpack.c.b16 %v1496, %v1494
      %v2039 = vpack.c.b16 %v1499, %v1497
      %v2040 = vpack.c.b16 %v1500, %v1498
      %v2041 = vpack.c.b16 %v1503, %v1501
      %v2042 = vpack.c.b16 %v1504, %v1502
      %v2043 = vpack.c.b16 %v1507, %v1505
      %v2044 = vpack.c.b16 %v1508, %v1506
      %v2045 = vpack.c.b16 %v1511, %v1509
      %v2046 = vpack.c.b16 %v1512, %v1510
      %v2047 = vpack.c.b16 %v1515, %v1513
      %v2048 = vpack.c.b16 %v1516, %v1514
      %v2049 = vpack.c.b16 %v1519, %v1517
      %v2050 = vpack.c.b16 %v1520, %v1518
      %v2051 = vpack.c.b16 %v1523, %v1521
      %v2052 = vpack.c.b16 %v1524, %v1522
      %v2053 = vpack.c.b16 %v1527, %v1525
      %v2054 = vpack.c.b16 %v1528, %v1526
      %v2055 = vpack.c.b16 %v1531, %v1529
      %v2056 = vpack.c.b16 %v1532, %v1530
      %v2057 = vpack.c.b16 %v1535, %v1533
      %v2058 = vpack.c.b16 %v1536, %v1534
      %v2059 = vpack.c.b16 %v1539, %v1537
      %v2060 = vpack.c.b16 %v1540, %v1538
      %v2061 = vpack.c.b16 %v1543, %v1541
      %v2062 = vpack.c.b16 %v1544, %v1542
      %v2063 = vpack.c.b16 %v1547, %v1545
      %v2064 = vpack.c.b16 %v1548, %v1546
      %v2065 = vpack.c.b16 %v1551, %v1549
      %v2066 = vpack.c.b16 %v1552, %v1550
      %v2067 = vpack.c.b16 %v1555, %v1553
      %v2068 = vpack.c.b16 %v1556, %v1554
      %v2069 = vpack.c.b16 %v1559, %v1557
      %v2070 = vpack.c.b16 %v1560, %v1558
      %v2071 = vpack.c.b16 %v1563, %v1561
      %v2072 = vpack.c.b16 %v1564, %v1562
      %v2073 = vpack.c.b16 %v1567, %v1565
      %v2074 = vpack.c.b16 %v1568, %v1566
      %v2075 = vpack.c.b16 %v1571, %v1569
      %v2076 = vpack.c.b16 %v1572, %v1570
      %v2077 = vpack.c.b16 %v1575, %v1573
      %v2078 = vpack.c.b16 %v1576, %v1574
      %v2079 = vpack.c.b16 %v1579, %v1577
      %v2080 = vpack.c.b16 %v1580, %v1578
      %v2081 = vpack.c.b16 %v1583, %v1581
      %v2082 = vpack.c.b16 %v1584, %v1582
      %v2083 = vpack.c.b16 %v1587, %v1585
      %v2084 = vpack.c.b16 %v1588, %v1586
      %v2085 = vpack.c.b16 %v1591, %v1589
      %v2086 = vpack.c.b16 %v1592, %v1590
      %v2087 = vpack.c.b16 %v1595, %v1593
      %v2088 = vpack.c.b16 %v1596, %v1594
      %v2089 = vpack.c.b16 %v1599, %v1597
      %v2090 = vpack.c.b16 %v1600, %v1598
      %v2091 = vpack.c.b16 %v1603, %v1601
      %v2092 = vpack.c.b16 %v1604, %v1602
      %v2093 = vpack.c.b16 %v1607, %v1605
      %v2094 = vpack.c.b16 %v1608, %v1606
      %v2095 = vpack.c.b16 %v1611, %v1609
      %v2096 = vpack.c.b16 %v1612, %v1610
      %v2097 = vpack.c.b16 %v1615, %v1613
      %v2098 = vpack.c.b16 %v1616, %v1614
      %v2099 = vpack.c.b16 %v1619, %v1617
      %v2100 = vpack.c.b16 %v1620, %v1618
      %v2101 = vpack.c.b16 %v1623, %v1621
      %v2102 = vpack.c.b16 %v1624, %v1622
      %v2103 = vpack.c.b16 %v1627, %v1625
      %v2104 = vpack.c.b16 %v1628, %v1626
      %v2105 = vpack.c.b16 %v1631, %v1629
      %v2106 = vpack.c.b16 %v1632, %v1630
      %v2107 = vpack.c.b16 %v1635, %v1633
      %v2108 = vpack.c.b16 %v1636, %v1634
      %v2109 = vpack.c.b16 %v1639, %v1637
      %v2110 = vpack.c.b16 %v1640, %v1638
      %v2111 = vpack.c.b16 %v1643, %v1641
      %v2112 = vpack.c.b16 %v1644, %v1642
      %v2113 = vpack.c.b16 %v1647, %v1645
      %v2114 = vpack.c.b16 %v1648, %v1646
      %v2115 = vpack.c.b16 %v1651, %v1649
      %v2116 = vpack.c.b16 %v1652, %v1650
      %v2117 = vpack.c.b16 %v1655, %v1653
      %v2118 = vpack.c.b16 %v1656, %v1654
      %v2119 = vpack.c.b16 %v1659, %v1657
      %v2120 = vpack.c.b16 %v1660, %v1658
      %v2121 = vpack.c.b16 %v1663, %v1661
      %v2122 = vpack.c.b16 %v1664, %v1662
      %v2123 = vpack.c.b16 %v1667, %v1665
      %v2124 = vpack.c.b16 %v1668, %v1666
      %v2125 = vpack.c.b16 %v1671, %v1669
      %v2126 = vpack.c.b16 %v1672, %v1670
      %v2127 = vpack.c.b16 %v1675, %v1673
      %v2128 = vpack.c.b16 %v1676, %v1674
      %v2129 = vpack.c.b16 %v1679, %v1677
      %v2130 = vpack.c.b16 %v1680, %v1678
      %v2131 = vpack.c.b16 %v1683, %v1681
      %v2132 = vpack.c.b16 %v1684, %v1682
      %v2133 = vpack.c.b16 %v1687, %v1685
      %v2134 = vpack.c.b16 %v1688, %v1686
      %v2135 = vpack.c.b16 %v1691, %v1689
      %v2136 = vpack.c.b16 %v1692, %v1690
      %v2137 = vpack.c.b16 %v1695, %v1693
      %v2138 = vpack.c.b16 %v1696, %v1694
      %v2139 = vpack.c.b16 %v1699, %v1697
      %v2140 = vpack.c.b16 %v1700, %v1698
      %v2141 = vpack.c.b16 %v1703, %v1701
      %v2142 = vpack.c.b16 %v1704, %v1702
      %v2143 = vpack.c.b16 %v1707, %v1705
      %v2144 = vpack.c.b16 %v1708, %v1706
      %v2145 = vpack.c.b16 %v1711, %v1709
      %v2146 = vpack.c.b16 %v1712, %v1710
      %v2147 = vpack.c.b16 %v1715, %v1713
      %v2148 = vpack.c.b16 %v1716, %v1714
      %v2149 = vpack.c.b16 %v1719, %v1717
      %v2150 = vpack.c.b16 %v1720, %v1718
      %v2151 = vpack.c.b16 %v1723, %v1721
      %v2152 = vpack.c.b16 %v1724, %v1722
      %v2153 = vpack.c.b16 %v1727, %v1725
      %v2154 = vpack.c.b16 %v1728, %v1726
      %v2155 = vpack.c.b16 %v1731, %v1729
      %v2156 = vpack.c.b16 %v1732, %v1730
      %v2157 = vpack.c.b16 %v1735, %v1733
      %v2158 = vpack.c.b16 %v1736, %v1734
      %v2159 = vpack.c.b16 %v1739, %v1737
      %v2160 = vpack.c.b16 %v1740, %v1738
      %v2161 = vpack.c.b16 %v1743, %v1741
      %v2162 = vpack.c.b16 %v1744, %v1742
      %v2163 = vpack.c.b16 %v1747, %v1745
      %v2164 = vpack.c.b16 %v1748, %v1746
      %v2165 = vpack.c.b16 %v1751, %v1749
      %v2166 = vpack.c.b16 %v1752, %v1750
      %v2167 = vpack.c.b16 %v1755, %v1753
      %v2168 = vpack.c.b16 %v1756, %v1754
      %v2169 = vpack.c.b16 %v1759, %v1757
      %v2170 = vpack.c.b16 %v1760, %v1758
      %v2171 = vpack.c.b16 %v1763, %v1761
      %v2172 = vpack.c.b16 %v1764, %v1762
      %v2173 = vpack.c.b16 %v1767, %v1765
      %v2174 = vpack.c.b16 %v1768, %v1766
      %v2175 = vpack.c.b16 %v1771, %v1769
      %v2176 = vpack.c.b16 %v1772, %v1770
      %v2177 = vpack.c.b16 %v1775, %v1773
      %v2178 = vpack.c.b16 %v1776, %v1774
      %v2179 = vpack.c.b16 %v1779, %v1777
      %v2180 = vpack.c.b16 %v1780, %v1778
      %v2181 = vpack.c.b16 %v1783, %v1781
      %v2182 = vpack.c.b16 %v1784, %v1782
      %v2183 = vpack.c.b16 %v1787, %v1785
      %v2184 = vpack.c.b16 %v1788, %v1786
      %v2185 = vpack.c.b16 %v1791, %v1789
      %v2186 = vpack.c.b16 %v1792, %v1790
      %v2187 = vpack.c.b16 %v1795, %v1793
      %v2188 = vpack.c.b16 %v1796, %v1794
      %v2189 = vpack.c.b16 %v1799, %v1797
      %v2190 = vpack.c.b16 %v1800, %v1798
      %v2191 = vpack.c.b16 %v1803, %v1801
      %v2192 = vpack.c.b16 %v1804, %v1802
      %v2193 = vpack.c.b16 %v1807, %v1805
      %v2194 = vpack.c.b16 %v1808, %v1806
      %v2195 = vpack.c.b16 %v1811, %v1809
      %v2196 = vpack.c.b16 %v1812, %v1810
      %v2197 = vpack.c.b16 %v1815, %v1813
      %v2198 = vpack.c.b16 %v1816, %v1814
      %v2199 = vpack.c.b16 %v1819, %v1817
      %v2200 = vpack.c.b16 %v1820, %v1818
      %v2201 = vpack.c.b16 %v1823, %v1821
      %v2202 = vpack.c.b16 %v1824, %v1822
      %v2203 = vpack.c.b16 %v1827, %v1825
      %v2204 = vpack.c.b16 %v1828, %v1826
      %v2205 = vpack.c.b16 %v1831, %v1829
      %v2206 = vpack.c.b16 %v1832, %v1830
      %v2207 = vpack.c.b16 %v1835, %v1833
      %v2208 = vpack.c.b16 %v1836, %v1834
      %v2209 = vpack.c.b16 %v1839, %v1837
      %v2210 = vpack.c.b16 %v1840, %v1838
      %v2211 = vpack.c.b16 %v1843, %v1841
      %v2212 = vpack.c.b16 %v1844, %v1842
      %v2213 = vpack.c.b16 %v1847, %v1845
      %v2214 = vpack.c.b16 %v1848, %v1846
      %v2215 = vpack.c.b16 %v1851, %v1849
      %v2216 = vpack.c.b16 %v1852, %v1850
      %v2217 = vpack.c.b16 %v1855, %v1853
      %v2218 = vpack.c.b16 %v1856, %v1854
      %v2219 = vpack.c.b16 %v1859, %v1857
      %v2220 = vpack.c.b16 %v1860, %v1858
      %v2221 = vpack.c.b16 %v1863, %v1861
      %v2222 = vpack.c.b16 %v1864, %v1862
      %v2223 = vpack.c.b16 %v1867, %v1865
      %v2224 = vpack.c.b16 %v1868, %v1866
      %v2225 = vpack.c.b16 %v1871, %v1869
      %v2226 = vpack.c.b16 %v1872, %v1870
      %v2227 = vpack.c.b16 %v1875, %v1873
      %v2228 = vpack.c.b16 %v1876, %v1874
      %v2229 = vpack.c.b16 %v1879, %v1877
      %v2230 = vpack.c.b16 %v1880, %v1878
      %v2231 = vpack.c.b16 %v1883, %v1881
      %v2232 = vpack.c.b16 %v1884, %v1882
      %v2233 = vpack.c.b16 %v1887, %v1885
      %v2234 = vpack.c.b16 %v1888, %v1886
      %v2235 = vpack.c.b16 %v1891, %v1889
      %v2236 = vpack.c.b16 %v1892, %v1890
      %v2237 = vpack.c.b16 %v1895, %v1893
      %v2238 = vpack.c.b16 %v1896, %v1894
      %v2239 = vpack.c.b16 %v1899, %v1897
      %v2240 = vpack.c.b16 %v1900, %v1898
      %v2241 = vpack.c.b16 %v1903, %v1901
      %v2242 = vpack.c.b16 %v1904, %v1902
      %v2243 = vpack.c.b16 %v1907, %v1905
      %v2244 = vpack.c.b16 %v1908, %v1906
      %v2245 = vpack.c.b16 %v1911, %v1909
      %v2246 = vpack.c.b16 %v1912, %v1910
      %v2247 = vpack.c.b16 %v1915, %v1913
      %v2248 = vpack.c.b16 %v1916, %v1914
      %v2249 = vpack.c.b16 %v1919, %v1917
      %v2250 = vpack.c.b16 %v1920, %v1918
      %v2251 = vpack.c.b16 %v1923, %v1921
      %v2252 = vpack.c.b16 %v1924, %v1922
      %v2253 = vpack.c.b16 %v1927, %v1925
      %v2254 = vpack.c.b16 %v1928, %v1926
      %v2255 = vpack.c.b16 %v1931, %v1929
      %v2256 = vpack.c.b16 %v1932, %v1930
      %v2257 = vpack.c.b16 %v1935, %v1933
      %v2258 = vpack.c.b16 %v1936, %v1934
      %v2259 = vpack.c.b16 %v1939, %v1937
      %v2260 = vpack.c.b16 %v1940, %v1938
      %v2261 = vpack.c.b16 %v1943, %v1941
      %v2262 = vpack.c.b16 %v1944, %v1942
      %v2263 = vpack.c.b16 %v1947, %v1945
      %v2264 = vpack.c.b16 %v1948, %v1946
      %v2265 = vpack.c.b16 %v1951, %v1949
      %v2266 = vpack.c.b16 %v1952, %v1950
      %v2267 = vpack.c.b16 %v1955, %v1953
      %v2268 = vpack.c.b16 %v1956, %v1954
      %v2269 = vpack.c.b16 %v1959, %v1957
      %v2270 = vpack.c.b16 %v1960, %v1958
      %v2271 = vpack.c.b16 %v1963, %v1961
      %v2272 = vpack.c.b16 %v1964, %v1962
      %v2273 = vpack.c.b16 %v1967, %v1965
      %v2274 = vpack.c.b16 %v1968, %v1966
      %v2275 = vpack.c.b16 %v1971, %v1969
      %v2276 = vpack.c.b16 %v1972, %v1970
      %2581 = vmatpush.bf16.msra.mxu0 %v1987
      %2582 = vmatpush.bf16.msra.mxu0 %v1985
      %2583 = vmatpush.bf16.msra.mxu0 %v1983
      %2584 = vmatpush.bf16.msra.mxu0 %v1981
      %2585 = vmatpush.bf16.msra.mxu0 %v1979
      %2586 = vmatpush.bf16.msra.mxu0 %v1977
      %2587 = vmatpush.bf16.msra.mxu0 %v1975
      %2588 = vmatpush.bf16.msra.mxu0 %v1973
      %2589 = vmatmul.bf16.gmra.mxu0 %v909
      %v2590 = vpop.f32.mrf.mxu0
      %v2591 = vadd.f32 %v673, %v2590
      %v2592 = vpop.f32.mrf.mxu0
      %v2593 = vadd.f32 %v673, %v2592
      %2594 = vmatmul.bf16.gmra.mxu0 %v928
      %v2595 = vpop.f32.mrf.mxu0
      %v2596 = vadd.f32 %v673, %v2595
      %v2597 = vpop.f32.mrf.mxu0
      %v2598 = vadd.f32 %v673, %v2597
      %2599 = vmatmul.bf16.gmra.mxu0 %v947
      %v2600 = vpop.f32.mrf.mxu0
      %v2601 = vadd.f32 %v673, %v2600
      %v2602 = vpop.f32.mrf.mxu0
      %v2603 = vadd.f32 %v673, %v2602
      %2604 = vmatmul.bf16.gmra.mxu0 %v966
      %v2605 = vpop.f32.mrf.mxu0
      %v2606 = vadd.f32 %v673, %v2605
      %v2607 = vpop.f32.mrf.mxu0
      %v2608 = vadd.f32 %v673, %v2607
      %2609 = vdwg.mxu0
      %2610 = vmatpush.bf16.msra.mxu0 %v2003
      %2611 = vmatpush.bf16.msra.mxu0 %v2001
      %2612 = vmatpush.bf16.msra.mxu0 %v1999
      %2613 = vmatpush.bf16.msra.mxu0 %v1997
      %2614 = vmatpush.bf16.msra.mxu0 %v1995
      %2615 = vmatpush.bf16.msra.mxu0 %v1993
      %2616 = vmatpush.bf16.msra.mxu0 %v1991
      %2617 = vmatpush.bf16.msra.mxu0 %v1989
      %2618 = vmatmul.bf16.gmra.mxu0 %v910
      %v2619 = vpop.f32.mrf.mxu0
      %v2620 = vadd.f32 %v2591, %v2619
      %v2621 = vpop.f32.mrf.mxu0
      %v2622 = vadd.f32 %v2593, %v2621
      %2623 = vmatmul.bf16.gmra.mxu0 %v929
      %v2624 = vpop.f32.mrf.mxu0
      %v2625 = vadd.f32 %v2596, %v2624
      %v2626 = vpop.f32.mrf.mxu0
      %v2627 = vadd.f32 %v2598, %v2626
      %2628 = vmatmul.bf16.gmra.mxu0 %v948
      %v2629 = vpop.f32.mrf.mxu0
      %v2630 = vadd.f32 %v2601, %v2629
      %v2631 = vpop.f32.mrf.mxu0
      %v2632 = vadd.f32 %v2603, %v2631
      %2633 = vmatmul.bf16.gmra.mxu0 %v967
      %v2634 = vpop.f32.mrf.mxu0
      %v2635 = vadd.f32 %v2606, %v2634
      %v2636 = vpop.f32.mrf.mxu0
      %v2637 = vadd.f32 %v2608, %v2636
      %2638 = vdwg.mxu0
      %2639 = vmatpush.bf16.msra.mxu0 %v2019
      %2640 = vmatpush.bf16.msra.mxu0 %v2017
      %2641 = vmatpush.bf16.msra.mxu0 %v2015
      %2642 = vmatpush.bf16.msra.mxu0 %v2013
      %2643 = vmatpush.bf16.msra.mxu0 %v2011
      %2644 = vmatpush.bf16.msra.mxu0 %v2009
      %2645 = vmatpush.bf16.msra.mxu0 %v2007
      %2646 = vmatpush.bf16.msra.mxu0 %v2005
      %2647 = vmatmul.bf16.gmra.mxu0 %v911
      %v2648 = vpop.f32.mrf.mxu0
      %v2649 = vadd.f32 %v2620, %v2648
      %v2650 = vpop.f32.mrf.mxu0
      %v2651 = vadd.f32 %v2622, %v2650
      %2652 = vmatmul.bf16.gmra.mxu0 %v930
      %v2653 = vpop.f32.mrf.mxu0
      %v2654 = vadd.f32 %v2625, %v2653
      %v2655 = vpop.f32.mrf.mxu0
      %v2656 = vadd.f32 %v2627, %v2655
      %2657 = vmatmul.bf16.gmra.mxu0 %v949
      %v2658 = vpop.f32.mrf.mxu0
      %v2659 = vadd.f32 %v2630, %v2658
      %v2660 = vpop.f32.mrf.mxu0
      %v2661 = vadd.f32 %v2632, %v2660
      %2662 = vmatmul.bf16.gmra.mxu0 %v968
      %v2663 = vpop.f32.mrf.mxu0
      %v2664 = vadd.f32 %v2635, %v2663
      %v2665 = vpop.f32.mrf.mxu0
      %v2666 = vadd.f32 %v2637, %v2665
      %2667 = vdwg.mxu0
      %2668 = vmatpush.bf16.msra.mxu0 %v2035
      %2669 = vmatpush.bf16.msra.mxu0 %v2033
      %2670 = vmatpush.bf16.msra.mxu0 %v2031
      %2671 = vmatpush.bf16.msra.mxu0 %v2029
      %2672 = vmatpush.bf16.msra.mxu0 %v2027
      %2673 = vmatpush.bf16.msra.mxu0 %v2025
      %2674 = vmatpush.bf16.msra.mxu0 %v2023
      %2675 = vmatpush.bf16.msra.mxu0 %v2021
      %2676 = vmatmul.bf16.gmra.mxu0 %v912
      %v2677 = vpop.f32.mrf.mxu0
      %v2678 = vadd.f32 %v2649, %v2677
      %v2679 = vpop.f32.mrf.mxu0
      %v2680 = vadd.f32 %v2651, %v2679
      %2681 = vmatmul.bf16.gmra.mxu0 %v931
      %v2682 = vpop.f32.mrf.mxu0
      %v2683 = vadd.f32 %v2654, %v2682
      %v2684 = vpop.f32.mrf.mxu0
      %v2685 = vadd.f32 %v2656, %v2684
      %2686 = vmatmul.bf16.gmra.mxu0 %v950
      %v2687 = vpop.f32.mrf.mxu0
      %v2688 = vadd.f32 %v2659, %v2687
      %v2689 = vpop.f32.mrf.mxu0
      %v2690 = vadd.f32 %v2661, %v2689
      %2691 = vmatmul.bf16.gmra.mxu0 %v969
      %v2692 = vpop.f32.mrf.mxu0
      %v2693 = vadd.f32 %v2664, %v2692
      %v2694 = vpop.f32.mrf.mxu0
      %v2695 = vadd.f32 %v2666, %v2694
      %2696 = vdwg.mxu0
      %2697 = vmatpush.bf16.msra.mxu0 %v2051
      %2698 = vmatpush.bf16.msra.mxu0 %v2049
      %2699 = vmatpush.bf16.msra.mxu0 %v2047
      %2700 = vmatpush.bf16.msra.mxu0 %v2045
      %2701 = vmatpush.bf16.msra.mxu0 %v2043
      %2702 = vmatpush.bf16.msra.mxu0 %v2041
      %2703 = vmatpush.bf16.msra.mxu0 %v2039
      %2704 = vmatpush.bf16.msra.mxu0 %v2037
      %2705 = vmatmul.bf16.gmra.mxu0 %v913
      %v2706 = vpop.f32.mrf.mxu0
      %v2707 = vadd.f32 %v2678, %v2706
      %v2708 = vpop.f32.mrf.mxu0
      %v2709 = vadd.f32 %v2680, %v2708
      %2710 = vmatmul.bf16.gmra.mxu0 %v932
      %v2711 = vpop.f32.mrf.mxu0
      %v2712 = vadd.f32 %v2683, %v2711
      %v2713 = vpop.f32.mrf.mxu0
      %v2714 = vadd.f32 %v2685, %v2713
      %2715 = vmatmul.bf16.gmra.mxu0 %v951
      %v2716 = vpop.f32.mrf.mxu0
      %v2717 = vadd.f32 %v2688, %v2716
      %v2718 = vpop.f32.mrf.mxu0
      %v2719 = vadd.f32 %v2690, %v2718
      %2720 = vmatmul.bf16.gmra.mxu0 %v970
      %v2721 = vpop.f32.mrf.mxu0
      %v2722 = vadd.f32 %v2693, %v2721
      %v2723 = vpop.f32.mrf.mxu0
      %v2724 = vadd.f32 %v2695, %v2723
      %2725 = vdwg.mxu0
      %2726 = vmatpush.bf16.msra.mxu0 %v2067
      %2727 = vmatpush.bf16.msra.mxu0 %v2065
      %2728 = vmatpush.bf16.msra.mxu0 %v2063
      %2729 = vmatpush.bf16.msra.mxu0 %v2061
      %2730 = vmatpush.bf16.msra.mxu0 %v2059
      %2731 = vmatpush.bf16.msra.mxu0 %v2057
      %2732 = vmatpush.bf16.msra.mxu0 %v2055
      %2733 = vmatpush.bf16.msra.mxu0 %v2053
      %2734 = vmatmul.bf16.gmra.mxu0 %v914
      %v2735 = vpop.f32.mrf.mxu0
      %v2736 = vadd.f32 %v2707, %v2735
      %v2737 = vpop.f32.mrf.mxu0
      %v2738 = vadd.f32 %v2709, %v2737
      %2739 = vmatmul.bf16.gmra.mxu0 %v933
      %v2740 = vpop.f32.mrf.mxu0
      %v2741 = vadd.f32 %v2712, %v2740
      %v2742 = vpop.f32.mrf.mxu0
      %v2743 = vadd.f32 %v2714, %v2742
      %2744 = vmatmul.bf16.gmra.mxu0 %v952
      %v2745 = vpop.f32.mrf.mxu0
      %v2746 = vadd.f32 %v2717, %v2745
      %v2747 = vpop.f32.mrf.mxu0
      %v2748 = vadd.f32 %v2719, %v2747
      %2749 = vmatmul.bf16.gmra.mxu0 %v971
      %v2750 = vpop.f32.mrf.mxu0
      %v2751 = vadd.f32 %v2722, %v2750
      %v2752 = vpop.f32.mrf.mxu0
      %v2753 = vadd.f32 %v2724, %v2752
      %2754 = vdwg.mxu0
      %2755 = vmatpush.bf16.msra.mxu0 %v2083
      %2756 = vmatpush.bf16.msra.mxu0 %v2081
      %2757 = vmatpush.bf16.msra.mxu0 %v2079
      %2758 = vmatpush.bf16.msra.mxu0 %v2077
      %2759 = vmatpush.bf16.msra.mxu0 %v2075
      %2760 = vmatpush.bf16.msra.mxu0 %v2073
      %2761 = vmatpush.bf16.msra.mxu0 %v2071
      %2762 = vmatpush.bf16.msra.mxu0 %v2069
      %2763 = vmatmul.bf16.gmra.mxu0 %v915
      %v2764 = vpop.f32.mrf.mxu0
      %v2765 = vadd.f32 %v2736, %v2764
      %v2766 = vpop.f32.mrf.mxu0
      %v2767 = vadd.f32 %v2738, %v2766
      %2768 = vmatmul.bf16.gmra.mxu0 %v934
      %v2769 = vpop.f32.mrf.mxu0
      %v2770 = vadd.f32 %v2741, %v2769
      %v2771 = vpop.f32.mrf.mxu0
      %v2772 = vadd.f32 %v2743, %v2771
      %2773 = vmatmul.bf16.gmra.mxu0 %v953
      %v2774 = vpop.f32.mrf.mxu0
      %v2775 = vadd.f32 %v2746, %v2774
      %v2776 = vpop.f32.mrf.mxu0
      %v2777 = vadd.f32 %v2748, %v2776
      %2778 = vmatmul.bf16.gmra.mxu0 %v972
      %v2779 = vpop.f32.mrf.mxu0
      %v2780 = vadd.f32 %v2751, %v2779
      %v2781 = vpop.f32.mrf.mxu0
      %v2782 = vadd.f32 %v2753, %v2781
      %2783 = vdwg.mxu0
      %2784 = vmatpush.bf16.msra.mxu0 %v2099
      %2785 = vmatpush.bf16.msra.mxu0 %v2097
      %2786 = vmatpush.bf16.msra.mxu0 %v2095
      %2787 = vmatpush.bf16.msra.mxu0 %v2093
      %2788 = vmatpush.bf16.msra.mxu0 %v2091
      %2789 = vmatpush.bf16.msra.mxu0 %v2089
      %2790 = vmatpush.bf16.msra.mxu0 %v2087
      %2791 = vmatpush.bf16.msra.mxu0 %v2085
      %2792 = vmatmul.bf16.gmra.mxu0 %v916
      %v2793 = vpop.f32.mrf.mxu0
      %v2794 = vadd.f32 %v2765, %v2793
      %v2795 = vpop.f32.mrf.mxu0
      %v2796 = vadd.f32 %v2767, %v2795
      %2797 = vmatmul.bf16.gmra.mxu0 %v935
      %v2798 = vpop.f32.mrf.mxu0
      %v2799 = vadd.f32 %v2770, %v2798
      %v2800 = vpop.f32.mrf.mxu0
      %v2801 = vadd.f32 %v2772, %v2800
      %2802 = vmatmul.bf16.gmra.mxu0 %v954
      %v2803 = vpop.f32.mrf.mxu0
      %v2804 = vadd.f32 %v2775, %v2803
      %v2805 = vpop.f32.mrf.mxu0
      %v2806 = vadd.f32 %v2777, %v2805
      %2807 = vmatmul.bf16.gmra.mxu0 %v973
      %v2808 = vpop.f32.mrf.mxu0
      %v2809 = vadd.f32 %v2780, %v2808
      %v2810 = vpop.f32.mrf.mxu0
      %v2811 = vadd.f32 %v2782, %v2810
      %2812 = vdwg.mxu0
      %2813 = vmatpush.bf16.msra.mxu0 %v2115
      %2814 = vmatpush.bf16.msra.mxu0 %v2113
      %2815 = vmatpush.bf16.msra.mxu0 %v2111
      %2816 = vmatpush.bf16.msra.mxu0 %v2109
      %2817 = vmatpush.bf16.msra.mxu0 %v2107
      %2818 = vmatpush.bf16.msra.mxu0 %v2105
      %2819 = vmatpush.bf16.msra.mxu0 %v2103
      %2820 = vmatpush.bf16.msra.mxu0 %v2101
      %2821 = vmatmul.bf16.gmra.mxu0 %v917
      %v2822 = vpop.f32.mrf.mxu0
      %v2823 = vadd.f32 %v2794, %v2822
      %v2824 = vpop.f32.mrf.mxu0
      %v2825 = vadd.f32 %v2796, %v2824
      %2826 = vmatmul.bf16.gmra.mxu0 %v936
      %v2827 = vpop.f32.mrf.mxu0
      %v2828 = vadd.f32 %v2799, %v2827
      %v2829 = vpop.f32.mrf.mxu0
      %v2830 = vadd.f32 %v2801, %v2829
      %2831 = vmatmul.bf16.gmra.mxu0 %v955
      %v2832 = vpop.f32.mrf.mxu0
      %v2833 = vadd.f32 %v2804, %v2832
      %v2834 = vpop.f32.mrf.mxu0
      %v2835 = vadd.f32 %v2806, %v2834
      %2836 = vmatmul.bf16.gmra.mxu0 %v974
      %v2837 = vpop.f32.mrf.mxu0
      %v2838 = vadd.f32 %v2809, %v2837
      %v2839 = vpop.f32.mrf.mxu0
      %v2840 = vadd.f32 %v2811, %v2839
      %2841 = vdwg.mxu0
      %2842 = vmatpush.bf16.msra.mxu0 %v2131
      %2843 = vmatpush.bf16.msra.mxu0 %v2129
      %2844 = vmatpush.bf16.msra.mxu0 %v2127
      %2845 = vmatpush.bf16.msra.mxu0 %v2125
      %2846 = vmatpush.bf16.msra.mxu0 %v2123
      %2847 = vmatpush.bf16.msra.mxu0 %v2121
      %2848 = vmatpush.bf16.msra.mxu0 %v2119
      %2849 = vmatpush.bf16.msra.mxu0 %v2117
      %2850 = vmatmul.bf16.gmra.mxu0 %v918
      %v2851 = vpop.f32.mrf.mxu0
      %v2852 = vadd.f32 %v2823, %v2851
      %v2853 = vpop.f32.mrf.mxu0
      %v2854 = vadd.f32 %v2825, %v2853
      %2855 = vmatmul.bf16.gmra.mxu0 %v937
      %v2856 = vpop.f32.mrf.mxu0
      %v2857 = vadd.f32 %v2828, %v2856
      %v2858 = vpop.f32.mrf.mxu0
      %v2859 = vadd.f32 %v2830, %v2858
      %2860 = vmatmul.bf16.gmra.mxu0 %v956
      %v2861 = vpop.f32.mrf.mxu0
      %v2862 = vadd.f32 %v2833, %v2861
      %v2863 = vpop.f32.mrf.mxu0
      %v2864 = vadd.f32 %v2835, %v2863
      %2865 = vmatmul.bf16.gmra.mxu0 %v975
      %v2866 = vpop.f32.mrf.mxu0
      %v2867 = vadd.f32 %v2838, %v2866
      %v2868 = vpop.f32.mrf.mxu0
      %v2869 = vadd.f32 %v2840, %v2868
      %2870 = vdwg.mxu0
      %2871 = vmatpush.bf16.msra.mxu0 %v2147
      %2872 = vmatpush.bf16.msra.mxu0 %v2145
      %2873 = vmatpush.bf16.msra.mxu0 %v2143
      %2874 = vmatpush.bf16.msra.mxu0 %v2141
      %2875 = vmatpush.bf16.msra.mxu0 %v2139
      %2876 = vmatpush.bf16.msra.mxu0 %v2137
      %2877 = vmatpush.bf16.msra.mxu0 %v2135
      %2878 = vmatpush.bf16.msra.mxu0 %v2133
      %2879 = vmatmul.bf16.gmra.mxu0 %v919
      %v2880 = vpop.f32.mrf.mxu0
      %v2881 = vadd.f32 %v2852, %v2880
      %v2882 = vpop.f32.mrf.mxu0
      %v2883 = vadd.f32 %v2854, %v2882
      %2884 = vmatmul.bf16.gmra.mxu0 %v938
      %v2885 = vpop.f32.mrf.mxu0
      %v2886 = vadd.f32 %v2857, %v2885
      %v2887 = vpop.f32.mrf.mxu0
      %v2888 = vadd.f32 %v2859, %v2887
      %2889 = vmatmul.bf16.gmra.mxu0 %v957
      %v2890 = vpop.f32.mrf.mxu0
      %v2891 = vadd.f32 %v2862, %v2890
      %v2892 = vpop.f32.mrf.mxu0
      %v2893 = vadd.f32 %v2864, %v2892
      %2894 = vmatmul.bf16.gmra.mxu0 %v976
      %v2895 = vpop.f32.mrf.mxu0
      %v2896 = vadd.f32 %v2867, %v2895
      %v2897 = vpop.f32.mrf.mxu0
      %v2898 = vadd.f32 %v2869, %v2897
      %2899 = vdwg.mxu0
      %2900 = vmatpush.bf16.msra.mxu0 %v2163
      %2901 = vmatpush.bf16.msra.mxu0 %v2161
      %2902 = vmatpush.bf16.msra.mxu0 %v2159
      %2903 = vmatpush.bf16.msra.mxu0 %v2157
      %2904 = vmatpush.bf16.msra.mxu0 %v2155
      %2905 = vmatpush.bf16.msra.mxu0 %v2153
      %2906 = vmatpush.bf16.msra.mxu0 %v2151
      %2907 = vmatpush.bf16.msra.mxu0 %v2149
      %2908 = vmatmul.bf16.gmra.mxu0 %v920
      %v2909 = vpop.f32.mrf.mxu0
      %v2910 = vadd.f32 %v2881, %v2909
      %v2911 = vpop.f32.mrf.mxu0
      %v2912 = vadd.f32 %v2883, %v2911
      %2913 = vmatmul.bf16.gmra.mxu0 %v939
      %v2914 = vpop.f32.mrf.mxu0
      %v2915 = vadd.f32 %v2886, %v2914
      %v2916 = vpop.f32.mrf.mxu0
      %v2917 = vadd.f32 %v2888, %v2916
      %2918 = vmatmul.bf16.gmra.mxu0 %v958
      %v2919 = vpop.f32.mrf.mxu0
      %v2920 = vadd.f32 %v2891, %v2919
      %v2921 = vpop.f32.mrf.mxu0
      %v2922 = vadd.f32 %v2893, %v2921
      %2923 = vmatmul.bf16.gmra.mxu0 %v977
      %v2924 = vpop.f32.mrf.mxu0
      %v2925 = vadd.f32 %v2896, %v2924
      %v2926 = vpop.f32.mrf.mxu0
      %v2927 = vadd.f32 %v2898, %v2926
      %2928 = vdwg.mxu0
      %2929 = vmatpush.bf16.msra.mxu0 %v2179
      %2930 = vmatpush.bf16.msra.mxu0 %v2177
      %2931 = vmatpush.bf16.msra.mxu0 %v2175
      %2932 = vmatpush.bf16.msra.mxu0 %v2173
      %2933 = vmatpush.bf16.msra.mxu0 %v2171
      %2934 = vmatpush.bf16.msra.mxu0 %v2169
      %2935 = vmatpush.bf16.msra.mxu0 %v2167
      %2936 = vmatpush.bf16.msra.mxu0 %v2165
      %2937 = vmatmul.bf16.gmra.mxu0 %v921
      %v2938 = vpop.f32.mrf.mxu0
      %v2939 = vadd.f32 %v2910, %v2938
      %v2940 = vpop.f32.mrf.mxu0
      %v2941 = vadd.f32 %v2912, %v2940
      %2942 = vmatmul.bf16.gmra.mxu0 %v940
      %v2943 = vpop.f32.mrf.mxu0
      %v2944 = vadd.f32 %v2915, %v2943
      %v2945 = vpop.f32.mrf.mxu0
      %v2946 = vadd.f32 %v2917, %v2945
      %2947 = vmatmul.bf16.gmra.mxu0 %v959
      %v2948 = vpop.f32.mrf.mxu0
      %v2949 = vadd.f32 %v2920, %v2948
      %v2950 = vpop.f32.mrf.mxu0
      %v2951 = vadd.f32 %v2922, %v2950
      %2952 = vmatmul.bf16.gmra.mxu0 %v978
      %v2953 = vpop.f32.mrf.mxu0
      %v2954 = vadd.f32 %v2925, %v2953
      %v2955 = vpop.f32.mrf.mxu0
      %v2956 = vadd.f32 %v2927, %v2955
      %2957 = vdwg.mxu0
      %2958 = vmatpush.bf16.msra.mxu0 %v2195
      %2959 = vmatpush.bf16.msra.mxu0 %v2193
      %2960 = vmatpush.bf16.msra.mxu0 %v2191
      %2961 = vmatpush.bf16.msra.mxu0 %v2189
      %2962 = vmatpush.bf16.msra.mxu0 %v2187
      %2963 = vmatpush.bf16.msra.mxu0 %v2185
      %2964 = vmatpush.bf16.msra.mxu0 %v2183
      %2965 = vmatpush.bf16.msra.mxu0 %v2181
      %2966 = vmatmul.bf16.gmra.mxu0 %v922
      %v2967 = vpop.f32.mrf.mxu0
      %v2968 = vadd.f32 %v2939, %v2967
      %v2969 = vpop.f32.mrf.mxu0
      %v2970 = vadd.f32 %v2941, %v2969
      %2971 = vmatmul.bf16.gmra.mxu0 %v941
      %v2972 = vpop.f32.mrf.mxu0
      %v2973 = vadd.f32 %v2944, %v2972
      %v2974 = vpop.f32.mrf.mxu0
      %v2975 = vadd.f32 %v2946, %v2974
      %2976 = vmatmul.bf16.gmra.mxu0 %v960
      %v2977 = vpop.f32.mrf.mxu0
      %v2978 = vadd.f32 %v2949, %v2977
      %v2979 = vpop.f32.mrf.mxu0
      %v2980 = vadd.f32 %v2951, %v2979
      %2981 = vmatmul.bf16.gmra.mxu0 %v979
      %v2982 = vpop.f32.mrf.mxu0
      %v2983 = vadd.f32 %v2954, %v2982
      %v2984 = vpop.f32.mrf.mxu0
      %v2985 = vadd.f32 %v2956, %v2984
      %2986 = vdwg.mxu0
      %2987 = vmatpush.bf16.msra.mxu0 %v2211
      %2988 = vmatpush.bf16.msra.mxu0 %v2209
      %2989 = vmatpush.bf16.msra.mxu0 %v2207
      %2990 = vmatpush.bf16.msra.mxu0 %v2205
      %2991 = vmatpush.bf16.msra.mxu0 %v2203
      %2992 = vmatpush.bf16.msra.mxu0 %v2201
      %2993 = vmatpush.bf16.msra.mxu0 %v2199
      %2994 = vmatpush.bf16.msra.mxu0 %v2197
      %2995 = vmatmul.bf16.gmra.mxu0 %v923
      %v2996 = vpop.f32.mrf.mxu0
      %v2997 = vadd.f32 %v2968, %v2996
      %v2998 = vpop.f32.mrf.mxu0
      %v2999 = vadd.f32 %v2970, %v2998
      %3000 = vmatmul.bf16.gmra.mxu0 %v942
      %v3001 = vpop.f32.mrf.mxu0
      %v3002 = vadd.f32 %v2973, %v3001
      %v3003 = vpop.f32.mrf.mxu0
      %v3004 = vadd.f32 %v2975, %v3003
      %3005 = vmatmul.bf16.gmra.mxu0 %v961
      %v3006 = vpop.f32.mrf.mxu0
      %v3007 = vadd.f32 %v2978, %v3006
      %v3008 = vpop.f32.mrf.mxu0
      %v3009 = vadd.f32 %v2980, %v3008
      %3010 = vmatmul.bf16.gmra.mxu0 %v980
      %v3011 = vpop.f32.mrf.mxu0
      %v3012 = vadd.f32 %v2983, %v3011
      %v3013 = vpop.f32.mrf.mxu0
      %v3014 = vadd.f32 %v2985, %v3013
      %3015 = vdwg.mxu0
      %3016 = vmatpush.bf16.msra.mxu0 %v2227
      %3017 = vmatpush.bf16.msra.mxu0 %v2225
      %3018 = vmatpush.bf16.msra.mxu0 %v2223
      %3019 = vmatpush.bf16.msra.mxu0 %v2221
      %3020 = vmatpush.bf16.msra.mxu0 %v2219
      %3021 = vmatpush.bf16.msra.mxu0 %v2217
      %3022 = vmatpush.bf16.msra.mxu0 %v2215
      %3023 = vmatpush.bf16.msra.mxu0 %v2213
      %3024 = vmatmul.bf16.gmra.mxu0 %v924
      %v3025 = vpop.f32.mrf.mxu0
      %v3026 = vadd.f32 %v2997, %v3025
      %v3027 = vpop.f32.mrf.mxu0
      %v3028 = vadd.f32 %v2999, %v3027
      %3029 = vmatmul.bf16.gmra.mxu0 %v943
      %v3030 = vpop.f32.mrf.mxu0
      %v3031 = vadd.f32 %v3002, %v3030
      %v3032 = vpop.f32.mrf.mxu0
      %v3033 = vadd.f32 %v3004, %v3032
      %3034 = vmatmul.bf16.gmra.mxu0 %v962
      %v3035 = vpop.f32.mrf.mxu0
      %v3036 = vadd.f32 %v3007, %v3035
      %v3037 = vpop.f32.mrf.mxu0
      %v3038 = vadd.f32 %v3009, %v3037
      %3039 = vmatmul.bf16.gmra.mxu0 %v981
      %v3040 = vpop.f32.mrf.mxu0
      %v3041 = vadd.f32 %v3012, %v3040
      %v3042 = vpop.f32.mrf.mxu0
      %v3043 = vadd.f32 %v3014, %v3042
      %3044 = vdwg.mxu0
      %3045 = vmatpush.bf16.msra.mxu0 %v2243
      %3046 = vmatpush.bf16.msra.mxu0 %v2241
      %3047 = vmatpush.bf16.msra.mxu0 %v2239
      %3048 = vmatpush.bf16.msra.mxu0 %v2237
      %3049 = vmatpush.bf16.msra.mxu0 %v2235
      %3050 = vmatpush.bf16.msra.mxu0 %v2233
      %3051 = vmatpush.bf16.msra.mxu0 %v2231
      %3052 = vmatpush.bf16.msra.mxu0 %v2229
      %3053 = vmatmul.bf16.gmra.mxu0 %v925
      %v3054 = vpop.f32.mrf.mxu0
      %v3055 = vadd.f32 %v3026, %v3054
      %v3056 = vpop.f32.mrf.mxu0
      %v3057 = vadd.f32 %v3028, %v3056
      %3058 = vmatmul.bf16.gmra.mxu0 %v944
      %v3059 = vpop.f32.mrf.mxu0
      %v3060 = vadd.f32 %v3031, %v3059
      %v3061 = vpop.f32.mrf.mxu0
      %v3062 = vadd.f32 %v3033, %v3061
      %3063 = vmatmul.bf16.gmra.mxu0 %v963
      %v3064 = vpop.f32.mrf.mxu0
      %v3065 = vadd.f32 %v3036, %v3064
      %v3066 = vpop.f32.mrf.mxu0
      %v3067 = vadd.f32 %v3038, %v3066
      %3068 = vmatmul.bf16.gmra.mxu0 %v982
      %v3069 = vpop.f32.mrf.mxu0
      %v3070 = vadd.f32 %v3041, %v3069
      %v3071 = vpop.f32.mrf.mxu0
      %v3072 = vadd.f32 %v3043, %v3071
      %3073 = vdwg.mxu0
      %3074 = vmatpush.bf16.msra.mxu0 %v2259
      %3075 = vmatpush.bf16.msra.mxu0 %v2257
      %3076 = vmatpush.bf16.msra.mxu0 %v2255
      %3077 = vmatpush.bf16.msra.mxu0 %v2253
      %3078 = vmatpush.bf16.msra.mxu0 %v2251
      %3079 = vmatpush.bf16.msra.mxu0 %v2249
      %3080 = vmatpush.bf16.msra.mxu0 %v2247
      %3081 = vmatpush.bf16.msra.mxu0 %v2245
      %3082 = vmatmul.bf16.gmra.mxu0 %v926
      %v3083 = vpop.f32.mrf.mxu0
      %v3084 = vadd.f32 %v3055, %v3083
      %v3085 = vpop.f32.mrf.mxu0
      %v3086 = vadd.f32 %v3057, %v3085
      %3087 = vmatmul.bf16.gmra.mxu0 %v945
      %v3088 = vpop.f32.mrf.mxu0
      %v3089 = vadd.f32 %v3060, %v3088
      %v3090 = vpop.f32.mrf.mxu0
      %v3091 = vadd.f32 %v3062, %v3090
      %3092 = vmatmul.bf16.gmra.mxu0 %v964
      %v3093 = vpop.f32.mrf.mxu0
      %v3094 = vadd.f32 %v3065, %v3093
      %v3095 = vpop.f32.mrf.mxu0
      %v3096 = vadd.f32 %v3067, %v3095
      %3097 = vmatmul.bf16.gmra.mxu0 %v983
      %v3098 = vpop.f32.mrf.mxu0
      %v3099 = vadd.f32 %v3070, %v3098
      %v3100 = vpop.f32.mrf.mxu0
      %v3101 = vadd.f32 %v3072, %v3100
      %3102 = vdwg.mxu0
      %3103 = vmatpush.bf16.msra.mxu0 %v2275
      %3104 = vmatpush.bf16.msra.mxu0 %v2273
      %3105 = vmatpush.bf16.msra.mxu0 %v2271
      %3106 = vmatpush.bf16.msra.mxu0 %v2269
      %3107 = vmatpush.bf16.msra.mxu0 %v2267
      %3108 = vmatpush.bf16.msra.mxu0 %v2265
      %3109 = vmatpush.bf16.msra.mxu0 %v2263
      %3110 = vmatpush.bf16.msra.mxu0 %v2261
      %3111 = vmatmul.bf16.gmra.mxu0 %v927
      %v3112 = vpop.f32.mrf.mxu0
      %v3113 = vadd.f32 %v3084, %v3112
      %v3114 = vpop.f32.mrf.mxu0
      %v3115 = vadd.f32 %v3086, %v3114
      %3116 = vmatmul.bf16.gmra.mxu0 %v946
      %v3117 = vpop.f32.mrf.mxu0
      %v3118 = vadd.f32 %v3089, %v3117
      %v3119 = vpop.f32.mrf.mxu0
      %v3120 = vadd.f32 %v3091, %v3119
      %3121 = vmatmul.bf16.gmra.mxu0 %v965
      %v3122 = vpop.f32.mrf.mxu0
      %v3123 = vadd.f32 %v3094, %v3122
      %v3124 = vpop.f32.mrf.mxu0
      %v3125 = vadd.f32 %v3096, %v3124
      %3126 = vmatmul.bf16.gmra.mxu0 %v984
      %v3127 = vpop.f32.mrf.mxu0
      %v3128 = vadd.f32 %v3099, %v3127
      %v3129 = vpop.f32.mrf.mxu0
      %v3130 = vadd.f32 %v3101, %v3129
      %3131 = vdwg.mxu0
      %3132 = vmatpush.bf16.msra.mxu0 %v1988
      %3133 = vmatpush.bf16.msra.mxu0 %v1986
      %3134 = vmatpush.bf16.msra.mxu0 %v1984
      %3135 = vmatpush.bf16.msra.mxu0 %v1982
      %3136 = vmatpush.bf16.msra.mxu0 %v1980
      %3137 = vmatpush.bf16.msra.mxu0 %v1978
      %3138 = vmatpush.bf16.msra.mxu0 %v1976
      %3139 = vmatpush.bf16.msra.mxu0 %v1974
      %3140 = vmatmul.bf16.gmra.mxu0 %v909
      %v3141 = vpop.f32.mrf.mxu0
      %v3142 = vadd.f32 %v674, %v3141
      %v3143 = vpop.f32.mrf.mxu0
      %v3144 = vadd.f32 %v674, %v3143
      %3145 = vmatmul.bf16.gmra.mxu0 %v928
      %v3146 = vpop.f32.mrf.mxu0
      %v3147 = vadd.f32 %v674, %v3146
      %v3148 = vpop.f32.mrf.mxu0
      %v3149 = vadd.f32 %v674, %v3148
      %3150 = vmatmul.bf16.gmra.mxu0 %v947
      %v3151 = vpop.f32.mrf.mxu0
      %v3152 = vadd.f32 %v674, %v3151
      %v3153 = vpop.f32.mrf.mxu0
      %v3154 = vadd.f32 %v674, %v3153
      %3155 = vmatmul.bf16.gmra.mxu0 %v966
      %v3156 = vpop.f32.mrf.mxu0
      %v3157 = vadd.f32 %v674, %v3156
      %v3158 = vpop.f32.mrf.mxu0
      %v3159 = vadd.f32 %v674, %v3158
      %3160 = vdwg.mxu0
      %3161 = vmatpush.bf16.msra.mxu0 %v2004
      %3162 = vmatpush.bf16.msra.mxu0 %v2002
      %3163 = vmatpush.bf16.msra.mxu0 %v2000
      %3164 = vmatpush.bf16.msra.mxu0 %v1998
      %3165 = vmatpush.bf16.msra.mxu0 %v1996
      %3166 = vmatpush.bf16.msra.mxu0 %v1994
      %3167 = vmatpush.bf16.msra.mxu0 %v1992
      %3168 = vmatpush.bf16.msra.mxu0 %v1990
      %3169 = vmatmul.bf16.gmra.mxu0 %v910
      %v3170 = vpop.f32.mrf.mxu0
      %v3171 = vadd.f32 %v3142, %v3170
      %v3172 = vpop.f32.mrf.mxu0
      %v3173 = vadd.f32 %v3144, %v3172
      %3174 = vmatmul.bf16.gmra.mxu0 %v929
      %v3175 = vpop.f32.mrf.mxu0
      %v3176 = vadd.f32 %v3147, %v3175
      %v3177 = vpop.f32.mrf.mxu0
      %v3178 = vadd.f32 %v3149, %v3177
      %3179 = vmatmul.bf16.gmra.mxu0 %v948
      %v3180 = vpop.f32.mrf.mxu0
      %v3181 = vadd.f32 %v3152, %v3180
      %v3182 = vpop.f32.mrf.mxu0
      %v3183 = vadd.f32 %v3154, %v3182
      %3184 = vmatmul.bf16.gmra.mxu0 %v967
      %v3185 = vpop.f32.mrf.mxu0
      %v3186 = vadd.f32 %v3157, %v3185
      %v3187 = vpop.f32.mrf.mxu0
      %v3188 = vadd.f32 %v3159, %v3187
      %3189 = vdwg.mxu0
      %3190 = vmatpush.bf16.msra.mxu0 %v2020
      %3191 = vmatpush.bf16.msra.mxu0 %v2018
      %3192 = vmatpush.bf16.msra.mxu0 %v2016
      %3193 = vmatpush.bf16.msra.mxu0 %v2014
      %3194 = vmatpush.bf16.msra.mxu0 %v2012
      %3195 = vmatpush.bf16.msra.mxu0 %v2010
      %3196 = vmatpush.bf16.msra.mxu0 %v2008
      %3197 = vmatpush.bf16.msra.mxu0 %v2006
      %3198 = vmatmul.bf16.gmra.mxu0 %v911
      %v3199 = vpop.f32.mrf.mxu0
      %v3200 = vadd.f32 %v3171, %v3199
      %v3201 = vpop.f32.mrf.mxu0
      %v3202 = vadd.f32 %v3173, %v3201
      %3203 = vmatmul.bf16.gmra.mxu0 %v930
      %v3204 = vpop.f32.mrf.mxu0
      %v3205 = vadd.f32 %v3176, %v3204
      %v3206 = vpop.f32.mrf.mxu0
      %v3207 = vadd.f32 %v3178, %v3206
      %3208 = vmatmul.bf16.gmra.mxu0 %v949
      %v3209 = vpop.f32.mrf.mxu0
      %v3210 = vadd.f32 %v3181, %v3209
      %v3211 = vpop.f32.mrf.mxu0
      %v3212 = vadd.f32 %v3183, %v3211
      %3213 = vmatmul.bf16.gmra.mxu0 %v968
      %v3214 = vpop.f32.mrf.mxu0
      %v3215 = vadd.f32 %v3186, %v3214
      %v3216 = vpop.f32.mrf.mxu0
      %v3217 = vadd.f32 %v3188, %v3216
      %3218 = vdwg.mxu0
      %3219 = vmatpush.bf16.msra.mxu0 %v2036
      %3220 = vmatpush.bf16.msra.mxu0 %v2034
      %3221 = vmatpush.bf16.msra.mxu0 %v2032
      %3222 = vmatpush.bf16.msra.mxu0 %v2030
      %3223 = vmatpush.bf16.msra.mxu0 %v2028
      %3224 = vmatpush.bf16.msra.mxu0 %v2026
      %3225 = vmatpush.bf16.msra.mxu0 %v2024
      %3226 = vmatpush.bf16.msra.mxu0 %v2022
      %3227 = vmatmul.bf16.gmra.mxu0 %v912
      %v3228 = vpop.f32.mrf.mxu0
      %v3229 = vadd.f32 %v3200, %v3228
      %v3230 = vpop.f32.mrf.mxu0
      %v3231 = vadd.f32 %v3202, %v3230
      %3232 = vmatmul.bf16.gmra.mxu0 %v931
      %v3233 = vpop.f32.mrf.mxu0
      %v3234 = vadd.f32 %v3205, %v3233
      %v3235 = vpop.f32.mrf.mxu0
      %v3236 = vadd.f32 %v3207, %v3235
      %3237 = vmatmul.bf16.gmra.mxu0 %v950
      %v3238 = vpop.f32.mrf.mxu0
      %v3239 = vadd.f32 %v3210, %v3238
      %v3240 = vpop.f32.mrf.mxu0
      %v3241 = vadd.f32 %v3212, %v3240
      %3242 = vmatmul.bf16.gmra.mxu0 %v969
      %v3243 = vpop.f32.mrf.mxu0
      %v3244 = vadd.f32 %v3215, %v3243
      %v3245 = vpop.f32.mrf.mxu0
      %v3246 = vadd.f32 %v3217, %v3245
      %3247 = vdwg.mxu0
      %3248 = vmatpush.bf16.msra.mxu0 %v2052
      %3249 = vmatpush.bf16.msra.mxu0 %v2050
      %3250 = vmatpush.bf16.msra.mxu0 %v2048
      %3251 = vmatpush.bf16.msra.mxu0 %v2046
      %3252 = vmatpush.bf16.msra.mxu0 %v2044
      %3253 = vmatpush.bf16.msra.mxu0 %v2042
      %3254 = vmatpush.bf16.msra.mxu0 %v2040
      %3255 = vmatpush.bf16.msra.mxu0 %v2038
      %3256 = vmatmul.bf16.gmra.mxu0 %v913
      %v3257 = vpop.f32.mrf.mxu0
      %v3258 = vadd.f32 %v3229, %v3257
      %v3259 = vpop.f32.mrf.mxu0
      %v3260 = vadd.f32 %v3231, %v3259
      %3261 = vmatmul.bf16.gmra.mxu0 %v932
      %v3262 = vpop.f32.mrf.mxu0
      %v3263 = vadd.f32 %v3234, %v3262
      %v3264 = vpop.f32.mrf.mxu0
      %v3265 = vadd.f32 %v3236, %v3264
      %3266 = vmatmul.bf16.gmra.mxu0 %v951
      %v3267 = vpop.f32.mrf.mxu0
      %v3268 = vadd.f32 %v3239, %v3267
      %v3269 = vpop.f32.mrf.mxu0
      %v3270 = vadd.f32 %v3241, %v3269
      %3271 = vmatmul.bf16.gmra.mxu0 %v970
      %v3272 = vpop.f32.mrf.mxu0
      %v3273 = vadd.f32 %v3244, %v3272
      %v3274 = vpop.f32.mrf.mxu0
      %v3275 = vadd.f32 %v3246, %v3274
      %3276 = vdwg.mxu0
      %3277 = vmatpush.bf16.msra.mxu0 %v2068
      %3278 = vmatpush.bf16.msra.mxu0 %v2066
      %3279 = vmatpush.bf16.msra.mxu0 %v2064
      %3280 = vmatpush.bf16.msra.mxu0 %v2062
      %3281 = vmatpush.bf16.msra.mxu0 %v2060
      %3282 = vmatpush.bf16.msra.mxu0 %v2058
      %3283 = vmatpush.bf16.msra.mxu0 %v2056
      %3284 = vmatpush.bf16.msra.mxu0 %v2054
      %3285 = vmatmul.bf16.gmra.mxu0 %v914
      %v3286 = vpop.f32.mrf.mxu0
      %v3287 = vadd.f32 %v3258, %v3286
      %v3288 = vpop.f32.mrf.mxu0
      %v3289 = vadd.f32 %v3260, %v3288
      %3290 = vmatmul.bf16.gmra.mxu0 %v933
      %v3291 = vpop.f32.mrf.mxu0
      %v3292 = vadd.f32 %v3263, %v3291
      %v3293 = vpop.f32.mrf.mxu0
      %v3294 = vadd.f32 %v3265, %v3293
      %3295 = vmatmul.bf16.gmra.mxu0 %v952
      %v3296 = vpop.f32.mrf.mxu0
      %v3297 = vadd.f32 %v3268, %v3296
      %v3298 = vpop.f32.mrf.mxu0
      %v3299 = vadd.f32 %v3270, %v3298
      %3300 = vmatmul.bf16.gmra.mxu0 %v971
      %v3301 = vpop.f32.mrf.mxu0
      %v3302 = vadd.f32 %v3273, %v3301
      %v3303 = vpop.f32.mrf.mxu0
      %v3304 = vadd.f32 %v3275, %v3303
      %3305 = vdwg.mxu0
      %3306 = vmatpush.bf16.msra.mxu0 %v2084
      %3307 = vmatpush.bf16.msra.mxu0 %v2082
      %3308 = vmatpush.bf16.msra.mxu0 %v2080
      %3309 = vmatpush.bf16.msra.mxu0 %v2078
      %3310 = vmatpush.bf16.msra.mxu0 %v2076
      %3311 = vmatpush.bf16.msra.mxu0 %v2074
      %3312 = vmatpush.bf16.msra.mxu0 %v2072
      %3313 = vmatpush.bf16.msra.mxu0 %v2070
      %3314 = vmatmul.bf16.gmra.mxu0 %v915
      %v3315 = vpop.f32.mrf.mxu0
      %v3316 = vadd.f32 %v3287, %v3315
      %v3317 = vpop.f32.mrf.mxu0
      %v3318 = vadd.f32 %v3289, %v3317
      %3319 = vmatmul.bf16.gmra.mxu0 %v934
      %v3320 = vpop.f32.mrf.mxu0
      %v3321 = vadd.f32 %v3292, %v3320
      %v3322 = vpop.f32.mrf.mxu0
      %v3323 = vadd.f32 %v3294, %v3322
      %3324 = vmatmul.bf16.gmra.mxu0 %v953
      %v3325 = vpop.f32.mrf.mxu0
      %v3326 = vadd.f32 %v3297, %v3325
      %v3327 = vpop.f32.mrf.mxu0
      %v3328 = vadd.f32 %v3299, %v3327
      %3329 = vmatmul.bf16.gmra.mxu0 %v972
      %v3330 = vpop.f32.mrf.mxu0
      %v3331 = vadd.f32 %v3302, %v3330
      %v3332 = vpop.f32.mrf.mxu0
      %v3333 = vadd.f32 %v3304, %v3332
      %3334 = vdwg.mxu0
      %3335 = vmatpush.bf16.msra.mxu0 %v2100
      %3336 = vmatpush.bf16.msra.mxu0 %v2098
      %3337 = vmatpush.bf16.msra.mxu0 %v2096
      %3338 = vmatpush.bf16.msra.mxu0 %v2094
      %3339 = vmatpush.bf16.msra.mxu0 %v2092
      %3340 = vmatpush.bf16.msra.mxu0 %v2090
      %3341 = vmatpush.bf16.msra.mxu0 %v2088
      %3342 = vmatpush.bf16.msra.mxu0 %v2086
      %3343 = vmatmul.bf16.gmra.mxu0 %v916
      %v3344 = vpop.f32.mrf.mxu0
      %v3345 = vadd.f32 %v3316, %v3344
      %v3346 = vpop.f32.mrf.mxu0
      %v3347 = vadd.f32 %v3318, %v3346
      %3348 = vmatmul.bf16.gmra.mxu0 %v935
      %v3349 = vpop.f32.mrf.mxu0
      %v3350 = vadd.f32 %v3321, %v3349
      %v3351 = vpop.f32.mrf.mxu0
      %v3352 = vadd.f32 %v3323, %v3351
      %3353 = vmatmul.bf16.gmra.mxu0 %v954
      %v3354 = vpop.f32.mrf.mxu0
      %v3355 = vadd.f32 %v3326, %v3354
      %v3356 = vpop.f32.mrf.mxu0
      %v3357 = vadd.f32 %v3328, %v3356
      %3358 = vmatmul.bf16.gmra.mxu0 %v973
      %v3359 = vpop.f32.mrf.mxu0
      %v3360 = vadd.f32 %v3331, %v3359
      %v3361 = vpop.f32.mrf.mxu0
      %v3362 = vadd.f32 %v3333, %v3361
      %3363 = vdwg.mxu0
      %3364 = vmatpush.bf16.msra.mxu0 %v2116
      %3365 = vmatpush.bf16.msra.mxu0 %v2114
      %3366 = vmatpush.bf16.msra.mxu0 %v2112
      %3367 = vmatpush.bf16.msra.mxu0 %v2110
      %3368 = vmatpush.bf16.msra.mxu0 %v2108
      %3369 = vmatpush.bf16.msra.mxu0 %v2106
      %3370 = vmatpush.bf16.msra.mxu0 %v2104
      %3371 = vmatpush.bf16.msra.mxu0 %v2102
      %3372 = vmatmul.bf16.gmra.mxu0 %v917
      %v3373 = vpop.f32.mrf.mxu0
      %v3374 = vadd.f32 %v3345, %v3373
      %v3375 = vpop.f32.mrf.mxu0
      %v3376 = vadd.f32 %v3347, %v3375
      %3377 = vmatmul.bf16.gmra.mxu0 %v936
      %v3378 = vpop.f32.mrf.mxu0
      %v3379 = vadd.f32 %v3350, %v3378
      %v3380 = vpop.f32.mrf.mxu0
      %v3381 = vadd.f32 %v3352, %v3380
      %3382 = vmatmul.bf16.gmra.mxu0 %v955
      %v3383 = vpop.f32.mrf.mxu0
      %v3384 = vadd.f32 %v3355, %v3383
      %v3385 = vpop.f32.mrf.mxu0
      %v3386 = vadd.f32 %v3357, %v3385
      %3387 = vmatmul.bf16.gmra.mxu0 %v974
      %v3388 = vpop.f32.mrf.mxu0
      %v3389 = vadd.f32 %v3360, %v3388
      %v3390 = vpop.f32.mrf.mxu0
      %v3391 = vadd.f32 %v3362, %v3390
      %3392 = vdwg.mxu0
      %3393 = vmatpush.bf16.msra.mxu0 %v2132
      %3394 = vmatpush.bf16.msra.mxu0 %v2130
      %3395 = vmatpush.bf16.msra.mxu0 %v2128
      %3396 = vmatpush.bf16.msra.mxu0 %v2126
      %3397 = vmatpush.bf16.msra.mxu0 %v2124
      %3398 = vmatpush.bf16.msra.mxu0 %v2122
      %3399 = vmatpush.bf16.msra.mxu0 %v2120
      %3400 = vmatpush.bf16.msra.mxu0 %v2118
      %3401 = vmatmul.bf16.gmra.mxu0 %v918
      %v3402 = vpop.f32.mrf.mxu0
      %v3403 = vadd.f32 %v3374, %v3402
      %v3404 = vpop.f32.mrf.mxu0
      %v3405 = vadd.f32 %v3376, %v3404
      %3406 = vmatmul.bf16.gmra.mxu0 %v937
      %v3407 = vpop.f32.mrf.mxu0
      %v3408 = vadd.f32 %v3379, %v3407
      %v3409 = vpop.f32.mrf.mxu0
      %v3410 = vadd.f32 %v3381, %v3409
      %3411 = vmatmul.bf16.gmra.mxu0 %v956
      %v3412 = vpop.f32.mrf.mxu0
      %v3413 = vadd.f32 %v3384, %v3412
      %v3414 = vpop.f32.mrf.mxu0
      %v3415 = vadd.f32 %v3386, %v3414
      %3416 = vmatmul.bf16.gmra.mxu0 %v975
      %v3417 = vpop.f32.mrf.mxu0
      %v3418 = vadd.f32 %v3389, %v3417
      %v3419 = vpop.f32.mrf.mxu0
      %v3420 = vadd.f32 %v3391, %v3419
      %3421 = vdwg.mxu0
      %3422 = vmatpush.bf16.msra.mxu0 %v2148
      %3423 = vmatpush.bf16.msra.mxu0 %v2146
      %3424 = vmatpush.bf16.msra.mxu0 %v2144
      %3425 = vmatpush.bf16.msra.mxu0 %v2142
      %3426 = vmatpush.bf16.msra.mxu0 %v2140
      %3427 = vmatpush.bf16.msra.mxu0 %v2138
      %3428 = vmatpush.bf16.msra.mxu0 %v2136
      %3429 = vmatpush.bf16.msra.mxu0 %v2134
      %3430 = vmatmul.bf16.gmra.mxu0 %v919
      %v3431 = vpop.f32.mrf.mxu0
      %v3432 = vadd.f32 %v3403, %v3431
      %v3433 = vpop.f32.mrf.mxu0
      %v3434 = vadd.f32 %v3405, %v3433
      %3435 = vmatmul.bf16.gmra.mxu0 %v938
      %v3436 = vpop.f32.mrf.mxu0
      %v3437 = vadd.f32 %v3408, %v3436
      %v3438 = vpop.f32.mrf.mxu0
      %v3439 = vadd.f32 %v3410, %v3438
      %3440 = vmatmul.bf16.gmra.mxu0 %v957
      %v3441 = vpop.f32.mrf.mxu0
      %v3442 = vadd.f32 %v3413, %v3441
      %v3443 = vpop.f32.mrf.mxu0
      %v3444 = vadd.f32 %v3415, %v3443
      %3445 = vmatmul.bf16.gmra.mxu0 %v976
      %v3446 = vpop.f32.mrf.mxu0
      %v3447 = vadd.f32 %v3418, %v3446
      %v3448 = vpop.f32.mrf.mxu0
      %v3449 = vadd.f32 %v3420, %v3448
      %3450 = vdwg.mxu0
      %3451 = vmatpush.bf16.msra.mxu0 %v2164
      %3452 = vmatpush.bf16.msra.mxu0 %v2162
      %3453 = vmatpush.bf16.msra.mxu0 %v2160
      %3454 = vmatpush.bf16.msra.mxu0 %v2158
      %3455 = vmatpush.bf16.msra.mxu0 %v2156
      %3456 = vmatpush.bf16.msra.mxu0 %v2154
      %3457 = vmatpush.bf16.msra.mxu0 %v2152
      %3458 = vmatpush.bf16.msra.mxu0 %v2150
      %3459 = vmatmul.bf16.gmra.mxu0 %v920
      %v3460 = vpop.f32.mrf.mxu0
      %v3461 = vadd.f32 %v3432, %v3460
      %v3462 = vpop.f32.mrf.mxu0
      %v3463 = vadd.f32 %v3434, %v3462
      %3464 = vmatmul.bf16.gmra.mxu0 %v939
      %v3465 = vpop.f32.mrf.mxu0
      %v3466 = vadd.f32 %v3437, %v3465
      %v3467 = vpop.f32.mrf.mxu0
      %v3468 = vadd.f32 %v3439, %v3467
      %3469 = vmatmul.bf16.gmra.mxu0 %v958
      %v3470 = vpop.f32.mrf.mxu0
      %v3471 = vadd.f32 %v3442, %v3470
      %v3472 = vpop.f32.mrf.mxu0
      %v3473 = vadd.f32 %v3444, %v3472
      %3474 = vmatmul.bf16.gmra.mxu0 %v977
      %v3475 = vpop.f32.mrf.mxu0
      %v3476 = vadd.f32 %v3447, %v3475
      %v3477 = vpop.f32.mrf.mxu0
      %v3478 = vadd.f32 %v3449, %v3477
      %3479 = vdwg.mxu0
      %3480 = vmatpush.bf16.msra.mxu0 %v2180
      %3481 = vmatpush.bf16.msra.mxu0 %v2178
      %3482 = vmatpush.bf16.msra.mxu0 %v2176
      %3483 = vmatpush.bf16.msra.mxu0 %v2174
      %3484 = vmatpush.bf16.msra.mxu0 %v2172
      %3485 = vmatpush.bf16.msra.mxu0 %v2170
      %3486 = vmatpush.bf16.msra.mxu0 %v2168
      %3487 = vmatpush.bf16.msra.mxu0 %v2166
      %3488 = vmatmul.bf16.gmra.mxu0 %v921
      %v3489 = vpop.f32.mrf.mxu0
      %v3490 = vadd.f32 %v3461, %v3489
      %v3491 = vpop.f32.mrf.mxu0
      %v3492 = vadd.f32 %v3463, %v3491
      %3493 = vmatmul.bf16.gmra.mxu0 %v940
      %v3494 = vpop.f32.mrf.mxu0
      %v3495 = vadd.f32 %v3466, %v3494
      %v3496 = vpop.f32.mrf.mxu0
      %v3497 = vadd.f32 %v3468, %v3496
      %3498 = vmatmul.bf16.gmra.mxu0 %v959
      %v3499 = vpop.f32.mrf.mxu0
      %v3500 = vadd.f32 %v3471, %v3499
      %v3501 = vpop.f32.mrf.mxu0
      %v3502 = vadd.f32 %v3473, %v3501
      %3503 = vmatmul.bf16.gmra.mxu0 %v978
      %v3504 = vpop.f32.mrf.mxu0
      %v3505 = vadd.f32 %v3476, %v3504
      %v3506 = vpop.f32.mrf.mxu0
      %v3507 = vadd.f32 %v3478, %v3506
      %3508 = vdwg.mxu0
      %3509 = vmatpush.bf16.msra.mxu0 %v2196
      %3510 = vmatpush.bf16.msra.mxu0 %v2194
      %3511 = vmatpush.bf16.msra.mxu0 %v2192
      %3512 = vmatpush.bf16.msra.mxu0 %v2190
      %3513 = vmatpush.bf16.msra.mxu0 %v2188
      %3514 = vmatpush.bf16.msra.mxu0 %v2186
      %3515 = vmatpush.bf16.msra.mxu0 %v2184
      %3516 = vmatpush.bf16.msra.mxu0 %v2182
      %3517 = vmatmul.bf16.gmra.mxu0 %v922
      %v3518 = vpop.f32.mrf.mxu0
      %v3519 = vadd.f32 %v3490, %v3518
      %v3520 = vpop.f32.mrf.mxu0
      %v3521 = vadd.f32 %v3492, %v3520
      %3522 = vmatmul.bf16.gmra.mxu0 %v941
      %v3523 = vpop.f32.mrf.mxu0
      %v3524 = vadd.f32 %v3495, %v3523
      %v3525 = vpop.f32.mrf.mxu0
      %v3526 = vadd.f32 %v3497, %v3525
      %3527 = vmatmul.bf16.gmra.mxu0 %v960
      %v3528 = vpop.f32.mrf.mxu0
      %v3529 = vadd.f32 %v3500, %v3528
      %v3530 = vpop.f32.mrf.mxu0
      %v3531 = vadd.f32 %v3502, %v3530
      %3532 = vmatmul.bf16.gmra.mxu0 %v979
      %v3533 = vpop.f32.mrf.mxu0
      %v3534 = vadd.f32 %v3505, %v3533
      %v3535 = vpop.f32.mrf.mxu0
      %v3536 = vadd.f32 %v3507, %v3535
      %3537 = vdwg.mxu0
      %3538 = vmatpush.bf16.msra.mxu0 %v2212
      %3539 = vmatpush.bf16.msra.mxu0 %v2210
      %3540 = vmatpush.bf16.msra.mxu0 %v2208
      %3541 = vmatpush.bf16.msra.mxu0 %v2206
      %3542 = vmatpush.bf16.msra.mxu0 %v2204
      %3543 = vmatpush.bf16.msra.mxu0 %v2202
      %3544 = vmatpush.bf16.msra.mxu0 %v2200
      %3545 = vmatpush.bf16.msra.mxu0 %v2198
      %3546 = vmatmul.bf16.gmra.mxu0 %v923
      %v3547 = vpop.f32.mrf.mxu0
      %v3548 = vadd.f32 %v3519, %v3547
      %v3549 = vpop.f32.mrf.mxu0
      %v3550 = vadd.f32 %v3521, %v3549
      %3551 = vmatmul.bf16.gmra.mxu0 %v942
      %v3552 = vpop.f32.mrf.mxu0
      %v3553 = vadd.f32 %v3524, %v3552
      %v3554 = vpop.f32.mrf.mxu0
      %v3555 = vadd.f32 %v3526, %v3554
      %3556 = vmatmul.bf16.gmra.mxu0 %v961
      %v3557 = vpop.f32.mrf.mxu0
      %v3558 = vadd.f32 %v3529, %v3557
      %v3559 = vpop.f32.mrf.mxu0
      %v3560 = vadd.f32 %v3531, %v3559
      %3561 = vmatmul.bf16.gmra.mxu0 %v980
      %v3562 = vpop.f32.mrf.mxu0
      %v3563 = vadd.f32 %v3534, %v3562
      %v3564 = vpop.f32.mrf.mxu0
      %v3565 = vadd.f32 %v3536, %v3564
      %3566 = vdwg.mxu0
      %3567 = vmatpush.bf16.msra.mxu0 %v2228
      %3568 = vmatpush.bf16.msra.mxu0 %v2226
      %3569 = vmatpush.bf16.msra.mxu0 %v2224
      %3570 = vmatpush.bf16.msra.mxu0 %v2222
      %3571 = vmatpush.bf16.msra.mxu0 %v2220
      %3572 = vmatpush.bf16.msra.mxu0 %v2218
      %3573 = vmatpush.bf16.msra.mxu0 %v2216
      %3574 = vmatpush.bf16.msra.mxu0 %v2214
      %3575 = vmatmul.bf16.gmra.mxu0 %v924
      %v3576 = vpop.f32.mrf.mxu0
      %v3577 = vadd.f32 %v3548, %v3576
      %v3578 = vpop.f32.mrf.mxu0
      %v3579 = vadd.f32 %v3550, %v3578
      %3580 = vmatmul.bf16.gmra.mxu0 %v943
      %v3581 = vpop.f32.mrf.mxu0
      %v3582 = vadd.f32 %v3553, %v3581
      %v3583 = vpop.f32.mrf.mxu0
      %v3584 = vadd.f32 %v3555, %v3583
      %3585 = vmatmul.bf16.gmra.mxu0 %v962
      %v3586 = vpop.f32.mrf.mxu0
      %v3587 = vadd.f32 %v3558, %v3586
      %v3588 = vpop.f32.mrf.mxu0
      %v3589 = vadd.f32 %v3560, %v3588
      %3590 = vmatmul.bf16.gmra.mxu0 %v981
      %v3591 = vpop.f32.mrf.mxu0
      %v3592 = vadd.f32 %v3563, %v3591
      %v3593 = vpop.f32.mrf.mxu0
      %v3594 = vadd.f32 %v3565, %v3593
      %3595 = vdwg.mxu0
      %3596 = vmatpush.bf16.msra.mxu0 %v2244
      %3597 = vmatpush.bf16.msra.mxu0 %v2242
      %3598 = vmatpush.bf16.msra.mxu0 %v2240
      %3599 = vmatpush.bf16.msra.mxu0 %v2238
      %3600 = vmatpush.bf16.msra.mxu0 %v2236
      %3601 = vmatpush.bf16.msra.mxu0 %v2234
      %3602 = vmatpush.bf16.msra.mxu0 %v2232
      %3603 = vmatpush.bf16.msra.mxu0 %v2230
      %3604 = vmatmul.bf16.gmra.mxu0 %v925
      %v3605 = vpop.f32.mrf.mxu0
      %v3606 = vadd.f32 %v3577, %v3605
      %v3607 = vpop.f32.mrf.mxu0
      %v3608 = vadd.f32 %v3579, %v3607
      %3609 = vmatmul.bf16.gmra.mxu0 %v944
      %v3610 = vpop.f32.mrf.mxu0
      %v3611 = vadd.f32 %v3582, %v3610
      %v3612 = vpop.f32.mrf.mxu0
      %v3613 = vadd.f32 %v3584, %v3612
      %3614 = vmatmul.bf16.gmra.mxu0 %v963
      %v3615 = vpop.f32.mrf.mxu0
      %v3616 = vadd.f32 %v3587, %v3615
      %v3617 = vpop.f32.mrf.mxu0
      %v3618 = vadd.f32 %v3589, %v3617
      %3619 = vmatmul.bf16.gmra.mxu0 %v982
      %v3620 = vpop.f32.mrf.mxu0
      %v3621 = vadd.f32 %v3592, %v3620
      %v3622 = vpop.f32.mrf.mxu0
      %v3623 = vadd.f32 %v3594, %v3622
      %3624 = vdwg.mxu0
      %3625 = vmatpush.bf16.msra.mxu0 %v2260
      %3626 = vmatpush.bf16.msra.mxu0 %v2258
      %3627 = vmatpush.bf16.msra.mxu0 %v2256
      %3628 = vmatpush.bf16.msra.mxu0 %v2254
      %3629 = vmatpush.bf16.msra.mxu0 %v2252
      %3630 = vmatpush.bf16.msra.mxu0 %v2250
      %3631 = vmatpush.bf16.msra.mxu0 %v2248
      %3632 = vmatpush.bf16.msra.mxu0 %v2246
      %3633 = vmatmul.bf16.gmra.mxu0 %v926
      %v3634 = vpop.f32.mrf.mxu0
      %v3635 = vadd.f32 %v3606, %v3634
      %v3636 = vpop.f32.mrf.mxu0
      %v3637 = vadd.f32 %v3608, %v3636
      %3638 = vmatmul.bf16.gmra.mxu0 %v945
      %v3639 = vpop.f32.mrf.mxu0
      %v3640 = vadd.f32 %v3611, %v3639
      %v3641 = vpop.f32.mrf.mxu0
      %v3642 = vadd.f32 %v3613, %v3641
      %3643 = vmatmul.bf16.gmra.mxu0 %v964
      %v3644 = vpop.f32.mrf.mxu0
      %v3645 = vadd.f32 %v3616, %v3644
      %v3646 = vpop.f32.mrf.mxu0
      %v3647 = vadd.f32 %v3618, %v3646
      %3648 = vmatmul.bf16.gmra.mxu0 %v983
      %v3649 = vpop.f32.mrf.mxu0
      %v3650 = vadd.f32 %v3621, %v3649
      %v3651 = vpop.f32.mrf.mxu0
      %v3652 = vadd.f32 %v3623, %v3651
      %3653 = vdwg.mxu0
      %3654 = vmatpush.bf16.msra.mxu0 %v2276
      %3655 = vmatpush.bf16.msra.mxu0 %v2274
      %3656 = vmatpush.bf16.msra.mxu0 %v2272
      %3657 = vmatpush.bf16.msra.mxu0 %v2270
      %3658 = vmatpush.bf16.msra.mxu0 %v2268
      %3659 = vmatpush.bf16.msra.mxu0 %v2266
      %3660 = vmatpush.bf16.msra.mxu0 %v2264
      %3661 = vmatpush.bf16.msra.mxu0 %v2262
      %3662 = vmatmul.bf16.gmra.mxu0 %v927
      %v3663 = vpop.f32.mrf.mxu0
      %v3664 = vadd.f32 %v3635, %v3663
      %v3665 = vpop.f32.mrf.mxu0
      %v3666 = vadd.f32 %v3637, %v3665
      %3667 = vmatmul.bf16.gmra.mxu0 %v946
      %v3668 = vpop.f32.mrf.mxu0
      %v3669 = vadd.f32 %v3640, %v3668
      %v3670 = vpop.f32.mrf.mxu0
      %v3671 = vadd.f32 %v3642, %v3670
      %3672 = vmatmul.bf16.gmra.mxu0 %v965
      %v3673 = vpop.f32.mrf.mxu0
      %v3674 = vadd.f32 %v3645, %v3673
      %v3675 = vpop.f32.mrf.mxu0
      %v3676 = vadd.f32 %v3647, %v3675
      %3677 = vmatmul.bf16.gmra.mxu0 %v984
      %v3678 = vpop.f32.mrf.mxu0
      %v3679 = vadd.f32 %v3650, %v3678
      %v3680 = vpop.f32.mrf.mxu0
      %v3681 = vadd.f32 %v3652, %v3680
      %3682 = vdwg.mxu0
      %v3683 = vmax.f32 %v3113, 0.0
      %v3684 = vmax.f32 %v3664, 0.0
      %v3685 = vmax.f32 %v3115, 0.0
      %v3686 = vmax.f32 %v3666, 0.0
      %v3687 = vmax.f32 %v3118, 0.0
      %v3688 = vmax.f32 %v3669, 0.0
      %v3689 = vmax.f32 %v3120, 0.0
      %v3690 = vmax.f32 %v3671, 0.0
      %v3691 = vmax.f32 %v3123, 0.0
      %v3692 = vmax.f32 %v3674, 0.0
      %v3693 = vmax.f32 %v3125, 0.0
      %v3694 = vmax.f32 %v3676, 0.0
      %v3695 = vmax.f32 %v3128, 0.0
      %v3696 = vmax.f32 %v3679, 0.0
      %v3697 = vmax.f32 %v3130, 0.0
      %v3698 = vmax.f32 %v3681, 0.0
      %v3699 = vpack.c.bf16 %v3685, %v3683
      %v3700 = vpack.c.bf16 %v3686, %v3684
      %v3701 = vpack.c.bf16 %v3689, %v3687
      %v3702 = vpack.c.bf16 %v3690, %v3688
      %v3703 = vpack.c.bf16 %v3693, %v3691
      %v3704 = vpack.c.bf16 %v3694, %v3692
      %v3705 = vpack.c.bf16 %v3697, %v3695
      %v3706 = vpack.c.bf16 %v3698, %v3696
      %v3707 = vld [vmem:[%s2] sm:$0xff]
      %v3708 = vld [vmem:[%s2 + $0x8] sm:$0xff]
      %v3709 = vld [vmem:[%s2 + $0x10] sm:$0xff]
      %v3710 = vld [vmem:[%s2 + $0x18] sm:$0xff]
      %v3711 = vld [vmem:[%s2 + $0x20] sm:$0xff]
      %v3712 = vld [vmem:[%s2 + $0x28] sm:$0xff]
      %v3713 = vld [vmem:[%s2 + $0x30] sm:$0xff]
      %v3714 = vld [vmem:[%s2 + $0x38] sm:$0xff]
      %v3715 = vld [vmem:[%s2 + $0x40] sm:$0xff]
      %v3716 = vld [vmem:[%s2 + $0x48] sm:$0xff]
      %v3717 = vld [vmem:[%s2 + $0x50] sm:$0xff]
      %v3718 = vld [vmem:[%s2 + $0x58] sm:$0xff]
      %v3719 = vld [vmem:[%s2 + $0x60] sm:$0xff]
      %v3720 = vld [vmem:[%s2 + $0x68] sm:$0xff]
      %v3721 = vld [vmem:[%s2 + $0x70] sm:$0xff]
      %v3722 = vld [vmem:[%s2 + $0x78] sm:$0xff]
      %v3723 = vld [vmem:[%s2 + $0x80] sm:$0xff]
      %v3724 = vld [vmem:[%s2 + $0x88] sm:$0xff]
      %v3725 = vld [vmem:[%s2 + $0x90] sm:$0xff]
      %v3726 = vld [vmem:[%s2 + $0x98] sm:$0xff]
      %v3727 = vld [vmem:[%s2 + $0xa0] sm:$0xff]
      %v3728 = vld [vmem:[%s2 + $0xa8] sm:$0xff]
      %v3729 = vld [vmem:[%s2 + $0xb0] sm:$0xff]
      %v3730 = vld [vmem:[%s2 + $0xb8] sm:$0xff]
      %v3731 = vld [vmem:[%s2 + $0xc0] sm:$0xff]
      %v3732 = vld [vmem:[%s2 + $0xc8] sm:$0xff]
      %v3733 = vld [vmem:[%s2 + $0xd0] sm:$0xff]
      %v3734 = vld [vmem:[%s2 + $0xd8] sm:$0xff]
      %v3735 = vld [vmem:[%s2 + $0xe0] sm:$0xff]
      %v3736 = vld [vmem:[%s2 + $0xe8] sm:$0xff]
      %v3737 = vld [vmem:[%s2 + $0xf0] sm:$0xff]
      %v3738 = vld [vmem:[%s2 + $0xf8] sm:$0xff]
      %v3739 = vld [vmem:[%s5] sm:$0x3]
      %v3741 = vperm.slane %v3739, 0
      %v3742 = vperm.slane %v3739, 1
      %v3777 = vunpack.c.l.b16 %v3707
      %v3778 = vunpack.c.h.b16 %v3707
      %v3779 = vunpack.c.l.b16 %v3708
      %v3780 = vunpack.c.h.b16 %v3708
      %v3781 = vunpack.c.l.b16 %v3709
      %v3782 = vunpack.c.h.b16 %v3709
      %v3783 = vunpack.c.l.b16 %v3710
      %v3784 = vunpack.c.h.b16 %v3710
      %v3785 = vunpack.c.l.b16 %v3711
      %v3786 = vunpack.c.h.b16 %v3711
      %v3787 = vunpack.c.l.b16 %v3712
      %v3788 = vunpack.c.h.b16 %v3712
      %v3789 = vunpack.c.l.b16 %v3713
      %v3790 = vunpack.c.h.b16 %v3713
      %v3791 = vunpack.c.l.b16 %v3714
      %v3792 = vunpack.c.h.b16 %v3714
      %v3793 = vunpack.c.l.b16 %v3715
      %v3794 = vunpack.c.h.b16 %v3715
      %v3795 = vunpack.c.l.b16 %v3716
      %v3796 = vunpack.c.h.b16 %v3716
      %v3797 = vunpack.c.l.b16 %v3717
      %v3798 = vunpack.c.h.b16 %v3717
      %v3799 = vunpack.c.l.b16 %v3718
      %v3800 = vunpack.c.h.b16 %v3718
      %v3801 = vunpack.c.l.b16 %v3719
      %v3802 = vunpack.c.h.b16 %v3719
      %v3803 = vunpack.c.l.b16 %v3720
      %v3804 = vunpack.c.h.b16 %v3720
      %v3805 = vunpack.c.l.b16 %v3721
      %v3806 = vunpack.c.h.b16 %v3721
      %v3807 = vunpack.c.l.b16 %v3722
      %v3808 = vunpack.c.h.b16 %v3722
      %v3809 = vunpack.c.l.b16 %v3723
      %v3810 = vunpack.c.h.b16 %v3723
      %v3811 = vunpack.c.l.b16 %v3724
      %v3812 = vunpack.c.h.b16 %v3724
      %v3813 = vunpack.c.l.b16 %v3725
      %v3814 = vunpack.c.h.b16 %v3725
      %v3815 = vunpack.c.l.b16 %v3726
      %v3816 = vunpack.c.h.b16 %v3726
      %v3817 = vunpack.c.l.b16 %v3727
      %v3818 = vunpack.c.h.b16 %v3727
      %v3819 = vunpack.c.l.b16 %v3728
      %v3820 = vunpack.c.h.b16 %v3728
      %v3821 = vunpack.c.l.b16 %v3729
      %v3822 = vunpack.c.h.b16 %v3729
      %v3823 = vunpack.c.l.b16 %v3730
      %v3824 = vunpack.c.h.b16 %v3730
      %v3825 = vunpack.c.l.b16 %v3731
      %v3826 = vunpack.c.h.b16 %v3731
      %v3827 = vunpack.c.l.b16 %v3732
      %v3828 = vunpack.c.h.b16 %v3732
      %v3829 = vunpack.c.l.b16 %v3733
      %v3830 = vunpack.c.h.b16 %v3733
      %v3831 = vunpack.c.l.b16 %v3734
      %v3832 = vunpack.c.h.b16 %v3734
      %v3833 = vunpack.c.l.b16 %v3735
      %v3834 = vunpack.c.h.b16 %v3735
      %v3835 = vunpack.c.l.b16 %v3736
      %v3836 = vunpack.c.h.b16 %v3736
      %v3837 = vunpack.c.l.b16 %v3737
      %v3838 = vunpack.c.h.b16 %v3737
      %v3839 = vunpack.c.l.b16 %v3738
      %v3840 = vunpack.c.h.b16 %v3738
      %v3841 = vpack.c.b16 %v3779, %v3777
      %v3842 = vpack.c.b16 %v3780, %v3778
      %v3843 = vpack.c.b16 %v3783, %v3781
      %v3844 = vpack.c.b16 %v3784, %v3782
      %v3845 = vpack.c.b16 %v3787, %v3785
      %v3846 = vpack.c.b16 %v3788, %v3786
      %v3847 = vpack.c.b16 %v3791, %v3789
      %v3848 = vpack.c.b16 %v3792, %v3790
      %v3849 = vpack.c.b16 %v3795, %v3793
      %v3850 = vpack.c.b16 %v3796, %v3794
      %v3851 = vpack.c.b16 %v3799, %v3797
      %v3852 = vpack.c.b16 %v3800, %v3798
      %v3853 = vpack.c.b16 %v3803, %v3801
      %v3854 = vpack.c.b16 %v3804, %v3802
      %v3855 = vpack.c.b16 %v3807, %v3805
      %v3856 = vpack.c.b16 %v3808, %v3806
      %v3857 = vpack.c.b16 %v3811, %v3809
      %v3858 = vpack.c.b16 %v3812, %v3810
      %v3859 = vpack.c.b16 %v3815, %v3813
      %v3860 = vpack.c.b16 %v3816, %v3814
      %v3861 = vpack.c.b16 %v3819, %v3817
      %v3862 = vpack.c.b16 %v3820, %v3818
      %v3863 = vpack.c.b16 %v3823, %v3821
      %v3864 = vpack.c.b16 %v3824, %v3822
      %v3865 = vpack.c.b16 %v3827, %v3825
      %v3866 = vpack.c.b16 %v3828, %v3826
      %v3867 = vpack.c.b16 %v3831, %v3829
      %v3868 = vpack.c.b16 %v3832, %v3830
      %v3869 = vpack.c.b16 %v3835, %v3833
      %v3870 = vpack.c.b16 %v3836, %v3834
      %v3871 = vpack.c.b16 %v3839, %v3837
      %v3872 = vpack.c.b16 %v3840, %v3838
      %3905 = vmatpush.bf16.msra.mxu0 %v3855
      %3906 = vmatpush.bf16.msra.mxu0 %v3853
      %3907 = vmatpush.bf16.msra.mxu0 %v3851
      %3908 = vmatpush.bf16.msra.mxu0 %v3849
      %3909 = vmatpush.bf16.msra.mxu0 %v3847
      %3910 = vmatpush.bf16.msra.mxu0 %v3845
      %3911 = vmatpush.bf16.msra.mxu0 %v3843
      %3912 = vmatpush.bf16.msra.mxu0 %v3841
      %3913 = vmatmul.bf16.gmra.mxu0 %v3699
      %v3914 = vpop.f32.mrf.mxu0
      %v3915 = vadd.f32 %v3741, %v3914
      %v3916 = vpop.f32.mrf.mxu0
      %v3917 = vadd.f32 %v3741, %v3916
      %3918 = vmatmul.bf16.gmra.mxu0 %v3701
      %v3919 = vpop.f32.mrf.mxu0
      %v3920 = vadd.f32 %v3741, %v3919
      %v3921 = vpop.f32.mrf.mxu0
      %v3922 = vadd.f32 %v3741, %v3921
      %3923 = vmatmul.bf16.gmra.mxu0 %v3703
      %v3924 = vpop.f32.mrf.mxu0
      %v3925 = vadd.f32 %v3741, %v3924
      %v3926 = vpop.f32.mrf.mxu0
      %v3927 = vadd.f32 %v3741, %v3926
      %3928 = vmatmul.bf16.gmra.mxu0 %v3705
      %v3929 = vpop.f32.mrf.mxu0
      %v3930 = vadd.f32 %v3741, %v3929
      %v3931 = vpop.f32.mrf.mxu0
      %v3932 = vadd.f32 %v3741, %v3931
      %3933 = vdwg.mxu0
      %3934 = vmatpush.bf16.msra.mxu0 %v3871
      %3935 = vmatpush.bf16.msra.mxu0 %v3869
      %3936 = vmatpush.bf16.msra.mxu0 %v3867
      %3937 = vmatpush.bf16.msra.mxu0 %v3865
      %3938 = vmatpush.bf16.msra.mxu0 %v3863
      %3939 = vmatpush.bf16.msra.mxu0 %v3861
      %3940 = vmatpush.bf16.msra.mxu0 %v3859
      %3941 = vmatpush.bf16.msra.mxu0 %v3857
      %3942 = vmatmul.bf16.gmra.mxu0 %v3700
      %v3943 = vpop.f32.mrf.mxu0
      %v3944 = vadd.f32 %v3915, %v3943
      %v3945 = vpop.f32.mrf.mxu0
      %v3946 = vadd.f32 %v3917, %v3945
      %3947 = vmatmul.bf16.gmra.mxu0 %v3702
      %v3948 = vpop.f32.mrf.mxu0
      %v3949 = vadd.f32 %v3920, %v3948
      %v3950 = vpop.f32.mrf.mxu0
      %v3951 = vadd.f32 %v3922, %v3950
      %3952 = vmatmul.bf16.gmra.mxu0 %v3704
      %v3953 = vpop.f32.mrf.mxu0
      %v3954 = vadd.f32 %v3925, %v3953
      %v3955 = vpop.f32.mrf.mxu0
      %v3956 = vadd.f32 %v3927, %v3955
      %3957 = vmatmul.bf16.gmra.mxu0 %v3706
      %v3958 = vpop.f32.mrf.mxu0
      %v3959 = vadd.f32 %v3930, %v3958
      %v3960 = vpop.f32.mrf.mxu0
      %v3961 = vadd.f32 %v3932, %v3960
      %3962 = vdwg.mxu0
      %3963 = vmatpush.bf16.msra.mxu0 %v3856
      %3964 = vmatpush.bf16.msra.mxu0 %v3854
      %3965 = vmatpush.bf16.msra.mxu0 %v3852
      %3966 = vmatpush.bf16.msra.mxu0 %v3850
      %3967 = vmatpush.bf16.msra.mxu0 %v3848
      %3968 = vmatpush.bf16.msra.mxu0 %v3846
      %3969 = vmatpush.bf16.msra.mxu0 %v3844
      %3970 = vmatpush.bf16.msra.mxu0 %v3842
      %3971 = vmatmul.bf16.gmra.mxu0 %v3699
      %v3972 = vpop.f32.mrf.mxu0
      %v3973 = vadd.f32 %v3742, %v3972
      %v3974 = vpop.f32.mrf.mxu0
      %v3975 = vadd.f32 %v3742, %v3974
      %3976 = vmatmul.bf16.gmra.mxu0 %v3701
      %v3977 = vpop.f32.mrf.mxu0
      %v3978 = vadd.f32 %v3742, %v3977
      %v3979 = vpop.f32.mrf.mxu0
      %v3980 = vadd.f32 %v3742, %v3979
      %3981 = vmatmul.bf16.gmra.mxu0 %v3703
      %v3982 = vpop.f32.mrf.mxu0
      %v3983 = vadd.f32 %v3742, %v3982
      %v3984 = vpop.f32.mrf.mxu0
      %v3985 = vadd.f32 %v3742, %v3984
      %3986 = vmatmul.bf16.gmra.mxu0 %v3705
      %v3987 = vpop.f32.mrf.mxu0
      %v3988 = vadd.f32 %v3742, %v3987
      %v3989 = vpop.f32.mrf.mxu0
      %v3990 = vadd.f32 %v3742, %v3989
      %3991 = vdwg.mxu0
      %3992 = vmatpush.bf16.msra.mxu0 %v3872
      %3993 = vmatpush.bf16.msra.mxu0 %v3870
      %3994 = vmatpush.bf16.msra.mxu0 %v3868
      %3995 = vmatpush.bf16.msra.mxu0 %v3866
      %3996 = vmatpush.bf16.msra.mxu0 %v3864
      %3997 = vmatpush.bf16.msra.mxu0 %v3862
      %3998 = vmatpush.bf16.msra.mxu0 %v3860
      %3999 = vmatpush.bf16.msra.mxu0 %v3858
      %4000 = vmatmul.bf16.gmra.mxu0 %v3700
      %v4001 = vpop.f32.mrf.mxu0
      %v4002 = vadd.f32 %v3973, %v4001
      %v4003 = vpop.f32.mrf.mxu0
      %v4004 = vadd.f32 %v3975, %v4003
      %4005 = vmatmul.bf16.gmra.mxu0 %v3702
      %v4006 = vpop.f32.mrf.mxu0
      %v4007 = vadd.f32 %v3978, %v4006
      %v4008 = vpop.f32.mrf.mxu0
      %v4009 = vadd.f32 %v3980, %v4008
      %4010 = vmatmul.bf16.gmra.mxu0 %v3704
      %v4011 = vpop.f32.mrf.mxu0
      %v4012 = vadd.f32 %v3983, %v4011
      %v4013 = vpop.f32.mrf.mxu0
      %v4014 = vadd.f32 %v3985, %v4013
      %4015 = vmatmul.bf16.gmra.mxu0 %v3706
      %v4016 = vpop.f32.mrf.mxu0
      %v4017 = vadd.f32 %v3988, %v4016
      %v4018 = vpop.f32.mrf.mxu0
      %v4019 = vadd.f32 %v3990, %v4018
      %4020 = vdwg.mxu0
      %v4021 = vmax.f32 %v3944, 0.0
      %v4022 = vmax.f32 %v4002, 0.0
      %v4023 = vmax.f32 %v3946, 0.0
      %v4024 = vmax.f32 %v4004, 0.0
      %v4025 = vmax.f32 %v3949, 0.0
      %v4026 = vmax.f32 %v4007, 0.0
      %v4027 = vmax.f32 %v3951, 0.0
      %v4028 = vmax.f32 %v4009, 0.0
      %v4029 = vmax.f32 %v3954, 0.0
      %v4030 = vmax.f32 %v4012, 0.0
      %v4031 = vmax.f32 %v3956, 0.0
      %v4032 = vmax.f32 %v4014, 0.0
      %v4033 = vmax.f32 %v3959, 0.0
      %v4034 = vmax.f32 %v4017, 0.0
      %v4035 = vmax.f32 %v3961, 0.0
      %v4036 = vmax.f32 %v4019, 0.0
      %v4037 = vpack.c.bf16 %v4023, %v4021
      %v4038 = vpack.c.bf16 %v4024, %v4022
      %v4039 = vpack.c.bf16 %v4027, %v4025
      %v4040 = vpack.c.bf16 %v4028, %v4026
      %v4041 = vpack.c.bf16 %v4031, %v4029
      %v4042 = vpack.c.bf16 %v4032, %v4030
      %v4043 = vpack.c.bf16 %v4035, %v4033
      %v4044 = vpack.c.bf16 %v4036, %v4034
      %v4045 = vld [vmem:[%s3] sm:$0xff]
      %v4046 = vld [vmem:[%s3 + $0x8] sm:$0xff]
      %v4047 = vld [vmem:[%s3 + $0x10] sm:$0xff]
      %v4048 = vld [vmem:[%s3 + $0x18] sm:$0xff]
      %v4049 = vld [vmem:[%s3 + $0x20] sm:$0xff]
      %v4050 = vld [vmem:[%s3 + $0x28] sm:$0xff]
      %v4051 = vld [vmem:[%s3 + $0x30] sm:$0xff]
      %v4052 = vld [vmem:[%s3 + $0x38] sm:$0xff]
      %v4053 = vld [vmem:[%s3 + $0x40] sm:$0xff]
      %v4054 = vld [vmem:[%s3 + $0x48] sm:$0xff]
      %v4055 = vld [vmem:[%s3 + $0x50] sm:$0xff]
      %v4056 = vld [vmem:[%s3 + $0x58] sm:$0xff]
      %v4057 = vld [vmem:[%s3 + $0x60] sm:$0xff]
      %v4058 = vld [vmem:[%s3 + $0x68] sm:$0xff]
      %v4059 = vld [vmem:[%s3 + $0x70] sm:$0xff]
      %v4060 = vld [vmem:[%s3 + $0x78] sm:$0xff]
      %v4061 = vld [vmem:[%s3 + $0x80] sm:$0xff]
      %v4062 = vld [vmem:[%s3 + $0x88] sm:$0xff]
      %v4063 = vld [vmem:[%s3 + $0x90] sm:$0xff]
      %v4064 = vld [vmem:[%s3 + $0x98] sm:$0xff]
      %v4065 = vld [vmem:[%s3 + $0xa0] sm:$0xff]
      %v4066 = vld [vmem:[%s3 + $0xa8] sm:$0xff]
      %v4067 = vld [vmem:[%s3 + $0xb0] sm:$0xff]
      %v4068 = vld [vmem:[%s3 + $0xb8] sm:$0xff]
      %v4069 = vld [vmem:[%s3 + $0xc0] sm:$0xff]
      %v4070 = vld [vmem:[%s3 + $0xc8] sm:$0xff]
      %v4071 = vld [vmem:[%s3 + $0xd0] sm:$0xff]
      %v4072 = vld [vmem:[%s3 + $0xd8] sm:$0xff]
      %v4073 = vld [vmem:[%s3 + $0xe0] sm:$0xff]
      %v4074 = vld [vmem:[%s3 + $0xe8] sm:$0xff]
      %v4075 = vld [vmem:[%s3 + $0xf0] sm:$0xff]
      %v4076 = vld [vmem:[%s3 + $0xf8] sm:$0xff]
      %v4077 = vld [vmem:[%s6] sm:$0x3]
      %v4079 = vperm.slane %v4077, 0
      %v4080 = vperm.slane %v4077, 1
      %v4115 = vunpack.c.l.b16 %v4045
      %v4116 = vunpack.c.h.b16 %v4045
      %v4117 = vunpack.c.l.b16 %v4046
      %v4118 = vunpack.c.h.b16 %v4046
      %v4119 = vunpack.c.l.b16 %v4047
      %v4120 = vunpack.c.h.b16 %v4047
      %v4121 = vunpack.c.l.b16 %v4048
      %v4122 = vunpack.c.h.b16 %v4048
      %v4123 = vunpack.c.l.b16 %v4049
      %v4124 = vunpack.c.h.b16 %v4049
      %v4125 = vunpack.c.l.b16 %v4050
      %v4126 = vunpack.c.h.b16 %v4050
      %v4127 = vunpack.c.l.b16 %v4051
      %v4128 = vunpack.c.h.b16 %v4051
      %v4129 = vunpack.c.l.b16 %v4052
      %v4130 = vunpack.c.h.b16 %v4052
      %v4131 = vunpack.c.l.b16 %v4053
      %v4132 = vunpack.c.h.b16 %v4053
      %v4133 = vunpack.c.l.b16 %v4054
      %v4134 = vunpack.c.h.b16 %v4054
      %v4135 = vunpack.c.l.b16 %v4055
      %v4136 = vunpack.c.h.b16 %v4055
      %v4137 = vunpack.c.l.b16 %v4056
      %v4138 = vunpack.c.h.b16 %v4056
      %v4139 = vunpack.c.l.b16 %v4057
      %v4140 = vunpack.c.h.b16 %v4057
      %v4141 = vunpack.c.l.b16 %v4058
      %v4142 = vunpack.c.h.b16 %v4058
      %v4143 = vunpack.c.l.b16 %v4059
      %v4144 = vunpack.c.h.b16 %v4059
      %v4145 = vunpack.c.l.b16 %v4060
      %v4146 = vunpack.c.h.b16 %v4060
      %v4147 = vunpack.c.l.b16 %v4061
      %v4148 = vunpack.c.h.b16 %v4061
      %v4149 = vunpack.c.l.b16 %v4062
      %v4150 = vunpack.c.h.b16 %v4062
      %v4151 = vunpack.c.l.b16 %v4063
      %v4152 = vunpack.c.h.b16 %v4063
      %v4153 = vunpack.c.l.b16 %v4064
      %v4154 = vunpack.c.h.b16 %v4064
      %v4155 = vunpack.c.l.b16 %v4065
      %v4156 = vunpack.c.h.b16 %v4065
      %v4157 = vunpack.c.l.b16 %v4066
      %v4158 = vunpack.c.h.b16 %v4066
      %v4159 = vunpack.c.l.b16 %v4067
      %v4160 = vunpack.c.h.b16 %v4067
      %v4161 = vunpack.c.l.b16 %v4068
      %v4162 = vunpack.c.h.b16 %v4068
      %v4163 = vunpack.c.l.b16 %v4069
      %v4164 = vunpack.c.h.b16 %v4069
      %v4165 = vunpack.c.l.b16 %v4070
      %v4166 = vunpack.c.h.b16 %v4070
      %v4167 = vunpack.c.l.b16 %v4071
      %v4168 = vunpack.c.h.b16 %v4071
      %v4169 = vunpack.c.l.b16 %v4072
      %v4170 = vunpack.c.h.b16 %v4072
      %v4171 = vunpack.c.l.b16 %v4073
      %v4172 = vunpack.c.h.b16 %v4073
      %v4173 = vunpack.c.l.b16 %v4074
      %v4174 = vunpack.c.h.b16 %v4074
      %v4175 = vunpack.c.l.b16 %v4075
      %v4176 = vunpack.c.h.b16 %v4075
      %v4177 = vunpack.c.l.b16 %v4076
      %v4178 = vunpack.c.h.b16 %v4076
      %v4179 = vpack.c.b16 %v4117, %v4115
      %v4180 = vpack.c.b16 %v4118, %v4116
      %v4181 = vpack.c.b16 %v4121, %v4119
      %v4182 = vpack.c.b16 %v4122, %v4120
      %v4183 = vpack.c.b16 %v4125, %v4123
      %v4184 = vpack.c.b16 %v4126, %v4124
      %v4185 = vpack.c.b16 %v4129, %v4127
      %v4186 = vpack.c.b16 %v4130, %v4128
      %v4187 = vpack.c.b16 %v4133, %v4131
      %v4188 = vpack.c.b16 %v4134, %v4132
      %v4189 = vpack.c.b16 %v4137, %v4135
      %v4190 = vpack.c.b16 %v4138, %v4136
      %v4191 = vpack.c.b16 %v4141, %v4139
      %v4192 = vpack.c.b16 %v4142, %v4140
      %v4193 = vpack.c.b16 %v4145, %v4143
      %v4194 = vpack.c.b16 %v4146, %v4144
      %v4195 = vpack.c.b16 %v4149, %v4147
      %v4196 = vpack.c.b16 %v4150, %v4148
      %v4197 = vpack.c.b16 %v4153, %v4151
      %v4198 = vpack.c.b16 %v4154, %v4152
      %v4199 = vpack.c.b16 %v4157, %v4155
      %v4200 = vpack.c.b16 %v4158, %v4156
      %v4201 = vpack.c.b16 %v4161, %v4159
      %v4202 = vpack.c.b16 %v4162, %v4160
      %v4203 = vpack.c.b16 %v4165, %v4163
      %v4204 = vpack.c.b16 %v4166, %v4164
      %v4205 = vpack.c.b16 %v4169, %v4167
      %v4206 = vpack.c.b16 %v4170, %v4168
      %v4207 = vpack.c.b16 %v4173, %v4171
      %v4208 = vpack.c.b16 %v4174, %v4172
      %v4209 = vpack.c.b16 %v4177, %v4175
      %v4210 = vpack.c.b16 %v4178, %v4176
      %4243 = vmatpush.bf16.msra.mxu0 %v4193
      %4244 = vmatpush.bf16.msra.mxu0 %v4191
      %4245 = vmatpush.bf16.msra.mxu0 %v4189
      %4246 = vmatpush.bf16.msra.mxu0 %v4187
      %4247 = vmatpush.bf16.msra.mxu0 %v4185
      %4248 = vmatpush.bf16.msra.mxu0 %v4183
      %4249 = vmatpush.bf16.msra.mxu0 %v4181
      %4250 = vmatpush.bf16.msra.mxu0 %v4179
      %4251 = vmatmul.bf16.gmra.mxu0 %v4037
      %v4252 = vpop.f32.mrf.mxu0
      %v4253 = vadd.f32 %v4079, %v4252
      %v4254 = vpop.f32.mrf.mxu0
      %v4255 = vadd.f32 %v4079, %v4254
      %4256 = vmatmul.bf16.gmra.mxu0 %v4039
      %v4257 = vpop.f32.mrf.mxu0
      %v4258 = vadd.f32 %v4079, %v4257
      %v4259 = vpop.f32.mrf.mxu0
      %v4260 = vadd.f32 %v4079, %v4259
      %4261 = vmatmul.bf16.gmra.mxu0 %v4041
      %v4262 = vpop.f32.mrf.mxu0
      %v4263 = vadd.f32 %v4079, %v4262
      %v4264 = vpop.f32.mrf.mxu0
      %v4265 = vadd.f32 %v4079, %v4264
      %4266 = vmatmul.bf16.gmra.mxu0 %v4043
      %v4267 = vpop.f32.mrf.mxu0
      %v4268 = vadd.f32 %v4079, %v4267
      %v4269 = vpop.f32.mrf.mxu0
      %v4270 = vadd.f32 %v4079, %v4269
      %4271 = vdwg.mxu0
      %4272 = vmatpush.bf16.msra.mxu0 %v4209
      %4273 = vmatpush.bf16.msra.mxu0 %v4207
      %4274 = vmatpush.bf16.msra.mxu0 %v4205
      %4275 = vmatpush.bf16.msra.mxu0 %v4203
      %4276 = vmatpush.bf16.msra.mxu0 %v4201
      %4277 = vmatpush.bf16.msra.mxu0 %v4199
      %4278 = vmatpush.bf16.msra.mxu0 %v4197
      %4279 = vmatpush.bf16.msra.mxu0 %v4195
      %4280 = vmatmul.bf16.gmra.mxu0 %v4038
      %v4281 = vpop.f32.mrf.mxu0
      %v4282 = vadd.f32 %v4253, %v4281
      %v4283 = vpop.f32.mrf.mxu0
      %v4284 = vadd.f32 %v4255, %v4283
      %4285 = vmatmul.bf16.gmra.mxu0 %v4040
      %v4286 = vpop.f32.mrf.mxu0
      %v4287 = vadd.f32 %v4258, %v4286
      %v4288 = vpop.f32.mrf.mxu0
      %v4289 = vadd.f32 %v4260, %v4288
      %4290 = vmatmul.bf16.gmra.mxu0 %v4042
      %v4291 = vpop.f32.mrf.mxu0
      %v4292 = vadd.f32 %v4263, %v4291
      %v4293 = vpop.f32.mrf.mxu0
      %v4294 = vadd.f32 %v4265, %v4293
      %4295 = vmatmul.bf16.gmra.mxu0 %v4044
      %v4296 = vpop.f32.mrf.mxu0
      %v4297 = vadd.f32 %v4268, %v4296
      %v4298 = vpop.f32.mrf.mxu0
      %v4299 = vadd.f32 %v4270, %v4298
      %4300 = vdwg.mxu0
      %4301 = vmatpush.bf16.msra.mxu0 %v4194
      %4302 = vmatpush.bf16.msra.mxu0 %v4192
      %4303 = vmatpush.bf16.msra.mxu0 %v4190
      %4304 = vmatpush.bf16.msra.mxu0 %v4188
      %4305 = vmatpush.bf16.msra.mxu0 %v4186
      %4306 = vmatpush.bf16.msra.mxu0 %v4184
      %4307 = vmatpush.bf16.msra.mxu0 %v4182
      %4308 = vmatpush.bf16.msra.mxu0 %v4180
      %4309 = vmatmul.bf16.gmra.mxu0 %v4037
      %v4310 = vpop.f32.mrf.mxu0
      %v4311 = vadd.f32 %v4080, %v4310
      %v4312 = vpop.f32.mrf.mxu0
      %v4313 = vadd.f32 %v4080, %v4312
      %4314 = vmatmul.bf16.gmra.mxu0 %v4039
      %v4315 = vpop.f32.mrf.mxu0
      %v4316 = vadd.f32 %v4080, %v4315
      %v4317 = vpop.f32.mrf.mxu0
      %v4318 = vadd.f32 %v4080, %v4317
      %4319 = vmatmul.bf16.gmra.mxu0 %v4041
      %v4320 = vpop.f32.mrf.mxu0
      %v4321 = vadd.f32 %v4080, %v4320
      %v4322 = vpop.f32.mrf.mxu0
      %v4323 = vadd.f32 %v4080, %v4322
      %4324 = vmatmul.bf16.gmra.mxu0 %v4043
      %v4325 = vpop.f32.mrf.mxu0
      %v4326 = vadd.f32 %v4080, %v4325
      %v4327 = vpop.f32.mrf.mxu0
      %v4328 = vadd.f32 %v4080, %v4327
      %4329 = vdwg.mxu0
      %4330 = vmatpush.bf16.msra.mxu0 %v4210
      %4331 = vmatpush.bf16.msra.mxu0 %v4208
      %4332 = vmatpush.bf16.msra.mxu0 %v4206
      %4333 = vmatpush.bf16.msra.mxu0 %v4204
      %4334 = vmatpush.bf16.msra.mxu0 %v4202
      %4335 = vmatpush.bf16.msra.mxu0 %v4200
      %4336 = vmatpush.bf16.msra.mxu0 %v4198
      %4337 = vmatpush.bf16.msra.mxu0 %v4196
      %4338 = vmatmul.bf16.gmra.mxu0 %v4038
      %v4339 = vpop.f32.mrf.mxu0
      %v4340 = vadd.f32 %v4311, %v4339
      %v4341 = vpop.f32.mrf.mxu0
      %v4342 = vadd.f32 %v4313, %v4341
      %4343 = vmatmul.bf16.gmra.mxu0 %v4040
      %v4344 = vpop.f32.mrf.mxu0
      %v4345 = vadd.f32 %v4316, %v4344
      %v4346 = vpop.f32.mrf.mxu0
      %v4347 = vadd.f32 %v4318, %v4346
      %4348 = vmatmul.bf16.gmra.mxu0 %v4042
      %v4349 = vpop.f32.mrf.mxu0
      %v4350 = vadd.f32 %v4321, %v4349
      %v4351 = vpop.f32.mrf.mxu0
      %v4352 = vadd.f32 %v4323, %v4351
      %4353 = vmatmul.bf16.gmra.mxu0 %v4044
      %v4354 = vpop.f32.mrf.mxu0
      %v4355 = vadd.f32 %v4326, %v4354
      %v4356 = vpop.f32.mrf.mxu0
      %v4357 = vadd.f32 %v4328, %v4356
      %4358 = vdwg.mxu0
      %v4359 = vmax.f32 %v4282, 0.0
      %v4360 = vmax.f32 %v4340, 0.0
      %v4361 = vmax.f32 %v4284, 0.0
      %v4362 = vmax.f32 %v4342, 0.0
      %v4363 = vmax.f32 %v4287, 0.0
      %v4364 = vmax.f32 %v4345, 0.0
      %v4365 = vmax.f32 %v4289, 0.0
      %v4366 = vmax.f32 %v4347, 0.0
      %v4367 = vmax.f32 %v4292, 0.0
      %v4368 = vmax.f32 %v4350, 0.0
      %v4369 = vmax.f32 %v4294, 0.0
      %v4370 = vmax.f32 %v4352, 0.0
      %v4371 = vmax.f32 %v4297, 0.0
      %v4372 = vmax.f32 %v4355, 0.0
      %v4373 = vmax.f32 %v4299, 0.0
      %v4374 = vmax.f32 %v4357, 0.0
      %v4375 = vpack.c.bf16 %v4360, %v4359
      %v4376 = vpack.c.bf16 %v4362, %v4361
      %v4377 = vpack.c.bf16 %v4364, %v4363
      %v4378 = vpack.c.bf16 %v4366, %v4365
      %v4379 = vpack.c.bf16 %v4368, %v4367
      %v4380 = vpack.c.bf16 %v4370, %v4369
      %v4381 = vpack.c.bf16 %v4372, %v4371
      %v4382 = vpack.c.bf16 %v4374, %v4373
      %4383 = vst [vmem:[%s285] sm:$0xff] %v4375
      %4384 = vst [vmem:[%s285 + $0x8] sm:$0xff] %v4376
      %4385 = vst [vmem:[%s285 + $0x10] sm:$0xff] %v4377
      %4386 = vst [vmem:[%s285 + $0x18] sm:$0xff] %v4378
      %4387 = vst [vmem:[%s285 + $0x20] sm:$0xff] %v4379
      %4388 = vst [vmem:[%s285 + $0x28] sm:$0xff] %v4380
      %4389 = vst [vmem:[%s285 + $0x30] sm:$0xff] %v4381
      %4390 = vst [vmem:[%s285 + $0x38] sm:$0xff] %v4382
      %s4391 = smul.u32 8, %s18
      %p4392 = scmp.lt.s32.totalorder %s4391, 15
      %s4393 = scalar_select %p4392, %s4391, 15
      %s4394 = smul.addr %s4393, 2
      %s4395 = smul.addr %s4394, 4
      %s4396 = scalar_lea.vmem %s7, %s4395
      // Predicated region
      $region49: #{nin_forward.4} parent=47 // pred_check
        %p4397 = pneg %p188
      $region50: #{nin_forward.4} parent=47 // pred_check_branch
        %4399 = sbr.rel (%p4397) target = $region52
      $region51: #{nin_forward.4} parent=47 // pred_region
        %s4400 = smul.u32 8, %s18
      $region52: #{nin_forward.4} parent=47 // pred_fallthru
        _
    $region48: #{nin_forward.4} parent=5 // pred_fallthru
      _
    %p4401 = scmp.le.s32.totalorder 2, %s13
    // Predicated region
    $region53: #{nin_forward.4} parent=5 // pred_check
      %p4402 = pneg %p4401
    $region54: #{nin_forward.4} parent=5 // pred_check_branch
      %4404 = sbr.rel (%p4402) target = $region56
    $region55: #{nin_forward.4} parent=5 // pred_region
      %s4405 = ssub.s32 %s13, 2
      // Predicated region
      $region57: #{nin_forward.4} parent=55 // pred_check
        %p4406 = pneg %p194
      $region58: #{nin_forward.4} parent=55 // pred_check_branch
        %4408 = sbr.rel (%p4406) target = $region60
      $region59: #{nin_forward.4} parent=55 // pred_region
        %s4409 = smul.u32 8, %s19
        %p4410 = scmp.lt.s32.totalorder %s4409, 15
        %s4411 = scalar_select %p4410, %s4409, 15
        %s4412 = smul.addr %s4411, 2
        %s4413 = smul.addr %s4412, 4
        %s4414 = scalar_lea.vmem %s7, %s4413
      $region60: #{nin_forward.4} parent=55 // pred_fallthru
        _
    $region56: #{nin_forward.4} parent=5 // pred_fallthru
      _
  $region6: #{nin_forward.4} parent=0 // loop_footer
    %s17 = sadd.s32 1, %s13
  $region7: #{nin_forward.4} parent=0 // loop_footer_branch
    %12 = sbr.rel target = $region3
  $region8: #{nin_forward.4} parent=0 // loop_exit
    _

// kernel: nin_forward.5
$region0: #{nin_forward.5}
  #allocation0 [shape = 'u32[]', space=smem, size = 0x4, offset = 0x4, fixed_abs, tag = 'smem constant byte address 0x4 - core index']
  #allocation1 [shape = 'u32[72,128]{1,0:T(1,128)}', space=vmem, size = 0x9000, scoped, tag = 'internal scratch']
  %s0 = inlined_call_operand.vmem [shape: bf16[8,1792], index: 0, kind: input, shape index: {}]
  %s1 = inlined_call_operand.vmem [shape: bf16[1792,256], index: 1, kind: input, shape index: {}]
  %s2 = inlined_call_operand.vmem [shape: bf16[256,256], index: 2, kind: input, shape index: {}]
  %s3 = inlined_call_operand.vmem [shape: bf16[256,256], index: 3, kind: input, shape index: {}]
  %s4 = inlined_call_operand.vmem [shape: bf16[256,128], index: 4, kind: input, shape index: {}]
  %s5 = inlined_call_operand.vmem [shape: f32[1,256], index: 5, kind: input, shape index: {}]
  %s6 = inlined_call_operand.vmem [shape: f32[1,256], index: 6, kind: input, shape index: {}]
  %s7 = inlined_call_operand.vmem [shape: f32[1,256], index: 7, kind: input, shape index: {}]
  %s8 = inlined_call_operand.vmem [shape: f32[1,128], index: 8, kind: input, shape index: {}]
  %s9 = inlined_call_operand.vmem [shape: bf16[8,128], index: 9, kind: output, shape index: {}]
  %s10 = sld [smem:[#allocation0]]
  $region46: #{nin_forward.5} parent=0
    _
  %s12 = ssub.s32 1, %s10
  %s13 = scalar_select 0, %s12, %s10
  // Predicated region
  $region2: #{nin_forward.5} parent=0 // pred_check
    _
  $region3: #{nin_forward.5} parent=0 // pred_check_branch
    %15 = sbr.rel (0) target = $region5
  $region4: #{nin_forward.5} parent=0 // pred_region
    _
  $region5: #{nin_forward.5} parent=0 // pred_fallthru
    _
  // Predicated region
  $region6: #{nin_forward.5} parent=0 // pred_check
    _
  $region7: #{nin_forward.5} parent=0 // pred_check_branch
    %17 = sbr.rel (0) target = $region9
  $region8: #{nin_forward.5} parent=0 // pred_region
    _
  $region9: #{nin_forward.5} parent=0 // pred_fallthru
    _
  // Predicated region
  $region10: #{nin_forward.5} parent=0 // pred_check
    _
  $region11: #{nin_forward.5} parent=0 // pred_check_branch
    %19 = sbr.rel (0) target = $region13
  $region12: #{nin_forward.5} parent=0 // pred_region
    _
  $region13: #{nin_forward.5} parent=0 // pred_fallthru
    _
  // Predicated region
  $region14: #{nin_forward.5} parent=0 // pred_check
    _
  $region15: #{nin_forward.5} parent=0 // pred_check_branch
    %21 = sbr.rel (0) target = $region17
  $region16: #{nin_forward.5} parent=0 // pred_region
    _
  $region17: #{nin_forward.5} parent=0 // pred_fallthru
    _
  // Predicated region
  $region18: #{nin_forward.5} parent=0 // pred_check
    _
  $region19: #{nin_forward.5} parent=0 // pred_check_branch
    %23 = sbr.rel (0) target = $region21
  $region20: #{nin_forward.5} parent=0 // pred_region
    _
  $region21: #{nin_forward.5} parent=0 // pred_fallthru
    _
  // Predicated region
  $region22: #{nin_forward.5} parent=0 // pred_check
    _
  $region23: #{nin_forward.5} parent=0 // pred_check_branch
    %25 = sbr.rel (0) target = $region25
  $region24: #{nin_forward.5} parent=0 // pred_region
    _
  $region25: #{nin_forward.5} parent=0 // pred_fallthru
    _
  // Predicated region
  $region26: #{nin_forward.5} parent=0 // pred_check
    _
  $region27: #{nin_forward.5} parent=0 // pred_check_branch
    %27 = sbr.rel (0) target = $region29
  $region28: #{nin_forward.5} parent=0 // pred_region
    _
  $region29: #{nin_forward.5} parent=0 // pred_fallthru
    _
  // Predicated region
  $region30: #{nin_forward.5} parent=0 // pred_check
    _
  $region31: #{nin_forward.5} parent=0 // pred_check_branch
    %29 = sbr.rel (0) target = $region33
  $region32: #{nin_forward.5} parent=0 // pred_region
    _
  $region33: #{nin_forward.5} parent=0 // pred_fallthru
    _
  // Predicated region
  $region34: #{nin_forward.5} parent=0 // pred_check
    _
  $region35: #{nin_forward.5} parent=0 // pred_check_branch
    %31 = sbr.rel (0) target = $region37
  $region36: #{nin_forward.5} parent=0 // pred_region
    _
  $region37: #{nin_forward.5} parent=0 // pred_fallthru
    _
  %v32 = vld [vmem:[%s0] sm:$0xff]
  %v33 = vld [vmem:[%s0 + $0x8] sm:$0xff]
  %v34 = vld [vmem:[%s0 + $0x10] sm:$0xff]
  %v35 = vld [vmem:[%s0 + $0x18] sm:$0xff]
  %v36 = vld [vmem:[%s0 + $0x20] sm:$0xff]
  %v37 = vld [vmem:[%s0 + $0x28] sm:$0xff]
  %v38 = vld [vmem:[%s0 + $0x30] sm:$0xff]
  %v39 = vld [vmem:[%s1] sm:$0xff]
  %v40 = vld [vmem:[%s1 + $0x8] sm:$0xff]
  %v41 = vld [vmem:[%s1 + $0x10] sm:$0xff]
  %v42 = vld [vmem:[%s1 + $0x18] sm:$0xff]
  %v43 = vld [vmem:[%s1 + $0x20] sm:$0xff]
  %v44 = vld [vmem:[%s1 + $0x28] sm:$0xff]
  %v45 = vld [vmem:[%s1 + $0x30] sm:$0xff]
  %v46 = vld [vmem:[%s1 + $0x38] sm:$0xff]
  %v47 = vld [vmem:[%s1 + $0x40] sm:$0xff]
  %v48 = vld [vmem:[%s1 + $0x48] sm:$0xff]
  %v49 = vld [vmem:[%s1 + $0x50] sm:$0xff]
  %v50 = vld [vmem:[%s1 + $0x58] sm:$0xff]
  %v51 = vld [vmem:[%s1 + $0x60] sm:$0xff]
  %v52 = vld [vmem:[%s1 + $0x68] sm:$0xff]
  %v53 = vld [vmem:[%s1 + $0x70] sm:$0xff]
  %v54 = vld [vmem:[%s1 + $0x78] sm:$0xff]
  %v55 = vld [vmem:[%s1 + $0x80] sm:$0xff]
  %v56 = vld [vmem:[%s1 + $0x88] sm:$0xff]
  %v57 = vld [vmem:[%s1 + $0x90] sm:$0xff]
  %v58 = vld [vmem:[%s1 + $0x98] sm:$0xff]
  %v59 = vld [vmem:[%s1 + $0xa0] sm:$0xff]
  %v60 = vld [vmem:[%s1 + $0xa8] sm:$0xff]
  %v61 = vld [vmem:[%s1 + $0xb0] sm:$0xff]
  %v62 = vld [vmem:[%s1 + $0xb8] sm:$0xff]
  %v63 = vld [vmem:[%s1 + $0xc0] sm:$0xff]
  %v64 = vld [vmem:[%s1 + $0xc8] sm:$0xff]
  %v65 = vld [vmem:[%s1 + $0xd0] sm:$0xff]
  %v66 = vld [vmem:[%s1 + $0xd8] sm:$0xff]
  %v67 = vld [vmem:[%s1 + $0xe0] sm:$0xff]
  %v68 = vld [vmem:[%s1 + $0xe8] sm:$0xff]
  %v69 = vld [vmem:[%s1 + $0xf0] sm:$0xff]
  %v70 = vld [vmem:[%s1 + $0xf8] sm:$0xff]
  %v71 = vld [vmem:[%s1 + $0x100] sm:$0xff]
  %v72 = vld [vmem:[%s1 + $0x108] sm:$0xff]
  %v73 = vld [vmem:[%s1 + $0x110] sm:$0xff]
  %v74 = vld [vmem:[%s1 + $0x118] sm:$0xff]
  %v75 = vld [vmem:[%s1 + $0x120] sm:$0xff]
  %v76 = vld [vmem:[%s1 + $0x128] sm:$0xff]
  %v77 = vld [vmem:[%s1 + $0x130] sm:$0xff]
  %v78 = vld [vmem:[%s1 + $0x138] sm:$0xff]
  %v79 = vld [vmem:[%s1 + $0x140] sm:$0xff]
  %v80 = vld [vmem:[%s1 + $0x148] sm:$0xff]
  %v81 = vld [vmem:[%s1 + $0x150] sm:$0xff]
  %v82 = vld [vmem:[%s1 + $0x158] sm:$0xff]
  %v83 = vld [vmem:[%s1 + $0x160] sm:$0xff]
  %v84 = vld [vmem:[%s1 + $0x168] sm:$0xff]
  %v85 = vld [vmem:[%s1 + $0x170] sm:$0xff]
  %v86 = vld [vmem:[%s1 + $0x178] sm:$0xff]
  %v87 = vld [vmem:[%s1 + $0x180] sm:$0xff]
  %v88 = vld [vmem:[%s1 + $0x188] sm:$0xff]
  %v89 = vld [vmem:[%s1 + $0x190] sm:$0xff]
  %v90 = vld [vmem:[%s1 + $0x198] sm:$0xff]
  %v91 = vld [vmem:[%s1 + $0x1a0] sm:$0xff]
  %v92 = vld [vmem:[%s1 + $0x1a8] sm:$0xff]
  %v93 = vld [vmem:[%s1 + $0x1b0] sm:$0xff]
  %v94 = vld [vmem:[%s1 + $0x1b8] sm:$0xff]
  %v95 = vld [vmem:[%s1 + $0x1c0] sm:$0xff]
  %v96 = vld [vmem:[%s1 + $0x1c8] sm:$0xff]
  %v97 = vld [vmem:[%s1 + $0x1d0] sm:$0xff]
  %v98 = vld [vmem:[%s1 + $0x1d8] sm:$0xff]
  %v99 = vld [vmem:[%s1 + $0x1e0] sm:$0xff]
  %v100 = vld [vmem:[%s1 + $0x1e8] sm:$0xff]
  %v101 = vld [vmem:[%s1 + $0x1f0] sm:$0xff]
  %v102 = vld [vmem:[%s1 + $0x1f8] sm:$0xff]
  %v103 = vld [vmem:[%s1 + $0x200] sm:$0xff]
  %v104 = vld [vmem:[%s1 + $0x208] sm:$0xff]
  %v105 = vld [vmem:[%s1 + $0x210] sm:$0xff]
  %v106 = vld [vmem:[%s1 + $0x218] sm:$0xff]
  %v107 = vld [vmem:[%s1 + $0x220] sm:$0xff]
  %v108 = vld [vmem:[%s1 + $0x228] sm:$0xff]
  %v109 = vld [vmem:[%s1 + $0x230] sm:$0xff]
  %v110 = vld [vmem:[%s1 + $0x238] sm:$0xff]
  %v111 = vld [vmem:[%s1 + $0x240] sm:$0xff]
  %v112 = vld [vmem:[%s1 + $0x248] sm:$0xff]
  %v113 = vld [vmem:[%s1 + $0x250] sm:$0xff]
  %v114 = vld [vmem:[%s1 + $0x258] sm:$0xff]
  %v115 = vld [vmem:[%s1 + $0x260] sm:$0xff]
  %v116 = vld [vmem:[%s1 + $0x268] sm:$0xff]
  %v117 = vld [vmem:[%s1 + $0x270] sm:$0xff]
  %v118 = vld [vmem:[%s1 + $0x278] sm:$0xff]
  %v119 = vld [vmem:[%s1 + $0x280] sm:$0xff]
  %v120 = vld [vmem:[%s1 + $0x288] sm:$0xff]
  %v121 = vld [vmem:[%s1 + $0x290] sm:$0xff]
  %v122 = vld [vmem:[%s1 + $0x298] sm:$0xff]
  %v123 = vld [vmem:[%s1 + $0x2a0] sm:$0xff]
  %v124 = vld [vmem:[%s1 + $0x2a8] sm:$0xff]
  %v125 = vld [vmem:[%s1 + $0x2b0] sm:$0xff]
  %v126 = vld [vmem:[%s1 + $0x2b8] sm:$0xff]
  %v127 = vld [vmem:[%s1 + $0x2c0] sm:$0xff]
  %v128 = vld [vmem:[%s1 + $0x2c8] sm:$0xff]
  %v129 = vld [vmem:[%s1 + $0x2d0] sm:$0xff]
  %v130 = vld [vmem:[%s1 + $0x2d8] sm:$0xff]
  %v131 = vld [vmem:[%s1 + $0x2e0] sm:$0xff]
  %v132 = vld [vmem:[%s1 + $0x2e8] sm:$0xff]
  %v133 = vld [vmem:[%s1 + $0x2f0] sm:$0xff]
  %v134 = vld [vmem:[%s1 + $0x2f8] sm:$0xff]
  %v135 = vld [vmem:[%s1 + $0x300] sm:$0xff]
  %v136 = vld [vmem:[%s1 + $0x308] sm:$0xff]
  %v137 = vld [vmem:[%s1 + $0x310] sm:$0xff]
  %v138 = vld [vmem:[%s1 + $0x318] sm:$0xff]
  %v139 = vld [vmem:[%s1 + $0x320] sm:$0xff]
  %v140 = vld [vmem:[%s1 + $0x328] sm:$0xff]
  %v141 = vld [vmem:[%s1 + $0x330] sm:$0xff]
  %v142 = vld [vmem:[%s1 + $0x338] sm:$0xff]
  %v143 = vld [vmem:[%s1 + $0x340] sm:$0xff]
  %v144 = vld [vmem:[%s1 + $0x348] sm:$0xff]
  %v145 = vld [vmem:[%s1 + $0x350] sm:$0xff]
  %v146 = vld [vmem:[%s1 + $0x358] sm:$0xff]
  %v147 = vld [vmem:[%s1 + $0x360] sm:$0xff]
  %v148 = vld [vmem:[%s1 + $0x368] sm:$0xff]
  %v149 = vld [vmem:[%s1 + $0x370] sm:$0xff]
  %v150 = vld [vmem:[%s1 + $0x378] sm:$0xff]
  %v151 = vld [vmem:[%s1 + $0x380] sm:$0xff]
  %v152 = vld [vmem:[%s1 + $0x388] sm:$0xff]
  %v153 = vld [vmem:[%s1 + $0x390] sm:$0xff]
  %v154 = vld [vmem:[%s1 + $0x398] sm:$0xff]
  %v155 = vld [vmem:[%s1 + $0x3a0] sm:$0xff]
  %v156 = vld [vmem:[%s1 + $0x3a8] sm:$0xff]
  %v157 = vld [vmem:[%s1 + $0x3b0] sm:$0xff]
  %v158 = vld [vmem:[%s1 + $0x3b8] sm:$0xff]
  %v159 = vld [vmem:[%s1 + $0x3c0] sm:$0xff]
  %v160 = vld [vmem:[%s1 + $0x3c8] sm:$0xff]
  %v161 = vld [vmem:[%s1 + $0x3d0] sm:$0xff]
  %v162 = vld [vmem:[%s1 + $0x3d8] sm:$0xff]
  %v163 = vld [vmem:[%s1 + $0x3e0] sm:$0xff]
  %v164 = vld [vmem:[%s1 + $0x3e8] sm:$0xff]
  %v165 = vld [vmem:[%s1 + $0x3f0] sm:$0xff]
  %v166 = vld [vmem:[%s1 + $0x3f8] sm:$0xff]
  %v167 = vld [vmem:[%s1 + $0x400] sm:$0xff]
  %v168 = vld [vmem:[%s1 + $0x408] sm:$0xff]
  %v169 = vld [vmem:[%s1 + $0x410] sm:$0xff]
  %v170 = vld [vmem:[%s1 + $0x418] sm:$0xff]
  %v171 = vld [vmem:[%s1 + $0x420] sm:$0xff]
  %v172 = vld [vmem:[%s1 + $0x428] sm:$0xff]
  %v173 = vld [vmem:[%s1 + $0x430] sm:$0xff]
  %v174 = vld [vmem:[%s1 + $0x438] sm:$0xff]
  %v175 = vld [vmem:[%s1 + $0x440] sm:$0xff]
  %v176 = vld [vmem:[%s1 + $0x448] sm:$0xff]
  %v177 = vld [vmem:[%s1 + $0x450] sm:$0xff]
  %v178 = vld [vmem:[%s1 + $0x458] sm:$0xff]
  %v179 = vld [vmem:[%s1 + $0x460] sm:$0xff]
  %v180 = vld [vmem:[%s1 + $0x468] sm:$0xff]
  %v181 = vld [vmem:[%s1 + $0x470] sm:$0xff]
  %v182 = vld [vmem:[%s1 + $0x478] sm:$0xff]
  %v183 = vld [vmem:[%s1 + $0x480] sm:$0xff]
  %v184 = vld [vmem:[%s1 + $0x488] sm:$0xff]
  %v185 = vld [vmem:[%s1 + $0x490] sm:$0xff]
  %v186 = vld [vmem:[%s1 + $0x498] sm:$0xff]
  %v187 = vld [vmem:[%s1 + $0x4a0] sm:$0xff]
  %v188 = vld [vmem:[%s1 + $0x4a8] sm:$0xff]
  %v189 = vld [vmem:[%s1 + $0x4b0] sm:$0xff]
  %v190 = vld [vmem:[%s1 + $0x4b8] sm:$0xff]
  %v191 = vld [vmem:[%s1 + $0x4c0] sm:$0xff]
  %v192 = vld [vmem:[%s1 + $0x4c8] sm:$0xff]
  %v193 = vld [vmem:[%s1 + $0x4d0] sm:$0xff]
  %v194 = vld [vmem:[%s1 + $0x4d8] sm:$0xff]
  %v195 = vld [vmem:[%s1 + $0x4e0] sm:$0xff]
  %v196 = vld [vmem:[%s1 + $0x4e8] sm:$0xff]
  %v197 = vld [vmem:[%s1 + $0x4f0] sm:$0xff]
  %v198 = vld [vmem:[%s1 + $0x4f8] sm:$0xff]
  %v199 = vld [vmem:[%s1 + $0x500] sm:$0xff]
  %v200 = vld [vmem:[%s1 + $0x508] sm:$0xff]
  %v201 = vld [vmem:[%s1 + $0x510] sm:$0xff]
  %v202 = vld [vmem:[%s1 + $0x518] sm:$0xff]
  %v203 = vld [vmem:[%s1 + $0x520] sm:$0xff]
  %v204 = vld [vmem:[%s1 + $0x528] sm:$0xff]
  %v205 = vld [vmem:[%s1 + $0x530] sm:$0xff]
  %v206 = vld [vmem:[%s1 + $0x538] sm:$0xff]
  %v207 = vld [vmem:[%s1 + $0x540] sm:$0xff]
  %v208 = vld [vmem:[%s1 + $0x548] sm:$0xff]
  %v209 = vld [vmem:[%s1 + $0x550] sm:$0xff]
  %v210 = vld [vmem:[%s1 + $0x558] sm:$0xff]
  %v211 = vld [vmem:[%s1 + $0x560] sm:$0xff]
  %v212 = vld [vmem:[%s1 + $0x568] sm:$0xff]
  %v213 = vld [vmem:[%s1 + $0x570] sm:$0xff]
  %v214 = vld [vmem:[%s1 + $0x578] sm:$0xff]
  %v215 = vld [vmem:[%s1 + $0x580] sm:$0xff]
  %v216 = vld [vmem:[%s1 + $0x588] sm:$0xff]
  %v217 = vld [vmem:[%s1 + $0x590] sm:$0xff]
  %v218 = vld [vmem:[%s1 + $0x598] sm:$0xff]
  %v219 = vld [vmem:[%s1 + $0x5a0] sm:$0xff]
  %v220 = vld [vmem:[%s1 + $0x5a8] sm:$0xff]
  %v221 = vld [vmem:[%s1 + $0x5b0] sm:$0xff]
  %v222 = vld [vmem:[%s1 + $0x5b8] sm:$0xff]
  %v223 = vld [vmem:[%s1 + $0x5c0] sm:$0xff]
  %v224 = vld [vmem:[%s1 + $0x5c8] sm:$0xff]
  %v225 = vld [vmem:[%s1 + $0x5d0] sm:$0xff]
  %v226 = vld [vmem:[%s1 + $0x5d8] sm:$0xff]
  %v227 = vld [vmem:[%s1 + $0x5e0] sm:$0xff]
  %v228 = vld [vmem:[%s1 + $0x5e8] sm:$0xff]
  %v229 = vld [vmem:[%s1 + $0x5f0] sm:$0xff]
  %v230 = vld [vmem:[%s1 + $0x5f8] sm:$0xff]
  %v231 = vld [vmem:[%s1 + $0x600] sm:$0xff]
  %v232 = vld [vmem:[%s1 + $0x608] sm:$0xff]
  %v233 = vld [vmem:[%s1 + $0x610] sm:$0xff]
  %v234 = vld [vmem:[%s1 + $0x618] sm:$0xff]
  %v235 = vld [vmem:[%s1 + $0x620] sm:$0xff]
  %v236 = vld [vmem:[%s1 + $0x628] sm:$0xff]
  %v237 = vld [vmem:[%s1 + $0x630] sm:$0xff]
  %v238 = vld [vmem:[%s1 + $0x638] sm:$0xff]
  %v239 = vld [vmem:[%s1 + $0x640] sm:$0xff]
  %v240 = vld [vmem:[%s1 + $0x648] sm:$0xff]
  %v241 = vld [vmem:[%s1 + $0x650] sm:$0xff]
  %v242 = vld [vmem:[%s1 + $0x658] sm:$0xff]
  %v243 = vld [vmem:[%s1 + $0x660] sm:$0xff]
  %v244 = vld [vmem:[%s1 + $0x668] sm:$0xff]
  %v245 = vld [vmem:[%s1 + $0x670] sm:$0xff]
  %v246 = vld [vmem:[%s1 + $0x678] sm:$0xff]
  %v247 = vld [vmem:[%s1 + $0x680] sm:$0xff]
  %v248 = vld [vmem:[%s1 + $0x688] sm:$0xff]
  %v249 = vld [vmem:[%s1 + $0x690] sm:$0xff]
  %v250 = vld [vmem:[%s1 + $0x698] sm:$0xff]
  %v251 = vld [vmem:[%s1 + $0x6a0] sm:$0xff]
  %v252 = vld [vmem:[%s1 + $0x6a8] sm:$0xff]
  %v253 = vld [vmem:[%s1 + $0x6b0] sm:$0xff]
  %v254 = vld [vmem:[%s1 + $0x6b8] sm:$0xff]
  %v255 = vld [vmem:[%s1 + $0x6c0] sm:$0xff]
  %v256 = vld [vmem:[%s1 + $0x6c8] sm:$0xff]
  %v257 = vld [vmem:[%s1 + $0x6d0] sm:$0xff]
  %v258 = vld [vmem:[%s1 + $0x6d8] sm:$0xff]
  %v259 = vld [vmem:[%s1 + $0x6e0] sm:$0xff]
  %v260 = vld [vmem:[%s1 + $0x6e8] sm:$0xff]
  %v261 = vld [vmem:[%s1 + $0x6f0] sm:$0xff]
  %v262 = vld [vmem:[%s1 + $0x6f8] sm:$0xff]
  %v263 = vld [vmem:[%s5] sm:$0x3]
  %v265 = vperm.slane %v263, 0
  %v266 = vperm.slane %v263, 1
  %v276 = vunpack.c.l.b16 %v32
  %v277 = vunpack.c.h.b16 %v32
  %v278 = vunpack.c.l.b16 %v33
  %v279 = vunpack.c.h.b16 %v33
  %v280 = vunpack.c.l.b16 %v34
  %v281 = vunpack.c.h.b16 %v34
  %v282 = vunpack.c.l.b16 %v35
  %v283 = vunpack.c.h.b16 %v35
  %v284 = vunpack.c.l.b16 %v36
  %v285 = vunpack.c.h.b16 %v36
  %v286 = vunpack.c.l.b16 %v37
  %v287 = vunpack.c.h.b16 %v37
  %v288 = vunpack.c.l.b16 %v38
  %v289 = vunpack.c.h.b16 %v38
  %v290 = vpack.c.b16 %v276, %v276
  %v291 = vpack.c.b16 %v277, %v277
  %v292 = vpack.c.b16 %v278, %v278
  %v293 = vpack.c.b16 %v279, %v279
  %v294 = vpack.c.b16 %v280, %v280
  %v295 = vpack.c.b16 %v281, %v281
  %v296 = vpack.c.b16 %v282, %v282
  %v297 = vpack.c.b16 %v283, %v283
  %v298 = vpack.c.b16 %v284, %v284
  %v299 = vpack.c.b16 %v285, %v285
  %v300 = vpack.c.b16 %v286, %v286
  %v301 = vpack.c.b16 %v287, %v287
  %v302 = vpack.c.b16 %v288, %v288
  %v303 = vpack.c.b16 %v289, %v289
  %v542 = vunpack.c.l.b16 %v39
  %v543 = vunpack.c.h.b16 %v39
  %v544 = vunpack.c.l.b16 %v40
  %v545 = vunpack.c.h.b16 %v40
  %v546 = vunpack.c.l.b16 %v41
  %v547 = vunpack.c.h.b16 %v41
  %v548 = vunpack.c.l.b16 %v42
  %v549 = vunpack.c.h.b16 %v42
  %v550 = vunpack.c.l.b16 %v43
  %v551 = vunpack.c.h.b16 %v43
  %v552 = vunpack.c.l.b16 %v44
  %v553 = vunpack.c.h.b16 %v44
  %v554 = vunpack.c.l.b16 %v45
  %v555 = vunpack.c.h.b16 %v45
  %v556 = vunpack.c.l.b16 %v46
  %v557 = vunpack.c.h.b16 %v46
  %v558 = vunpack.c.l.b16 %v47
  %v559 = vunpack.c.h.b16 %v47
  %v560 = vunpack.c.l.b16 %v48
  %v561 = vunpack.c.h.b16 %v48
  %v562 = vunpack.c.l.b16 %v49
  %v563 = vunpack.c.h.b16 %v49
  %v564 = vunpack.c.l.b16 %v50
  %v565 = vunpack.c.h.b16 %v50
  %v566 = vunpack.c.l.b16 %v51
  %v567 = vunpack.c.h.b16 %v51
  %v568 = vunpack.c.l.b16 %v52
  %v569 = vunpack.c.h.b16 %v52
  %v570 = vunpack.c.l.b16 %v53
  %v571 = vunpack.c.h.b16 %v53
  %v572 = vunpack.c.l.b16 %v54
  %v573 = vunpack.c.h.b16 %v54
  %v574 = vunpack.c.l.b16 %v55
  %v575 = vunpack.c.h.b16 %v55
  %v576 = vunpack.c.l.b16 %v56
  %v577 = vunpack.c.h.b16 %v56
  %v578 = vunpack.c.l.b16 %v57
  %v579 = vunpack.c.h.b16 %v57
  %v580 = vunpack.c.l.b16 %v58
  %v581 = vunpack.c.h.b16 %v58
  %v582 = vunpack.c.l.b16 %v59
  %v583 = vunpack.c.h.b16 %v59
  %v584 = vunpack.c.l.b16 %v60
  %v585 = vunpack.c.h.b16 %v60
  %v586 = vunpack.c.l.b16 %v61
  %v587 = vunpack.c.h.b16 %v61
  %v588 = vunpack.c.l.b16 %v62
  %v589 = vunpack.c.h.b16 %v62
  %v590 = vunpack.c.l.b16 %v63
  %v591 = vunpack.c.h.b16 %v63
  %v592 = vunpack.c.l.b16 %v64
  %v593 = vunpack.c.h.b16 %v64
  %v594 = vunpack.c.l.b16 %v65
  %v595 = vunpack.c.h.b16 %v65
  %v596 = vunpack.c.l.b16 %v66
  %v597 = vunpack.c.h.b16 %v66
  %v598 = vunpack.c.l.b16 %v67
  %v599 = vunpack.c.h.b16 %v67
  %v600 = vunpack.c.l.b16 %v68
  %v601 = vunpack.c.h.b16 %v68
  %v602 = vunpack.c.l.b16 %v69
  %v603 = vunpack.c.h.b16 %v69
  %v604 = vunpack.c.l.b16 %v70
  %v605 = vunpack.c.h.b16 %v70
  %v606 = vunpack.c.l.b16 %v71
  %v607 = vunpack.c.h.b16 %v71
  %v608 = vunpack.c.l.b16 %v72
  %v609 = vunpack.c.h.b16 %v72
  %v610 = vunpack.c.l.b16 %v73
  %v611 = vunpack.c.h.b16 %v73
  %v612 = vunpack.c.l.b16 %v74
  %v613 = vunpack.c.h.b16 %v74
  %v614 = vunpack.c.l.b16 %v75
  %v615 = vunpack.c.h.b16 %v75
  %v616 = vunpack.c.l.b16 %v76
  %v617 = vunpack.c.h.b16 %v76
  %v618 = vunpack.c.l.b16 %v77
  %v619 = vunpack.c.h.b16 %v77
  %v620 = vunpack.c.l.b16 %v78
  %v621 = vunpack.c.h.b16 %v78
  %v622 = vunpack.c.l.b16 %v79
  %v623 = vunpack.c.h.b16 %v79
  %v624 = vunpack.c.l.b16 %v80
  %v625 = vunpack.c.h.b16 %v80
  %v626 = vunpack.c.l.b16 %v81
  %v627 = vunpack.c.h.b16 %v81
  %v628 = vunpack.c.l.b16 %v82
  %v629 = vunpack.c.h.b16 %v82
  %v630 = vunpack.c.l.b16 %v83
  %v631 = vunpack.c.h.b16 %v83
  %v632 = vunpack.c.l.b16 %v84
  %v633 = vunpack.c.h.b16 %v84
  %v634 = vunpack.c.l.b16 %v85
  %v635 = vunpack.c.h.b16 %v85
  %v636 = vunpack.c.l.b16 %v86
  %v637 = vunpack.c.h.b16 %v86
  %v638 = vunpack.c.l.b16 %v87
  %v639 = vunpack.c.h.b16 %v87
  %v640 = vunpack.c.l.b16 %v88
  %v641 = vunpack.c.h.b16 %v88
  %v642 = vunpack.c.l.b16 %v89
  %v643 = vunpack.c.h.b16 %v89
  %v644 = vunpack.c.l.b16 %v90
  %v645 = vunpack.c.h.b16 %v90
  %v646 = vunpack.c.l.b16 %v91
  %v647 = vunpack.c.h.b16 %v91
  %v648 = vunpack.c.l.b16 %v92
  %v649 = vunpack.c.h.b16 %v92
  %v650 = vunpack.c.l.b16 %v93
  %v651 = vunpack.c.h.b16 %v93
  %v652 = vunpack.c.l.b16 %v94
  %v653 = vunpack.c.h.b16 %v94
  %v654 = vunpack.c.l.b16 %v95
  %v655 = vunpack.c.h.b16 %v95
  %v656 = vunpack.c.l.b16 %v96
  %v657 = vunpack.c.h.b16 %v96
  %v658 = vunpack.c.l.b16 %v97
  %v659 = vunpack.c.h.b16 %v97
  %v660 = vunpack.c.l.b16 %v98
  %v661 = vunpack.c.h.b16 %v98
  %v662 = vunpack.c.l.b16 %v99
  %v663 = vunpack.c.h.b16 %v99
  %v664 = vunpack.c.l.b16 %v100
  %v665 = vunpack.c.h.b16 %v100
  %v666 = vunpack.c.l.b16 %v101
  %v667 = vunpack.c.h.b16 %v101
  %v668 = vunpack.c.l.b16 %v102
  %v669 = vunpack.c.h.b16 %v102
  %v670 = vunpack.c.l.b16 %v103
  %v671 = vunpack.c.h.b16 %v103
  %v672 = vunpack.c.l.b16 %v104
  %v673 = vunpack.c.h.b16 %v104
  %v674 = vunpack.c.l.b16 %v105
  %v675 = vunpack.c.h.b16 %v105
  %v676 = vunpack.c.l.b16 %v106
  %v677 = vunpack.c.h.b16 %v106
  %v678 = vunpack.c.l.b16 %v107
  %v679 = vunpack.c.h.b16 %v107
  %v680 = vunpack.c.l.b16 %v108
  %v681 = vunpack.c.h.b16 %v108
  %v682 = vunpack.c.l.b16 %v109
  %v683 = vunpack.c.h.b16 %v109
  %v684 = vunpack.c.l.b16 %v110
  %v685 = vunpack.c.h.b16 %v110
  %v686 = vunpack.c.l.b16 %v111
  %v687 = vunpack.c.h.b16 %v111
  %v688 = vunpack.c.l.b16 %v112
  %v689 = vunpack.c.h.b16 %v112
  %v690 = vunpack.c.l.b16 %v113
  %v691 = vunpack.c.h.b16 %v113
  %v692 = vunpack.c.l.b16 %v114
  %v693 = vunpack.c.h.b16 %v114
  %v694 = vunpack.c.l.b16 %v115
  %v695 = vunpack.c.h.b16 %v115
  %v696 = vunpack.c.l.b16 %v116
  %v697 = vunpack.c.h.b16 %v116
  %v698 = vunpack.c.l.b16 %v117
  %v699 = vunpack.c.h.b16 %v117
  %v700 = vunpack.c.l.b16 %v118
  %v701 = vunpack.c.h.b16 %v118
  %v702 = vunpack.c.l.b16 %v119
  %v703 = vunpack.c.h.b16 %v119
  %v704 = vunpack.c.l.b16 %v120
  %v705 = vunpack.c.h.b16 %v120
  %v706 = vunpack.c.l.b16 %v121
  %v707 = vunpack.c.h.b16 %v121
  %v708 = vunpack.c.l.b16 %v122
  %v709 = vunpack.c.h.b16 %v122
  %v710 = vunpack.c.l.b16 %v123
  %v711 = vunpack.c.h.b16 %v123
  %v712 = vunpack.c.l.b16 %v124
  %v713 = vunpack.c.h.b16 %v124
  %v714 = vunpack.c.l.b16 %v125
  %v715 = vunpack.c.h.b16 %v125
  %v716 = vunpack.c.l.b16 %v126
  %v717 = vunpack.c.h.b16 %v126
  %v718 = vunpack.c.l.b16 %v127
  %v719 = vunpack.c.h.b16 %v127
  %v720 = vunpack.c.l.b16 %v128
  %v721 = vunpack.c.h.b16 %v128
  %v722 = vunpack.c.l.b16 %v129
  %v723 = vunpack.c.h.b16 %v129
  %v724 = vunpack.c.l.b16 %v130
  %v725 = vunpack.c.h.b16 %v130
  %v726 = vunpack.c.l.b16 %v131
  %v727 = vunpack.c.h.b16 %v131
  %v728 = vunpack.c.l.b16 %v132
  %v729 = vunpack.c.h.b16 %v132
  %v730 = vunpack.c.l.b16 %v133
  %v731 = vunpack.c.h.b16 %v133
  %v732 = vunpack.c.l.b16 %v134
  %v733 = vunpack.c.h.b16 %v134
  %v734 = vunpack.c.l.b16 %v135
  %v735 = vunpack.c.h.b16 %v135
  %v736 = vunpack.c.l.b16 %v136
  %v737 = vunpack.c.h.b16 %v136
  %v738 = vunpack.c.l.b16 %v137
  %v739 = vunpack.c.h.b16 %v137
  %v740 = vunpack.c.l.b16 %v138
  %v741 = vunpack.c.h.b16 %v138
  %v742 = vunpack.c.l.b16 %v139
  %v743 = vunpack.c.h.b16 %v139
  %v744 = vunpack.c.l.b16 %v140
  %v745 = vunpack.c.h.b16 %v140
  %v746 = vunpack.c.l.b16 %v141
  %v747 = vunpack.c.h.b16 %v141
  %v748 = vunpack.c.l.b16 %v142
  %v749 = vunpack.c.h.b16 %v142
  %v750 = vunpack.c.l.b16 %v143
  %v751 = vunpack.c.h.b16 %v143
  %v752 = vunpack.c.l.b16 %v144
  %v753 = vunpack.c.h.b16 %v144
  %v754 = vunpack.c.l.b16 %v145
  %v755 = vunpack.c.h.b16 %v145
  %v756 = vunpack.c.l.b16 %v146
  %v757 = vunpack.c.h.b16 %v146
  %v758 = vunpack.c.l.b16 %v147
  %v759 = vunpack.c.h.b16 %v147
  %v760 = vunpack.c.l.b16 %v148
  %v761 = vunpack.c.h.b16 %v148
  %v762 = vunpack.c.l.b16 %v149
  %v763 = vunpack.c.h.b16 %v149
  %v764 = vunpack.c.l.b16 %v150
  %v765 = vunpack.c.h.b16 %v150
  %v766 = vunpack.c.l.b16 %v151
  %v767 = vunpack.c.h.b16 %v151
  %v768 = vunpack.c.l.b16 %v152
  %v769 = vunpack.c.h.b16 %v152
  %v770 = vunpack.c.l.b16 %v153
  %v771 = vunpack.c.h.b16 %v153
  %v772 = vunpack.c.l.b16 %v154
  %v773 = vunpack.c.h.b16 %v154
  %v774 = vunpack.c.l.b16 %v155
  %v775 = vunpack.c.h.b16 %v155
  %v776 = vunpack.c.l.b16 %v156
  %v777 = vunpack.c.h.b16 %v156
  %v778 = vunpack.c.l.b16 %v157
  %v779 = vunpack.c.h.b16 %v157
  %v780 = vunpack.c.l.b16 %v158
  %v781 = vunpack.c.h.b16 %v158
  %v782 = vunpack.c.l.b16 %v159
  %v783 = vunpack.c.h.b16 %v159
  %v784 = vunpack.c.l.b16 %v160
  %v785 = vunpack.c.h.b16 %v160
  %v786 = vunpack.c.l.b16 %v161
  %v787 = vunpack.c.h.b16 %v161
  %v788 = vunpack.c.l.b16 %v162
  %v789 = vunpack.c.h.b16 %v162
  %v790 = vunpack.c.l.b16 %v163
  %v791 = vunpack.c.h.b16 %v163
  %v792 = vunpack.c.l.b16 %v164
  %v793 = vunpack.c.h.b16 %v164
  %v794 = vunpack.c.l.b16 %v165
  %v795 = vunpack.c.h.b16 %v165
  %v796 = vunpack.c.l.b16 %v166
  %v797 = vunpack.c.h.b16 %v166
  %v798 = vunpack.c.l.b16 %v167
  %v799 = vunpack.c.h.b16 %v167
  %v800 = vunpack.c.l.b16 %v168
  %v801 = vunpack.c.h.b16 %v168
  %v802 = vunpack.c.l.b16 %v169
  %v803 = vunpack.c.h.b16 %v169
  %v804 = vunpack.c.l.b16 %v170
  %v805 = vunpack.c.h.b16 %v170
  %v806 = vunpack.c.l.b16 %v171
  %v807 = vunpack.c.h.b16 %v171
  %v808 = vunpack.c.l.b16 %v172
  %v809 = vunpack.c.h.b16 %v172
  %v810 = vunpack.c.l.b16 %v173
  %v811 = vunpack.c.h.b16 %v173
  %v812 = vunpack.c.l.b16 %v174
  %v813 = vunpack.c.h.b16 %v174
  %v814 = vunpack.c.l.b16 %v175
  %v815 = vunpack.c.h.b16 %v175
  %v816 = vunpack.c.l.b16 %v176
  %v817 = vunpack.c.h.b16 %v176
  %v818 = vunpack.c.l.b16 %v177
  %v819 = vunpack.c.h.b16 %v177
  %v820 = vunpack.c.l.b16 %v178
  %v821 = vunpack.c.h.b16 %v178
  %v822 = vunpack.c.l.b16 %v179
  %v823 = vunpack.c.h.b16 %v179
  %v824 = vunpack.c.l.b16 %v180
  %v825 = vunpack.c.h.b16 %v180
  %v826 = vunpack.c.l.b16 %v181
  %v827 = vunpack.c.h.b16 %v181
  %v828 = vunpack.c.l.b16 %v182
  %v829 = vunpack.c.h.b16 %v182
  %v830 = vunpack.c.l.b16 %v183
  %v831 = vunpack.c.h.b16 %v183
  %v832 = vunpack.c.l.b16 %v184
  %v833 = vunpack.c.h.b16 %v184
  %v834 = vunpack.c.l.b16 %v185
  %v835 = vunpack.c.h.b16 %v185
  %v836 = vunpack.c.l.b16 %v186
  %v837 = vunpack.c.h.b16 %v186
  %v838 = vunpack.c.l.b16 %v187
  %v839 = vunpack.c.h.b16 %v187
  %v840 = vunpack.c.l.b16 %v188
  %v841 = vunpack.c.h.b16 %v188
  %v842 = vunpack.c.l.b16 %v189
  %v843 = vunpack.c.h.b16 %v189
  %v844 = vunpack.c.l.b16 %v190
  %v845 = vunpack.c.h.b16 %v190
  %v846 = vunpack.c.l.b16 %v191
  %v847 = vunpack.c.h.b16 %v191
  %v848 = vunpack.c.l.b16 %v192
  %v849 = vunpack.c.h.b16 %v192
  %v850 = vunpack.c.l.b16 %v193
  %v851 = vunpack.c.h.b16 %v193
  %v852 = vunpack.c.l.b16 %v194
  %v853 = vunpack.c.h.b16 %v194
  %v854 = vunpack.c.l.b16 %v195
  %v855 = vunpack.c.h.b16 %v195
  %v856 = vunpack.c.l.b16 %v196
  %v857 = vunpack.c.h.b16 %v196
  %v858 = vunpack.c.l.b16 %v197
  %v859 = vunpack.c.h.b16 %v197
  %v860 = vunpack.c.l.b16 %v198
  %v861 = vunpack.c.h.b16 %v198
  %v862 = vunpack.c.l.b16 %v199
  %v863 = vunpack.c.h.b16 %v199
  %v864 = vunpack.c.l.b16 %v200
  %v865 = vunpack.c.h.b16 %v200
  %v866 = vunpack.c.l.b16 %v201
  %v867 = vunpack.c.h.b16 %v201
  %v868 = vunpack.c.l.b16 %v202
  %v869 = vunpack.c.h.b16 %v202
  %v870 = vunpack.c.l.b16 %v203
  %v871 = vunpack.c.h.b16 %v203
  %v872 = vunpack.c.l.b16 %v204
  %v873 = vunpack.c.h.b16 %v204
  %v874 = vunpack.c.l.b16 %v205
  %v875 = vunpack.c.h.b16 %v205
  %v876 = vunpack.c.l.b16 %v206
  %v877 = vunpack.c.h.b16 %v206
  %v878 = vunpack.c.l.b16 %v207
  %v879 = vunpack.c.h.b16 %v207
  %v880 = vunpack.c.l.b16 %v208
  %v881 = vunpack.c.h.b16 %v208
  %v882 = vunpack.c.l.b16 %v209
  %v883 = vunpack.c.h.b16 %v209
  %v884 = vunpack.c.l.b16 %v210
  %v885 = vunpack.c.h.b16 %v210
  %v886 = vunpack.c.l.b16 %v211
  %v887 = vunpack.c.h.b16 %v211
  %v888 = vunpack.c.l.b16 %v212
  %v889 = vunpack.c.h.b16 %v212
  %v890 = vunpack.c.l.b16 %v213
  %v891 = vunpack.c.h.b16 %v213
  %v892 = vunpack.c.l.b16 %v214
  %v893 = vunpack.c.h.b16 %v214
  %v894 = vunpack.c.l.b16 %v215
  %v895 = vunpack.c.h.b16 %v215
  %v896 = vunpack.c.l.b16 %v216
  %v897 = vunpack.c.h.b16 %v216
  %v898 = vunpack.c.l.b16 %v217
  %v899 = vunpack.c.h.b16 %v217
  %v900 = vunpack.c.l.b16 %v218
  %v901 = vunpack.c.h.b16 %v218
  %v902 = vunpack.c.l.b16 %v219
  %v903 = vunpack.c.h.b16 %v219
  %v904 = vunpack.c.l.b16 %v220
  %v905 = vunpack.c.h.b16 %v220
  %v906 = vunpack.c.l.b16 %v221
  %v907 = vunpack.c.h.b16 %v221
  %v908 = vunpack.c.l.b16 %v222
  %v909 = vunpack.c.h.b16 %v222
  %v910 = vunpack.c.l.b16 %v223
  %v911 = vunpack.c.h.b16 %v223
  %v912 = vunpack.c.l.b16 %v224
  %v913 = vunpack.c.h.b16 %v224
  %v914 = vunpack.c.l.b16 %v225
  %v915 = vunpack.c.h.b16 %v225
  %v916 = vunpack.c.l.b16 %v226
  %v917 = vunpack.c.h.b16 %v226
  %v918 = vunpack.c.l.b16 %v227
  %v919 = vunpack.c.h.b16 %v227
  %v920 = vunpack.c.l.b16 %v228
  %v921 = vunpack.c.h.b16 %v228
  %v922 = vunpack.c.l.b16 %v229
  %v923 = vunpack.c.h.b16 %v229
  %v924 = vunpack.c.l.b16 %v230
  %v925 = vunpack.c.h.b16 %v230
  %v926 = vunpack.c.l.b16 %v231
  %v927 = vunpack.c.h.b16 %v231
  %v928 = vunpack.c.l.b16 %v232
  %v929 = vunpack.c.h.b16 %v232
  %v930 = vunpack.c.l.b16 %v233
  %v931 = vunpack.c.h.b16 %v233
  %v932 = vunpack.c.l.b16 %v234
  %v933 = vunpack.c.h.b16 %v234
  %v934 = vunpack.c.l.b16 %v235
  %v935 = vunpack.c.h.b16 %v235
  %v936 = vunpack.c.l.b16 %v236
  %v937 = vunpack.c.h.b16 %v236
  %v938 = vunpack.c.l.b16 %v237
  %v939 = vunpack.c.h.b16 %v237
  %v940 = vunpack.c.l.b16 %v238
  %v941 = vunpack.c.h.b16 %v238
  %v942 = vunpack.c.l.b16 %v239
  %v943 = vunpack.c.h.b16 %v239
  %v944 = vunpack.c.l.b16 %v240
  %v945 = vunpack.c.h.b16 %v240
  %v946 = vunpack.c.l.b16 %v241
  %v947 = vunpack.c.h.b16 %v241
  %v948 = vunpack.c.l.b16 %v242
  %v949 = vunpack.c.h.b16 %v242
  %v950 = vunpack.c.l.b16 %v243
  %v951 = vunpack.c.h.b16 %v243
  %v952 = vunpack.c.l.b16 %v244
  %v953 = vunpack.c.h.b16 %v244
  %v954 = vunpack.c.l.b16 %v245
  %v955 = vunpack.c.h.b16 %v245
  %v956 = vunpack.c.l.b16 %v246
  %v957 = vunpack.c.h.b16 %v246
  %v958 = vunpack.c.l.b16 %v247
  %v959 = vunpack.c.h.b16 %v247
  %v960 = vunpack.c.l.b16 %v248
  %v961 = vunpack.c.h.b16 %v248
  %v962 = vunpack.c.l.b16 %v249
  %v963 = vunpack.c.h.b16 %v249
  %v964 = vunpack.c.l.b16 %v250
  %v965 = vunpack.c.h.b16 %v250
  %v966 = vunpack.c.l.b16 %v251
  %v967 = vunpack.c.h.b16 %v251
  %v968 = vunpack.c.l.b16 %v252
  %v969 = vunpack.c.h.b16 %v252
  %v970 = vunpack.c.l.b16 %v253
  %v971 = vunpack.c.h.b16 %v253
  %v972 = vunpack.c.l.b16 %v254
  %v973 = vunpack.c.h.b16 %v254
  %v974 = vunpack.c.l.b16 %v255
  %v975 = vunpack.c.h.b16 %v255
  %v976 = vunpack.c.l.b16 %v256
  %v977 = vunpack.c.h.b16 %v256
  %v978 = vunpack.c.l.b16 %v257
  %v979 = vunpack.c.h.b16 %v257
  %v980 = vunpack.c.l.b16 %v258
  %v981 = vunpack.c.h.b16 %v258
  %v982 = vunpack.c.l.b16 %v259
  %v983 = vunpack.c.h.b16 %v259
  %v984 = vunpack.c.l.b16 %v260
  %v985 = vunpack.c.h.b16 %v260
  %v986 = vunpack.c.l.b16 %v261
  %v987 = vunpack.c.h.b16 %v261
  %v988 = vunpack.c.l.b16 %v262
  %v989 = vunpack.c.h.b16 %v262
  %v990 = vpack.c.b16 %v544, %v542
  %v991 = vpack.c.b16 %v545, %v543
  %v992 = vpack.c.b16 %v548, %v546
  %v993 = vpack.c.b16 %v549, %v547
  %v994 = vpack.c.b16 %v552, %v550
  %v995 = vpack.c.b16 %v553, %v551
  %v996 = vpack.c.b16 %v556, %v554
  %v997 = vpack.c.b16 %v557, %v555
  %v998 = vpack.c.b16 %v560, %v558
  %v999 = vpack.c.b16 %v561, %v559
  %v1000 = vpack.c.b16 %v564, %v562
  %v1001 = vpack.c.b16 %v565, %v563
  %v1002 = vpack.c.b16 %v568, %v566
  %v1003 = vpack.c.b16 %v569, %v567
  %v1004 = vpack.c.b16 %v572, %v570
  %v1005 = vpack.c.b16 %v573, %v571
  %v1006 = vpack.c.b16 %v576, %v574
  %v1007 = vpack.c.b16 %v577, %v575
  %v1008 = vpack.c.b16 %v580, %v578
  %v1009 = vpack.c.b16 %v581, %v579
  %v1010 = vpack.c.b16 %v584, %v582
  %v1011 = vpack.c.b16 %v585, %v583
  %v1012 = vpack.c.b16 %v588, %v586
  %v1013 = vpack.c.b16 %v589, %v587
  %v1014 = vpack.c.b16 %v592, %v590
  %v1015 = vpack.c.b16 %v593, %v591
  %v1016 = vpack.c.b16 %v596, %v594
  %v1017 = vpack.c.b16 %v597, %v595
  %v1018 = vpack.c.b16 %v600, %v598
  %v1019 = vpack.c.b16 %v601, %v599
  %v1020 = vpack.c.b16 %v604, %v602
  %v1021 = vpack.c.b16 %v605, %v603
  %v1022 = vpack.c.b16 %v608, %v606
  %v1023 = vpack.c.b16 %v609, %v607
  %v1024 = vpack.c.b16 %v612, %v610
  %v1025 = vpack.c.b16 %v613, %v611
  %v1026 = vpack.c.b16 %v616, %v614
  %v1027 = vpack.c.b16 %v617, %v615
  %v1028 = vpack.c.b16 %v620, %v618
  %v1029 = vpack.c.b16 %v621, %v619
  %v1030 = vpack.c.b16 %v624, %v622
  %v1031 = vpack.c.b16 %v625, %v623
  %v1032 = vpack.c.b16 %v628, %v626
  %v1033 = vpack.c.b16 %v629, %v627
  %v1034 = vpack.c.b16 %v632, %v630
  %v1035 = vpack.c.b16 %v633, %v631
  %v1036 = vpack.c.b16 %v636, %v634
  %v1037 = vpack.c.b16 %v637, %v635
  %v1038 = vpack.c.b16 %v640, %v638
  %v1039 = vpack.c.b16 %v641, %v639
  %v1040 = vpack.c.b16 %v644, %v642
  %v1041 = vpack.c.b16 %v645, %v643
  %v1042 = vpack.c.b16 %v648, %v646
  %v1043 = vpack.c.b16 %v649, %v647
  %v1044 = vpack.c.b16 %v652, %v650
  %v1045 = vpack.c.b16 %v653, %v651
  %v1046 = vpack.c.b16 %v656, %v654
  %v1047 = vpack.c.b16 %v657, %v655
  %v1048 = vpack.c.b16 %v660, %v658
  %v1049 = vpack.c.b16 %v661, %v659
  %v1050 = vpack.c.b16 %v664, %v662
  %v1051 = vpack.c.b16 %v665, %v663
  %v1052 = vpack.c.b16 %v668, %v666
  %v1053 = vpack.c.b16 %v669, %v667
  %v1054 = vpack.c.b16 %v672, %v670
  %v1055 = vpack.c.b16 %v673, %v671
  %v1056 = vpack.c.b16 %v676, %v674
  %v1057 = vpack.c.b16 %v677, %v675
  %v1058 = vpack.c.b16 %v680, %v678
  %v1059 = vpack.c.b16 %v681, %v679
  %v1060 = vpack.c.b16 %v684, %v682
  %v1061 = vpack.c.b16 %v685, %v683
  %v1062 = vpack.c.b16 %v688, %v686
  %v1063 = vpack.c.b16 %v689, %v687
  %v1064 = vpack.c.b16 %v692, %v690
  %v1065 = vpack.c.b16 %v693, %v691
  %v1066 = vpack.c.b16 %v696, %v694
  %v1067 = vpack.c.b16 %v697, %v695
  %v1068 = vpack.c.b16 %v700, %v698
  %v1069 = vpack.c.b16 %v701, %v699
  %v1070 = vpack.c.b16 %v704, %v702
  %v1071 = vpack.c.b16 %v705, %v703
  %v1072 = vpack.c.b16 %v708, %v706
  %v1073 = vpack.c.b16 %v709, %v707
  %v1074 = vpack.c.b16 %v712, %v710
  %v1075 = vpack.c.b16 %v713, %v711
  %v1076 = vpack.c.b16 %v716, %v714
  %v1077 = vpack.c.b16 %v717, %v715
  %v1078 = vpack.c.b16 %v720, %v718
  %v1079 = vpack.c.b16 %v721, %v719
  %v1080 = vpack.c.b16 %v724, %v722
  %v1081 = vpack.c.b16 %v725, %v723
  %v1082 = vpack.c.b16 %v728, %v726
  %v1083 = vpack.c.b16 %v729, %v727
  %v1084 = vpack.c.b16 %v732, %v730
  %v1085 = vpack.c.b16 %v733, %v731
  %v1086 = vpack.c.b16 %v736, %v734
  %v1087 = vpack.c.b16 %v737, %v735
  %v1088 = vpack.c.b16 %v740, %v738
  %v1089 = vpack.c.b16 %v741, %v739
  %v1090 = vpack.c.b16 %v744, %v742
  %v1091 = vpack.c.b16 %v745, %v743
  %v1092 = vpack.c.b16 %v748, %v746
  %v1093 = vpack.c.b16 %v749, %v747
  %v1094 = vpack.c.b16 %v752, %v750
  %v1095 = vpack.c.b16 %v753, %v751
  %v1096 = vpack.c.b16 %v756, %v754
  %v1097 = vpack.c.b16 %v757, %v755
  %v1098 = vpack.c.b16 %v760, %v758
  %v1099 = vpack.c.b16 %v761, %v759
  %v1100 = vpack.c.b16 %v764, %v762
  %v1101 = vpack.c.b16 %v765, %v763
  %v1102 = vpack.c.b16 %v768, %v766
  %v1103 = vpack.c.b16 %v769, %v767
  %v1104 = vpack.c.b16 %v772, %v770
  %v1105 = vpack.c.b16 %v773, %v771
  %v1106 = vpack.c.b16 %v776, %v774
  %v1107 = vpack.c.b16 %v777, %v775
  %v1108 = vpack.c.b16 %v780, %v778
  %v1109 = vpack.c.b16 %v781, %v779
  %v1110 = vpack.c.b16 %v784, %v782
  %v1111 = vpack.c.b16 %v785, %v783
  %v1112 = vpack.c.b16 %v788, %v786
  %v1113 = vpack.c.b16 %v789, %v787
  %v1114 = vpack.c.b16 %v792, %v790
  %v1115 = vpack.c.b16 %v793, %v791
  %v1116 = vpack.c.b16 %v796, %v794
  %v1117 = vpack.c.b16 %v797, %v795
  %v1118 = vpack.c.b16 %v800, %v798
  %v1119 = vpack.c.b16 %v801, %v799
  %v1120 = vpack.c.b16 %v804, %v802
  %v1121 = vpack.c.b16 %v805, %v803
  %v1122 = vpack.c.b16 %v808, %v806
  %v1123 = vpack.c.b16 %v809, %v807
  %v1124 = vpack.c.b16 %v812, %v810
  %v1125 = vpack.c.b16 %v813, %v811
  %v1126 = vpack.c.b16 %v816, %v814
  %v1127 = vpack.c.b16 %v817, %v815
  %v1128 = vpack.c.b16 %v820, %v818
  %v1129 = vpack.c.b16 %v821, %v819
  %v1130 = vpack.c.b16 %v824, %v822
  %v1131 = vpack.c.b16 %v825, %v823
  %v1132 = vpack.c.b16 %v828, %v826
  %v1133 = vpack.c.b16 %v829, %v827
  %v1134 = vpack.c.b16 %v832, %v830
  %v1135 = vpack.c.b16 %v833, %v831
  %v1136 = vpack.c.b16 %v836, %v834
  %v1137 = vpack.c.b16 %v837, %v835
  %v1138 = vpack.c.b16 %v840, %v838
  %v1139 = vpack.c.b16 %v841, %v839
  %v1140 = vpack.c.b16 %v844, %v842
  %v1141 = vpack.c.b16 %v845, %v843
  %v1142 = vpack.c.b16 %v848, %v846
  %v1143 = vpack.c.b16 %v849, %v847
  %v1144 = vpack.c.b16 %v852, %v850
  %v1145 = vpack.c.b16 %v853, %v851
  %v1146 = vpack.c.b16 %v856, %v854
  %v1147 = vpack.c.b16 %v857, %v855
  %v1148 = vpack.c.b16 %v860, %v858
  %v1149 = vpack.c.b16 %v861, %v859
  %v1150 = vpack.c.b16 %v864, %v862
  %v1151 = vpack.c.b16 %v865, %v863
  %v1152 = vpack.c.b16 %v868, %v866
  %v1153 = vpack.c.b16 %v869, %v867
  %v1154 = vpack.c.b16 %v872, %v870
  %v1155 = vpack.c.b16 %v873, %v871
  %v1156 = vpack.c.b16 %v876, %v874
  %v1157 = vpack.c.b16 %v877, %v875
  %v1158 = vpack.c.b16 %v880, %v878
  %v1159 = vpack.c.b16 %v881, %v879
  %v1160 = vpack.c.b16 %v884, %v882
  %v1161 = vpack.c.b16 %v885, %v883
  %v1162 = vpack.c.b16 %v888, %v886
  %v1163 = vpack.c.b16 %v889, %v887
  %v1164 = vpack.c.b16 %v892, %v890
  %v1165 = vpack.c.b16 %v893, %v891
  %v1166 = vpack.c.b16 %v896, %v894
  %v1167 = vpack.c.b16 %v897, %v895
  %v1168 = vpack.c.b16 %v900, %v898
  %v1169 = vpack.c.b16 %v901, %v899
  %v1170 = vpack.c.b16 %v904, %v902
  %v1171 = vpack.c.b16 %v905, %v903
  %v1172 = vpack.c.b16 %v908, %v906
  %v1173 = vpack.c.b16 %v909, %v907
  %v1174 = vpack.c.b16 %v912, %v910
  %v1175 = vpack.c.b16 %v913, %v911
  %v1176 = vpack.c.b16 %v916, %v914
  %v1177 = vpack.c.b16 %v917, %v915
  %v1178 = vpack.c.b16 %v920, %v918
  %v1179 = vpack.c.b16 %v921, %v919
  %v1180 = vpack.c.b16 %v924, %v922
  %v1181 = vpack.c.b16 %v925, %v923
  %v1182 = vpack.c.b16 %v928, %v926
  %v1183 = vpack.c.b16 %v929, %v927
  %v1184 = vpack.c.b16 %v932, %v930
  %v1185 = vpack.c.b16 %v933, %v931
  %v1186 = vpack.c.b16 %v936, %v934
  %v1187 = vpack.c.b16 %v937, %v935
  %v1188 = vpack.c.b16 %v940, %v938
  %v1189 = vpack.c.b16 %v941, %v939
  %v1190 = vpack.c.b16 %v944, %v942
  %v1191 = vpack.c.b16 %v945, %v943
  %v1192 = vpack.c.b16 %v948, %v946
  %v1193 = vpack.c.b16 %v949, %v947
  %v1194 = vpack.c.b16 %v952, %v950
  %v1195 = vpack.c.b16 %v953, %v951
  %v1196 = vpack.c.b16 %v956, %v954
  %v1197 = vpack.c.b16 %v957, %v955
  %v1198 = vpack.c.b16 %v960, %v958
  %v1199 = vpack.c.b16 %v961, %v959
  %v1200 = vpack.c.b16 %v964, %v962
  %v1201 = vpack.c.b16 %v965, %v963
  %v1202 = vpack.c.b16 %v968, %v966
  %v1203 = vpack.c.b16 %v969, %v967
  %v1204 = vpack.c.b16 %v972, %v970
  %v1205 = vpack.c.b16 %v973, %v971
  %v1206 = vpack.c.b16 %v976, %v974
  %v1207 = vpack.c.b16 %v977, %v975
  %v1208 = vpack.c.b16 %v980, %v978
  %v1209 = vpack.c.b16 %v981, %v979
  %v1210 = vpack.c.b16 %v984, %v982
  %v1211 = vpack.c.b16 %v985, %v983
  %v1212 = vpack.c.b16 %v988, %v986
  %v1213 = vpack.c.b16 %v989, %v987
  %1438 = vmatpush.bf16.msra.mxu0 %v1004
  %1439 = vmatpush.bf16.msra.mxu0 %v1002
  %1440 = vmatpush.bf16.msra.mxu0 %v1000
  %1441 = vmatpush.bf16.msra.mxu0 %v998
  %1442 = vmatpush.bf16.msra.mxu0 %v996
  %1443 = vmatpush.bf16.msra.mxu0 %v994
  %1444 = vmatpush.bf16.msra.mxu0 %v992
  %1445 = vmatpush.bf16.msra.mxu0 %v990
  %1446 = vmatmul.bf16.gmra.mxu0 %v290
  %v1447 = vpop.f32.mrf.mxu0
  %v1448 = vadd.f32 %v265, %v1447
  %v1449 = vpop.f32.mrf.mxu0
  %1450 = vdwg.mxu0
  %1451 = vmatpush.bf16.msra.mxu0 %v1020
  %1452 = vmatpush.bf16.msra.mxu0 %v1018
  %1453 = vmatpush.bf16.msra.mxu0 %v1016
  %1454 = vmatpush.bf16.msra.mxu0 %v1014
  %1455 = vmatpush.bf16.msra.mxu0 %v1012
  %1456 = vmatpush.bf16.msra.mxu0 %v1010
  %1457 = vmatpush.bf16.msra.mxu0 %v1008
  %1458 = vmatpush.bf16.msra.mxu0 %v1006
  %1459 = vmatmul.bf16.gmra.mxu0 %v291
  %v1460 = vpop.f32.mrf.mxu0
  %v1461 = vadd.f32 %v1448, %v1460
  %v1462 = vpop.f32.mrf.mxu0
  %1463 = vdwg.mxu0
  %1464 = vmatpush.bf16.msra.mxu0 %v1036
  %1465 = vmatpush.bf16.msra.mxu0 %v1034
  %1466 = vmatpush.bf16.msra.mxu0 %v1032
  %1467 = vmatpush.bf16.msra.mxu0 %v1030
  %1468 = vmatpush.bf16.msra.mxu0 %v1028
  %1469 = vmatpush.bf16.msra.mxu0 %v1026
  %1470 = vmatpush.bf16.msra.mxu0 %v1024
  %1471 = vmatpush.bf16.msra.mxu0 %v1022
  %1472 = vmatmul.bf16.gmra.mxu0 %v292
  %v1473 = vpop.f32.mrf.mxu0
  %v1474 = vadd.f32 %v1461, %v1473
  %v1475 = vpop.f32.mrf.mxu0
  %1476 = vdwg.mxu0
  %1477 = vmatpush.bf16.msra.mxu0 %v1052
  %1478 = vmatpush.bf16.msra.mxu0 %v1050
  %1479 = vmatpush.bf16.msra.mxu0 %v1048
  %1480 = vmatpush.bf16.msra.mxu0 %v1046
  %1481 = vmatpush.bf16.msra.mxu0 %v1044
  %1482 = vmatpush.bf16.msra.mxu0 %v1042
  %1483 = vmatpush.bf16.msra.mxu0 %v1040
  %1484 = vmatpush.bf16.msra.mxu0 %v1038
  %1485 = vmatmul.bf16.gmra.mxu0 %v293
  %v1486 = vpop.f32.mrf.mxu0
  %v1487 = vadd.f32 %v1474, %v1486
  %v1488 = vpop.f32.mrf.mxu0
  %1489 = vdwg.mxu0
  %1490 = vmatpush.bf16.msra.mxu0 %v1068
  %1491 = vmatpush.bf16.msra.mxu0 %v1066
  %1492 = vmatpush.bf16.msra.mxu0 %v1064
  %1493 = vmatpush.bf16.msra.mxu0 %v1062
  %1494 = vmatpush.bf16.msra.mxu0 %v1060
  %1495 = vmatpush.bf16.msra.mxu0 %v1058
  %1496 = vmatpush.bf16.msra.mxu0 %v1056
  %1497 = vmatpush.bf16.msra.mxu0 %v1054
  %1498 = vmatmul.bf16.gmra.mxu0 %v294
  %v1499 = vpop.f32.mrf.mxu0
  %v1500 = vadd.f32 %v1487, %v1499
  %v1501 = vpop.f32.mrf.mxu0
  %1502 = vdwg.mxu0
  %1503 = vmatpush.bf16.msra.mxu0 %v1084
  %1504 = vmatpush.bf16.msra.mxu0 %v1082
  %1505 = vmatpush.bf16.msra.mxu0 %v1080
  %1506 = vmatpush.bf16.msra.mxu0 %v1078
  %1507 = vmatpush.bf16.msra.mxu0 %v1076
  %1508 = vmatpush.bf16.msra.mxu0 %v1074
  %1509 = vmatpush.bf16.msra.mxu0 %v1072
  %1510 = vmatpush.bf16.msra.mxu0 %v1070
  %1511 = vmatmul.bf16.gmra.mxu0 %v295
  %v1512 = vpop.f32.mrf.mxu0
  %v1513 = vadd.f32 %v1500, %v1512
  %v1514 = vpop.f32.mrf.mxu0
  %1515 = vdwg.mxu0
  %1516 = vmatpush.bf16.msra.mxu0 %v1100
  %1517 = vmatpush.bf16.msra.mxu0 %v1098
  %1518 = vmatpush.bf16.msra.mxu0 %v1096
  %1519 = vmatpush.bf16.msra.mxu0 %v1094
  %1520 = vmatpush.bf16.msra.mxu0 %v1092
  %1521 = vmatpush.bf16.msra.mxu0 %v1090
  %1522 = vmatpush.bf16.msra.mxu0 %v1088
  %1523 = vmatpush.bf16.msra.mxu0 %v1086
  %1524 = vmatmul.bf16.gmra.mxu0 %v296
  %v1525 = vpop.f32.mrf.mxu0
  %v1526 = vadd.f32 %v1513, %v1525
  %v1527 = vpop.f32.mrf.mxu0
  %1528 = vdwg.mxu0
  %1529 = vmatpush.bf16.msra.mxu0 %v1116
  %1530 = vmatpush.bf16.msra.mxu0 %v1114
  %1531 = vmatpush.bf16.msra.mxu0 %v1112
  %1532 = vmatpush.bf16.msra.mxu0 %v1110
  %1533 = vmatpush.bf16.msra.mxu0 %v1108
  %1534 = vmatpush.bf16.msra.mxu0 %v1106
  %1535 = vmatpush.bf16.msra.mxu0 %v1104
  %1536 = vmatpush.bf16.msra.mxu0 %v1102
  %1537 = vmatmul.bf16.gmra.mxu0 %v297
  %v1538 = vpop.f32.mrf.mxu0
  %v1539 = vadd.f32 %v1526, %v1538
  %v1540 = vpop.f32.mrf.mxu0
  %1541 = vdwg.mxu0
  %1542 = vmatpush.bf16.msra.mxu0 %v1132
  %1543 = vmatpush.bf16.msra.mxu0 %v1130
  %1544 = vmatpush.bf16.msra.mxu0 %v1128
  %1545 = vmatpush.bf16.msra.mxu0 %v1126
  %1546 = vmatpush.bf16.msra.mxu0 %v1124
  %1547 = vmatpush.bf16.msra.mxu0 %v1122
  %1548 = vmatpush.bf16.msra.mxu0 %v1120
  %1549 = vmatpush.bf16.msra.mxu0 %v1118
  %1550 = vmatmul.bf16.gmra.mxu0 %v298
  %v1551 = vpop.f32.mrf.mxu0
  %v1552 = vadd.f32 %v1539, %v1551
  %v1553 = vpop.f32.mrf.mxu0
  %1554 = vdwg.mxu0
  %1555 = vmatpush.bf16.msra.mxu0 %v1148
  %1556 = vmatpush.bf16.msra.mxu0 %v1146
  %1557 = vmatpush.bf16.msra.mxu0 %v1144
  %1558 = vmatpush.bf16.msra.mxu0 %v1142
  %1559 = vmatpush.bf16.msra.mxu0 %v1140
  %1560 = vmatpush.bf16.msra.mxu0 %v1138
  %1561 = vmatpush.bf16.msra.mxu0 %v1136
  %1562 = vmatpush.bf16.msra.mxu0 %v1134
  %1563 = vmatmul.bf16.gmra.mxu0 %v299
  %v1564 = vpop.f32.mrf.mxu0
  %v1565 = vadd.f32 %v1552, %v1564
  %v1566 = vpop.f32.mrf.mxu0
  %1567 = vdwg.mxu0
  %1568 = vmatpush.bf16.msra.mxu0 %v1164
  %1569 = vmatpush.bf16.msra.mxu0 %v1162
  %1570 = vmatpush.bf16.msra.mxu0 %v1160
  %1571 = vmatpush.bf16.msra.mxu0 %v1158
  %1572 = vmatpush.bf16.msra.mxu0 %v1156
  %1573 = vmatpush.bf16.msra.mxu0 %v1154
  %1574 = vmatpush.bf16.msra.mxu0 %v1152
  %1575 = vmatpush.bf16.msra.mxu0 %v1150
  %1576 = vmatmul.bf16.gmra.mxu0 %v300
  %v1577 = vpop.f32.mrf.mxu0
  %v1578 = vadd.f32 %v1565, %v1577
  %v1579 = vpop.f32.mrf.mxu0
  %1580 = vdwg.mxu0
  %1581 = vmatpush.bf16.msra.mxu0 %v1180
  %1582 = vmatpush.bf16.msra.mxu0 %v1178
  %1583 = vmatpush.bf16.msra.mxu0 %v1176
  %1584 = vmatpush.bf16.msra.mxu0 %v1174
  %1585 = vmatpush.bf16.msra.mxu0 %v1172
  %1586 = vmatpush.bf16.msra.mxu0 %v1170
  %1587 = vmatpush.bf16.msra.mxu0 %v1168
  %1588 = vmatpush.bf16.msra.mxu0 %v1166
  %1589 = vmatmul.bf16.gmra.mxu0 %v301
  %v1590 = vpop.f32.mrf.mxu0
  %v1591 = vadd.f32 %v1578, %v1590
  %v1592 = vpop.f32.mrf.mxu0
  %1593 = vdwg.mxu0
  %1594 = vmatpush.bf16.msra.mxu0 %v1196
  %1595 = vmatpush.bf16.msra.mxu0 %v1194
  %1596 = vmatpush.bf16.msra.mxu0 %v1192
  %1597 = vmatpush.bf16.msra.mxu0 %v1190
  %1598 = vmatpush.bf16.msra.mxu0 %v1188
  %1599 = vmatpush.bf16.msra.mxu0 %v1186
  %1600 = vmatpush.bf16.msra.mxu0 %v1184
  %1601 = vmatpush.bf16.msra.mxu0 %v1182
  %1602 = vmatmul.bf16.gmra.mxu0 %v302
  %v1603 = vpop.f32.mrf.mxu0
  %v1604 = vadd.f32 %v1591, %v1603
  %v1605 = vpop.f32.mrf.mxu0
  %1606 = vdwg.mxu0
  %1607 = vmatpush.bf16.msra.mxu0 %v1212
  %1608 = vmatpush.bf16.msra.mxu0 %v1210
  %1609 = vmatpush.bf16.msra.mxu0 %v1208
  %1610 = vmatpush.bf16.msra.mxu0 %v1206
  %1611 = vmatpush.bf16.msra.mxu0 %v1204
  %1612 = vmatpush.bf16.msra.mxu0 %v1202
  %1613 = vmatpush.bf16.msra.mxu0 %v1200
  %1614 = vmatpush.bf16.msra.mxu0 %v1198
  %1615 = vmatmul.bf16.gmra.mxu0 %v303
  %v1616 = vpop.f32.mrf.mxu0
  %v1617 = vadd.f32 %v1604, %v1616
  %v1618 = vpop.f32.mrf.mxu0
  %1619 = vdwg.mxu0
  %1620 = vmatpush.bf16.msra.mxu0 %v1005
  %1621 = vmatpush.bf16.msra.mxu0 %v1003
  %1622 = vmatpush.bf16.msra.mxu0 %v1001
  %1623 = vmatpush.bf16.msra.mxu0 %v999
  %1624 = vmatpush.bf16.msra.mxu0 %v997
  %1625 = vmatpush.bf16.msra.mxu0 %v995
  %1626 = vmatpush.bf16.msra.mxu0 %v993
  %1627 = vmatpush.bf16.msra.mxu0 %v991
  %1628 = vmatmul.bf16.gmra.mxu0 %v290
  %v1629 = vpop.f32.mrf.mxu0
  %v1630 = vadd.f32 %v266, %v1629
  %v1631 = vpop.f32.mrf.mxu0
  %1632 = vdwg.mxu0
  %1633 = vmatpush.bf16.msra.mxu0 %v1021
  %1634 = vmatpush.bf16.msra.mxu0 %v1019
  %1635 = vmatpush.bf16.msra.mxu0 %v1017
  %1636 = vmatpush.bf16.msra.mxu0 %v1015
  %1637 = vmatpush.bf16.msra.mxu0 %v1013
  %1638 = vmatpush.bf16.msra.mxu0 %v1011
  %1639 = vmatpush.bf16.msra.mxu0 %v1009
  %1640 = vmatpush.bf16.msra.mxu0 %v1007
  %1641 = vmatmul.bf16.gmra.mxu0 %v291
  %v1642 = vpop.f32.mrf.mxu0
  %v1643 = vadd.f32 %v1630, %v1642
  %v1644 = vpop.f32.mrf.mxu0
  %1645 = vdwg.mxu0
  %1646 = vmatpush.bf16.msra.mxu0 %v1037
  %1647 = vmatpush.bf16.msra.mxu0 %v1035
  %1648 = vmatpush.bf16.msra.mxu0 %v1033
  %1649 = vmatpush.bf16.msra.mxu0 %v1031
  %1650 = vmatpush.bf16.msra.mxu0 %v1029
  %1651 = vmatpush.bf16.msra.mxu0 %v1027
  %1652 = vmatpush.bf16.msra.mxu0 %v1025
  %1653 = vmatpush.bf16.msra.mxu0 %v1023
  %1654 = vmatmul.bf16.gmra.mxu0 %v292
  %v1655 = vpop.f32.mrf.mxu0
  %v1656 = vadd.f32 %v1643, %v1655
  %v1657 = vpop.f32.mrf.mxu0
  %1658 = vdwg.mxu0
  %1659 = vmatpush.bf16.msra.mxu0 %v1053
  %1660 = vmatpush.bf16.msra.mxu0 %v1051
  %1661 = vmatpush.bf16.msra.mxu0 %v1049
  %1662 = vmatpush.bf16.msra.mxu0 %v1047
  %1663 = vmatpush.bf16.msra.mxu0 %v1045
  %1664 = vmatpush.bf16.msra.mxu0 %v1043
  %1665 = vmatpush.bf16.msra.mxu0 %v1041
  %1666 = vmatpush.bf16.msra.mxu0 %v1039
  %1667 = vmatmul.bf16.gmra.mxu0 %v293
  %v1668 = vpop.f32.mrf.mxu0
  %v1669 = vadd.f32 %v1656, %v1668
  %v1670 = vpop.f32.mrf.mxu0
  %1671 = vdwg.mxu0
  %1672 = vmatpush.bf16.msra.mxu0 %v1069
  %1673 = vmatpush.bf16.msra.mxu0 %v1067
  %1674 = vmatpush.bf16.msra.mxu0 %v1065
  %1675 = vmatpush.bf16.msra.mxu0 %v1063
  %1676 = vmatpush.bf16.msra.mxu0 %v1061
  %1677 = vmatpush.bf16.msra.mxu0 %v1059
  %1678 = vmatpush.bf16.msra.mxu0 %v1057
  %1679 = vmatpush.bf16.msra.mxu0 %v1055
  %1680 = vmatmul.bf16.gmra.mxu0 %v294
  %v1681 = vpop.f32.mrf.mxu0
  %v1682 = vadd.f32 %v1669, %v1681
  %v1683 = vpop.f32.mrf.mxu0
  %1684 = vdwg.mxu0
  %1685 = vmatpush.bf16.msra.mxu0 %v1085
  %1686 = vmatpush.bf16.msra.mxu0 %v1083
  %1687 = vmatpush.bf16.msra.mxu0 %v1081
  %1688 = vmatpush.bf16.msra.mxu0 %v1079
  %1689 = vmatpush.bf16.msra.mxu0 %v1077
  %1690 = vmatpush.bf16.msra.mxu0 %v1075
  %1691 = vmatpush.bf16.msra.mxu0 %v1073
  %1692 = vmatpush.bf16.msra.mxu0 %v1071
  %1693 = vmatmul.bf16.gmra.mxu0 %v295
  %v1694 = vpop.f32.mrf.mxu0
  %v1695 = vadd.f32 %v1682, %v1694
  %v1696 = vpop.f32.mrf.mxu0
  %1697 = vdwg.mxu0
  %1698 = vmatpush.bf16.msra.mxu0 %v1101
  %1699 = vmatpush.bf16.msra.mxu0 %v1099
  %1700 = vmatpush.bf16.msra.mxu0 %v1097
  %1701 = vmatpush.bf16.msra.mxu0 %v1095
  %1702 = vmatpush.bf16.msra.mxu0 %v1093
  %1703 = vmatpush.bf16.msra.mxu0 %v1091
  %1704 = vmatpush.bf16.msra.mxu0 %v1089
  %1705 = vmatpush.bf16.msra.mxu0 %v1087
  %1706 = vmatmul.bf16.gmra.mxu0 %v296
  %v1707 = vpop.f32.mrf.mxu0
  %v1708 = vadd.f32 %v1695, %v1707
  %v1709 = vpop.f32.mrf.mxu0
  %1710 = vdwg.mxu0
  %1711 = vmatpush.bf16.msra.mxu0 %v1117
  %1712 = vmatpush.bf16.msra.mxu0 %v1115
  %1713 = vmatpush.bf16.msra.mxu0 %v1113
  %1714 = vmatpush.bf16.msra.mxu0 %v1111
  %1715 = vmatpush.bf16.msra.mxu0 %v1109
  %1716 = vmatpush.bf16.msra.mxu0 %v1107
  %1717 = vmatpush.bf16.msra.mxu0 %v1105
  %1718 = vmatpush.bf16.msra.mxu0 %v1103
  %1719 = vmatmul.bf16.gmra.mxu0 %v297
  %v1720 = vpop.f32.mrf.mxu0
  %v1721 = vadd.f32 %v1708, %v1720
  %v1722 = vpop.f32.mrf.mxu0
  %1723 = vdwg.mxu0
  %1724 = vmatpush.bf16.msra.mxu0 %v1133
  %1725 = vmatpush.bf16.msra.mxu0 %v1131
  %1726 = vmatpush.bf16.msra.mxu0 %v1129
  %1727 = vmatpush.bf16.msra.mxu0 %v1127
  %1728 = vmatpush.bf16.msra.mxu0 %v1125
  %1729 = vmatpush.bf16.msra.mxu0 %v1123
  %1730 = vmatpush.bf16.msra.mxu0 %v1121
  %1731 = vmatpush.bf16.msra.mxu0 %v1119
  %1732 = vmatmul.bf16.gmra.mxu0 %v298
  %v1733 = vpop.f32.mrf.mxu0
  %v1734 = vadd.f32 %v1721, %v1733
  %v1735 = vpop.f32.mrf.mxu0
  %1736 = vdwg.mxu0
  %1737 = vmatpush.bf16.msra.mxu0 %v1149
  %1738 = vmatpush.bf16.msra.mxu0 %v1147
  %1739 = vmatpush.bf16.msra.mxu0 %v1145
  %1740 = vmatpush.bf16.msra.mxu0 %v1143
  %1741 = vmatpush.bf16.msra.mxu0 %v1141
  %1742 = vmatpush.bf16.msra.mxu0 %v1139
  %1743 = vmatpush.bf16.msra.mxu0 %v1137
  %1744 = vmatpush.bf16.msra.mxu0 %v1135
  %1745 = vmatmul.bf16.gmra.mxu0 %v299
  %v1746 = vpop.f32.mrf.mxu0
  %v1747 = vadd.f32 %v1734, %v1746
  %v1748 = vpop.f32.mrf.mxu0
  %1749 = vdwg.mxu0
  %1750 = vmatpush.bf16.msra.mxu0 %v1165
  %1751 = vmatpush.bf16.msra.mxu0 %v1163
  %1752 = vmatpush.bf16.msra.mxu0 %v1161
  %1753 = vmatpush.bf16.msra.mxu0 %v1159
  %1754 = vmatpush.bf16.msra.mxu0 %v1157
  %1755 = vmatpush.bf16.msra.mxu0 %v1155
  %1756 = vmatpush.bf16.msra.mxu0 %v1153
  %1757 = vmatpush.bf16.msra.mxu0 %v1151
  %1758 = vmatmul.bf16.gmra.mxu0 %v300
  %v1759 = vpop.f32.mrf.mxu0
  %v1760 = vadd.f32 %v1747, %v1759
  %v1761 = vpop.f32.mrf.mxu0
  %1762 = vdwg.mxu0
  %1763 = vmatpush.bf16.msra.mxu0 %v1181
  %1764 = vmatpush.bf16.msra.mxu0 %v1179
  %1765 = vmatpush.bf16.msra.mxu0 %v1177
  %1766 = vmatpush.bf16.msra.mxu0 %v1175
  %1767 = vmatpush.bf16.msra.mxu0 %v1173
  %1768 = vmatpush.bf16.msra.mxu0 %v1171
  %1769 = vmatpush.bf16.msra.mxu0 %v1169
  %1770 = vmatpush.bf16.msra.mxu0 %v1167
  %1771 = vmatmul.bf16.gmra.mxu0 %v301
  %v1772 = vpop.f32.mrf.mxu0
  %v1773 = vadd.f32 %v1760, %v1772
  %v1774 = vpop.f32.mrf.mxu0
  %1775 = vdwg.mxu0
  %1776 = vmatpush.bf16.msra.mxu0 %v1197
  %1777 = vmatpush.bf16.msra.mxu0 %v1195
  %1778 = vmatpush.bf16.msra.mxu0 %v1193
  %1779 = vmatpush.bf16.msra.mxu0 %v1191
  %1780 = vmatpush.bf16.msra.mxu0 %v1189
  %1781 = vmatpush.bf16.msra.mxu0 %v1187
  %1782 = vmatpush.bf16.msra.mxu0 %v1185
  %1783 = vmatpush.bf16.msra.mxu0 %v1183
  %1784 = vmatmul.bf16.gmra.mxu0 %v302
  %v1785 = vpop.f32.mrf.mxu0
  %v1786 = vadd.f32 %v1773, %v1785
  %v1787 = vpop.f32.mrf.mxu0
  %1788 = vdwg.mxu0
  %1789 = vmatpush.bf16.msra.mxu0 %v1213
  %1790 = vmatpush.bf16.msra.mxu0 %v1211
  %1791 = vmatpush.bf16.msra.mxu0 %v1209
  %1792 = vmatpush.bf16.msra.mxu0 %v1207
  %1793 = vmatpush.bf16.msra.mxu0 %v1205
  %1794 = vmatpush.bf16.msra.mxu0 %v1203
  %1795 = vmatpush.bf16.msra.mxu0 %v1201
  %1796 = vmatpush.bf16.msra.mxu0 %v1199
  %1797 = vmatmul.bf16.gmra.mxu0 %v303
  %v1798 = vpop.f32.mrf.mxu0
  %v1799 = vadd.f32 %v1786, %v1798
  %v1800 = vpop.f32.mrf.mxu0
  %1801 = vdwg.mxu0
  %v1802 = vmax.f32 %v1617, 0.0
  %v1803 = vmax.f32 %v1799, 0.0
  %v1804 = vpack.c.bf16 %v1802, %v1802
  %v1805 = vpack.c.bf16 %v1803, %v1803
  %v1806 = vld [vmem:[%s2] sm:$0xff]
  %v1807 = vld [vmem:[%s2 + $0x8] sm:$0xff]
  %v1808 = vld [vmem:[%s2 + $0x10] sm:$0xff]
  %v1809 = vld [vmem:[%s2 + $0x18] sm:$0xff]
  %v1810 = vld [vmem:[%s2 + $0x20] sm:$0xff]
  %v1811 = vld [vmem:[%s2 + $0x28] sm:$0xff]
  %v1812 = vld [vmem:[%s2 + $0x30] sm:$0xff]
  %v1813 = vld [vmem:[%s2 + $0x38] sm:$0xff]
  %v1814 = vld [vmem:[%s2 + $0x40] sm:$0xff]
  %v1815 = vld [vmem:[%s2 + $0x48] sm:$0xff]
  %v1816 = vld [vmem:[%s2 + $0x50] sm:$0xff]
  %v1817 = vld [vmem:[%s2 + $0x58] sm:$0xff]
  %v1818 = vld [vmem:[%s2 + $0x60] sm:$0xff]
  %v1819 = vld [vmem:[%s2 + $0x68] sm:$0xff]
  %v1820 = vld [vmem:[%s2 + $0x70] sm:$0xff]
  %v1821 = vld [vmem:[%s2 + $0x78] sm:$0xff]
  %v1822 = vld [vmem:[%s2 + $0x80] sm:$0xff]
  %v1823 = vld [vmem:[%s2 + $0x88] sm:$0xff]
  %v1824 = vld [vmem:[%s2 + $0x90] sm:$0xff]
  %v1825 = vld [vmem:[%s2 + $0x98] sm:$0xff]
  %v1826 = vld [vmem:[%s2 + $0xa0] sm:$0xff]
  %v1827 = vld [vmem:[%s2 + $0xa8] sm:$0xff]
  %v1828 = vld [vmem:[%s2 + $0xb0] sm:$0xff]
  %v1829 = vld [vmem:[%s2 + $0xb8] sm:$0xff]
  %v1830 = vld [vmem:[%s2 + $0xc0] sm:$0xff]
  %v1831 = vld [vmem:[%s2 + $0xc8] sm:$0xff]
  %v1832 = vld [vmem:[%s2 + $0xd0] sm:$0xff]
  %v1833 = vld [vmem:[%s2 + $0xd8] sm:$0xff]
  %v1834 = vld [vmem:[%s2 + $0xe0] sm:$0xff]
  %v1835 = vld [vmem:[%s2 + $0xe8] sm:$0xff]
  %v1836 = vld [vmem:[%s2 + $0xf0] sm:$0xff]
  %v1837 = vld [vmem:[%s2 + $0xf8] sm:$0xff]
  %v1838 = vld [vmem:[%s6] sm:$0x3]
  %v1840 = vperm.slane %v1838, 0
  %v1841 = vperm.slane %v1838, 1
  %v1876 = vunpack.c.l.b16 %v1806
  %v1877 = vunpack.c.h.b16 %v1806
  %v1878 = vunpack.c.l.b16 %v1807
  %v1879 = vunpack.c.h.b16 %v1807
  %v1880 = vunpack.c.l.b16 %v1808
  %v1881 = vunpack.c.h.b16 %v1808
  %v1882 = vunpack.c.l.b16 %v1809
  %v1883 = vunpack.c.h.b16 %v1809
  %v1884 = vunpack.c.l.b16 %v1810
  %v1885 = vunpack.c.h.b16 %v1810
  %v1886 = vunpack.c.l.b16 %v1811
  %v1887 = vunpack.c.h.b16 %v1811
  %v1888 = vunpack.c.l.b16 %v1812
  %v1889 = vunpack.c.h.b16 %v1812
  %v1890 = vunpack.c.l.b16 %v1813
  %v1891 = vunpack.c.h.b16 %v1813
  %v1892 = vunpack.c.l.b16 %v1814
  %v1893 = vunpack.c.h.b16 %v1814
  %v1894 = vunpack.c.l.b16 %v1815
  %v1895 = vunpack.c.h.b16 %v1815
  %v1896 = vunpack.c.l.b16 %v1816
  %v1897 = vunpack.c.h.b16 %v1816
  %v1898 = vunpack.c.l.b16 %v1817
  %v1899 = vunpack.c.h.b16 %v1817
  %v1900 = vunpack.c.l.b16 %v1818
  %v1901 = vunpack.c.h.b16 %v1818
  %v1902 = vunpack.c.l.b16 %v1819
  %v1903 = vunpack.c.h.b16 %v1819
  %v1904 = vunpack.c.l.b16 %v1820
  %v1905 = vunpack.c.h.b16 %v1820
  %v1906 = vunpack.c.l.b16 %v1821
  %v1907 = vunpack.c.h.b16 %v1821
  %v1908 = vunpack.c.l.b16 %v1822
  %v1909 = vunpack.c.h.b16 %v1822
  %v1910 = vunpack.c.l.b16 %v1823
  %v1911 = vunpack.c.h.b16 %v1823
  %v1912 = vunpack.c.l.b16 %v1824
  %v1913 = vunpack.c.h.b16 %v1824
  %v1914 = vunpack.c.l.b16 %v1825
  %v1915 = vunpack.c.h.b16 %v1825
  %v1916 = vunpack.c.l.b16 %v1826
  %v1917 = vunpack.c.h.b16 %v1826
  %v1918 = vunpack.c.l.b16 %v1827
  %v1919 = vunpack.c.h.b16 %v1827
  %v1920 = vunpack.c.l.b16 %v1828
  %v1921 = vunpack.c.h.b16 %v1828
  %v1922 = vunpack.c.l.b16 %v1829
  %v1923 = vunpack.c.h.b16 %v1829
  %v1924 = vunpack.c.l.b16 %v1830
  %v1925 = vunpack.c.h.b16 %v1830
  %v1926 = vunpack.c.l.b16 %v1831
  %v1927 = vunpack.c.h.b16 %v1831
  %v1928 = vunpack.c.l.b16 %v1832
  %v1929 = vunpack.c.h.b16 %v1832
  %v1930 = vunpack.c.l.b16 %v1833
  %v1931 = vunpack.c.h.b16 %v1833
  %v1932 = vunpack.c.l.b16 %v1834
  %v1933 = vunpack.c.h.b16 %v1834
  %v1934 = vunpack.c.l.b16 %v1835
  %v1935 = vunpack.c.h.b16 %v1835
  %v1936 = vunpack.c.l.b16 %v1836
  %v1937 = vunpack.c.h.b16 %v1836
  %v1938 = vunpack.c.l.b16 %v1837
  %v1939 = vunpack.c.h.b16 %v1837
  %v1940 = vpack.c.b16 %v1878, %v1876
  %v1941 = vpack.c.b16 %v1879, %v1877
  %v1942 = vpack.c.b16 %v1882, %v1880
  %v1943 = vpack.c.b16 %v1883, %v1881
  %v1944 = vpack.c.b16 %v1886, %v1884
  %v1945 = vpack.c.b16 %v1887, %v1885
  %v1946 = vpack.c.b16 %v1890, %v1888
  %v1947 = vpack.c.b16 %v1891, %v1889
  %v1948 = vpack.c.b16 %v1894, %v1892
  %v1949 = vpack.c.b16 %v1895, %v1893
  %v1950 = vpack.c.b16 %v1898, %v1896
  %v1951 = vpack.c.b16 %v1899, %v1897
  %v1952 = vpack.c.b16 %v1902, %v1900
  %v1953 = vpack.c.b16 %v1903, %v1901
  %v1954 = vpack.c.b16 %v1906, %v1904
  %v1955 = vpack.c.b16 %v1907, %v1905
  %v1956 = vpack.c.b16 %v1910, %v1908
  %v1957 = vpack.c.b16 %v1911, %v1909
  %v1958 = vpack.c.b16 %v1914, %v1912
  %v1959 = vpack.c.b16 %v1915, %v1913
  %v1960 = vpack.c.b16 %v1918, %v1916
  %v1961 = vpack.c.b16 %v1919, %v1917
  %v1962 = vpack.c.b16 %v1922, %v1920
  %v1963 = vpack.c.b16 %v1923, %v1921
  %v1964 = vpack.c.b16 %v1926, %v1924
  %v1965 = vpack.c.b16 %v1927, %v1925
  %v1966 = vpack.c.b16 %v1930, %v1928
  %v1967 = vpack.c.b16 %v1931, %v1929
  %v1968 = vpack.c.b16 %v1934, %v1932
  %v1969 = vpack.c.b16 %v1935, %v1933
  %v1970 = vpack.c.b16 %v1938, %v1936
  %v1971 = vpack.c.b16 %v1939, %v1937
  %2004 = vmatpush.bf16.msra.mxu0 %v1954
  %2005 = vmatpush.bf16.msra.mxu0 %v1952
  %2006 = vmatpush.bf16.msra.mxu0 %v1950
  %2007 = vmatpush.bf16.msra.mxu0 %v1948
  %2008 = vmatpush.bf16.msra.mxu0 %v1946
  %2009 = vmatpush.bf16.msra.mxu0 %v1944
  %2010 = vmatpush.bf16.msra.mxu0 %v1942
  %2011 = vmatpush.bf16.msra.mxu0 %v1940
  %2012 = vmatmul.bf16.gmra.mxu0 %v1804
  %v2013 = vpop.f32.mrf.mxu0
  %v2014 = vadd.f32 %v1840, %v2013
  %v2015 = vpop.f32.mrf.mxu0
  %2016 = vdwg.mxu0
  %2017 = vmatpush.bf16.msra.mxu0 %v1970
  %2018 = vmatpush.bf16.msra.mxu0 %v1968
  %2019 = vmatpush.bf16.msra.mxu0 %v1966
  %2020 = vmatpush.bf16.msra.mxu0 %v1964
  %2021 = vmatpush.bf16.msra.mxu0 %v1962
  %2022 = vmatpush.bf16.msra.mxu0 %v1960
  %2023 = vmatpush.bf16.msra.mxu0 %v1958
  %2024 = vmatpush.bf16.msra.mxu0 %v1956
  %2025 = vmatmul.bf16.gmra.mxu0 %v1805
  %v2026 = vpop.f32.mrf.mxu0
  %v2027 = vadd.f32 %v2014, %v2026
  %v2028 = vpop.f32.mrf.mxu0
  %2029 = vdwg.mxu0
  %2030 = vmatpush.bf16.msra.mxu0 %v1955
  %2031 = vmatpush.bf16.msra.mxu0 %v1953
  %2032 = vmatpush.bf16.msra.mxu0 %v1951
  %2033 = vmatpush.bf16.msra.mxu0 %v1949
  %2034 = vmatpush.bf16.msra.mxu0 %v1947
  %2035 = vmatpush.bf16.msra.mxu0 %v1945
  %2036 = vmatpush.bf16.msra.mxu0 %v1943
  %2037 = vmatpush.bf16.msra.mxu0 %v1941
  %2038 = vmatmul.bf16.gmra.mxu0 %v1804
  %v2039 = vpop.f32.mrf.mxu0
  %v2040 = vadd.f32 %v1841, %v2039
  %v2041 = vpop.f32.mrf.mxu0
  %2042 = vdwg.mxu0
  %2043 = vmatpush.bf16.msra.mxu0 %v1971
  %2044 = vmatpush.bf16.msra.mxu0 %v1969
  %2045 = vmatpush.bf16.msra.mxu0 %v1967
  %2046 = vmatpush.bf16.msra.mxu0 %v1965
  %2047 = vmatpush.bf16.msra.mxu0 %v1963
  %2048 = vmatpush.bf16.msra.mxu0 %v1961
  %2049 = vmatpush.bf16.msra.mxu0 %v1959
  %2050 = vmatpush.bf16.msra.mxu0 %v1957
  %2051 = vmatmul.bf16.gmra.mxu0 %v1805
  %v2052 = vpop.f32.mrf.mxu0
  %v2053 = vadd.f32 %v2040, %v2052
  %v2054 = vpop.f32.mrf.mxu0
  %2055 = vdwg.mxu0
  %v2056 = vmax.f32 %v2027, 0.0
  %v2057 = vmax.f32 %v2053, 0.0
  %v2058 = vpack.c.bf16 %v2056, %v2056
  %v2059 = vpack.c.bf16 %v2057, %v2057
  %v2060 = vld [vmem:[%s3] sm:$0xff]
  %v2061 = vld [vmem:[%s3 + $0x8] sm:$0xff]
  %v2062 = vld [vmem:[%s3 + $0x10] sm:$0xff]
  %v2063 = vld [vmem:[%s3 + $0x18] sm:$0xff]
  %v2064 = vld [vmem:[%s3 + $0x20] sm:$0xff]
  %v2065 = vld [vmem:[%s3 + $0x28] sm:$0xff]
  %v2066 = vld [vmem:[%s3 + $0x30] sm:$0xff]
  %v2067 = vld [vmem:[%s3 + $0x38] sm:$0xff]
  %v2068 = vld [vmem:[%s3 + $0x40] sm:$0xff]
  %v2069 = vld [vmem:[%s3 + $0x48] sm:$0xff]
  %v2070 = vld [vmem:[%s3 + $0x50] sm:$0xff]
  %v2071 = vld [vmem:[%s3 + $0x58] sm:$0xff]
  %v2072 = vld [vmem:[%s3 + $0x60] sm:$0xff]
  %v2073 = vld [vmem:[%s3 + $0x68] sm:$0xff]
  %v2074 = vld [vmem:[%s3 + $0x70] sm:$0xff]
  %v2075 = vld [vmem:[%s3 + $0x78] sm:$0xff]
  %v2076 = vld [vmem:[%s3 + $0x80] sm:$0xff]
  %v2077 = vld [vmem:[%s3 + $0x88] sm:$0xff]
  %v2078 = vld [vmem:[%s3 + $0x90] sm:$0xff]
  %v2079 = vld [vmem:[%s3 + $0x98] sm:$0xff]
  %v2080 = vld [vmem:[%s3 + $0xa0] sm:$0xff]
  %v2081 = vld [vmem:[%s3 + $0xa8] sm:$0xff]
  %v2082 = vld [vmem:[%s3 + $0xb0] sm:$0xff]
  %v2083 = vld [vmem:[%s3 + $0xb8] sm:$0xff]
  %v2084 = vld [vmem:[%s3 + $0xc0] sm:$0xff]
  %v2085 = vld [vmem:[%s3 + $0xc8] sm:$0xff]
  %v2086 = vld [vmem:[%s3 + $0xd0] sm:$0xff]
  %v2087 = vld [vmem:[%s3 + $0xd8] sm:$0xff]
  %v2088 = vld [vmem:[%s3 + $0xe0] sm:$0xff]
  %v2089 = vld [vmem:[%s3 + $0xe8] sm:$0xff]
  %v2090 = vld [vmem:[%s3 + $0xf0] sm:$0xff]
  %v2091 = vld [vmem:[%s3 + $0xf8] sm:$0xff]
  %v2092 = vld [vmem:[%s7] sm:$0x3]
  %v2094 = vperm.slane %v2092, 0
  %v2095 = vperm.slane %v2092, 1
  %v2130 = vunpack.c.l.b16 %v2060
  %v2131 = vunpack.c.h.b16 %v2060
  %v2132 = vunpack.c.l.b16 %v2061
  %v2133 = vunpack.c.h.b16 %v2061
  %v2134 = vunpack.c.l.b16 %v2062
  %v2135 = vunpack.c.h.b16 %v2062
  %v2136 = vunpack.c.l.b16 %v2063
  %v2137 = vunpack.c.h.b16 %v2063
  %v2138 = vunpack.c.l.b16 %v2064
  %v2139 = vunpack.c.h.b16 %v2064
  %v2140 = vunpack.c.l.b16 %v2065
  %v2141 = vunpack.c.h.b16 %v2065
  %v2142 = vunpack.c.l.b16 %v2066
  %v2143 = vunpack.c.h.b16 %v2066
  %v2144 = vunpack.c.l.b16 %v2067
  %v2145 = vunpack.c.h.b16 %v2067
  %v2146 = vunpack.c.l.b16 %v2068
  %v2147 = vunpack.c.h.b16 %v2068
  %v2148 = vunpack.c.l.b16 %v2069
  %v2149 = vunpack.c.h.b16 %v2069
  %v2150 = vunpack.c.l.b16 %v2070
  %v2151 = vunpack.c.h.b16 %v2070
  %v2152 = vunpack.c.l.b16 %v2071
  %v2153 = vunpack.c.h.b16 %v2071
  %v2154 = vunpack.c.l.b16 %v2072
  %v2155 = vunpack.c.h.b16 %v2072
  %v2156 = vunpack.c.l.b16 %v2073
  %v2157 = vunpack.c.h.b16 %v2073
  %v2158 = vunpack.c.l.b16 %v2074
  %v2159 = vunpack.c.h.b16 %v2074
  %v2160 = vunpack.c.l.b16 %v2075
  %v2161 = vunpack.c.h.b16 %v2075
  %v2162 = vunpack.c.l.b16 %v2076
  %v2163 = vunpack.c.h.b16 %v2076
  %v2164 = vunpack.c.l.b16 %v2077
  %v2165 = vunpack.c.h.b16 %v2077
  %v2166 = vunpack.c.l.b16 %v2078
  %v2167 = vunpack.c.h.b16 %v2078
  %v2168 = vunpack.c.l.b16 %v2079
  %v2169 = vunpack.c.h.b16 %v2079
  %v2170 = vunpack.c.l.b16 %v2080
  %v2171 = vunpack.c.h.b16 %v2080
  %v2172 = vunpack.c.l.b16 %v2081
  %v2173 = vunpack.c.h.b16 %v2081
  %v2174 = vunpack.c.l.b16 %v2082
  %v2175 = vunpack.c.h.b16 %v2082
  %v2176 = vunpack.c.l.b16 %v2083
  %v2177 = vunpack.c.h.b16 %v2083
  %v2178 = vunpack.c.l.b16 %v2084
  %v2179 = vunpack.c.h.b16 %v2084
  %v2180 = vunpack.c.l.b16 %v2085
  %v2181 = vunpack.c.h.b16 %v2085
  %v2182 = vunpack.c.l.b16 %v2086
  %v2183 = vunpack.c.h.b16 %v2086
  %v2184 = vunpack.c.l.b16 %v2087
  %v2185 = vunpack.c.h.b16 %v2087
  %v2186 = vunpack.c.l.b16 %v2088
  %v2187 = vunpack.c.h.b16 %v2088
  %v2188 = vunpack.c.l.b16 %v2089
  %v2189 = vunpack.c.h.b16 %v2089
  %v2190 = vunpack.c.l.b16 %v2090
  %v2191 = vunpack.c.h.b16 %v2090
  %v2192 = vunpack.c.l.b16 %v2091
  %v2193 = vunpack.c.h.b16 %v2091
  %v2194 = vpack.c.b16 %v2132, %v2130
  %v2195 = vpack.c.b16 %v2133, %v2131
  %v2196 = vpack.c.b16 %v2136, %v2134
  %v2197 = vpack.c.b16 %v2137, %v2135
  %v2198 = vpack.c.b16 %v2140, %v2138
  %v2199 = vpack.c.b16 %v2141, %v2139
  %v2200 = vpack.c.b16 %v2144, %v2142
  %v2201 = vpack.c.b16 %v2145, %v2143
  %v2202 = vpack.c.b16 %v2148, %v2146
  %v2203 = vpack.c.b16 %v2149, %v2147
  %v2204 = vpack.c.b16 %v2152, %v2150
  %v2205 = vpack.c.b16 %v2153, %v2151
  %v2206 = vpack.c.b16 %v2156, %v2154
  %v2207 = vpack.c.b16 %v2157, %v2155
  %v2208 = vpack.c.b16 %v2160, %v2158
  %v2209 = vpack.c.b16 %v2161, %v2159
  %v2210 = vpack.c.b16 %v2164, %v2162
  %v2211 = vpack.c.b16 %v2165, %v2163
  %v2212 = vpack.c.b16 %v2168, %v2166
  %v2213 = vpack.c.b16 %v2169, %v2167
  %v2214 = vpack.c.b16 %v2172, %v2170
  %v2215 = vpack.c.b16 %v2173, %v2171
  %v2216 = vpack.c.b16 %v2176, %v2174
  %v2217 = vpack.c.b16 %v2177, %v2175
  %v2218 = vpack.c.b16 %v2180, %v2178
  %v2219 = vpack.c.b16 %v2181, %v2179
  %v2220 = vpack.c.b16 %v2184, %v2182
  %v2221 = vpack.c.b16 %v2185, %v2183
  %v2222 = vpack.c.b16 %v2188, %v2186
  %v2223 = vpack.c.b16 %v2189, %v2187
  %v2224 = vpack.c.b16 %v2192, %v2190
  %v2225 = vpack.c.b16 %v2193, %v2191
  %2258 = vmatpush.bf16.msra.mxu0 %v2208
  %2259 = vmatpush.bf16.msra.mxu0 %v2206
  %2260 = vmatpush.bf16.msra.mxu0 %v2204
  %2261 = vmatpush.bf16.msra.mxu0 %v2202
  %2262 = vmatpush.bf16.msra.mxu0 %v2200
  %2263 = vmatpush.bf16.msra.mxu0 %v2198
  %2264 = vmatpush.bf16.msra.mxu0 %v2196
  %2265 = vmatpush.bf16.msra.mxu0 %v2194
  %2266 = vmatmul.bf16.gmra.mxu0 %v2058
  %v2267 = vpop.f32.mrf.mxu0
  %v2268 = vadd.f32 %v2094, %v2267
  %v2269 = vpop.f32.mrf.mxu0
  %2270 = vdwg.mxu0
  %2271 = vmatpush.bf16.msra.mxu0 %v2224
  %2272 = vmatpush.bf16.msra.mxu0 %v2222
  %2273 = vmatpush.bf16.msra.mxu0 %v2220
  %2274 = vmatpush.bf16.msra.mxu0 %v2218
  %2275 = vmatpush.bf16.msra.mxu0 %v2216
  %2276 = vmatpush.bf16.msra.mxu0 %v2214
  %2277 = vmatpush.bf16.msra.mxu0 %v2212
  %2278 = vmatpush.bf16.msra.mxu0 %v2210
  %2279 = vmatmul.bf16.gmra.mxu0 %v2059
  %v2280 = vpop.f32.mrf.mxu0
  %v2281 = vadd.f32 %v2268, %v2280
  %v2282 = vpop.f32.mrf.mxu0
  %2283 = vdwg.mxu0
  %2284 = vmatpush.bf16.msra.mxu0 %v2209
  %2285 = vmatpush.bf16.msra.mxu0 %v2207
  %2286 = vmatpush.bf16.msra.mxu0 %v2205
  %2287 = vmatpush.bf16.msra.mxu0 %v2203
  %2288 = vmatpush.bf16.msra.mxu0 %v2201
  %2289 = vmatpush.bf16.msra.mxu0 %v2199
  %2290 = vmatpush.bf16.msra.mxu0 %v2197
  %2291 = vmatpush.bf16.msra.mxu0 %v2195
  %2292 = vmatmul.bf16.gmra.mxu0 %v2058
  %v2293 = vpop.f32.mrf.mxu0
  %v2294 = vadd.f32 %v2095, %v2293
  %v2295 = vpop.f32.mrf.mxu0
  %2296 = vdwg.mxu0
  %2297 = vmatpush.bf16.msra.mxu0 %v2225
  %2298 = vmatpush.bf16.msra.mxu0 %v2223
  %2299 = vmatpush.bf16.msra.mxu0 %v2221
  %2300 = vmatpush.bf16.msra.mxu0 %v2219
  %2301 = vmatpush.bf16.msra.mxu0 %v2217
  %2302 = vmatpush.bf16.msra.mxu0 %v2215
  %2303 = vmatpush.bf16.msra.mxu0 %v2213
  %2304 = vmatpush.bf16.msra.mxu0 %v2211
  %2305 = vmatmul.bf16.gmra.mxu0 %v2059
  %v2306 = vpop.f32.mrf.mxu0
  %v2307 = vadd.f32 %v2294, %v2306
  %v2308 = vpop.f32.mrf.mxu0
  %2309 = vdwg.mxu0
  %v2310 = vmax.f32 %v2281, 0.0
  %v2311 = vmax.f32 %v2307, 0.0
  %v2312 = vpack.c.bf16 %v2310, %v2310
  %v2313 = vpack.c.bf16 %v2311, %v2311
  %v2314 = vld [vmem:[%s4] sm:$0xf]
  %v2315 = vld [vmem:[%s4 + $0x4] sm:$0xf]
  %v2316 = vld [vmem:[%s4 + $0x8] sm:$0xf]
  %v2317 = vld [vmem:[%s4 + $0xc] sm:$0xf]
  %v2318 = vld [vmem:[%s4 + $0x10] sm:$0xf]
  %v2319 = vld [vmem:[%s4 + $0x14] sm:$0xf]
  %v2320 = vld [vmem:[%s4 + $0x18] sm:$0xf]
  %v2321 = vld [vmem:[%s4 + $0x1c] sm:$0xf]
  %v2322 = vld [vmem:[%s4 + $0x20] sm:$0xf]
  %v2323 = vld [vmem:[%s4 + $0x24] sm:$0xf]
  %v2324 = vld [vmem:[%s4 + $0x28] sm:$0xf]
  %v2325 = vld [vmem:[%s4 + $0x2c] sm:$0xf]
  %v2326 = vld [vmem:[%s4 + $0x30] sm:$0xf]
  %v2327 = vld [vmem:[%s4 + $0x34] sm:$0xf]
  %v2328 = vld [vmem:[%s4 + $0x38] sm:$0xf]
  %v2329 = vld [vmem:[%s4 + $0x3c] sm:$0xf]
  %v2330 = vld [vmem:[%s4 + $0x40] sm:$0xf]
  %v2331 = vld [vmem:[%s4 + $0x44] sm:$0xf]
  %v2332 = vld [vmem:[%s4 + $0x48] sm:$0xf]
  %v2333 = vld [vmem:[%s4 + $0x4c] sm:$0xf]
  %v2334 = vld [vmem:[%s4 + $0x50] sm:$0xf]
  %v2335 = vld [vmem:[%s4 + $0x54] sm:$0xf]
  %v2336 = vld [vmem:[%s4 + $0x58] sm:$0xf]
  %v2337 = vld [vmem:[%s4 + $0x5c] sm:$0xf]
  %v2338 = vld [vmem:[%s4 + $0x60] sm:$0xf]
  %v2339 = vld [vmem:[%s4 + $0x64] sm:$0xf]
  %v2340 = vld [vmem:[%s4 + $0x68] sm:$0xf]
  %v2341 = vld [vmem:[%s4 + $0x6c] sm:$0xf]
  %v2342 = vld [vmem:[%s4 + $0x70] sm:$0xf]
  %v2343 = vld [vmem:[%s4 + $0x74] sm:$0xf]
  %v2344 = vld [vmem:[%s4 + $0x78] sm:$0xf]
  %v2345 = vld [vmem:[%s4 + $0x7c] sm:$0xf]
  %v2346 = vld [vmem:[%s8] sm:$0x1]
  %v2348 = vperm.slane %v2346, 0
  %v2382 = vunpack.c.l.b16 %v2314
  %v2383 = vunpack.c.l.b16 %v2315
  %v2384 = vunpack.c.l.b16 %v2316
  %v2385 = vunpack.c.l.b16 %v2317
  %v2386 = vunpack.c.l.b16 %v2318
  %v2387 = vunpack.c.l.b16 %v2319
  %v2388 = vunpack.c.l.b16 %v2320
  %v2389 = vunpack.c.l.b16 %v2321
  %v2390 = vunpack.c.l.b16 %v2322
  %v2391 = vunpack.c.l.b16 %v2323
  %v2392 = vunpack.c.l.b16 %v2324
  %v2393 = vunpack.c.l.b16 %v2325
  %v2394 = vunpack.c.l.b16 %v2326
  %v2395 = vunpack.c.l.b16 %v2327
  %v2396 = vunpack.c.l.b16 %v2328
  %v2397 = vunpack.c.l.b16 %v2329
  %v2398 = vunpack.c.l.b16 %v2330
  %v2399 = vunpack.c.l.b16 %v2331
  %v2400 = vunpack.c.l.b16 %v2332
  %v2401 = vunpack.c.l.b16 %v2333
  %v2402 = vunpack.c.l.b16 %v2334
  %v2403 = vunpack.c.l.b16 %v2335
  %v2404 = vunpack.c.l.b16 %v2336
  %v2405 = vunpack.c.l.b16 %v2337
  %v2406 = vunpack.c.l.b16 %v2338
  %v2407 = vunpack.c.l.b16 %v2339
  %v2408 = vunpack.c.l.b16 %v2340
  %v2409 = vunpack.c.l.b16 %v2341
  %v2410 = vunpack.c.l.b16 %v2342
  %v2411 = vunpack.c.l.b16 %v2343
  %v2412 = vunpack.c.l.b16 %v2344
  %v2413 = vunpack.c.l.b16 %v2345
  %v2414 = vpack.c.b16 %v2383, %v2382
  %v2415 = vpack.c.b16 %v2385, %v2384
  %v2416 = vpack.c.b16 %v2387, %v2386
  %v2417 = vpack.c.b16 %v2389, %v2388
  %v2418 = vpack.c.b16 %v2391, %v2390
  %v2419 = vpack.c.b16 %v2393, %v2392
  %v2420 = vpack.c.b16 %v2395, %v2394
  %v2421 = vpack.c.b16 %v2397, %v2396
  %v2422 = vpack.c.b16 %v2399, %v2398
  %v2423 = vpack.c.b16 %v2401, %v2400
  %v2424 = vpack.c.b16 %v2403, %v2402
  %v2425 = vpack.c.b16 %v2405, %v2404
  %v2426 = vpack.c.b16 %v2407, %v2406
  %v2427 = vpack.c.b16 %v2409, %v2408
  %v2428 = vpack.c.b16 %v2411, %v2410
  %v2429 = vpack.c.b16 %v2413, %v2412
  %2446 = vmatpush.bf16.msra.mxu0 %v2421
  %2447 = vmatpush.bf16.msra.mxu0 %v2420
  %2448 = vmatpush.bf16.msra.mxu0 %v2419
  %2449 = vmatpush.bf16.msra.mxu0 %v2418
  %2450 = vmatpush.bf16.msra.mxu0 %v2417
  %2451 = vmatpush.bf16.msra.mxu0 %v2416
  %2452 = vmatpush.bf16.msra.mxu0 %v2415
  %2453 = vmatpush.bf16.msra.mxu0 %v2414
  %2454 = vmatmul.bf16.gmra.mxu0 %v2312
  %v2455 = vpop.f32.mrf.mxu0
  %v2456 = vadd.f32 %v2348, %v2455
  %v2457 = vpop.f32.mrf.mxu0
  %2458 = vdwg.mxu0
  %2459 = vmatpush.bf16.msra.mxu0 %v2429
  %2460 = vmatpush.bf16.msra.mxu0 %v2428
  %2461 = vmatpush.bf16.msra.mxu0 %v2427
  %2462 = vmatpush.bf16.msra.mxu0 %v2426
  %2463 = vmatpush.bf16.msra.mxu0 %v2425
  %2464 = vmatpush.bf16.msra.mxu0 %v2424
  %2465 = vmatpush.bf16.msra.mxu0 %v2423
  %2466 = vmatpush.bf16.msra.mxu0 %v2422
  %2467 = vmatmul.bf16.gmra.mxu0 %v2313
  %v2468 = vpop.f32.mrf.mxu0
  %v2469 = vadd.f32 %v2456, %v2468
  %v2470 = vpop.f32.mrf.mxu0
  %2471 = vdwg.mxu0
  %v2472 = vmax.f32 %v2469, 0.0
  %v2473 = vpack.c.bf16 %v2472, %v2472
  %2474 = vst [vmem:[%s9] sm:$0xf] %v2473
  // Predicated region
  $region38: #{nin_forward.5} parent=0 // pred_check
    _
  $region39: #{nin_forward.5} parent=0 // pred_check_branch
    %2476 = sbr.rel (0) target = $region41
  $region40: #{nin_forward.5} parent=0 // pred_region
    _
  $region41: #{nin_forward.5} parent=0 // pred_fallthru
    _
  // Predicated region
  $region42: #{nin_forward.5} parent=0 // pred_check
    _
  $region43: #{nin_forward.5} parent=0 // pred_check_branch
    %2478 = sbr.rel (0) target = $region45
  $region44: #{nin_forward.5} parent=0 // pred_region
    _
  $region45: #{nin_forward.5} parent=0 // pred_fallthru
    _

</llo_original>
